<compile_context>
chip_gen: v6e
topology: v6e:2x2x1
jax: 0.10.0
libtpu: 0.0.40
codegen_flags: <defaults>
</compile_context>

<pallas_src>
import jax
import jax.numpy as jnp
from jax import lax
from jax.experimental import pallas as pl
from jax.experimental.pallas import tpu as pltpu

FEATURE_DIM = 128
HEADS = 4          # static (was causing the tracer error when kept in params)
DIM_HEAD = 32


def _round_up(x, m):
    return (x + m - 1) // m * m


# ---------------------------------------------------------------------------
# Pallas kernels
# ---------------------------------------------------------------------------
def _matmul_bias_kernel(a_ref, b_ref, bias_ref, o_ref):
    o_ref[...] = (jnp.dot(a_ref[...], b_ref[...],
                          preferred_element_type=jnp.float32)
                  + bias_ref[...])


def pallas_matmul(a, b, bias=None):
    """(M,K)@(K,N)+bias -> (M,N) f32.  bf16 MXU operands, f32 accumulation.
    Single grid step: whole problem (<2 MiB) fits VMEM on v5e/v6e/v7x."""
    M, K = a.shape
    K2, N = b.shape
    assert K == K2
    Mp = _round_up(M, 16)
    Kp = _round_up(K, 128)
    Np = _round_up(N, 128)
    a_p = jnp.pad(a.astype(jnp.bfloat16), ((0, Mp - M), (0, Kp - K)))
    b_p = jnp.pad(b.astype(jnp.bfloat16), ((0, Kp - K), (0, Np - N)))
    if bias is None:
        bias = jnp.zeros((N,), jnp.float32)
    bias_p = jnp.pad(bias.astype(jnp.float32), (0, Np - N)).reshape(1, Np)
    out = pl.pallas_call(
        _matmul_bias_kernel,
        out_shape=jax.ShapeDtypeStruct((Mp, Np), jnp.float32),
        grid=(1,),
        in_specs=[
            pl.BlockSpec((Mp, Kp), lambda i: (0, 0)),
            pl.BlockSpec((Kp, Np), lambda i: (0, 0)),
            pl.BlockSpec((1, Np), lambda i: (0, 0)),
        ],
        out_specs=pl.BlockSpec((Mp, Np), lambda i: (0, 0)),
        compiler_params=pltpu.CompilerParams(
            dimension_semantics=("parallel",)),
    )(a_p, b_p, bias_p)
    return out[:M, :N]


def _layernorm_kernel(x_ref, w_ref, o_ref):
    x = x_ref[...]
    mean = jnp.mean(x, axis=-1, keepdims=True)
    var = jnp.maximum(jnp.mean(x * x, axis=-1, keepdims=True) - mean * mean, 0.0)
    o_ref[...] = x * lax.rsqrt(var + 1e-5) * w_ref[...]


def pallas_layernorm_biasfree(x2d, weight):
    """Bias-free LayerNorm over the last (channel) dim; one grid step."""
    M, C = x2d.shape
    Mp = _round_up(M, 8)
    x_p = jnp.pad(x2d.astype(jnp.float32), ((0, Mp - M), (0, 0)))
    out = pl.pallas_call(
        _layernorm_kernel,
        out_shape=jax.ShapeDtypeStruct((Mp, C), jnp.float32),
        grid=(1,),
        in_specs=[
            pl.BlockSpec((Mp, C), lambda i: (0, 0)),
            pl.BlockSpec((1, C), lambda i: (0, 0)),
        ],
        out_specs=pl.BlockSpec((Mp, C), lambda i: (0, 0)),
        compiler_params=pltpu.CompilerParams(
            dimension_semantics=("parallel",)),
    )(x_p, weight.reshape(1, C).astype(jnp.float32))
    return out[:M]


def _spectral_attn_kernel(q_ref, k_ref, v_ref, r_ref, o_ref):
    q = q_ref[...]                      # (BH, d, Lp) f32
    k = k_ref[...]
    v = v_ref[...]
    r = r_ref[...]                      # (BH, 1, 1) per-(batch,head) rescale
    qn = q * lax.rsqrt(jnp.sum(q * q, axis=-1, keepdims=True) + 1e-12)
    kn = k * lax.rsqrt(jnp.sum(k * k, axis=-1, keepdims=True) + 1e-12)
    logits = jnp.einsum('bdl,bel->bde',
                        qn.astype(jnp.bfloat16), kn.astype(jnp.bfloat16),
                        preferred_element_type=jnp.float32) * r
    m = jnp.max(logits, axis=-1, keepdims=True)
    p = jnp.exp(logits - m)
    attn = p * pl.reciprocal(jnp.sum(p, axis=-1, keepdims=True), approx=True)
    o_ref[...] = jnp.einsum('bde,bel->bdl',
                            attn.astype(jnp.bfloat16), v.astype(jnp.bfloat16),
                            preferred_element_type=jnp.float32)


def pallas_spectral_attention(q, k, v, rescale):
    """Channel-wise (spectral) MHSA core.  q,k,v: (B*heads, d, L).
    All (batch,head) slabs processed in one grid step (footprint ~0.5 MiB)."""
    BH, d, L = q.shape
    Lp = _round_up(L, 128)
    pad = ((0, 0), (0, 0), (0, Lp - L))
    q_p = jnp.pad(q.astype(jnp.float32), pad)
    k_p = jnp.pad(k.astype(jnp.float32), pad)
    v_p = jnp.pad(v.astype(jnp.float32), pad)
    r = rescale.astype(jnp.float32).reshape(BH, 1, 1)
    out = pl.pallas_call(
        _spectral_attn_kernel,
        out_shape=jax.ShapeDtypeStruct((BH, d, Lp), jnp.float32),
        grid=(1,),
        in_specs=[
            pl.BlockSpec((BH, d, Lp), lambda i: (0, 0, 0)),
            pl.BlockSpec((BH, d, Lp), lambda i: (0, 0, 0)),
            pl.BlockSpec((BH, d, Lp), lambda i: (0, 0, 0)),
            pl.BlockSpec((BH, 1, 1), lambda i: (0, 0, 0)),
        ],
        out_specs=pl.BlockSpec((BH, d, Lp), lambda i: (0, 0, 0)),
        compiler_params=pltpu.CompilerParams(
            dimension_semantics=("parallel",)),
    )(q_p, k_p, v_p, r)
    return out[:, :, :L]


# ---------------------------------------------------------------------------
# Conv / norm / resize helpers
# ---------------------------------------------------------------------------
def conv1x1_2d(x, w):
    """1x1 conv (B,Cin,H,W) with weight (O,Cin,1,1) -> reshape + Pallas matmul."""
    B, Cin, H, W = x.shape
    O = w.shape[0]
    xt = x.transpose(0, 2, 3, 1).reshape(B * H * W, Cin)
    out = pallas_matmul(xt, w.reshape(O, Cin).T)
    return out.reshape(B, H, W, O).transpose(0, 3, 1, 2)


def conv2d_3x3(x, w, padding=1):
    """Dense 3x3 conv via im2col + Pallas matmul (used for conv3, K=1152)."""
    B, Cin, H, W = x.shape
    O, _, kh, kw = w.shape
    patches = lax.conv_general_dilated_patches(
        x, (kh, kw), (1, 1), [(padding, padding)] * 2,
        dimension_numbers=("NCHW", "OIHW", "NCHW"))
    Ho, Wo = patches.shape[2], patches.shape[3]
    pm = patches.transpose(0, 2, 3, 1).reshape(B * Ho * Wo, Cin * kh * kw)
    out = pallas_matmul(pm, w.reshape(O, -1).T)
    return out.reshape(B, Ho, Wo, O).transpose(0, 3, 1, 2)


def conv3d_small(x, w, padding=1):
    """Tiny 3x3x3 convs (Cin=1, O=1): negligible FLOPs, kept off the MXU path."""
    return lax.conv_general_dilated(
        x, w, (1, 1, 1), [(padding, padding)] * 3,
        dimension_numbers=("NCDHW", "OIDHW", "NCDHW"))


def depthwise_conv3x3(x, w):
    # negligible-compute grouped conv (pos-emb / GDFN dwconv); default precision
    return lax.conv_general_dilated(
        x, w, (1, 1), [(1, 1), (1, 1)],
        dimension_numbers=("NCHW", "OIHW", "NCHW"),
        feature_group_count=x.shape[1])


def batchnorm(x, bn):
    """Inference-mode BatchNorm (channel axis = 1) for 4-D or 5-D tensors."""
    shape = (1, -1) + (1,) * (x.ndim - 2)
    return ((x - bn["mean"].reshape(shape))
            * lax.rsqrt(bn["var"].reshape(shape) + 1e-5)
            * bn["gamma"].reshape(shape) + bn["beta"].reshape(shape))


def avg_pool_1x2x2(x):
    """F.avg_pool3d(kernel=(1,2,2), stride=(1,2,2)) on (B,1,D,H,W)."""
    B, C, D, H, W = x.shape
    Hc, Wc = (H // 2) * 2, (W // 2) * 2
    xv = x[:, :, :, :Hc, :Wc].reshape(B, C, D, H // 2, 2, W // 2, 2)
    return xv.mean(axis=(4, 6))


def resize_bilinear_align_corners(x, out_h, out_w):
    """F.interpolate(..., mode='bilinear', align_corners=True) on NCHW."""
    B, C, H, W = x.shape
    ys = jnp.linspace(0.0, H - 1.0, out_h)
    xs = jnp.linspace(0.0, W - 1.0, out_w)
    y0 = jnp.floor(ys).astype(jnp.int32)
    x0 = jnp.floor(xs).astype(jnp.int32)
    y1 = jnp.minimum(y0 + 1, H - 1)
    x1 = jnp.minimum(x0 + 1, W - 1)
    wy = (ys - y0.astype(jnp.float32))[None, None, :, None]
    wx = (xs - x0.astype(jnp.float32))[None, None, None, :]
    g = lambda yi, xi: x[:, :, yi, :][:, :, :, xi]
    top = g(y0, x0) * (1.0 - wx) + g(y0, x1) * wx
    bot = g(y1, x0) * (1.0 - wx) + g(y1, x1) * wx
    return top * (1.0 - wy) + bot * wy


def re_4d(x):
    return x.reshape(x.shape[0], x.shape[1] * x.shape[2], x.shape[3], x.shape[4])


# ---------------------------------------------------------------------------
# Model components
# ---------------------------------------------------------------------------
def layer_norm_biasfree(x, weight):
    B, C, H, W = x.shape
    xt = x.transpose(0, 2, 3, 1).reshape(B * H * W, C)
    y = pallas_layernorm_biasfree(xt, weight)
    return y.reshape(B, H, W, C).transpose(0, 3, 1, 2)


def ms_msa(x, p):
    """MST-style spectral multi-head self-attention; x: (B, C, H, W)."""
    B, C, H, W = x.shape
    heads, d = HEADS, DIM_HEAD
    L = H * W
    xt = x.transpose(0, 2, 3, 1).reshape(B * L, C)

    # fused QKV projection: one matmul, 128 -> 3*128
    qkv = pallas_matmul(xt, p["wqkv"])
    q, k, v = jnp.split(qkv, 3, axis=-1)

    def to_heads(t):
        return (t.reshape(B, L, heads, d).transpose(0, 2, 3, 1)
                 .reshape(B * heads, d, L))

    rescale = jnp.tile(p["rescale"], B)            # (B*heads,), b-major
    oh = pallas_spectral_attention(to_heads(q), to_heads(k), to_heads(v), rescale)
    o = (oh.reshape(B, heads, d, L).transpose(0, 3, 1, 2)
           .reshape(B * L, heads * d))
    out = pallas_matmul(o, p["wproj"], bias=p["bproj"])   # bias fused in kernel
    out = out.reshape(B, H, W, C).transpose(0, 3, 1, 2)
    # positional embedding branch on V
    v_img = v.reshape(B, H, W, C).transpose(0, 3, 1, 2)
    pos = depthwise_conv3x3(v_img, p["pe_w1"])
    pos = jax.nn.gelu(pos, approximate=False)
    pos = depthwise_conv3x3(pos, p["pe_w2"])
    return out + pos


def feed_forward(x, p):
    """Restormer gated-dconv feed-forward; x: (B, C, H, W)."""
    B, C, H, W = x.shape
    hidden = p["w_out"].shape[0]
    xt = x.transpose(0, 2, 3, 1).reshape(B * H * W, C)
    h = pallas_matmul(xt, p["w_in"])                        # C -> 2*hidden
    h = h.reshape(B, H, W, 2 * hidden).transpose(0, 3, 1, 2)
    h = depthwise_conv3x3(h, p["w_dw"])
    x1, x2 = jnp.split(h, 2, axis=1)
    g = jax.nn.gelu(x1, approximate=False) * x2
    gt = g.transpose(0, 2, 3, 1).reshape(B * H * W, hidden)
    out = pallas_matmul(gt, p["w_out"])
    return out.reshape(B, H, W, C).transpose(0, 3, 1, 2)


def transformer_block(x, p):
    x = layer_norm_biasfree(ms_msa(x, p["attn"]) + x, p["norm1_w"])
    y = x
    x = feed_forward(x, p["ffn"])
    return layer_norm_biasfree(y + x, p["norm2_w"])


def res_mapping(x, p):
    x5 = x[:, None]                                    # unsqueeze(1): (B,1,C,H,W)
    out = jax.nn.relu(batchnorm(conv3d_small(x5, p["c1_w"]), p["c1_bn"]))
    out = batchnorm(conv3d_small(out, p["c2_w"]), p["c2_bn"])
    return x + out[:, 0]


def main_forward(x_in, P):
    # x_in: (B, 100, H, W) with H == W odd so the bilinear-upsample branches
    # line up with the transformer branches (2*(H//2)+1 == H), exactly as the
    # PyTorch graph's torch.add calls require.
    x = jax.nn.relu(batchnorm(conv1x1_2d(x_in, P["conv2d0_w"]), P["conv2d0_bn"]))
    x = res_mapping(x, P["resmapping"])

    x_L1_tmp = avg_pool_1x2x2(x[:, None])
    x_L1 = jax.nn.relu(batchnorm(conv3d_small(x_L1_tmp, P["conv0_w"]),
                                 P["conv0_bn"]))

    x_H2_tmp = transformer_block(x, P["TB_H2"])
    x_H2_tmp = transformer_block(x_H2_tmp, P["TB_H2_1"])

    x_L2 = transformer_block(re_4d(x_L1), P["TB_L2"])
    x_L2 = transformer_block(x_L2, P["TB_L2_1"])

    s2 = 2 * x_L2.shape[2] + 1
    x_L2_H2_tmp = resize_bilinear_align_corners(x_L2, s2, s2)
    x_L2_H2 = jax.nn.relu(batchnorm(conv3d_small(x_L2_H2_tmp[:, None],
                                                 P["conv1_w"]), P["conv1_bn"]))
    x_H2 = x_H2_tmp[:, None] + x_L2_H2

    x_H3_tmp = transformer_block(re_4d(x_H2), P["TB_H3"])
    x_H3_tmp = transformer_block(x_H3_tmp, P["TB_H3_1"])

    x_L3 = transformer_block(x_L2, P["TB_L3"])
    x_L3 = transformer_block(x_L3, P["TB_L3_1"])

    s3 = 2 * x_L3.shape[2] + 1
    x_L3_H3_tmp = resize_bilinear_align_corners(x_L3, s3, s3)
    x_L3_H3 = jax.nn.relu(batchnorm(conv3d_small(x_L3_H3_tmp[:, None],
                                                 P["conv2_w"]), P["conv2_bn"]))
    x_H3 = x_H3_tmp[:, None] + x_L3_H3

    Z = jax.nn.relu(batchnorm(conv2d_3x3(re_4d(x_H3), P["conv3_w"]),
                              P["conv3_bn"]))
    # adaptive_avg_pool2d -> (1,1) then flatten
    return jnp.mean(Z, axis=(2, 3))                         # (B, FEATURE_DIM)


# ---------------------------------------------------------------------------
# Deterministic parameter construction (shapes from Main.__init__)
# ---------------------------------------------------------------------------
def _normal(key, shape, scale=0.05):
    return scale * jax.random.normal(key, shape, dtype=jnp.float32)


def init_bn(c):
    return dict(gamma=jnp.ones((c,), jnp.float32),
                beta=jnp.zeros((c,), jnp.float32),
                mean=jnp.zeros((c,), jnp.float32),
                var=jnp.ones((c,), jnp.float32))


def init_transformer_block(key, dim=128, heads=HEADS, dim_head=DIM_HEAD,
                           ffn_factor=1):
    ks = jax.random.split(key, 7)
    hidden = dim * ffn_factor
    attn = dict(
        wqkv=_normal(ks[0], (dim, 3 * heads * dim_head)),   # fused [wq|wk|wv]
        rescale=jnp.ones((heads,), jnp.float32),
        wproj=_normal(ks[1], (heads * dim_head, dim)),
        bproj=jnp.zeros((dim,), jnp.float32),
        pe_w1=_normal(ks[2], (dim, 1, 3, 3)),
        pe_w2=_normal(ks[3], (dim, 1, 3, 3)),
    )
    ffn = dict(
        w_in=_normal(ks[4], (dim, 2 * hidden)),
        w_dw=_normal(ks[5], (2 * hidden, 1, 3, 3)),
        w_out=_normal(ks[6], (hidden, dim)),
    )
    return dict(attn=attn, ffn=ffn,
                norm1_w=jnp.ones((dim,), jnp.float32),
                norm2_w=jnp.ones((dim,), jnp.float32))


def init_main_params(seed=42, in_channel=1, out_channel1=1):
    ks = jax.random.split(jax.random.PRNGKey(seed), 16)
    return dict(
        conv2d0_w=_normal(ks[0], (FEATURE_DIM, 100, 1, 1)),
        conv2d0_bn=init_bn(FEATURE_DIM),
        resmapping=dict(
            c1_w=_normal(ks[1], (1, 1, 3, 3, 3)), c1_bn=init_bn(1),
            c2_w=_normal(ks[2], (1, 1, 3, 3, 3)), c2_bn=init_bn(1),
        ),
        conv0_w=_normal(ks[3], (out_channel1, in_channel, 3, 3, 3)),
        conv0_bn=init_bn(out_channel1),
        conv1_w=_normal(ks[4], (out_channel1, in_channel, 3, 3, 3)),
        conv1_bn=init_bn(out_channel1),
        conv2_w=_normal(ks[5], (out_channel1, in_channel, 3, 3, 3)),
        conv2_bn=init_bn(out_channel1),
        conv3_w=_normal(ks[6], (FEATURE_DIM, FEATURE_DIM, 3, 3)),
        conv3_bn=init_bn(FEATURE_DIM),
        TB_H2=init_transformer_block(ks[7]),
        TB_L2=init_transformer_block(ks[8]),
        TB_H3=init_transformer_block(ks[9]),
        TB_L3=init_transformer_block(ks[10]),
        TB_H2_1=init_transformer_block(ks[11]),
        TB_L2_1=init_transformer_block(ks[12]),
        TB_H3_1=init_transformer_block(ks[13]),
        TB_L3_1=init_transformer_block(ks[14]),
    )


if __name__ == "__main__":
    # Main(in_channel=1, out_channel1=1); spatial size must be odd (see above).
    B, C_in, H, W = 2, 100, 9, 9
    x_in = jax.random.normal(jax.random.PRNGKey(0), (B, C_in, H, W),
                             dtype=jnp.float32)
    params = init_main_params(seed=42)
    fwd = jax.jit(main_forward)
    out = jax.block_until_ready(fwd(x_in, params))
    assert out.shape == (B, FEATURE_DIM), out.shape
    assert bool(jnp.all(jnp.isfinite(out)))
    print("KERNEL_OK")
</pallas_src>

<mosaic_0001>
module attributes {stable_mosaic.version = 11 : i64} {
  func.func @_matmul_bias_kernel(%arg0: i32, %arg1: memref<176x128xbf16, #tpu.memory_space<vmem>>, %arg2: memref<128x128xbf16, #tpu.memory_space<vmem>>, %arg3: memref<1x128xf32, #tpu.memory_space<vmem>>, %arg4: memref<176x128xf32, #tpu.memory_space<vmem>>) attributes {dimension_semantics = [#tpu.dimension_semantics<parallel>], iteration_bounds = array<i64: 1>, scalar_prefetch = 0 : i64, scratch_operands = 0 : i64, tpu.core_type = #tpu.core_type<tc>, window_params = [{pipeline_mode = #tpu.pipeline_mode<synchronous>, transform_indices = @transform_0, window_bounds = array<i64: 176, 128>}, {pipeline_mode = #tpu.pipeline_mode<synchronous>, transform_indices = @transform_1, window_bounds = array<i64: 128, 128>}, {pipeline_mode = #tpu.pipeline_mode<synchronous>, transform_indices = @transform_2, window_bounds = array<i64: 1, 128>}, {pipeline_mode = #tpu.pipeline_mode<synchronous>, transform_indices = @transform_3, window_bounds = array<i64: 176, 128>}]} {
    %c0 = arith.constant 0 : index
    %c0_0 = arith.constant 0 : index
    %0 = vector.load %arg1[%c0, %c0_0] : memref<176x128xbf16, #tpu.memory_space<vmem>>, vector<176x128xbf16>
    %c0_1 = arith.constant 0 : index
    %c0_2 = arith.constant 0 : index
    %1 = vector.load %arg2[%c0_1, %c0_2] : memref<128x128xbf16, #tpu.memory_space<vmem>>, vector<128x128xbf16>
    %cst = arith.constant dense<0.000000e+00> : vector<176x128xf32>
    %2 = tpu.matmul %0, %1, %cst {dimension_numbers = #tpu.dot_dimension_numbers<[1], [0], [0], [1], [0, 0, 1, 1], [], []>} : vector<176x128xbf16>, vector<128x128xbf16>, vector<176x128xf32> -> vector<176x128xf32>
    %c0_3 = arith.constant 0 : index
    %c0_4 = arith.constant 0 : index
    %3 = vector.load %arg3[%c0_3, %c0_4] : memref<1x128xf32, #tpu.memory_space<vmem>>, vector<1x128xf32>
    %4 = vector.broadcast %3 : vector<1x128xf32> to vector<176x128xf32>
    %5 = arith.addf %2, %4 : vector<176x128xf32>
    %c0_5 = arith.constant 0 : index
    %c0_6 = arith.constant 0 : index
    %6 = vector.load %arg4[%c0_5, %c0_6] : memref<176x128xf32, #tpu.memory_space<vmem>>, vector<176x128xf32>
    tpu.vector_store %arg4[%c0_5, %c0_6], %5 {strides = array<i32>} : memref<176x128xf32, #tpu.memory_space<vmem>>, vector<176x128xf32>,
    return
  }
  func.func @transform_0(%arg0: i32) -> (i32, i32) {
    %c0_i32 = arith.constant 0 : i32
    %c0_i32_0 = arith.constant 0 : i32
    %c0_i32_1 = arith.constant 0 : i32
    return %c0_i32, %c0_i32_0 : i32, i32
  }
  func.func @transform_1(%arg0: i32) -> (i32, i32) {
    %c0_i32 = arith.constant 0 : i32
    %c0_i32_0 = arith.constant 0 : i32
    %c0_i32_1 = arith.constant 0 : i32
    return %c0_i32, %c0_i32_0 : i32, i32
  }
  func.func @transform_2(%arg0: i32) -> (i32, i32) {
    %c0_i32 = arith.constant 0 : i32
    %c0_i32_0 = arith.constant 0 : i32
    %c0_i32_1 = arith.constant 0 : i32
    return %c0_i32, %c0_i32_0 : i32, i32
  }
  func.func @transform_3(%arg0: i32) -> (i32, i32) {
    %c0_i32 = arith.constant 0 : i32
    %c0_i32_0 = arith.constant 0 : i32
    %c0_i32_1 = arith.constant 0 : i32
    return %c0_i32, %c0_i32_0 : i32, i32
  }
}

module attributes {stable_mosaic.version = 11 : i64} {
  func.func @_matmul_bias_kernel(%arg0: i32, %arg1: memref<32x128xbf16, #tpu.memory_space<vmem>>, %arg2: memref<128x384xbf16, #tpu.memory_space<vmem>>, %arg3: memref<1x384xf32, #tpu.memory_space<vmem>>, %arg4: memref<32x384xf32, #tpu.memory_space<vmem>>) attributes {dimension_semantics = [#tpu.dimension_semantics<parallel>], iteration_bounds = array<i64: 1>, scalar_prefetch = 0 : i64, scratch_operands = 0 : i64, tpu.core_type = #tpu.core_type<tc>, window_params = [{pipeline_mode = #tpu.pipeline_mode<synchronous>, transform_indices = @transform_0, window_bounds = array<i64: 32, 128>}, {pipeline_mode = #tpu.pipeline_mode<synchronous>, transform_indices = @transform_1, window_bounds = array<i64: 128, 384>}, {pipeline_mode = #tpu.pipeline_mode<synchronous>, transform_indices = @transform_2, window_bounds = array<i64: 1, 384>}, {pipeline_mode = #tpu.pipeline_mode<synchronous>, transform_indices = @transform_3, window_bounds = array<i64: 32, 384>}]} {
    %c0 = arith.constant 0 : index
    %c0_0 = arith.constant 0 : index
    %0 = vector.load %arg1[%c0, %c0_0] : memref<32x128xbf16, #tpu.memory_space<vmem>>, vector<32x128xbf16>
    %c0_1 = arith.constant 0 : index
    %c0_2 = arith.constant 0 : index
    %1 = vector.load %arg2[%c0_1, %c0_2] : memref<128x384xbf16, #tpu.memory_space<vmem>>, vector<128x384xbf16>
    %cst = arith.constant dense<0.000000e+00> : vector<32x384xf32>
    %2 = tpu.matmul %0, %1, %cst {dimension_numbers = #tpu.dot_dimension_numbers<[1], [0], [0], [1], [0, 0, 1, 1], [], []>} : vector<32x128xbf16>, vector<128x384xbf16>, vector<32x384xf32> -> vector<32x384xf32>
    %c0_3 = arith.constant 0 : index
    %c0_4 = arith.constant 0 : index
    %3 = vector.load %arg3[%c0_3, %c0_4] : memref<1x384xf32, #tpu.memory_space<vmem>>, vector<1x384xf32>
    %4 = vector.broadcast %3 : vector<1x384xf32> to vector<32x384xf32>
    %5 = arith.addf %2, %4 : vector<32x384xf32>
    %c0_5 = arith.constant 0 : index
    %c0_6 = arith.constant 0 : index
    %6 = vector.load %arg4[%c0_5, %c0_6] : memref<32x384xf32, #tpu.memory_space<vmem>>, vector<32x384xf32>
    tpu.vector_store %arg4[%c0_5, %c0_6], %5 {strides = array<i32>} : memref<32x384xf32, #tpu.memory_space<vmem>>, vector<32x384xf32>,
    return
  }
  func.func @transform_0(%arg0: i32) -> (i32, i32) {
    %c0_i32 = arith.constant 0 : i32
    %c0_i32_0 = arith.constant 0 : i32
    %c0_i32_1 = arith.constant 0 : i32
    return %c0_i32, %c0_i32_0 : i32, i32
  }
  func.func @transform_1(%arg0: i32) -> (i32, i32) {
    %c0_i32 = arith.constant 0 : i32
    %c0_i32_0 = arith.constant 0 : i32
    %c0_i32_1 = arith.constant 0 : i32
    return %c0_i32, %c0_i32_0 : i32, i32
  }
  func.func @transform_2(%arg0: i32) -> (i32, i32) {
    %c0_i32 = arith.constant 0 : i32
    %c0_i32_0 = arith.constant 0 : i32
    %c0_i32_1 = arith.constant 0 : i32
    return %c0_i32, %c0_i32_0 : i32, i32
  }
  func.func @transform_3(%arg0: i32) -> (i32, i32) {
    %c0_i32 = arith.constant 0 : i32
    %c0_i32_0 = arith.constant 0 : i32
    %c0_i32_1 = arith.constant 0 : i32
    return %c0_i32, %c0_i32_0 : i32, i32
  }
}

module attributes {stable_mosaic.version = 11 : i64} {
  func.func @_spectral_attn_kernel(%arg0: i32, %arg1: memref<8x32x128xf32, #tpu.memory_space<vmem>>, %arg2: memref<8x32x128xf32, #tpu.memory_space<vmem>>, %arg3: memref<8x32x128xf32, #tpu.memory_space<vmem>>, %arg4: memref<8x1x1xf32, #tpu.memory_space<vmem>>, %arg5: memref<8x32x128xf32, #tpu.memory_space<vmem>>) attributes {dimension_semantics = [#tpu.dimension_semantics<parallel>], iteration_bounds = array<i64: 1>, scalar_prefetch = 0 : i64, scratch_operands = 0 : i64, tpu.core_type = #tpu.core_type<tc>, window_params = [{pipeline_mode = #tpu.pipeline_mode<synchronous>, transform_indices = @transform_0, window_bounds = array<i64: 8, 32, 128>}, {pipeline_mode = #tpu.pipeline_mode<synchronous>, transform_indices = @transform_1, window_bounds = array<i64: 8, 32, 128>}, {pipeline_mode = #tpu.pipeline_mode<synchronous>, transform_indices = @transform_2, window_bounds = array<i64: 8, 32, 128>}, {pipeline_mode = #tpu.pipeline_mode<synchronous>, transform_indices = @transform_3, window_bounds = array<i64: 8, 1, 1>}, {pipeline_mode = #tpu.pipeline_mode<synchronous>, transform_indices = @transform_4, window_bounds = array<i64: 8, 32, 128>}]} {
    %c0 = arith.constant 0 : index
    %c0_0 = arith.constant 0 : index
    %c0_1 = arith.constant 0 : index
    %0 = vector.load %arg1[%c0, %c0_0, %c0_1] : memref<8x32x128xf32, #tpu.memory_space<vmem>>, vector<8x32x128xf32>
    %c0_2 = arith.constant 0 : index
    %c0_3 = arith.constant 0 : index
    %c0_4 = arith.constant 0 : index
    %1 = vector.load %arg2[%c0_2, %c0_3, %c0_4] : memref<8x32x128xf32, #tpu.memory_space<vmem>>, vector<8x32x128xf32>
    %c0_5 = arith.constant 0 : index
    %c0_6 = arith.constant 0 : index
    %c0_7 = arith.constant 0 : index
    %2 = vector.load %arg3[%c0_5, %c0_6, %c0_7] : memref<8x32x128xf32, #tpu.memory_space<vmem>>, vector<8x32x128xf32>
    %c0_8 = arith.constant 0 : index
    %c0_9 = arith.constant 0 : index
    %c0_10 = arith.constant 0 : index
    %3 = vector.load %arg4[%c0_8, %c0_9, %c0_10] : memref<8x1x1xf32, #tpu.memory_space<vmem>>, vector<8x1x1xf32>
    %4 = arith.mulf %0, %0 : vector<8x32x128xf32>
    %cst = arith.constant dense<0.000000e+00> : vector<8x32xf32>
    %5 = vector.multi_reduction <add>, %4, %cst [2] : vector<8x32x128xf32> to vector<8x32xf32>
    %6 = vector.shape_cast %5 : vector<8x32xf32> to vector<8x32x1xf32>
    %cst_11 = arith.constant 9.99999996E-13 : f32
    %7 = vector.broadcast %cst_11 : f32 to vector<8x32x1xf32>
    %8 = arith.addf %6, %7 : vector<8x32x1xf32>
    %9 = math.rsqrt %8 : vector<8x32x1xf32>
    %10 = vector.broadcast %9 : vector<8x32x1xf32> to vector<8x32x128xf32>
    %11 = arith.mulf %0, %10 : vector<8x32x128xf32>
    %12 = arith.mulf %1, %1 : vector<8x32x128xf32>
    %cst_12 = arith.constant dense<0.000000e+00> : vector<8x32xf32>
    %13 = vector.multi_reduction <add>, %12, %cst_12 [2] : vector<8x32x128xf32> to vector<8x32xf32>
    %14 = vector.shape_cast %13 : vector<8x32xf32> to vector<8x32x1xf32>
    %cst_13 = arith.constant 9.99999996E-13 : f32
    %15 = vector.broadcast %cst_13 : f32 to vector<8x32x1xf32>
    %16 = arith.addf %14, %15 : vector<8x32x1xf32>
    %17 = math.rsqrt %16 : vector<8x32x1xf32>
    %18 = vector.broadcast %17 : vector<8x32x1xf32> to vector<8x32x128xf32>
    %19 = arith.mulf %1, %18 : vector<8x32x128xf32>
    %20 = arith.truncf %11 : vector<8x32x128xf32> to vector<8x32x128xbf16>
    %21 = arith.truncf %19 : vector<8x32x128xf32> to vector<8x32x128xbf16>
    "tpu.trace_start"() <{level = 10 : i32, message = "bdl,bel->bde"}> : () -> ()
    %cst_14 = arith.constant dense<0.000000e+00> : vector<8x32x32xf32>
    %22 = tpu.matmul %20, %21, %cst_14 {dimension_numbers = #tpu.dot_dimension_numbers<[2], [2], [1], [1], [0, 0, 0, 1, 1, 1], [0], [0]>} : vector<8x32x128xbf16>, vector<8x32x128xbf16>, vector<8x32x32xf32> -> vector<8x32x32xf32>
    "tpu.trace_stop"() : () -> ()
    %23 = vector.broadcast %3 : vector<8x1x1xf32> to vector<8x32x32xf32>
    %24 = arith.mulf %22, %23 : vector<8x32x32xf32>
    %cst_15 = arith.constant dense<0xFF800000> : vector<8x32xf32>
    %25 = vector.multi_reduction <maximumf>, %24, %cst_15 [2] : vector<8x32x32xf32> to vector<8x32xf32>
    %26 = vector.shape_cast %25 : vector<8x32xf32> to vector<8x32x1xf32>
    %27 = vector.broadcast %26 : vector<8x32x1xf32> to vector<8x32x32xf32>
    %28 = arith.subf %24, %27 : vector<8x32x32xf32>
    %29 = math.exp %28 : vector<8x32x32xf32>
    %cst_16 = arith.constant dense<0.000000e+00> : vector<8x32xf32>
    %30 = vector.multi_reduction <add>, %29, %cst_16 [2] : vector<8x32x32xf32> to vector<8x32xf32>
    %31 = vector.shape_cast %30 : vector<8x32xf32> to vector<8x32x1xf32>
    %32 = tpu.reciprocal %31 {approx = true} : vector<8x32x1xf32> -> vector<8x32x1xf32>
    %33 = vector.broadcast %32 : vector<8x32x1xf32> to vector<8x32x32xf32>
    %34 = arith.mulf %29, %33 : vector<8x32x32xf32>
    %35 = arith.truncf %34 : vector<8x32x32xf32> to vector<8x32x32xbf16>
    %36 = arith.truncf %2 : vector<8x32x128xf32> to vector<8x32x128xbf16>
    "tpu.trace_start"() <{level = 10 : i32, message = "bde,bel->bdl"}> : () -> ()
    %cst_17 = arith.constant dense<0.000000e+00> : vector<8x32x128xf32>
    %37 = tpu.matmul %35, %36, %cst_17 {dimension_numbers = #tpu.dot_dimension_numbers<[2], [1], [1], [2], [0, 0, 0, 1, 1, 2], [0], [0]>} : vector<8x32x32xbf16>, vector<8x32x128xbf16>, vector<8x32x128xf32> -> vector<8x32x128xf32>
    "tpu.trace_stop"() : () -> ()
    %c0_18 = arith.constant 0 : index
    %c0_19 = arith.constant 0 : index
    %c0_20 = arith.constant 0 : index
    %38 = vector.load %arg5[%c0_18, %c0_19, %c0_20] : memref<8x32x128xf32, #tpu.memory_space<vmem>>, vector<8x32x128xf32>
    tpu.vector_store %arg5[%c0_18, %c0_19, %c0_20], %37 {strides = array<i32>} : memref<8x32x128xf32, #tpu.memory_space<vmem>>, vector<8x32x128xf32>,
    return
  }
  func.func @transform_0(%arg0: i32) -> (i32, i32, i32) {
    %c0_i32 = arith.constant 0 : i32
    %c0_i32_0 = arith.constant 0 : i32
    %c0_i32_1 = arith.constant 0 : i32
    %c0_i32_2 = arith.constant 0 : i32
    return %c0_i32, %c0_i32_0, %c0_i32_1 : i32, i32, i32
  }
  func.func @transform_1(%arg0: i32) -> (i32, i32, i32) {
    %c0_i32 = arith.constant 0 : i32
    %c0_i32_0 = arith.constant 0 : i32
    %c0_i32_1 = arith.constant 0 : i32
    %c0_i32_2 = arith.constant 0 : i32
    return %c0_i32, %c0_i32_0, %c0_i32_1 : i32, i32, i32
  }
  func.func @transform_2(%arg0: i32) -> (i32, i32, i32) {
    %c0_i32 = arith.constant 0 : i32
    %c0_i32_0 = arith.constant 0 : i32
    %c0_i32_1 = arith.constant 0 : i32
    %c0_i32_2 = arith.constant 0 : i32
    return %c0_i32, %c0_i32_0, %c0_i32_1 : i32, i32, i32
  }
  func.func @transform_3(%arg0: i32) -> (i32, i32, i32) {
    %c0_i32 = arith.constant 0 : i32
    %c0_i32_0 = arith.constant 0 : i32
    %c0_i32_1 = arith.constant 0 : i32
    %c0_i32_2 = arith.constant 0 : i32
    return %c0_i32, %c0_i32_0, %c0_i32_1 : i32, i32, i32
  }
  func.func @transform_4(%arg0: i32) -> (i32, i32, i32) {
    %c0_i32 = arith.constant 0 : i32
    %c0_i32_0 = arith.constant 0 : i32
    %c0_i32_1 = arith.constant 0 : i32
    %c0_i32_2 = arith.constant 0 : i32
    return %c0_i32, %c0_i32_0, %c0_i32_1 : i32, i32, i32
  }
}

module attributes {stable_mosaic.version = 11 : i64} {
  func.func @_matmul_bias_kernel(%arg0: i32, %arg1: memref<32x128xbf16, #tpu.memory_space<vmem>>, %arg2: memref<128x128xbf16, #tpu.memory_space<vmem>>, %arg3: memref<1x128xf32, #tpu.memory_space<vmem>>, %arg4: memref<32x128xf32, #tpu.memory_space<vmem>>) attributes {dimension_semantics = [#tpu.dimension_semantics<parallel>], iteration_bounds = array<i64: 1>, scalar_prefetch = 0 : i64, scratch_operands = 0 : i64, tpu.core_type = #tpu.core_type<tc>, window_params = [{pipeline_mode = #tpu.pipeline_mode<synchronous>, transform_indices = @transform_0, window_bounds = array<i64: 32, 128>}, {pipeline_mode = #tpu.pipeline_mode<synchronous>, transform_indices = @transform_1, window_bounds = array<i64: 128, 128>}, {pipeline_mode = #tpu.pipeline_mode<synchronous>, transform_indices = @transform_2, window_bounds = array<i64: 1, 128>}, {pipeline_mode = #tpu.pipeline_mode<synchronous>, transform_indices = @transform_3, window_bounds = array<i64: 32, 128>}]} {
    %c0 = arith.constant 0 : index
    %c0_0 = arith.constant 0 : index
    %0 = vector.load %arg1[%c0, %c0_0] : memref<32x128xbf16, #tpu.memory_space<vmem>>, vector<32x128xbf16>
    %c0_1 = arith.constant 0 : index
    %c0_2 = arith.constant 0 : index
    %1 = vector.load %arg2[%c0_1, %c0_2] : memref<128x128xbf16, #tpu.memory_space<vmem>>, vector<128x128xbf16>
    %cst = arith.constant dense<0.000000e+00> : vector<32x128xf32>
    %2 = tpu.matmul %0, %1, %cst {dimension_numbers = #tpu.dot_dimension_numbers<[1], [0], [0], [1], [0, 0, 1, 1], [], []>} : vector<32x128xbf16>, vector<128x128xbf16>, vector<32x128xf32> -> vector<32x128xf32>
    %c0_3 = arith.constant 0 : index
    %c0_4 = arith.constant 0 : index
    %3 = vector.load %arg3[%c0_3, %c0_4] : memref<1x128xf32, #tpu.memory_space<vmem>>, vector<1x128xf32>
    %4 = vector.broadcast %3 : vector<1x128xf32> to vector<32x128xf32>
    %5 = arith.addf %2, %4 : vector<32x128xf32>
    %c0_5 = arith.constant 0 : index
    %c0_6 = arith.constant 0 : index
    %6 = vector.load %arg4[%c0_5, %c0_6] : memref<32x128xf32, #tpu.memory_space<vmem>>, vector<32x128xf32>
    tpu.vector_store %arg4[%c0_5, %c0_6], %5 {strides = array<i32>} : memref<32x128xf32, #tpu.memory_space<vmem>>, vector<32x128xf32>,
    return
  }
  func.func @transform_0(%arg0: i32) -> (i32, i32) {
    %c0_i32 = arith.constant 0 : i32
    %c0_i32_0 = arith.constant 0 : i32
    %c0_i32_1 = arith.constant 0 : i32
    return %c0_i32, %c0_i32_0 : i32, i32
  }
  func.func @transform_1(%arg0: i32) -> (i32, i32) {
    %c0_i32 = arith.constant 0 : i32
    %c0_i32_0 = arith.constant 0 : i32
    %c0_i32_1 = arith.constant 0 : i32
    return %c0_i32, %c0_i32_0 : i32, i32
  }
  func.func @transform_2(%arg0: i32) -> (i32, i32) {
    %c0_i32 = arith.constant 0 : i32
    %c0_i32_0 = arith.constant 0 : i32
    %c0_i32_1 = arith.constant 0 : i32
    return %c0_i32, %c0_i32_0 : i32, i32
  }
  func.func @transform_3(%arg0: i32) -> (i32, i32) {
    %c0_i32 = arith.constant 0 : i32
    %c0_i32_0 = arith.constant 0 : i32
    %c0_i32_1 = arith.constant 0 : i32
    return %c0_i32, %c0_i32_0 : i32, i32
  }
}

module attributes {stable_mosaic.version = 11 : i64} {
  func.func @_layernorm_kernel(%arg0: i32, %arg1: memref<32x128xf32, #tpu.memory_space<vmem>>, %arg2: memref<1x128xf32, #tpu.memory_space<vmem>>, %arg3: memref<32x128xf32, #tpu.memory_space<vmem>>) attributes {dimension_semantics = [#tpu.dimension_semantics<parallel>], iteration_bounds = array<i64: 1>, scalar_prefetch = 0 : i64, scratch_operands = 0 : i64, tpu.core_type = #tpu.core_type<tc>, window_params = [{pipeline_mode = #tpu.pipeline_mode<synchronous>, transform_indices = @transform_0, window_bounds = array<i64: 32, 128>}, {pipeline_mode = #tpu.pipeline_mode<synchronous>, transform_indices = @transform_1, window_bounds = array<i64: 1, 128>}, {pipeline_mode = #tpu.pipeline_mode<synchronous>, transform_indices = @transform_2, window_bounds = array<i64: 32, 128>}]} {
    %c0 = arith.constant 0 : index
    %c0_0 = arith.constant 0 : index
    %0 = vector.load %arg1[%c0, %c0_0] : memref<32x128xf32, #tpu.memory_space<vmem>>, vector<32x128xf32>
    %cst = arith.constant dense<0.000000e+00> : vector<32xf32>
    %1 = vector.multi_reduction <add>, %0, %cst [1] : vector<32x128xf32> to vector<32xf32>
    %2 = vector.shape_cast %1 : vector<32xf32> to vector<32x1xf32>
    %cst_1 = arith.constant 1.280000e+02 : f32
    %3 = vector.broadcast %cst_1 : f32 to vector<32x1xf32>
    %4 = arith.divf %2, %3 : vector<32x1xf32>
    %5 = arith.mulf %0, %0 : vector<32x128xf32>
    %cst_2 = arith.constant dense<0.000000e+00> : vector<32xf32>
    %6 = vector.multi_reduction <add>, %5, %cst_2 [1] : vector<32x128xf32> to vector<32xf32>
    %7 = vector.shape_cast %6 : vector<32xf32> to vector<32x1xf32>
    %cst_3 = arith.constant 1.280000e+02 : f32
    %8 = vector.broadcast %cst_3 : f32 to vector<32x1xf32>
    %9 = arith.divf %7, %8 : vector<32x1xf32>
    %10 = arith.mulf %4, %4 : vector<32x1xf32>
    %11 = arith.subf %9, %10 : vector<32x1xf32>
    %cst_4 = arith.constant 0.000000e+00 : f32
    %12 = vector.broadcast %cst_4 : f32 to vector<32x1xf32>
    %13 = arith.maximumf %11, %12 : vector<32x1xf32>
    %cst_5 = arith.constant 9.99999974E-6 : f32
    %14 = vector.broadcast %cst_5 : f32 to vector<32x1xf32>
    %15 = arith.addf %13, %14 : vector<32x1xf32>
    %16 = math.rsqrt %15 : vector<32x1xf32>
    %17 = vector.broadcast %16 : vector<32x1xf32> to vector<32x128xf32>
    %18 = arith.mulf %0, %17 : vector<32x128xf32>
    %c0_6 = arith.constant 0 : index
    %c0_7 = arith.constant 0 : index
    %19 = vector.load %arg2[%c0_6, %c0_7] : memref<1x128xf32, #tpu.memory_space<vmem>>, vector<1x128xf32>
    %20 = vector.broadcast %19 : vector<1x128xf32> to vector<32x128xf32>
    %21 = arith.mulf %18, %20 : vector<32x128xf32>
    %c0_8 = arith.constant 0 : index
    %c0_9 = arith.constant 0 : index
    %22 = vector.load %arg3[%c0_8, %c0_9] : memref<32x128xf32, #tpu.memory_space<vmem>>, vector<32x128xf32>
    tpu.vector_store %arg3[%c0_8, %c0_9], %21 {strides = array<i32>} : memref<32x128xf32, #tpu.memory_space<vmem>>, vector<32x128xf32>,
    return
  }
  func.func @transform_0(%arg0: i32) -> (i32, i32) {
    %c0_i32 = arith.constant 0 : i32
    %c0_i32_0 = arith.constant 0 : i32
    %c0_i32_1 = arith.constant 0 : i32
    return %c0_i32, %c0_i32_0 : i32, i32
  }
  func.func @transform_1(%arg0: i32) -> (i32, i32) {
    %c0_i32 = arith.constant 0 : i32
    %c0_i32_0 = arith.constant 0 : i32
    %c0_i32_1 = arith.constant 0 : i32
    return %c0_i32, %c0_i32_0 : i32, i32
  }
  func.func @transform_2(%arg0: i32) -> (i32, i32) {
    %c0_i32 = arith.constant 0 : i32
    %c0_i32_0 = arith.constant 0 : i32
    %c0_i32_1 = arith.constant 0 : i32
    return %c0_i32, %c0_i32_0 : i32, i32
  }
}

module attributes {stable_mosaic.version = 11 : i64} {
  func.func @_matmul_bias_kernel(%arg0: i32, %arg1: memref<32x128xbf16, #tpu.memory_space<vmem>>, %arg2: memref<128x256xbf16, #tpu.memory_space<vmem>>, %arg3: memref<1x256xf32, #tpu.memory_space<vmem>>, %arg4: memref<32x256xf32, #tpu.memory_space<vmem>>) attributes {dimension_semantics = [#tpu.dimension_semantics<parallel>], iteration_bounds = array<i64: 1>, scalar_prefetch = 0 : i64, scratch_operands = 0 : i64, tpu.core_type = #tpu.core_type<tc>, window_params = [{pipeline_mode = #tpu.pipeline_mode<synchronous>, transform_indices = @transform_0, window_bounds = array<i64: 32, 128>}, {pipeline_mode = #tpu.pipeline_mode<synchronous>, transform_indices = @transform_1, window_bounds = array<i64: 128, 256>}, {pipeline_mode = #tpu.pipeline_mode<synchronous>, transform_indices = @transform_2, window_bounds = array<i64: 1, 256>}, {pipeline_mode = #tpu.pipeline_mode<synchronous>, transform_indices = @transform_3, window_bounds = array<i64: 32, 256>}]} {
    %c0 = arith.constant 0 : index
    %c0_0 = arith.constant 0 : index
    %0 = vector.load %arg1[%c0, %c0_0] : memref<32x128xbf16, #tpu.memory_space<vmem>>, vector<32x128xbf16>
    %c0_1 = arith.constant 0 : index
    %c0_2 = arith.constant 0 : index
    %1 = vector.load %arg2[%c0_1, %c0_2] : memref<128x256xbf16, #tpu.memory_space<vmem>>, vector<128x256xbf16>
    %cst = arith.constant dense<0.000000e+00> : vector<32x256xf32>
    %2 = tpu.matmul %0, %1, %cst {dimension_numbers = #tpu.dot_dimension_numbers<[1], [0], [0], [1], [0, 0, 1, 1], [], []>} : vector<32x128xbf16>, vector<128x256xbf16>, vector<32x256xf32> -> vector<32x256xf32>
    %c0_3 = arith.constant 0 : index
    %c0_4 = arith.constant 0 : index
    %3 = vector.load %arg3[%c0_3, %c0_4] : memref<1x256xf32, #tpu.memory_space<vmem>>, vector<1x256xf32>
    %4 = vector.broadcast %3 : vector<1x256xf32> to vector<32x256xf32>
    %5 = arith.addf %2, %4 : vector<32x256xf32>
    %c0_5 = arith.constant 0 : index
    %c0_6 = arith.constant 0 : index
    %6 = vector.load %arg4[%c0_5, %c0_6] : memref<32x256xf32, #tpu.memory_space<vmem>>, vector<32x256xf32>
    tpu.vector_store %arg4[%c0_5, %c0_6], %5 {strides = array<i32>} : memref<32x256xf32, #tpu.memory_space<vmem>>, vector<32x256xf32>,
    return
  }
  func.func @transform_0(%arg0: i32) -> (i32, i32) {
    %c0_i32 = arith.constant 0 : i32
    %c0_i32_0 = arith.constant 0 : i32
    %c0_i32_1 = arith.constant 0 : i32
    return %c0_i32, %c0_i32_0 : i32, i32
  }
  func.func @transform_1(%arg0: i32) -> (i32, i32) {
    %c0_i32 = arith.constant 0 : i32
    %c0_i32_0 = arith.constant 0 : i32
    %c0_i32_1 = arith.constant 0 : i32
    return %c0_i32, %c0_i32_0 : i32, i32
  }
  func.func @transform_2(%arg0: i32) -> (i32, i32) {
    %c0_i32 = arith.constant 0 : i32
    %c0_i32_0 = arith.constant 0 : i32
    %c0_i32_1 = arith.constant 0 : i32
    return %c0_i32, %c0_i32_0 : i32, i32
  }
  func.func @transform_3(%arg0: i32) -> (i32, i32) {
    %c0_i32 = arith.constant 0 : i32
    %c0_i32_0 = arith.constant 0 : i32
    %c0_i32_1 = arith.constant 0 : i32
    return %c0_i32, %c0_i32_0 : i32, i32
  }
}

module attributes {stable_mosaic.version = 11 : i64} {
  func.func @_matmul_bias_kernel(%arg0: i32, %arg1: memref<176x128xbf16, #tpu.memory_space<vmem>>, %arg2: memref<128x384xbf16, #tpu.memory_space<vmem>>, %arg3: memref<1x384xf32, #tpu.memory_space<vmem>>, %arg4: memref<176x384xf32, #tpu.memory_space<vmem>>) attributes {dimension_semantics = [#tpu.dimension_semantics<parallel>], iteration_bounds = array<i64: 1>, scalar_prefetch = 0 : i64, scratch_operands = 0 : i64, tpu.core_type = #tpu.core_type<tc>, window_params = [{pipeline_mode = #tpu.pipeline_mode<synchronous>, transform_indices = @transform_0, window_bounds = array<i64: 176, 128>}, {pipeline_mode = #tpu.pipeline_mode<synchronous>, transform_indices = @transform_1, window_bounds = array<i64: 128, 384>}, {pipeline_mode = #tpu.pipeline_mode<synchronous>, transform_indices = @transform_2, window_bounds = array<i64: 1, 384>}, {pipeline_mode = #tpu.pipeline_mode<synchronous>, transform_indices = @transform_3, window_bounds = array<i64: 176, 384>}]} {
    %c0 = arith.constant 0 : index
    %c0_0 = arith.constant 0 : index
    %0 = vector.load %arg1[%c0, %c0_0] : memref<176x128xbf16, #tpu.memory_space<vmem>>, vector<176x128xbf16>
    %c0_1 = arith.constant 0 : index
    %c0_2 = arith.constant 0 : index
    %1 = vector.load %arg2[%c0_1, %c0_2] : memref<128x384xbf16, #tpu.memory_space<vmem>>, vector<128x384xbf16>
    %cst = arith.constant dense<0.000000e+00> : vector<176x384xf32>
    %2 = tpu.matmul %0, %1, %cst {dimension_numbers = #tpu.dot_dimension_numbers<[1], [0], [0], [1], [0, 0, 1, 1], [], []>} : vector<176x128xbf16>, vector<128x384xbf16>, vector<176x384xf32> -> vector<176x384xf32>
    %c0_3 = arith.constant 0 : index
    %c0_4 = arith.constant 0 : index
    %3 = vector.load %arg3[%c0_3, %c0_4] : memref<1x384xf32, #tpu.memory_space<vmem>>, vector<1x384xf32>
    %4 = vector.broadcast %3 : vector<1x384xf32> to vector<176x384xf32>
    %5 = arith.addf %2, %4 : vector<176x384xf32>
    %c0_5 = arith.constant 0 : index
    %c0_6 = arith.constant 0 : index
    %6 = vector.load %arg4[%c0_5, %c0_6] : memref<176x384xf32, #tpu.memory_space<vmem>>, vector<176x384xf32>
    tpu.vector_store %arg4[%c0_5, %c0_6], %5 {strides = array<i32>} : memref<176x384xf32, #tpu.memory_space<vmem>>, vector<176x384xf32>,
    return
  }
  func.func @transform_0(%arg0: i32) -> (i32, i32) {
    %c0_i32 = arith.constant 0 : i32
    %c0_i32_0 = arith.constant 0 : i32
    %c0_i32_1 = arith.constant 0 : i32
    return %c0_i32, %c0_i32_0 : i32, i32
  }
  func.func @transform_1(%arg0: i32) -> (i32, i32) {
    %c0_i32 = arith.constant 0 : i32
    %c0_i32_0 = arith.constant 0 : i32
    %c0_i32_1 = arith.constant 0 : i32
    return %c0_i32, %c0_i32_0 : i32, i32
  }
  func.func @transform_2(%arg0: i32) -> (i32, i32) {
    %c0_i32 = arith.constant 0 : i32
    %c0_i32_0 = arith.constant 0 : i32
    %c0_i32_1 = arith.constant 0 : i32
    return %c0_i32, %c0_i32_0 : i32, i32
  }
  func.func @transform_3(%arg0: i32) -> (i32, i32) {
    %c0_i32 = arith.constant 0 : i32
    %c0_i32_0 = arith.constant 0 : i32
    %c0_i32_1 = arith.constant 0 : i32
    return %c0_i32, %c0_i32_0 : i32, i32
  }
}

module attributes {stable_mosaic.version = 11 : i64} {
  func.func @_layernorm_kernel(%arg0: i32, %arg1: memref<168x128xf32, #tpu.memory_space<vmem>>, %arg2: memref<1x128xf32, #tpu.memory_space<vmem>>, %arg3: memref<168x128xf32, #tpu.memory_space<vmem>>) attributes {dimension_semantics = [#tpu.dimension_semantics<parallel>], iteration_bounds = array<i64: 1>, scalar_prefetch = 0 : i64, scratch_operands = 0 : i64, tpu.core_type = #tpu.core_type<tc>, window_params = [{pipeline_mode = #tpu.pipeline_mode<synchronous>, transform_indices = @transform_0, window_bounds = array<i64: 168, 128>}, {pipeline_mode = #tpu.pipeline_mode<synchronous>, transform_indices = @transform_1, window_bounds = array<i64: 1, 128>}, {pipeline_mode = #tpu.pipeline_mode<synchronous>, transform_indices = @transform_2, window_bounds = array<i64: 168, 128>}]} {
    %c0 = arith.constant 0 : index
    %c0_0 = arith.constant 0 : index
    %0 = vector.load %arg1[%c0, %c0_0] : memref<168x128xf32, #tpu.memory_space<vmem>>, vector<168x128xf32>
    %cst = arith.constant dense<0.000000e+00> : vector<168xf32>
    %1 = vector.multi_reduction <add>, %0, %cst [1] : vector<168x128xf32> to vector<168xf32>
    %2 = vector.shape_cast %1 : vector<168xf32> to vector<168x1xf32>
    %cst_1 = arith.constant 1.280000e+02 : f32
    %3 = vector.broadcast %cst_1 : f32 to vector<168x1xf32>
    %4 = arith.divf %2, %3 : vector<168x1xf32>
    %5 = arith.mulf %0, %0 : vector<168x128xf32>
    %cst_2 = arith.constant dense<0.000000e+00> : vector<168xf32>
    %6 = vector.multi_reduction <add>, %5, %cst_2 [1] : vector<168x128xf32> to vector<168xf32>
    %7 = vector.shape_cast %6 : vector<168xf32> to vector<168x1xf32>
    %cst_3 = arith.constant 1.280000e+02 : f32
    %8 = vector.broadcast %cst_3 : f32 to vector<168x1xf32>
    %9 = arith.divf %7, %8 : vector<168x1xf32>
    %10 = arith.mulf %4, %4 : vector<168x1xf32>
    %11 = arith.subf %9, %10 : vector<168x1xf32>
    %cst_4 = arith.constant 0.000000e+00 : f32
    %12 = vector.broadcast %cst_4 : f32 to vector<168x1xf32>
    %13 = arith.maximumf %11, %12 : vector<168x1xf32>
    %cst_5 = arith.constant 9.99999974E-6 : f32
    %14 = vector.broadcast %cst_5 : f32 to vector<168x1xf32>
    %15 = arith.addf %13, %14 : vector<168x1xf32>
    %16 = math.rsqrt %15 : vector<168x1xf32>
    %17 = vector.broadcast %16 : vector<168x1xf32> to vector<168x128xf32>
    %18 = arith.mulf %0, %17 : vector<168x128xf32>
    %c0_6 = arith.constant 0 : index
    %c0_7 = arith.constant 0 : index
    %19 = vector.load %arg2[%c0_6, %c0_7] : memref<1x128xf32, #tpu.memory_space<vmem>>, vector<1x128xf32>
    %20 = vector.broadcast %19 : vector<1x128xf32> to vector<168x128xf32>
    %21 = arith.mulf %18, %20 : vector<168x128xf32>
    %c0_8 = arith.constant 0 : index
    %c0_9 = arith.constant 0 : index
    %22 = vector.load %arg3[%c0_8, %c0_9] : memref<168x128xf32, #tpu.memory_space<vmem>>, vector<168x128xf32>
    tpu.vector_store %arg3[%c0_8, %c0_9], %21 {strides = array<i32>} : memref<168x128xf32, #tpu.memory_space<vmem>>, vector<168x128xf32>,
    return
  }
  func.func @transform_0(%arg0: i32) -> (i32, i32) {
    %c0_i32 = arith.constant 0 : i32
    %c0_i32_0 = arith.constant 0 : i32
    %c0_i32_1 = arith.constant 0 : i32
    return %c0_i32, %c0_i32_0 : i32, i32
  }
  func.func @transform_1(%arg0: i32) -> (i32, i32) {
    %c0_i32 = arith.constant 0 : i32
    %c0_i32_0 = arith.constant 0 : i32
    %c0_i32_1 = arith.constant 0 : i32
    return %c0_i32, %c0_i32_0 : i32, i32
  }
  func.func @transform_2(%arg0: i32) -> (i32, i32) {
    %c0_i32 = arith.constant 0 : i32
    %c0_i32_0 = arith.constant 0 : i32
    %c0_i32_1 = arith.constant 0 : i32
    return %c0_i32, %c0_i32_0 : i32, i32
  }
}

module attributes {stable_mosaic.version = 11 : i64} {
  func.func @_matmul_bias_kernel(%arg0: i32, %arg1: memref<176x128xbf16, #tpu.memory_space<vmem>>, %arg2: memref<128x256xbf16, #tpu.memory_space<vmem>>, %arg3: memref<1x256xf32, #tpu.memory_space<vmem>>, %arg4: memref<176x256xf32, #tpu.memory_space<vmem>>) attributes {dimension_semantics = [#tpu.dimension_semantics<parallel>], iteration_bounds = array<i64: 1>, scalar_prefetch = 0 : i64, scratch_operands = 0 : i64, tpu.core_type = #tpu.core_type<tc>, window_params = [{pipeline_mode = #tpu.pipeline_mode<synchronous>, transform_indices = @transform_0, window_bounds = array<i64: 176, 128>}, {pipeline_mode = #tpu.pipeline_mode<synchronous>, transform_indices = @transform_1, window_bounds = array<i64: 128, 256>}, {pipeline_mode = #tpu.pipeline_mode<synchronous>, transform_indices = @transform_2, window_bounds = array<i64: 1, 256>}, {pipeline_mode = #tpu.pipeline_mode<synchronous>, transform_indices = @transform_3, window_bounds = array<i64: 176, 256>}]} {
    %c0 = arith.constant 0 : index
    %c0_0 = arith.constant 0 : index
    %0 = vector.load %arg1[%c0, %c0_0] : memref<176x128xbf16, #tpu.memory_space<vmem>>, vector<176x128xbf16>
    %c0_1 = arith.constant 0 : index
    %c0_2 = arith.constant 0 : index
    %1 = vector.load %arg2[%c0_1, %c0_2] : memref<128x256xbf16, #tpu.memory_space<vmem>>, vector<128x256xbf16>
    %cst = arith.constant dense<0.000000e+00> : vector<176x256xf32>
    %2 = tpu.matmul %0, %1, %cst {dimension_numbers = #tpu.dot_dimension_numbers<[1], [0], [0], [1], [0, 0, 1, 1], [], []>} : vector<176x128xbf16>, vector<128x256xbf16>, vector<176x256xf32> -> vector<176x256xf32>
    %c0_3 = arith.constant 0 : index
    %c0_4 = arith.constant 0 : index
    %3 = vector.load %arg3[%c0_3, %c0_4] : memref<1x256xf32, #tpu.memory_space<vmem>>, vector<1x256xf32>
    %4 = vector.broadcast %3 : vector<1x256xf32> to vector<176x256xf32>
    %5 = arith.addf %2, %4 : vector<176x256xf32>
    %c0_5 = arith.constant 0 : index
    %c0_6 = arith.constant 0 : index
    %6 = vector.load %arg4[%c0_5, %c0_6] : memref<176x256xf32, #tpu.memory_space<vmem>>, vector<176x256xf32>
    tpu.vector_store %arg4[%c0_5, %c0_6], %5 {strides = array<i32>} : memref<176x256xf32, #tpu.memory_space<vmem>>, vector<176x256xf32>,
    return
  }
  func.func @transform_0(%arg0: i32) -> (i32, i32) {
    %c0_i32 = arith.constant 0 : i32
    %c0_i32_0 = arith.constant 0 : i32
    %c0_i32_1 = arith.constant 0 : i32
    return %c0_i32, %c0_i32_0 : i32, i32
  }
  func.func @transform_1(%arg0: i32) -> (i32, i32) {
    %c0_i32 = arith.constant 0 : i32
    %c0_i32_0 = arith.constant 0 : i32
    %c0_i32_1 = arith.constant 0 : i32
    return %c0_i32, %c0_i32_0 : i32, i32
  }
  func.func @transform_2(%arg0: i32) -> (i32, i32) {
    %c0_i32 = arith.constant 0 : i32
    %c0_i32_0 = arith.constant 0 : i32
    %c0_i32_1 = arith.constant 0 : i32
    return %c0_i32, %c0_i32_0 : i32, i32
  }
  func.func @transform_3(%arg0: i32) -> (i32, i32) {
    %c0_i32 = arith.constant 0 : i32
    %c0_i32_0 = arith.constant 0 : i32
    %c0_i32_1 = arith.constant 0 : i32
    return %c0_i32, %c0_i32_0 : i32, i32
  }
}

module attributes {stable_mosaic.version = 11 : i64} {
  func.func @_matmul_bias_kernel(%arg0: i32, %arg1: memref<176x1152xbf16, #tpu.memory_space<vmem>>, %arg2: memref<1152x128xbf16, #tpu.memory_space<vmem>>, %arg3: memref<1x128xf32, #tpu.memory_space<vmem>>, %arg4: memref<176x128xf32, #tpu.memory_space<vmem>>) attributes {dimension_semantics = [#tpu.dimension_semantics<parallel>], iteration_bounds = array<i64: 1>, scalar_prefetch = 0 : i64, scratch_operands = 0 : i64, tpu.core_type = #tpu.core_type<tc>, window_params = [{pipeline_mode = #tpu.pipeline_mode<synchronous>, transform_indices = @transform_0, window_bounds = array<i64: 176, 1152>}, {pipeline_mode = #tpu.pipeline_mode<synchronous>, transform_indices = @transform_1, window_bounds = array<i64: 1152, 128>}, {pipeline_mode = #tpu.pipeline_mode<synchronous>, transform_indices = @transform_2, window_bounds = array<i64: 1, 128>}, {pipeline_mode = #tpu.pipeline_mode<synchronous>, transform_indices = @transform_3, window_bounds = array<i64: 176, 128>}]} {
    %c0 = arith.constant 0 : index
    %c0_0 = arith.constant 0 : index
    %0 = vector.load %arg1[%c0, %c0_0] : memref<176x1152xbf16, #tpu.memory_space<vmem>>, vector<176x1152xbf16>
    %c0_1 = arith.constant 0 : index
    %c0_2 = arith.constant 0 : index
    %1 = vector.load %arg2[%c0_1, %c0_2] : memref<1152x128xbf16, #tpu.memory_space<vmem>>, vector<1152x128xbf16>
    %cst = arith.constant dense<0.000000e+00> : vector<176x128xf32>
    %2 = tpu.matmul %0, %1, %cst {dimension_numbers = #tpu.dot_dimension_numbers<[1], [0], [0], [1], [0, 0, 1, 1], [], []>} : vector<176x1152xbf16>, vector<1152x128xbf16>, vector<176x128xf32> -> vector<176x128xf32>
    %c0_3 = arith.constant 0 : index
    %c0_4 = arith.constant 0 : index
    %3 = vector.load %arg3[%c0_3, %c0_4] : memref<1x128xf32, #tpu.memory_space<vmem>>, vector<1x128xf32>
    %4 = vector.broadcast %3 : vector<1x128xf32> to vector<176x128xf32>
    %5 = arith.addf %2, %4 : vector<176x128xf32>
    %c0_5 = arith.constant 0 : index
    %c0_6 = arith.constant 0 : index
    %6 = vector.load %arg4[%c0_5, %c0_6] : memref<176x128xf32, #tpu.memory_space<vmem>>, vector<176x128xf32>
    tpu.vector_store %arg4[%c0_5, %c0_6], %5 {strides = array<i32>} : memref<176x128xf32, #tpu.memory_space<vmem>>, vector<176x128xf32>,
    return
  }
  func.func @transform_0(%arg0: i32) -> (i32, i32) {
    %c0_i32 = arith.constant 0 : i32
    %c0_i32_0 = arith.constant 0 : i32
    %c0_i32_1 = arith.constant 0 : i32
    return %c0_i32, %c0_i32_0 : i32, i32
  }
  func.func @transform_1(%arg0: i32) -> (i32, i32) {
    %c0_i32 = arith.constant 0 : i32
    %c0_i32_0 = arith.constant 0 : i32
    %c0_i32_1 = arith.constant 0 : i32
    return %c0_i32, %c0_i32_0 : i32, i32
  }
  func.func @transform_2(%arg0: i32) -> (i32, i32) {
    %c0_i32 = arith.constant 0 : i32
    %c0_i32_0 = arith.constant 0 : i32
    %c0_i32_1 = arith.constant 0 : i32
    return %c0_i32, %c0_i32_0 : i32, i32
  }
  func.func @transform_3(%arg0: i32) -> (i32, i32) {
    %c0_i32 = arith.constant 0 : i32
    %c0_i32_0 = arith.constant 0 : i32
    %c0_i32_1 = arith.constant 0 : i32
    return %c0_i32, %c0_i32_0 : i32, i32
  }
}

</mosaic_0001>

<llo_original>
// kernel: main_forward.58
$region0: #{main_forward.58}
  #allocation0 [shape = 'u32[]', space=smem, size = 0x4, offset = 0x4, fixed_abs, tag = 'smem constant byte address 0x4 - core index']
  #allocation1 [shape = 'u32[144,128]{1,0:T(1,128)}', space=vmem, size = 0x12000, scoped, tag = 'internal scratch']
  %s0 = inlined_call_operand.vmem [shape: bf16[176,128], index: 0, kind: input, shape index: {}]
  %s1 = inlined_call_operand.vmem [shape: bf16[128,128], index: 1, kind: input, shape index: {}]
  %s2 = inlined_call_operand.vmem [shape: f32[1,128], index: 2, kind: input, shape index: {}]
  %s3 = inlined_call_operand.vmem [shape: f32[176,128], index: 3, kind: output, shape index: {}]
  %s4 = sld [smem:[#allocation0]]
  $region22: #{main_forward.58} parent=0
    _
  %s6 = ssub.s32 1, %s4
  %s7 = scalar_select 0, %s6, %s4
  // Predicated region
  $region2: #{main_forward.58} parent=0 // pred_check
    _
  $region3: #{main_forward.58} parent=0 // pred_check_branch
    %9 = sbr.rel (0) target = $region5
  $region4: #{main_forward.58} parent=0 // pred_region
    _
  $region5: #{main_forward.58} parent=0 // pred_fallthru
    _
  // Predicated region
  $region6: #{main_forward.58} parent=0 // pred_check
    _
  $region7: #{main_forward.58} parent=0 // pred_check_branch
    %11 = sbr.rel (0) target = $region9
  $region8: #{main_forward.58} parent=0 // pred_region
    _
  $region9: #{main_forward.58} parent=0 // pred_fallthru
    _
  // Predicated region
  $region10: #{main_forward.58} parent=0 // pred_check
    _
  $region11: #{main_forward.58} parent=0 // pred_check_branch
    %13 = sbr.rel (0) target = $region13
  $region12: #{main_forward.58} parent=0 // pred_region
    _
  $region13: #{main_forward.58} parent=0 // pred_fallthru
    _
  %v15 = vld [vmem:[%s0] sm:$0xf]
  %v16 = vld [vmem:[%s0 + $0x4] sm:$0xf]
  %v17 = vld [vmem:[%s0 + $0x8] sm:$0xf]
  %v18 = vld [vmem:[%s0 + $0xc] sm:$0xf]
  %v19 = vld [vmem:[%s0 + $0x10] sm:$0xf]
  %v20 = vld [vmem:[%s0 + $0x14] sm:$0xf]
  %v21 = vld [vmem:[%s0 + $0x18] sm:$0xf]
  %v22 = vld [vmem:[%s0 + $0x1c] sm:$0xf]
  %v23 = vld [vmem:[%s0 + $0x20] sm:$0xf]
  %v24 = vld [vmem:[%s0 + $0x24] sm:$0xf]
  %v25 = vld [vmem:[%s0 + $0x28] sm:$0xf]
  %v26 = vld [vmem:[%s0 + $0x2c] sm:$0xf]
  %v27 = vld [vmem:[%s0 + $0x30] sm:$0xf]
  %v28 = vld [vmem:[%s0 + $0x34] sm:$0xf]
  %v29 = vld [vmem:[%s0 + $0x38] sm:$0xf]
  %v30 = vld [vmem:[%s0 + $0x3c] sm:$0xf]
  %v31 = vld [vmem:[%s0 + $0x40] sm:$0xf]
  %v32 = vld [vmem:[%s0 + $0x44] sm:$0xf]
  %v33 = vld [vmem:[%s0 + $0x48] sm:$0xf]
  %v34 = vld [vmem:[%s0 + $0x4c] sm:$0xf]
  %v35 = vld [vmem:[%s0 + $0x50] sm:$0xf]
  %v36 = vld [vmem:[%s0 + $0x54] sm:$0xf]
  %v37 = vld [vmem:[%s1] sm:$0xf]
  %v38 = vld [vmem:[%s1 + $0x4] sm:$0xf]
  %v39 = vld [vmem:[%s1 + $0x8] sm:$0xf]
  %v40 = vld [vmem:[%s1 + $0xc] sm:$0xf]
  %v41 = vld [vmem:[%s1 + $0x10] sm:$0xf]
  %v42 = vld [vmem:[%s1 + $0x14] sm:$0xf]
  %v43 = vld [vmem:[%s1 + $0x18] sm:$0xf]
  %v44 = vld [vmem:[%s1 + $0x1c] sm:$0xf]
  %v45 = vld [vmem:[%s1 + $0x20] sm:$0xf]
  %v46 = vld [vmem:[%s1 + $0x24] sm:$0xf]
  %v47 = vld [vmem:[%s1 + $0x28] sm:$0xf]
  %v48 = vld [vmem:[%s1 + $0x2c] sm:$0xf]
  %v49 = vld [vmem:[%s1 + $0x30] sm:$0xf]
  %v50 = vld [vmem:[%s1 + $0x34] sm:$0xf]
  %v51 = vld [vmem:[%s1 + $0x38] sm:$0xf]
  %v52 = vld [vmem:[%s1 + $0x3c] sm:$0xf]
  %v53 = vld [vmem:[%s2] sm:$0x1]
  %v55 = vlaneseq
  %v56 = vshrl.u32 %v55, 7
  %v57 = vsub.s32 0, %v56
  %v58 = vrot.slane %v53, %v57
  %v82 = vunpack.c.l.b16 %v15
  %v83 = vunpack.c.l.b16 %v16
  %v84 = vunpack.c.l.b16 %v17
  %v85 = vunpack.c.l.b16 %v18
  %v86 = vunpack.c.l.b16 %v19
  %v87 = vunpack.c.l.b16 %v20
  %v88 = vunpack.c.l.b16 %v21
  %v89 = vunpack.c.l.b16 %v22
  %v90 = vunpack.c.l.b16 %v23
  %v91 = vunpack.c.l.b16 %v24
  %v92 = vunpack.c.l.b16 %v25
  %v93 = vunpack.c.l.b16 %v26
  %v94 = vunpack.c.l.b16 %v27
  %v95 = vunpack.c.l.b16 %v28
  %v96 = vunpack.c.l.b16 %v29
  %v97 = vunpack.c.l.b16 %v30
  %v98 = vunpack.c.l.b16 %v31
  %v99 = vunpack.c.l.b16 %v32
  %v100 = vunpack.c.l.b16 %v33
  %v101 = vunpack.c.l.b16 %v34
  %v102 = vunpack.c.l.b16 %v35
  %v103 = vunpack.c.l.b16 %v36
  %v104 = vpack.c.b16 %v83, %v82
  %v105 = vpack.c.b16 %v85, %v84
  %v106 = vpack.c.b16 %v87, %v86
  %v107 = vpack.c.b16 %v89, %v88
  %v108 = vpack.c.b16 %v91, %v90
  %v109 = vpack.c.b16 %v93, %v92
  %v110 = vpack.c.b16 %v95, %v94
  %v111 = vpack.c.b16 %v97, %v96
  %v112 = vpack.c.b16 %v99, %v98
  %v113 = vpack.c.b16 %v101, %v100
  %v114 = vpack.c.b16 %v103, %v102
  %v142 = vunpack.c.l.b16 %v37
  %v143 = vunpack.c.l.b16 %v38
  %v144 = vunpack.c.l.b16 %v39
  %v145 = vunpack.c.l.b16 %v40
  %v146 = vunpack.c.l.b16 %v41
  %v147 = vunpack.c.l.b16 %v42
  %v148 = vunpack.c.l.b16 %v43
  %v149 = vunpack.c.l.b16 %v44
  %v150 = vunpack.c.l.b16 %v45
  %v151 = vunpack.c.l.b16 %v46
  %v152 = vunpack.c.l.b16 %v47
  %v153 = vunpack.c.l.b16 %v48
  %v154 = vunpack.c.l.b16 %v49
  %v155 = vunpack.c.l.b16 %v50
  %v156 = vunpack.c.l.b16 %v51
  %v157 = vunpack.c.l.b16 %v52
  %v158 = vpack.c.b16 %v143, %v142
  %v159 = vpack.c.b16 %v145, %v144
  %v160 = vpack.c.b16 %v147, %v146
  %v161 = vpack.c.b16 %v149, %v148
  %v162 = vpack.c.b16 %v151, %v150
  %v163 = vpack.c.b16 %v153, %v152
  %v164 = vpack.c.b16 %v155, %v154
  %v165 = vpack.c.b16 %v157, %v156
  %174 = vmatprep.subr.bf16.mxu0 0
  %175 = vmatpush1.bf16.msra.mxu0 %v165
  %176 = vmatprep.subr.bf16.mxu0 0
  %177 = vmatpush1.bf16.msra.mxu0 %v164
  %178 = vmatprep.subr.bf16.mxu0 0
  %179 = vmatpush1.bf16.msra.mxu0 %v163
  %180 = vmatprep.subr.bf16.mxu0 0
  %181 = vmatpush1.bf16.msra.mxu0 %v162
  %182 = vmatprep.subr.bf16.mxu0 0
  %183 = vmatpush1.bf16.msra.mxu0 %v161
  %184 = vmatprep.subr.bf16.mxu0 0
  %185 = vmatpush1.bf16.msra.mxu0 %v160
  %186 = vmatprep.subr.bf16.mxu0 0
  %187 = vmatpush1.bf16.msra.mxu0 %v159
  %188 = vmatprep.subr.bf16.mxu0 0
  %189 = vmatpush1.bf16.msra.mxu0 %v158
  %190 = vmatprep.subr.bf16.mxu0 0
  %191 = vmatpush2.bf16.msra.mxu0 0
  %192 = vmatprep.subr.bf16.mxu0 0
  %193 = vmatpush2.bf16.msra.mxu0 0
  %194 = vmatprep.subr.bf16.mxu0 0
  %195 = vmatpush2.bf16.msra.mxu0 0
  %196 = vmatprep.subr.bf16.mxu0 0
  %197 = vmatpush2.bf16.msra.mxu0 0
  %198 = vmatprep.subr.bf16.mxu0 0
  %199 = vmatpush2.bf16.msra.mxu0 0
  %200 = vmatprep.subr.bf16.mxu0 0
  %201 = vmatpush2.bf16.msra.mxu0 0
  %202 = vmatprep.subr.bf16.mxu0 0
  %203 = vmatpush2.bf16.msra.mxu0 0
  %204 = vmatprep.subr.bf16.mxu0 0
  %205 = vmatpush2.bf16.msra.mxu0 0
  %206 = vmatprep.mubr.bf16.mxu0 0
  %207 = vmatmul.mubr.bf16.gmra.mxu0 %v104
  %v208 = vpop.f32.mrf.mxu0
  %v209 = vadd.f32 %v58, %v208
  %v210 = vpop.f32.mrf.mxu0
  %v211 = vpop.f32.mrf.mxu0
  %v212 = vadd.f32 %v58, %v211
  %v213 = vpop.f32.mrf.mxu0
  %214 = vmatprep.mubr.bf16.mxu0 0
  %215 = vmatmul.mubr.bf16.gmra.mxu0 %v105
  %v216 = vpop.f32.mrf.mxu0
  %v217 = vadd.f32 %v58, %v216
  %v218 = vpop.f32.mrf.mxu0
  %v219 = vpop.f32.mrf.mxu0
  %v220 = vadd.f32 %v58, %v219
  %v221 = vpop.f32.mrf.mxu0
  %222 = vmatprep.mubr.bf16.mxu0 0
  %223 = vmatmul.mubr.bf16.gmra.mxu0 %v106
  %v224 = vpop.f32.mrf.mxu0
  %v225 = vadd.f32 %v58, %v224
  %v226 = vpop.f32.mrf.mxu0
  %v227 = vpop.f32.mrf.mxu0
  %v228 = vadd.f32 %v58, %v227
  %v229 = vpop.f32.mrf.mxu0
  %230 = vmatprep.mubr.bf16.mxu0 0
  %231 = vmatmul.mubr.bf16.gmra.mxu0 %v107
  %v232 = vpop.f32.mrf.mxu0
  %v233 = vadd.f32 %v58, %v232
  %v234 = vpop.f32.mrf.mxu0
  %v235 = vpop.f32.mrf.mxu0
  %v236 = vadd.f32 %v58, %v235
  %v237 = vpop.f32.mrf.mxu0
  %238 = vmatprep.mubr.bf16.mxu0 0
  %239 = vmatmul.mubr.bf16.gmra.mxu0 %v108
  %v240 = vpop.f32.mrf.mxu0
  %v241 = vadd.f32 %v58, %v240
  %v242 = vpop.f32.mrf.mxu0
  %v243 = vpop.f32.mrf.mxu0
  %v244 = vadd.f32 %v58, %v243
  %v245 = vpop.f32.mrf.mxu0
  %246 = vmatprep.mubr.bf16.mxu0 0
  %247 = vmatmul.mubr.bf16.gmra.mxu0 %v109
  %v248 = vpop.f32.mrf.mxu0
  %v249 = vadd.f32 %v58, %v248
  %v250 = vpop.f32.mrf.mxu0
  %v251 = vpop.f32.mrf.mxu0
  %v252 = vadd.f32 %v58, %v251
  %v253 = vpop.f32.mrf.mxu0
  %254 = vmatprep.mubr.bf16.mxu0 0
  %255 = vmatmul.mubr.bf16.gmra.mxu0 %v110
  %v256 = vpop.f32.mrf.mxu0
  %v257 = vadd.f32 %v58, %v256
  %v258 = vpop.f32.mrf.mxu0
  %v259 = vpop.f32.mrf.mxu0
  %v260 = vadd.f32 %v58, %v259
  %v261 = vpop.f32.mrf.mxu0
  %262 = vmatprep.mubr.bf16.mxu0 0
  %263 = vmatmul.mubr.bf16.gmra.mxu0 %v111
  %v264 = vpop.f32.mrf.mxu0
  %v265 = vadd.f32 %v58, %v264
  %v266 = vpop.f32.mrf.mxu0
  %v267 = vpop.f32.mrf.mxu0
  %v268 = vadd.f32 %v58, %v267
  %v269 = vpop.f32.mrf.mxu0
  %270 = vmatprep.mubr.bf16.mxu0 0
  %271 = vmatmul.mubr.bf16.gmra.mxu0 %v112
  %v272 = vpop.f32.mrf.mxu0
  %v273 = vadd.f32 %v58, %v272
  %v274 = vpop.f32.mrf.mxu0
  %v275 = vpop.f32.mrf.mxu0
  %v276 = vadd.f32 %v58, %v275
  %v277 = vpop.f32.mrf.mxu0
  %278 = vmatprep.mubr.bf16.mxu0 0
  %279 = vmatmul.mubr.bf16.gmra.mxu0 %v113
  %v280 = vpop.f32.mrf.mxu0
  %v281 = vadd.f32 %v58, %v280
  %v282 = vpop.f32.mrf.mxu0
  %v283 = vpop.f32.mrf.mxu0
  %v284 = vadd.f32 %v58, %v283
  %v285 = vpop.f32.mrf.mxu0
  %286 = vmatprep.mubr.bf16.mxu0 0
  %287 = vmatmul.mubr.bf16.gmra.mxu0 %v114
  %v288 = vpop.f32.mrf.mxu0
  %v289 = vadd.f32 %v58, %v288
  %v290 = vpop.f32.mrf.mxu0
  %v291 = vpop.f32.mrf.mxu0
  %v292 = vadd.f32 %v58, %v291
  %v293 = vpop.f32.mrf.mxu0
  %294 = vdwg.mxu0
  %295 = vst [vmem:[%s3] sm:$0xff] %v209
  %296 = vst [vmem:[%s3 + $0x8] sm:$0xff] %v212
  %297 = vst [vmem:[%s3 + $0x10] sm:$0xff] %v217
  %298 = vst [vmem:[%s3 + $0x18] sm:$0xff] %v220
  %299 = vst [vmem:[%s3 + $0x20] sm:$0xff] %v225
  %300 = vst [vmem:[%s3 + $0x28] sm:$0xff] %v228
  %301 = vst [vmem:[%s3 + $0x30] sm:$0xff] %v233
  %302 = vst [vmem:[%s3 + $0x38] sm:$0xff] %v236
  %303 = vst [vmem:[%s3 + $0x40] sm:$0xff] %v241
  %304 = vst [vmem:[%s3 + $0x48] sm:$0xff] %v244
  %305 = vst [vmem:[%s3 + $0x50] sm:$0xff] %v249
  %306 = vst [vmem:[%s3 + $0x58] sm:$0xff] %v252
  %307 = vst [vmem:[%s3 + $0x60] sm:$0xff] %v257
  %308 = vst [vmem:[%s3 + $0x68] sm:$0xff] %v260
  %309 = vst [vmem:[%s3 + $0x70] sm:$0xff] %v265
  %310 = vst [vmem:[%s3 + $0x78] sm:$0xff] %v268
  %311 = vst [vmem:[%s3 + $0x80] sm:$0xff] %v273
  %312 = vst [vmem:[%s3 + $0x88] sm:$0xff] %v276
  %313 = vst [vmem:[%s3 + $0x90] sm:$0xff] %v281
  %314 = vst [vmem:[%s3 + $0x98] sm:$0xff] %v284
  %315 = vst [vmem:[%s3 + $0xa0] sm:$0xff] %v289
  %316 = vst [vmem:[%s3 + $0xa8] sm:$0xff] %v292
  // Predicated region
  $region14: #{main_forward.58} parent=0 // pred_check
    _
  $region15: #{main_forward.58} parent=0 // pred_check_branch
    %318 = sbr.rel (0) target = $region17
  $region16: #{main_forward.58} parent=0 // pred_region
    _
  $region17: #{main_forward.58} parent=0 // pred_fallthru
    _
  // Predicated region
  $region18: #{main_forward.58} parent=0 // pred_check
    _
  $region19: #{main_forward.58} parent=0 // pred_check_branch
    %320 = sbr.rel (0) target = $region21
  $region20: #{main_forward.58} parent=0 // pred_region
    _
  $region21: #{main_forward.58} parent=0 // pred_fallthru
    _

// kernel: tile.53
$region0: #{tile.53}
  #allocation0 [shape = 's32[1]{0}', space=sflag, size = 0x4, scoped, tag = 'scoped memory for tile.53']
  %s0 = inlined_call_operand.vmem [shape: f32[4], index: 0, kind: input, shape index: {}]
  %s1 = inlined_call_operand.vmem [shape: f32[2,4], index: 1, kind: output, shape index: {}]
  // Predicated region
  $region2: #{tile.53} parent=0 // pred_check
    _
  $region3: #{tile.53} parent=0 // pred_check_branch
    %3 = sbr.rel (0) target = $region5
  $region4: #{tile.53} parent=0 // pred_region
    _
  $region5: #{tile.53} parent=0 // pred_fallthru
    _
  %v4 = vld [vmem:[%s0] ss:$0 sm:$0xff]
  %5 = vst [vmem:[%s1] sm:$0x3] %v4

// kernel: tile.2
$region0: #{tile.2}
  %s0 = inlined_call_operand.vmem [shape: f32[2,4], index: 0, kind: input, shape index: {}]
  %s1 = inlined_call_operand.vmem [shape: f32[8,1,1], index: 1, kind: output, shape index: {}]
  $region1: #{tile.2} parent=0
    #allocation0 [shape = 'u8[32768]{0}', space=vmem, size = 0x8000, scoped, tag = 'scoped mem for output reshape']
    #allocation1 [shape = 'u8[4096]{0}', space=vmem, size = 0x1000, scoped, tag = 'scoped mem for input reshape']
    %s3 = sshll.u32 1, 2
    %s4 = ssub.s32 %s3, 1
    %v5 = vld [vmem:[%s0] sm:%s4]
    %6 = vst [vmem:[#allocation1] sm:%s4] %v5
    %v7 = vld [vmem:[#allocation1] sm:$0x3]
    %vm8 = vcmask 7168
    %9 = vst.msk [vmem:[#allocation0] sm:$0x1] %vm8, %v7
    %s10 = scalar_lea.vmem [#allocation0], 31
    %11 = vst.msk [vmem:[%s10] sm:$0x2] %vm8, %v7
    %v12 = vld [vmem:[#allocation1] sm:$0x3]
    %13 = vrot.lane.b32.xlu0 %v12, 127
    %v14 = vpop.permute.xlu0 %13
    %vm15 = vcmask 7168
    %s16 = scalar_lea.vmem [#allocation0], 8
    %17 = vst.msk [vmem:[%s16] sm:$0x1] %vm15, %v14
    %s18 = scalar_lea.vmem [#allocation0], 39
    %19 = vst.msk [vmem:[%s18] sm:$0x2] %vm15, %v14
    %v20 = vld [vmem:[#allocation1] sm:$0x3]
    %21 = vrot.lane.b32.xlu0 %v20, 126
    %v22 = vpop.permute.xlu0 %21
    %vm23 = vcmask 7168
    %s24 = scalar_lea.vmem [#allocation0], 16
    %25 = vst.msk [vmem:[%s24] sm:$0x1] %vm23, %v22
    %s26 = scalar_lea.vmem [#allocation0], 47
    %27 = vst.msk [vmem:[%s26] sm:$0x2] %vm23, %v22
    %v28 = vld [vmem:[#allocation1] sm:$0x3]
    %29 = vrot.lane.b32.xlu0 %v28, 125
    %v30 = vpop.permute.xlu0 %29
    %vm31 = vcmask 7168
    %s32 = scalar_lea.vmem [#allocation0], 24
    %33 = vst.msk [vmem:[%s32] sm:$0x1] %vm31, %v30
    %s34 = scalar_lea.vmem [#allocation0], 55
    %35 = vst.msk [vmem:[%s34] sm:$0x2] %vm31, %v30
    %s37 = sshll.u32 1, 1
    %s38 = ssub.s32 %s37, 1
    %v40 = vld [vmem:[#allocation0] sm:%s38]
    %s41 = sshll.u32 1, 1
    %s42 = ssub.s32 %s41, 1
    %43 = vst [vmem:[%s1] sm:%s42] %v40
    %s44 = scalar_lea.vmem [#allocation0], 8
    %v45 = vld [vmem:[%s44] sm:%s38]
    %s46 = sshll.u32 1, 1
    %s47 = ssub.s32 %s46, 1
    %s48 = scalar_lea.vmem %s1, 1
    %49 = vst [vmem:[%s48] sm:%s47] %v45
    %s50 = scalar_lea.vmem [#allocation0], 16
    %v51 = vld [vmem:[%s50] sm:%s38]
    %s52 = sshll.u32 1, 1
    %s53 = ssub.s32 %s52, 1
    %s54 = smul.addr 1, 2
    %s55 = scalar_lea.vmem %s1, %s54
    %56 = vst [vmem:[%s55] sm:%s53] %v51
    %s57 = scalar_lea.vmem [#allocation0], 24
    %v58 = vld [vmem:[%s57] sm:%s38]
    %s59 = sshll.u32 1, 1
    %s60 = ssub.s32 %s59, 1
    %s61 = smul.addr 1, 3
    %s62 = scalar_lea.vmem %s1, %s61
    %63 = vst [vmem:[%s62] sm:%s60] %v58
    %s64 = scalar_lea.vmem [#allocation0], 32
    %v65 = vld [vmem:[%s64] sm:%s38]
    %s66 = sshll.u32 1, 1
    %s67 = ssub.s32 %s66, 1
    %s68 = smul.addr 1, 4
    %s69 = scalar_lea.vmem %s1, %s68
    %70 = vst [vmem:[%s69] sm:%s67] %v65
    %s71 = scalar_lea.vmem [#allocation0], 40
    %v72 = vld [vmem:[%s71] sm:%s38]
    %s73 = sshll.u32 1, 1
    %s74 = ssub.s32 %s73, 1
    %s75 = smul.addr 1, 5
    %s76 = scalar_lea.vmem %s1, %s75
    %77 = vst [vmem:[%s76] sm:%s74] %v72
    %s78 = scalar_lea.vmem [#allocation0], 48
    %v79 = vld [vmem:[%s78] sm:%s38]
    %s80 = sshll.u32 1, 1
    %s81 = ssub.s32 %s80, 1
    %s82 = smul.addr 1, 6
    %s83 = scalar_lea.vmem %s1, %s82
    %84 = vst [vmem:[%s83] sm:%s81] %v79
    %s85 = scalar_lea.vmem [#allocation0], 56
    %v86 = vld [vmem:[%s85] sm:%s38]
    %s87 = sshll.u32 1, 1
    %s88 = ssub.s32 %s87, 1
    %s89 = smul.addr 1, 7
    %s90 = scalar_lea.vmem %s1, %s89
    %91 = vst [vmem:[%s90] sm:%s88] %v86

// kernel: main_forward.73
$region0: #{main_forward.73}
  #allocation0 [shape = 'u32[]', space=smem, size = 0x4, offset = 0x4, fixed_abs, tag = 'smem constant byte address 0x4 - core index']
  #allocation1 [shape = 'u32[144,128]{1,0:T(1,128)}', space=vmem, size = 0x12000, scoped, tag = 'internal scratch']
  %s0 = inlined_call_operand.vmem [shape: bf16[32,128], index: 0, kind: input, shape index: {}]
  %s1 = inlined_call_operand.vmem [shape: bf16[128,384], index: 1, kind: input, shape index: {}]
  %s2 = inlined_call_operand.vmem [shape: f32[1,384], index: 2, kind: input, shape index: {}]
  %s3 = inlined_call_operand.vmem [shape: f32[32,384], index: 3, kind: output, shape index: {}]
  %s4 = sld [smem:[#allocation0]]
  $region22: #{main_forward.73} parent=0
    _
  %s6 = ssub.s32 1, %s4
  %s7 = scalar_select 0, %s6, %s4
  // Predicated region
  $region2: #{main_forward.73} parent=0 // pred_check
    _
  $region3: #{main_forward.73} parent=0 // pred_check_branch
    %9 = sbr.rel (0) target = $region5
  $region4: #{main_forward.73} parent=0 // pred_region
    _
  $region5: #{main_forward.73} parent=0 // pred_fallthru
    _
  // Predicated region
  $region6: #{main_forward.73} parent=0 // pred_check
    _
  $region7: #{main_forward.73} parent=0 // pred_check_branch
    %11 = sbr.rel (0) target = $region9
  $region8: #{main_forward.73} parent=0 // pred_region
    _
  $region9: #{main_forward.73} parent=0 // pred_fallthru
    _
  // Predicated region
  $region10: #{main_forward.73} parent=0 // pred_check
    _
  $region11: #{main_forward.73} parent=0 // pred_check_branch
    %13 = sbr.rel (0) target = $region13
  $region12: #{main_forward.73} parent=0 // pred_region
    _
  $region13: #{main_forward.73} parent=0 // pred_fallthru
    _
  %v15 = vld [vmem:[%s0] sm:$0xf]
  %v16 = vld [vmem:[%s0 + $0x4] sm:$0xf]
  %v17 = vld [vmem:[%s0 + $0x8] sm:$0xf]
  %v18 = vld [vmem:[%s0 + $0xc] sm:$0xf]
  %v19 = vld [vmem:[%s1] sm:$0xff]
  %v20 = vld [vmem:[%s1 + $0x8] sm:$0xf]
  %v21 = vld [vmem:[%s1 + $0xc] sm:$0xff]
  %v22 = vld [vmem:[%s1 + $0x14] sm:$0xf]
  %v23 = vld [vmem:[%s1 + $0x18] sm:$0xff]
  %v24 = vld [vmem:[%s1 + $0x20] sm:$0xf]
  %v25 = vld [vmem:[%s1 + $0x24] sm:$0xff]
  %v26 = vld [vmem:[%s1 + $0x2c] sm:$0xf]
  %v27 = vld [vmem:[%s1 + $0x30] sm:$0xff]
  %v28 = vld [vmem:[%s1 + $0x38] sm:$0xf]
  %v29 = vld [vmem:[%s1 + $0x3c] sm:$0xff]
  %v30 = vld [vmem:[%s1 + $0x44] sm:$0xf]
  %v31 = vld [vmem:[%s1 + $0x48] sm:$0xff]
  %v32 = vld [vmem:[%s1 + $0x50] sm:$0xf]
  %v33 = vld [vmem:[%s1 + $0x54] sm:$0xff]
  %v34 = vld [vmem:[%s1 + $0x5c] sm:$0xf]
  %v35 = vld [vmem:[%s1 + $0x60] sm:$0xff]
  %v36 = vld [vmem:[%s1 + $0x68] sm:$0xf]
  %v37 = vld [vmem:[%s1 + $0x6c] sm:$0xff]
  %v38 = vld [vmem:[%s1 + $0x74] sm:$0xf]
  %v39 = vld [vmem:[%s1 + $0x78] sm:$0xff]
  %v40 = vld [vmem:[%s1 + $0x80] sm:$0xf]
  %v41 = vld [vmem:[%s1 + $0x84] sm:$0xff]
  %v42 = vld [vmem:[%s1 + $0x8c] sm:$0xf]
  %v43 = vld [vmem:[%s1 + $0x90] sm:$0xff]
  %v44 = vld [vmem:[%s1 + $0x98] sm:$0xf]
  %v45 = vld [vmem:[%s1 + $0x9c] sm:$0xff]
  %v46 = vld [vmem:[%s1 + $0xa4] sm:$0xf]
  %v47 = vld [vmem:[%s1 + $0xa8] sm:$0xff]
  %v48 = vld [vmem:[%s1 + $0xb0] sm:$0xf]
  %v49 = vld [vmem:[%s1 + $0xb4] sm:$0xff]
  %v50 = vld [vmem:[%s1 + $0xbc] sm:$0xf]
  %v51 = vld [vmem:[%s2] sm:$0x7]
  %v53 = vlaneseq
  %v54 = vshrl.u32 %v53, 7
  %v55 = vsub.s32 0, %v54
  %v56 = vrot.slane %v51, %v55
  %v57 = vlaneseq
  %v58 = vshrl.u32 %v57, 7
  %v59 = vsub.s32 1, %v58
  %v60 = vrot.slane %v51, %v59
  %v61 = vlaneseq
  %v62 = vshrl.u32 %v61, 7
  %v63 = vsub.s32 2, %v62
  %v64 = vrot.slane %v51, %v63
  %v72 = vunpack.c.l.b16 %v15
  %v73 = vunpack.c.l.b16 %v16
  %v74 = vunpack.c.l.b16 %v17
  %v75 = vunpack.c.l.b16 %v18
  %v76 = vpack.c.b16 %v73, %v72
  %v77 = vpack.c.b16 %v75, %v74
  %v112 = vunpack.c.l.b16 %v19
  %v113 = vunpack.c.h.b16 %v19
  %v114 = vunpack.c.l.b16 %v20
  %v115 = vunpack.c.l.b16 %v21
  %v116 = vunpack.c.h.b16 %v21
  %v117 = vunpack.c.l.b16 %v22
  %v118 = vunpack.c.l.b16 %v23
  %v119 = vunpack.c.h.b16 %v23
  %v120 = vunpack.c.l.b16 %v24
  %v121 = vunpack.c.l.b16 %v25
  %v122 = vunpack.c.h.b16 %v25
  %v123 = vunpack.c.l.b16 %v26
  %v124 = vunpack.c.l.b16 %v27
  %v125 = vunpack.c.h.b16 %v27
  %v126 = vunpack.c.l.b16 %v28
  %v127 = vunpack.c.l.b16 %v29
  %v128 = vunpack.c.h.b16 %v29
  %v129 = vunpack.c.l.b16 %v30
  %v130 = vunpack.c.l.b16 %v31
  %v131 = vunpack.c.h.b16 %v31
  %v132 = vunpack.c.l.b16 %v32
  %v133 = vunpack.c.l.b16 %v33
  %v134 = vunpack.c.h.b16 %v33
  %v135 = vunpack.c.l.b16 %v34
  %v136 = vunpack.c.l.b16 %v35
  %v137 = vunpack.c.h.b16 %v35
  %v138 = vunpack.c.l.b16 %v36
  %v139 = vunpack.c.l.b16 %v37
  %v140 = vunpack.c.h.b16 %v37
  %v141 = vunpack.c.l.b16 %v38
  %v142 = vunpack.c.l.b16 %v39
  %v143 = vunpack.c.h.b16 %v39
  %v144 = vunpack.c.l.b16 %v40
  %v145 = vunpack.c.l.b16 %v41
  %v146 = vunpack.c.h.b16 %v41
  %v147 = vunpack.c.l.b16 %v42
  %v148 = vunpack.c.l.b16 %v43
  %v149 = vunpack.c.h.b16 %v43
  %v150 = vunpack.c.l.b16 %v44
  %v151 = vunpack.c.l.b16 %v45
  %v152 = vunpack.c.h.b16 %v45
  %v153 = vunpack.c.l.b16 %v46
  %v154 = vunpack.c.l.b16 %v47
  %v155 = vunpack.c.h.b16 %v47
  %v156 = vunpack.c.l.b16 %v48
  %v157 = vunpack.c.l.b16 %v49
  %v158 = vunpack.c.h.b16 %v49
  %v159 = vunpack.c.l.b16 %v50
  %v160 = vpack.c.b16 %v115, %v112
  %v161 = vpack.c.b16 %v116, %v113
  %v162 = vpack.c.b16 %v117, %v114
  %v163 = vpack.c.b16 %v121, %v118
  %v164 = vpack.c.b16 %v122, %v119
  %v165 = vpack.c.b16 %v123, %v120
  %v166 = vpack.c.b16 %v127, %v124
  %v167 = vpack.c.b16 %v128, %v125
  %v168 = vpack.c.b16 %v129, %v126
  %v169 = vpack.c.b16 %v133, %v130
  %v170 = vpack.c.b16 %v134, %v131
  %v171 = vpack.c.b16 %v135, %v132
  %v172 = vpack.c.b16 %v139, %v136
  %v173 = vpack.c.b16 %v140, %v137
  %v174 = vpack.c.b16 %v141, %v138
  %v175 = vpack.c.b16 %v145, %v142
  %v176 = vpack.c.b16 %v146, %v143
  %v177 = vpack.c.b16 %v147, %v144
  %v178 = vpack.c.b16 %v151, %v148
  %v179 = vpack.c.b16 %v152, %v149
  %v180 = vpack.c.b16 %v153, %v150
  %v181 = vpack.c.b16 %v157, %v154
  %v182 = vpack.c.b16 %v158, %v155
  %v183 = vpack.c.b16 %v159, %v156
  %208 = vmatprep.subr.bf16.mxu0 %v182
  %209 = vmatpush1.bf16.msra.mxu0 %v181
  %210 = vmatprep.subr.bf16.mxu0 %v179
  %211 = vmatpush1.bf16.msra.mxu0 %v178
  %212 = vmatprep.subr.bf16.mxu0 %v176
  %213 = vmatpush1.bf16.msra.mxu0 %v175
  %214 = vmatprep.subr.bf16.mxu0 %v173
  %215 = vmatpush1.bf16.msra.mxu0 %v172
  %216 = vmatprep.subr.bf16.mxu0 %v170
  %217 = vmatpush1.bf16.msra.mxu0 %v169
  %218 = vmatprep.subr.bf16.mxu0 %v167
  %219 = vmatpush1.bf16.msra.mxu0 %v166
  %220 = vmatprep.subr.bf16.mxu0 %v164
  %221 = vmatpush1.bf16.msra.mxu0 %v163
  %222 = vmatprep.subr.bf16.mxu0 %v161
  %223 = vmatpush1.bf16.msra.mxu0 %v160
  %224 = vmatprep.subr.bf16.mxu0 0
  %225 = vmatpush2.bf16.msra.mxu0 0
  %226 = vmatprep.subr.bf16.mxu0 0
  %227 = vmatpush2.bf16.msra.mxu0 0
  %228 = vmatprep.subr.bf16.mxu0 0
  %229 = vmatpush2.bf16.msra.mxu0 0
  %230 = vmatprep.subr.bf16.mxu0 0
  %231 = vmatpush2.bf16.msra.mxu0 0
  %232 = vmatprep.subr.bf16.mxu0 0
  %233 = vmatpush2.bf16.msra.mxu0 0
  %234 = vmatprep.subr.bf16.mxu0 0
  %235 = vmatpush2.bf16.msra.mxu0 0
  %236 = vmatprep.subr.bf16.mxu0 0
  %237 = vmatpush2.bf16.msra.mxu0 0
  %238 = vmatprep.subr.bf16.mxu0 0
  %239 = vmatpush2.bf16.msra.mxu0 0
  %240 = vmatprep.mubr.bf16.mxu0 0
  %241 = vmatmul.mubr.bf16.gmra.mxu0 %v76
  %v242 = vpop.f32.mrf.mxu0
  %v243 = vadd.f32 %v56, %v242
  %v244 = vpop.f32.mrf.mxu0
  %v245 = vadd.f32 %v60, %v244
  %v246 = vpop.f32.mrf.mxu0
  %v247 = vadd.f32 %v56, %v246
  %v248 = vpop.f32.mrf.mxu0
  %v249 = vadd.f32 %v60, %v248
  %250 = vmatprep.mubr.bf16.mxu0 0
  %251 = vmatmul.mubr.bf16.gmra.mxu0 %v77
  %v252 = vpop.f32.mrf.mxu0
  %v253 = vadd.f32 %v56, %v252
  %v254 = vpop.f32.mrf.mxu0
  %v255 = vadd.f32 %v60, %v254
  %v256 = vpop.f32.mrf.mxu0
  %v257 = vadd.f32 %v56, %v256
  %v258 = vpop.f32.mrf.mxu0
  %v259 = vadd.f32 %v60, %v258
  %260 = vdwg.mxu0
  %261 = vmatprep.subr.bf16.mxu0 0
  %262 = vmatpush1.bf16.msra.mxu0 %v183
  %263 = vmatprep.subr.bf16.mxu0 0
  %264 = vmatpush1.bf16.msra.mxu0 %v180
  %265 = vmatprep.subr.bf16.mxu0 0
  %266 = vmatpush1.bf16.msra.mxu0 %v177
  %267 = vmatprep.subr.bf16.mxu0 0
  %268 = vmatpush1.bf16.msra.mxu0 %v174
  %269 = vmatprep.subr.bf16.mxu0 0
  %270 = vmatpush1.bf16.msra.mxu0 %v171
  %271 = vmatprep.subr.bf16.mxu0 0
  %272 = vmatpush1.bf16.msra.mxu0 %v168
  %273 = vmatprep.subr.bf16.mxu0 0
  %274 = vmatpush1.bf16.msra.mxu0 %v165
  %275 = vmatprep.subr.bf16.mxu0 0
  %276 = vmatpush1.bf16.msra.mxu0 %v162
  %277 = vmatprep.subr.bf16.mxu0 0
  %278 = vmatpush2.bf16.msra.mxu0 0
  %279 = vmatprep.subr.bf16.mxu0 0
  %280 = vmatpush2.bf16.msra.mxu0 0
  %281 = vmatprep.subr.bf16.mxu0 0
  %282 = vmatpush2.bf16.msra.mxu0 0
  %283 = vmatprep.subr.bf16.mxu0 0
  %284 = vmatpush2.bf16.msra.mxu0 0
  %285 = vmatprep.subr.bf16.mxu0 0
  %286 = vmatpush2.bf16.msra.mxu0 0
  %287 = vmatprep.subr.bf16.mxu0 0
  %288 = vmatpush2.bf16.msra.mxu0 0
  %289 = vmatprep.subr.bf16.mxu0 0
  %290 = vmatpush2.bf16.msra.mxu0 0
  %291 = vmatprep.subr.bf16.mxu0 0
  %292 = vmatpush2.bf16.msra.mxu0 0
  %293 = vmatprep.mubr.bf16.mxu0 0
  %294 = vmatmul.mubr.bf16.gmra.mxu0 %v76
  %v295 = vpop.f32.mrf.mxu0
  %v296 = vadd.f32 %v64, %v295
  %v297 = vpop.f32.mrf.mxu0
  %v298 = vpop.f32.mrf.mxu0
  %v299 = vadd.f32 %v64, %v298
  %v300 = vpop.f32.mrf.mxu0
  %301 = vmatprep.mubr.bf16.mxu0 0
  %302 = vmatmul.mubr.bf16.gmra.mxu0 %v77
  %v303 = vpop.f32.mrf.mxu0
  %v304 = vadd.f32 %v64, %v303
  %v305 = vpop.f32.mrf.mxu0
  %v306 = vpop.f32.mrf.mxu0
  %v307 = vadd.f32 %v64, %v306
  %v308 = vpop.f32.mrf.mxu0
  %309 = vdwg.mxu0
  %310 = vst [vmem:[%s3] sm:$0xff] %v243
  %311 = vst [vmem:[%s3 + $0x8] sm:$0xff] %v245
  %312 = vst [vmem:[%s3 + $0x10] sm:$0xff] %v296
  %313 = vst [vmem:[%s3 + $0x18] sm:$0xff] %v247
  %314 = vst [vmem:[%s3 + $0x20] sm:$0xff] %v249
  %315 = vst [vmem:[%s3 + $0x28] sm:$0xff] %v299
  %316 = vst [vmem:[%s3 + $0x30] sm:$0xff] %v253
  %317 = vst [vmem:[%s3 + $0x38] sm:$0xff] %v255
  %318 = vst [vmem:[%s3 + $0x40] sm:$0xff] %v304
  %319 = vst [vmem:[%s3 + $0x48] sm:$0xff] %v257
  %320 = vst [vmem:[%s3 + $0x50] sm:$0xff] %v259
  %321 = vst [vmem:[%s3 + $0x58] sm:$0xff] %v307
  // Predicated region
  $region14: #{main_forward.73} parent=0 // pred_check
    _
  $region15: #{main_forward.73} parent=0 // pred_check_branch
    %323 = sbr.rel (0) target = $region17
  $region16: #{main_forward.73} parent=0 // pred_region
    _
  $region17: #{main_forward.73} parent=0 // pred_fallthru
    _
  // Predicated region
  $region18: #{main_forward.73} parent=0 // pred_check
    _
  $region19: #{main_forward.73} parent=0 // pred_check_branch
    %325 = sbr.rel (0) target = $region21
  $region20: #{main_forward.73} parent=0 // pred_region
    _
  $region21: #{main_forward.73} parent=0 // pred_fallthru
    _

// kernel: main_forward.75
$region0: #{main_forward.75}
  #allocation0 [shape = 'u32[]', space=smem, size = 0x4, offset = 0x4, fixed_abs, tag = 'smem constant byte address 0x4 - core index']
  #allocation1 [shape = 'u32[144,128]{1,0:T(1,128)}', space=vmem, size = 0x12000, scoped, tag = 'internal scratch']
  %s0 = inlined_call_operand.vmem [shape: bf16[32,128], index: 0, kind: input, shape index: {}]
  %s1 = inlined_call_operand.vmem [shape: bf16[128,128], index: 1, kind: input, shape index: {}]
  %s2 = inlined_call_operand.vmem [shape: f32[1,128], index: 2, kind: input, shape index: {}]
  %s3 = inlined_call_operand.vmem [shape: f32[32,128], index: 3, kind: output, shape index: {}]
  %s4 = sld [smem:[#allocation0]]
  $region22: #{main_forward.75} parent=0
    _
  %s6 = ssub.s32 1, %s4
  %s7 = scalar_select 0, %s6, %s4
  // Predicated region
  $region2: #{main_forward.75} parent=0 // pred_check
    _
  $region3: #{main_forward.75} parent=0 // pred_check_branch
    %9 = sbr.rel (0) target = $region5
  $region4: #{main_forward.75} parent=0 // pred_region
    _
  $region5: #{main_forward.75} parent=0 // pred_fallthru
    _
  // Predicated region
  $region6: #{main_forward.75} parent=0 // pred_check
    _
  $region7: #{main_forward.75} parent=0 // pred_check_branch
    %11 = sbr.rel (0) target = $region9
  $region8: #{main_forward.75} parent=0 // pred_region
    _
  $region9: #{main_forward.75} parent=0 // pred_fallthru
    _
  // Predicated region
  $region10: #{main_forward.75} parent=0 // pred_check
    _
  $region11: #{main_forward.75} parent=0 // pred_check_branch
    %13 = sbr.rel (0) target = $region13
  $region12: #{main_forward.75} parent=0 // pred_region
    _
  $region13: #{main_forward.75} parent=0 // pred_fallthru
    _
  %v15 = vld [vmem:[%s0] sm:$0xf]
  %v16 = vld [vmem:[%s0 + $0x4] sm:$0xf]
  %v17 = vld [vmem:[%s0 + $0x8] sm:$0xf]
  %v18 = vld [vmem:[%s0 + $0xc] sm:$0xf]
  %v19 = vld [vmem:[%s1] sm:$0xf]
  %v20 = vld [vmem:[%s1 + $0x4] sm:$0xf]
  %v21 = vld [vmem:[%s1 + $0x8] sm:$0xf]
  %v22 = vld [vmem:[%s1 + $0xc] sm:$0xf]
  %v23 = vld [vmem:[%s1 + $0x10] sm:$0xf]
  %v24 = vld [vmem:[%s1 + $0x14] sm:$0xf]
  %v25 = vld [vmem:[%s1 + $0x18] sm:$0xf]
  %v26 = vld [vmem:[%s1 + $0x1c] sm:$0xf]
  %v27 = vld [vmem:[%s1 + $0x20] sm:$0xf]
  %v28 = vld [vmem:[%s1 + $0x24] sm:$0xf]
  %v29 = vld [vmem:[%s1 + $0x28] sm:$0xf]
  %v30 = vld [vmem:[%s1 + $0x2c] sm:$0xf]
  %v31 = vld [vmem:[%s1 + $0x30] sm:$0xf]
  %v32 = vld [vmem:[%s1 + $0x34] sm:$0xf]
  %v33 = vld [vmem:[%s1 + $0x38] sm:$0xf]
  %v34 = vld [vmem:[%s1 + $0x3c] sm:$0xf]
  %v35 = vld [vmem:[%s2] sm:$0x1]
  %v37 = vlaneseq
  %v38 = vshrl.u32 %v37, 7
  %v39 = vsub.s32 0, %v38
  %v40 = vrot.slane %v35, %v39
  %v46 = vunpack.c.l.b16 %v15
  %v47 = vunpack.c.l.b16 %v16
  %v48 = vunpack.c.l.b16 %v17
  %v49 = vunpack.c.l.b16 %v18
  %v50 = vpack.c.b16 %v47, %v46
  %v51 = vpack.c.b16 %v49, %v48
  %v70 = vunpack.c.l.b16 %v19
  %v71 = vunpack.c.l.b16 %v20
  %v72 = vunpack.c.l.b16 %v21
  %v73 = vunpack.c.l.b16 %v22
  %v74 = vunpack.c.l.b16 %v23
  %v75 = vunpack.c.l.b16 %v24
  %v76 = vunpack.c.l.b16 %v25
  %v77 = vunpack.c.l.b16 %v26
  %v78 = vunpack.c.l.b16 %v27
  %v79 = vunpack.c.l.b16 %v28
  %v80 = vunpack.c.l.b16 %v29
  %v81 = vunpack.c.l.b16 %v30
  %v82 = vunpack.c.l.b16 %v31
  %v83 = vunpack.c.l.b16 %v32
  %v84 = vunpack.c.l.b16 %v33
  %v85 = vunpack.c.l.b16 %v34
  %v86 = vpack.c.b16 %v71, %v70
  %v87 = vpack.c.b16 %v73, %v72
  %v88 = vpack.c.b16 %v75, %v74
  %v89 = vpack.c.b16 %v77, %v76
  %v90 = vpack.c.b16 %v79, %v78
  %v91 = vpack.c.b16 %v81, %v80
  %v92 = vpack.c.b16 %v83, %v82
  %v93 = vpack.c.b16 %v85, %v84
  %102 = vmatprep.subr.bf16.mxu0 0
  %103 = vmatpush1.bf16.msra.mxu0 %v93
  %104 = vmatprep.subr.bf16.mxu0 0
  %105 = vmatpush1.bf16.msra.mxu0 %v92
  %106 = vmatprep.subr.bf16.mxu0 0
  %107 = vmatpush1.bf16.msra.mxu0 %v91
  %108 = vmatprep.subr.bf16.mxu0 0
  %109 = vmatpush1.bf16.msra.mxu0 %v90
  %110 = vmatprep.subr.bf16.mxu0 0
  %111 = vmatpush1.bf16.msra.mxu0 %v89
  %112 = vmatprep.subr.bf16.mxu0 0
  %113 = vmatpush1.bf16.msra.mxu0 %v88
  %114 = vmatprep.subr.bf16.mxu0 0
  %115 = vmatpush1.bf16.msra.mxu0 %v87
  %116 = vmatprep.subr.bf16.mxu0 0
  %117 = vmatpush1.bf16.msra.mxu0 %v86
  %118 = vmatprep.subr.bf16.mxu0 0
  %119 = vmatpush2.bf16.msra.mxu0 0
  %120 = vmatprep.subr.bf16.mxu0 0
  %121 = vmatpush2.bf16.msra.mxu0 0
  %122 = vmatprep.subr.bf16.mxu0 0
  %123 = vmatpush2.bf16.msra.mxu0 0
  %124 = vmatprep.subr.bf16.mxu0 0
  %125 = vmatpush2.bf16.msra.mxu0 0
  %126 = vmatprep.subr.bf16.mxu0 0
  %127 = vmatpush2.bf16.msra.mxu0 0
  %128 = vmatprep.subr.bf16.mxu0 0
  %129 = vmatpush2.bf16.msra.mxu0 0
  %130 = vmatprep.subr.bf16.mxu0 0
  %131 = vmatpush2.bf16.msra.mxu0 0
  %132 = vmatprep.subr.bf16.mxu0 0
  %133 = vmatpush2.bf16.msra.mxu0 0
  %134 = vmatprep.mubr.bf16.mxu0 0
  %135 = vmatmul.mubr.bf16.gmra.mxu0 %v50
  %v136 = vpop.f32.mrf.mxu0
  %v137 = vadd.f32 %v40, %v136
  %v138 = vpop.f32.mrf.mxu0
  %v139 = vpop.f32.mrf.mxu0
  %v140 = vadd.f32 %v40, %v139
  %v141 = vpop.f32.mrf.mxu0
  %142 = vmatprep.mubr.bf16.mxu0 0
  %143 = vmatmul.mubr.bf16.gmra.mxu0 %v51
  %v144 = vpop.f32.mrf.mxu0
  %v145 = vadd.f32 %v40, %v144
  %v146 = vpop.f32.mrf.mxu0
  %v147 = vpop.f32.mrf.mxu0
  %v148 = vadd.f32 %v40, %v147
  %v149 = vpop.f32.mrf.mxu0
  %150 = vdwg.mxu0
  %151 = vst [vmem:[%s3] sm:$0xff] %v137
  %152 = vst [vmem:[%s3 + $0x8] sm:$0xff] %v140
  %153 = vst [vmem:[%s3 + $0x10] sm:$0xff] %v145
  %154 = vst [vmem:[%s3 + $0x18] sm:$0xff] %v148
  // Predicated region
  $region14: #{main_forward.75} parent=0 // pred_check
    _
  $region15: #{main_forward.75} parent=0 // pred_check_branch
    %156 = sbr.rel (0) target = $region17
  $region16: #{main_forward.75} parent=0 // pred_region
    _
  $region17: #{main_forward.75} parent=0 // pred_fallthru
    _
  // Predicated region
  $region18: #{main_forward.75} parent=0 // pred_check
    _
  $region19: #{main_forward.75} parent=0 // pred_check_branch
    %158 = sbr.rel (0) target = $region21
  $region20: #{main_forward.75} parent=0 // pred_region
    _
  $region21: #{main_forward.75} parent=0 // pred_fallthru
    _

// kernel: main_forward.74
$region0: #{main_forward.74}
  #allocation0 [shape = 'u32[]', space=smem, size = 0x4, offset = 0x4, fixed_abs, tag = 'smem constant byte address 0x4 - core index']
  #allocation1 [shape = 'u32[144,128]{1,0:T(1,128)}', space=vmem, size = 0x12000, scoped, tag = 'internal scratch']
  %s0 = inlined_call_operand.vmem [shape: f32[8,32,128], index: 0, kind: input, shape index: {}]
  %s1 = inlined_call_operand.vmem [shape: f32[8,32,128], index: 1, kind: input, shape index: {}]
  %s2 = inlined_call_operand.vmem [shape: f32[8,32,128], index: 2, kind: input, shape index: {}]
  %s3 = inlined_call_operand.vmem [shape: f32[8,1,1], index: 3, kind: input, shape index: {}]
  %s4 = inlined_call_operand.vmem [shape: f32[8,32,128], index: 4, kind: output, shape index: {}]
  %s5 = sld [smem:[#allocation0]]
  $region26: #{main_forward.74} parent=0
    _
  %s7 = ssub.s32 1, %s5
  %s8 = scalar_select 0, %s7, %s5
  // Predicated region
  $region2: #{main_forward.74} parent=0 // pred_check
    _
  $region3: #{main_forward.74} parent=0 // pred_check_branch
    %10 = sbr.rel (0) target = $region5
  $region4: #{main_forward.74} parent=0 // pred_region
    _
  $region5: #{main_forward.74} parent=0 // pred_fallthru
    _
  // Predicated region
  $region6: #{main_forward.74} parent=0 // pred_check
    _
  $region7: #{main_forward.74} parent=0 // pred_check_branch
    %12 = sbr.rel (0) target = $region9
  $region8: #{main_forward.74} parent=0 // pred_region
    _
  $region9: #{main_forward.74} parent=0 // pred_fallthru
    _
  // Predicated region
  $region10: #{main_forward.74} parent=0 // pred_check
    _
  $region11: #{main_forward.74} parent=0 // pred_check_branch
    %14 = sbr.rel (0) target = $region13
  $region12: #{main_forward.74} parent=0 // pred_region
    _
  $region13: #{main_forward.74} parent=0 // pred_fallthru
    _
  // Predicated region
  $region14: #{main_forward.74} parent=0 // pred_check
    _
  $region15: #{main_forward.74} parent=0 // pred_check_branch
    %16 = sbr.rel (0) target = $region17
  $region16: #{main_forward.74} parent=0 // pred_region
    _
  $region17: #{main_forward.74} parent=0 // pred_fallthru
    _
  %v18 = vld [vmem:[%s0] sm:$0xff]
  %v19 = vld [vmem:[%s0 + $0x8] sm:$0xff]
  %v20 = vld [vmem:[%s0 + $0x10] sm:$0xff]
  %v21 = vld [vmem:[%s0 + $0x18] sm:$0xff]
  %v22 = vld [vmem:[%s0 + $0x20] sm:$0xff]
  %v23 = vld [vmem:[%s0 + $0x28] sm:$0xff]
  %v24 = vld [vmem:[%s0 + $0x30] sm:$0xff]
  %v25 = vld [vmem:[%s0 + $0x38] sm:$0xff]
  %v26 = vld [vmem:[%s0 + $0x40] sm:$0xff]
  %v27 = vld [vmem:[%s0 + $0x48] sm:$0xff]
  %v28 = vld [vmem:[%s0 + $0x50] sm:$0xff]
  %v29 = vld [vmem:[%s0 + $0x58] sm:$0xff]
  %v30 = vld [vmem:[%s0 + $0x60] sm:$0xff]
  %v31 = vld [vmem:[%s0 + $0x68] sm:$0xff]
  %v32 = vld [vmem:[%s0 + $0x70] sm:$0xff]
  %v33 = vld [vmem:[%s0 + $0x78] sm:$0xff]
  %v34 = vld [vmem:[%s0 + $0x80] sm:$0xff]
  %v35 = vld [vmem:[%s0 + $0x88] sm:$0xff]
  %v36 = vld [vmem:[%s0 + $0x90] sm:$0xff]
  %v37 = vld [vmem:[%s0 + $0x98] sm:$0xff]
  %v38 = vld [vmem:[%s0 + $0xa0] sm:$0xff]
  %v39 = vld [vmem:[%s0 + $0xa8] sm:$0xff]
  %v40 = vld [vmem:[%s0 + $0xb0] sm:$0xff]
  %v41 = vld [vmem:[%s0 + $0xb8] sm:$0xff]
  %v42 = vld [vmem:[%s0 + $0xc0] sm:$0xff]
  %v43 = vld [vmem:[%s0 + $0xc8] sm:$0xff]
  %v44 = vld [vmem:[%s0 + $0xd0] sm:$0xff]
  %v45 = vld [vmem:[%s0 + $0xd8] sm:$0xff]
  %v46 = vld [vmem:[%s0 + $0xe0] sm:$0xff]
  %v47 = vld [vmem:[%s0 + $0xe8] sm:$0xff]
  %v48 = vld [vmem:[%s0 + $0xf0] sm:$0xff]
  %v49 = vld [vmem:[%s0 + $0xf8] sm:$0xff]
  %v50 = vld [vmem:[%s1] sm:$0xff]
  %v51 = vld [vmem:[%s1 + $0x8] sm:$0xff]
  %v52 = vld [vmem:[%s1 + $0x10] sm:$0xff]
  %v53 = vld [vmem:[%s1 + $0x18] sm:$0xff]
  %v54 = vld [vmem:[%s1 + $0x20] sm:$0xff]
  %v55 = vld [vmem:[%s1 + $0x28] sm:$0xff]
  %v56 = vld [vmem:[%s1 + $0x30] sm:$0xff]
  %v57 = vld [vmem:[%s1 + $0x38] sm:$0xff]
  %v58 = vld [vmem:[%s1 + $0x40] sm:$0xff]
  %v59 = vld [vmem:[%s1 + $0x48] sm:$0xff]
  %v60 = vld [vmem:[%s1 + $0x50] sm:$0xff]
  %v61 = vld [vmem:[%s1 + $0x58] sm:$0xff]
  %v62 = vld [vmem:[%s1 + $0x60] sm:$0xff]
  %v63 = vld [vmem:[%s1 + $0x68] sm:$0xff]
  %v64 = vld [vmem:[%s1 + $0x70] sm:$0xff]
  %v65 = vld [vmem:[%s1 + $0x78] sm:$0xff]
  %v66 = vld [vmem:[%s1 + $0x80] sm:$0xff]
  %v67 = vld [vmem:[%s1 + $0x88] sm:$0xff]
  %v68 = vld [vmem:[%s1 + $0x90] sm:$0xff]
  %v69 = vld [vmem:[%s1 + $0x98] sm:$0xff]
  %v70 = vld [vmem:[%s1 + $0xa0] sm:$0xff]
  %v71 = vld [vmem:[%s1 + $0xa8] sm:$0xff]
  %v72 = vld [vmem:[%s1 + $0xb0] sm:$0xff]
  %v73 = vld [vmem:[%s1 + $0xb8] sm:$0xff]
  %v74 = vld [vmem:[%s1 + $0xc0] sm:$0xff]
  %v75 = vld [vmem:[%s1 + $0xc8] sm:$0xff]
  %v76 = vld [vmem:[%s1 + $0xd0] sm:$0xff]
  %v77 = vld [vmem:[%s1 + $0xd8] sm:$0xff]
  %v78 = vld [vmem:[%s1 + $0xe0] sm:$0xff]
  %v79 = vld [vmem:[%s1 + $0xe8] sm:$0xff]
  %v80 = vld [vmem:[%s1 + $0xf0] sm:$0xff]
  %v81 = vld [vmem:[%s1 + $0xf8] sm:$0xff]
  %v82 = vld [vmem:[%s2] sm:$0xff]
  %v83 = vld [vmem:[%s2 + $0x8] sm:$0xff]
  %v84 = vld [vmem:[%s2 + $0x10] sm:$0xff]
  %v85 = vld [vmem:[%s2 + $0x18] sm:$0xff]
  %v86 = vld [vmem:[%s2 + $0x20] sm:$0xff]
  %v87 = vld [vmem:[%s2 + $0x28] sm:$0xff]
  %v88 = vld [vmem:[%s2 + $0x30] sm:$0xff]
  %v89 = vld [vmem:[%s2 + $0x38] sm:$0xff]
  %v90 = vld [vmem:[%s2 + $0x40] sm:$0xff]
  %v91 = vld [vmem:[%s2 + $0x48] sm:$0xff]
  %v92 = vld [vmem:[%s2 + $0x50] sm:$0xff]
  %v93 = vld [vmem:[%s2 + $0x58] sm:$0xff]
  %v94 = vld [vmem:[%s2 + $0x60] sm:$0xff]
  %v95 = vld [vmem:[%s2 + $0x68] sm:$0xff]
  %v96 = vld [vmem:[%s2 + $0x70] sm:$0xff]
  %v97 = vld [vmem:[%s2 + $0x78] sm:$0xff]
  %v98 = vld [vmem:[%s2 + $0x80] sm:$0xff]
  %v99 = vld [vmem:[%s2 + $0x88] sm:$0xff]
  %v100 = vld [vmem:[%s2 + $0x90] sm:$0xff]
  %v101 = vld [vmem:[%s2 + $0x98] sm:$0xff]
  %v102 = vld [vmem:[%s2 + $0xa0] sm:$0xff]
  %v103 = vld [vmem:[%s2 + $0xa8] sm:$0xff]
  %v104 = vld [vmem:[%s2 + $0xb0] sm:$0xff]
  %v105 = vld [vmem:[%s2 + $0xb8] sm:$0xff]
  %v106 = vld [vmem:[%s2 + $0xc0] sm:$0xff]
  %v107 = vld [vmem:[%s2 + $0xc8] sm:$0xff]
  %v108 = vld [vmem:[%s2 + $0xd0] sm:$0xff]
  %v109 = vld [vmem:[%s2 + $0xd8] sm:$0xff]
  %v110 = vld [vmem:[%s2 + $0xe0] sm:$0xff]
  %v111 = vld [vmem:[%s2 + $0xe8] sm:$0xff]
  %v112 = vld [vmem:[%s2 + $0xf0] sm:$0xff]
  %v113 = vld [vmem:[%s2 + $0xf8] sm:$0xff]
  %v114 = vld [vmem:[%s3] sm:$0x1]
  %v115 = vld [vmem:[%s3 + $0x1] sm:$0x1]
  %v116 = vld [vmem:[%s3 + $0x2] sm:$0x1]
  %v117 = vld [vmem:[%s3 + $0x3] sm:$0x1]
  %v118 = vld [vmem:[%s3 + $0x4] sm:$0x1]
  %v119 = vld [vmem:[%s3 + $0x5] sm:$0x1]
  %v120 = vld [vmem:[%s3 + $0x6] sm:$0x1]
  %v121 = vld [vmem:[%s3 + $0x7] sm:$0x1]
  %v122 = vmul.f32 %v18, %v18
  %v123 = vmul.f32 %v19, %v19
  %v124 = vmul.f32 %v20, %v20
  %v125 = vmul.f32 %v21, %v21
  %v126 = vmul.f32 %v22, %v22
  %v127 = vmul.f32 %v23, %v23
  %v128 = vmul.f32 %v24, %v24
  %v129 = vmul.f32 %v25, %v25
  %v130 = vmul.f32 %v26, %v26
  %v131 = vmul.f32 %v27, %v27
  %v132 = vmul.f32 %v28, %v28
  %v133 = vmul.f32 %v29, %v29
  %v134 = vmul.f32 %v30, %v30
  %v135 = vmul.f32 %v31, %v31
  %v136 = vmul.f32 %v32, %v32
  %v137 = vmul.f32 %v33, %v33
  %v138 = vmul.f32 %v34, %v34
  %v139 = vmul.f32 %v35, %v35
  %v140 = vmul.f32 %v36, %v36
  %v141 = vmul.f32 %v37, %v37
  %v142 = vmul.f32 %v38, %v38
  %v143 = vmul.f32 %v39, %v39
  %v144 = vmul.f32 %v40, %v40
  %v145 = vmul.f32 %v41, %v41
  %v146 = vmul.f32 %v42, %v42
  %v147 = vmul.f32 %v43, %v43
  %v148 = vmul.f32 %v44, %v44
  %v149 = vmul.f32 %v45, %v45
  %v150 = vmul.f32 %v46, %v46
  %v151 = vmul.f32 %v47, %v47
  %v152 = vmul.f32 %v48, %v48
  %v153 = vmul.f32 %v49, %v49
  %154 = vadd.xlane.f32.xlu0 %v122
  %v155 = vpop.xlane.xlu0 %154
  %156 = vadd.xlane.f32.xlu0 %v123
  %v157 = vpop.xlane.xlu0 %156
  %158 = vadd.xlane.f32.xlu0 %v124
  %v159 = vpop.xlane.xlu0 %158
  %160 = vadd.xlane.f32.xlu0 %v125
  %v161 = vpop.xlane.xlu0 %160
  %162 = vadd.xlane.f32.xlu0 %v126
  %v163 = vpop.xlane.xlu0 %162
  %164 = vadd.xlane.f32.xlu0 %v127
  %v165 = vpop.xlane.xlu0 %164
  %166 = vadd.xlane.f32.xlu0 %v128
  %v167 = vpop.xlane.xlu0 %166
  %168 = vadd.xlane.f32.xlu0 %v129
  %v169 = vpop.xlane.xlu0 %168
  %170 = vadd.xlane.f32.xlu0 %v130
  %v171 = vpop.xlane.xlu0 %170
  %172 = vadd.xlane.f32.xlu0 %v131
  %v173 = vpop.xlane.xlu0 %172
  %174 = vadd.xlane.f32.xlu0 %v132
  %v175 = vpop.xlane.xlu0 %174
  %176 = vadd.xlane.f32.xlu0 %v133
  %v177 = vpop.xlane.xlu0 %176
  %178 = vadd.xlane.f32.xlu0 %v134
  %v179 = vpop.xlane.xlu0 %178
  %180 = vadd.xlane.f32.xlu0 %v135
  %v181 = vpop.xlane.xlu0 %180
  %182 = vadd.xlane.f32.xlu0 %v136
  %v183 = vpop.xlane.xlu0 %182
  %184 = vadd.xlane.f32.xlu0 %v137
  %v185 = vpop.xlane.xlu0 %184
  %186 = vadd.xlane.f32.xlu0 %v138
  %v187 = vpop.xlane.xlu0 %186
  %188 = vadd.xlane.f32.xlu0 %v139
  %v189 = vpop.xlane.xlu0 %188
  %190 = vadd.xlane.f32.xlu0 %v140
  %v191 = vpop.xlane.xlu0 %190
  %192 = vadd.xlane.f32.xlu0 %v141
  %v193 = vpop.xlane.xlu0 %192
  %194 = vadd.xlane.f32.xlu0 %v142
  %v195 = vpop.xlane.xlu0 %194
  %196 = vadd.xlane.f32.xlu0 %v143
  %v197 = vpop.xlane.xlu0 %196
  %198 = vadd.xlane.f32.xlu0 %v144
  %v199 = vpop.xlane.xlu0 %198
  %200 = vadd.xlane.f32.xlu0 %v145
  %v201 = vpop.xlane.xlu0 %200
  %202 = vadd.xlane.f32.xlu0 %v146
  %v203 = vpop.xlane.xlu0 %202
  %204 = vadd.xlane.f32.xlu0 %v147
  %v205 = vpop.xlane.xlu0 %204
  %206 = vadd.xlane.f32.xlu0 %v148
  %v207 = vpop.xlane.xlu0 %206
  %208 = vadd.xlane.f32.xlu0 %v149
  %v209 = vpop.xlane.xlu0 %208
  %210 = vadd.xlane.f32.xlu0 %v150
  %v211 = vpop.xlane.xlu0 %210
  %212 = vadd.xlane.f32.xlu0 %v151
  %v213 = vpop.xlane.xlu0 %212
  %214 = vadd.xlane.f32.xlu0 %v152
  %v215 = vpop.xlane.xlu0 %214
  %216 = vadd.xlane.f32.xlu0 %v153
  %v217 = vpop.xlane.xlu0 %216
  %v218 = vadd.f32 %v155, 1e-12
  %v219 = vadd.f32 %v157, 1e-12
  %v220 = vadd.f32 %v159, 1e-12
  %v221 = vadd.f32 %v161, 1e-12
  %v222 = vadd.f32 %v163, 1e-12
  %v223 = vadd.f32 %v165, 1e-12
  %v224 = vadd.f32 %v167, 1e-12
  %v225 = vadd.f32 %v169, 1e-12
  %v226 = vadd.f32 %v171, 1e-12
  %v227 = vadd.f32 %v173, 1e-12
  %v228 = vadd.f32 %v175, 1e-12
  %v229 = vadd.f32 %v177, 1e-12
  %v230 = vadd.f32 %v179, 1e-12
  %v231 = vadd.f32 %v181, 1e-12
  %v232 = vadd.f32 %v183, 1e-12
  %v233 = vadd.f32 %v185, 1e-12
  %v234 = vadd.f32 %v187, 1e-12
  %v235 = vadd.f32 %v189, 1e-12
  %v236 = vadd.f32 %v191, 1e-12
  %v237 = vadd.f32 %v193, 1e-12
  %v238 = vadd.f32 %v195, 1e-12
  %v239 = vadd.f32 %v197, 1e-12
  %v240 = vadd.f32 %v199, 1e-12
  %v241 = vadd.f32 %v201, 1e-12
  %v242 = vadd.f32 %v203, 1e-12
  %v243 = vadd.f32 %v205, 1e-12
  %v244 = vadd.f32 %v207, 1e-12
  %v245 = vadd.f32 %v209, 1e-12
  %v246 = vadd.f32 %v211, 1e-12
  %v247 = vadd.f32 %v213, 1e-12
  %v248 = vadd.f32 %v215, 1e-12
  %v249 = vadd.f32 %v217, 1e-12
  %v250 = vrsqrt.pop %v218
  %v251 = vrsqrt.pop %v219
  %v252 = vrsqrt.pop %v220
  %v253 = vrsqrt.pop %v221
  %v254 = vrsqrt.pop %v222
  %v255 = vrsqrt.pop %v223
  %v256 = vrsqrt.pop %v224
  %v257 = vrsqrt.pop %v225
  %v258 = vrsqrt.pop %v226
  %v259 = vrsqrt.pop %v227
  %v260 = vrsqrt.pop %v228
  %v261 = vrsqrt.pop %v229
  %v262 = vrsqrt.pop %v230
  %v263 = vrsqrt.pop %v231
  %v264 = vrsqrt.pop %v232
  %v265 = vrsqrt.pop %v233
  %v266 = vrsqrt.pop %v234
  %v267 = vrsqrt.pop %v235
  %v268 = vrsqrt.pop %v236
  %v269 = vrsqrt.pop %v237
  %v270 = vrsqrt.pop %v238
  %v271 = vrsqrt.pop %v239
  %v272 = vrsqrt.pop %v240
  %v273 = vrsqrt.pop %v241
  %v274 = vrsqrt.pop %v242
  %v275 = vrsqrt.pop %v243
  %v276 = vrsqrt.pop %v244
  %v277 = vrsqrt.pop %v245
  %v278 = vrsqrt.pop %v246
  %v279 = vrsqrt.pop %v247
  %v280 = vrsqrt.pop %v248
  %v281 = vrsqrt.pop %v249
  %v282 = vmul.f32 %v18, %v250
  %v283 = vmul.f32 %v19, %v251
  %v284 = vmul.f32 %v20, %v252
  %v285 = vmul.f32 %v21, %v253
  %v286 = vmul.f32 %v22, %v254
  %v287 = vmul.f32 %v23, %v255
  %v288 = vmul.f32 %v24, %v256
  %v289 = vmul.f32 %v25, %v257
  %v290 = vmul.f32 %v26, %v258
  %v291 = vmul.f32 %v27, %v259
  %v292 = vmul.f32 %v28, %v260
  %v293 = vmul.f32 %v29, %v261
  %v294 = vmul.f32 %v30, %v262
  %v295 = vmul.f32 %v31, %v263
  %v296 = vmul.f32 %v32, %v264
  %v297 = vmul.f32 %v33, %v265
  %v298 = vmul.f32 %v34, %v266
  %v299 = vmul.f32 %v35, %v267
  %v300 = vmul.f32 %v36, %v268
  %v301 = vmul.f32 %v37, %v269
  %v302 = vmul.f32 %v38, %v270
  %v303 = vmul.f32 %v39, %v271
  %v304 = vmul.f32 %v40, %v272
  %v305 = vmul.f32 %v41, %v273
  %v306 = vmul.f32 %v42, %v274
  %v307 = vmul.f32 %v43, %v275
  %v308 = vmul.f32 %v44, %v276
  %v309 = vmul.f32 %v45, %v277
  %v310 = vmul.f32 %v46, %v278
  %v311 = vmul.f32 %v47, %v279
  %v312 = vmul.f32 %v48, %v280
  %v313 = vmul.f32 %v49, %v281
  %v314 = vmul.f32 %v50, %v50
  %v315 = vmul.f32 %v51, %v51
  %v316 = vmul.f32 %v52, %v52
  %v317 = vmul.f32 %v53, %v53
  %v318 = vmul.f32 %v54, %v54
  %v319 = vmul.f32 %v55, %v55
  %v320 = vmul.f32 %v56, %v56
  %v321 = vmul.f32 %v57, %v57
  %v322 = vmul.f32 %v58, %v58
  %v323 = vmul.f32 %v59, %v59
  %v324 = vmul.f32 %v60, %v60
  %v325 = vmul.f32 %v61, %v61
  %v326 = vmul.f32 %v62, %v62
  %v327 = vmul.f32 %v63, %v63
  %v328 = vmul.f32 %v64, %v64
  %v329 = vmul.f32 %v65, %v65
  %v330 = vmul.f32 %v66, %v66
  %v331 = vmul.f32 %v67, %v67
  %v332 = vmul.f32 %v68, %v68
  %v333 = vmul.f32 %v69, %v69
  %v334 = vmul.f32 %v70, %v70
  %v335 = vmul.f32 %v71, %v71
  %v336 = vmul.f32 %v72, %v72
  %v337 = vmul.f32 %v73, %v73
  %v338 = vmul.f32 %v74, %v74
  %v339 = vmul.f32 %v75, %v75
  %v340 = vmul.f32 %v76, %v76
  %v341 = vmul.f32 %v77, %v77
  %v342 = vmul.f32 %v78, %v78
  %v343 = vmul.f32 %v79, %v79
  %v344 = vmul.f32 %v80, %v80
  %v345 = vmul.f32 %v81, %v81
  %346 = vadd.xlane.f32.xlu0 %v314
  %v347 = vpop.xlane.xlu0 %346
  %348 = vadd.xlane.f32.xlu0 %v315
  %v349 = vpop.xlane.xlu0 %348
  %350 = vadd.xlane.f32.xlu0 %v316
  %v351 = vpop.xlane.xlu0 %350
  %352 = vadd.xlane.f32.xlu0 %v317
  %v353 = vpop.xlane.xlu0 %352
  %354 = vadd.xlane.f32.xlu0 %v318
  %v355 = vpop.xlane.xlu0 %354
  %356 = vadd.xlane.f32.xlu0 %v319
  %v357 = vpop.xlane.xlu0 %356
  %358 = vadd.xlane.f32.xlu0 %v320
  %v359 = vpop.xlane.xlu0 %358
  %360 = vadd.xlane.f32.xlu0 %v321
  %v361 = vpop.xlane.xlu0 %360
  %362 = vadd.xlane.f32.xlu0 %v322
  %v363 = vpop.xlane.xlu0 %362
  %364 = vadd.xlane.f32.xlu0 %v323
  %v365 = vpop.xlane.xlu0 %364
  %366 = vadd.xlane.f32.xlu0 %v324
  %v367 = vpop.xlane.xlu0 %366
  %368 = vadd.xlane.f32.xlu0 %v325
  %v369 = vpop.xlane.xlu0 %368
  %370 = vadd.xlane.f32.xlu0 %v326
  %v371 = vpop.xlane.xlu0 %370
  %372 = vadd.xlane.f32.xlu0 %v327
  %v373 = vpop.xlane.xlu0 %372
  %374 = vadd.xlane.f32.xlu0 %v328
  %v375 = vpop.xlane.xlu0 %374
  %376 = vadd.xlane.f32.xlu0 %v329
  %v377 = vpop.xlane.xlu0 %376
  %378 = vadd.xlane.f32.xlu0 %v330
  %v379 = vpop.xlane.xlu0 %378
  %380 = vadd.xlane.f32.xlu0 %v331
  %v381 = vpop.xlane.xlu0 %380
  %382 = vadd.xlane.f32.xlu0 %v332
  %v383 = vpop.xlane.xlu0 %382
  %384 = vadd.xlane.f32.xlu0 %v333
  %v385 = vpop.xlane.xlu0 %384
  %386 = vadd.xlane.f32.xlu0 %v334
  %v387 = vpop.xlane.xlu0 %386
  %388 = vadd.xlane.f32.xlu0 %v335
  %v389 = vpop.xlane.xlu0 %388
  %390 = vadd.xlane.f32.xlu0 %v336
  %v391 = vpop.xlane.xlu0 %390
  %392 = vadd.xlane.f32.xlu0 %v337
  %v393 = vpop.xlane.xlu0 %392
  %394 = vadd.xlane.f32.xlu0 %v338
  %v395 = vpop.xlane.xlu0 %394
  %396 = vadd.xlane.f32.xlu0 %v339
  %v397 = vpop.xlane.xlu0 %396
  %398 = vadd.xlane.f32.xlu0 %v340
  %v399 = vpop.xlane.xlu0 %398
  %400 = vadd.xlane.f32.xlu0 %v341
  %v401 = vpop.xlane.xlu0 %400
  %402 = vadd.xlane.f32.xlu0 %v342
  %v403 = vpop.xlane.xlu0 %402
  %404 = vadd.xlane.f32.xlu0 %v343
  %v405 = vpop.xlane.xlu0 %404
  %406 = vadd.xlane.f32.xlu0 %v344
  %v407 = vpop.xlane.xlu0 %406
  %408 = vadd.xlane.f32.xlu0 %v345
  %v409 = vpop.xlane.xlu0 %408
  %v410 = vadd.f32 %v347, 1e-12
  %v411 = vadd.f32 %v349, 1e-12
  %v412 = vadd.f32 %v351, 1e-12
  %v413 = vadd.f32 %v353, 1e-12
  %v414 = vadd.f32 %v355, 1e-12
  %v415 = vadd.f32 %v357, 1e-12
  %v416 = vadd.f32 %v359, 1e-12
  %v417 = vadd.f32 %v361, 1e-12
  %v418 = vadd.f32 %v363, 1e-12
  %v419 = vadd.f32 %v365, 1e-12
  %v420 = vadd.f32 %v367, 1e-12
  %v421 = vadd.f32 %v369, 1e-12
  %v422 = vadd.f32 %v371, 1e-12
  %v423 = vadd.f32 %v373, 1e-12
  %v424 = vadd.f32 %v375, 1e-12
  %v425 = vadd.f32 %v377, 1e-12
  %v426 = vadd.f32 %v379, 1e-12
  %v427 = vadd.f32 %v381, 1e-12
  %v428 = vadd.f32 %v383, 1e-12
  %v429 = vadd.f32 %v385, 1e-12
  %v430 = vadd.f32 %v387, 1e-12
  %v431 = vadd.f32 %v389, 1e-12
  %v432 = vadd.f32 %v391, 1e-12
  %v433 = vadd.f32 %v393, 1e-12
  %v434 = vadd.f32 %v395, 1e-12
  %v435 = vadd.f32 %v397, 1e-12
  %v436 = vadd.f32 %v399, 1e-12
  %v437 = vadd.f32 %v401, 1e-12
  %v438 = vadd.f32 %v403, 1e-12
  %v439 = vadd.f32 %v405, 1e-12
  %v440 = vadd.f32 %v407, 1e-12
  %v441 = vadd.f32 %v409, 1e-12
  %v442 = vrsqrt.pop %v410
  %v443 = vrsqrt.pop %v411
  %v444 = vrsqrt.pop %v412
  %v445 = vrsqrt.pop %v413
  %v446 = vrsqrt.pop %v414
  %v447 = vrsqrt.pop %v415
  %v448 = vrsqrt.pop %v416
  %v449 = vrsqrt.pop %v417
  %v450 = vrsqrt.pop %v418
  %v451 = vrsqrt.pop %v419
  %v452 = vrsqrt.pop %v420
  %v453 = vrsqrt.pop %v421
  %v454 = vrsqrt.pop %v422
  %v455 = vrsqrt.pop %v423
  %v456 = vrsqrt.pop %v424
  %v457 = vrsqrt.pop %v425
  %v458 = vrsqrt.pop %v426
  %v459 = vrsqrt.pop %v427
  %v460 = vrsqrt.pop %v428
  %v461 = vrsqrt.pop %v429
  %v462 = vrsqrt.pop %v430
  %v463 = vrsqrt.pop %v431
  %v464 = vrsqrt.pop %v432
  %v465 = vrsqrt.pop %v433
  %v466 = vrsqrt.pop %v434
  %v467 = vrsqrt.pop %v435
  %v468 = vrsqrt.pop %v436
  %v469 = vrsqrt.pop %v437
  %v470 = vrsqrt.pop %v438
  %v471 = vrsqrt.pop %v439
  %v472 = vrsqrt.pop %v440
  %v473 = vrsqrt.pop %v441
  %v474 = vmul.f32 %v50, %v442
  %v475 = vmul.f32 %v51, %v443
  %v476 = vmul.f32 %v52, %v444
  %v477 = vmul.f32 %v53, %v445
  %v478 = vmul.f32 %v54, %v446
  %v479 = vmul.f32 %v55, %v447
  %v480 = vmul.f32 %v56, %v448
  %v481 = vmul.f32 %v57, %v449
  %v482 = vmul.f32 %v58, %v450
  %v483 = vmul.f32 %v59, %v451
  %v484 = vmul.f32 %v60, %v452
  %v485 = vmul.f32 %v61, %v453
  %v486 = vmul.f32 %v62, %v454
  %v487 = vmul.f32 %v63, %v455
  %v488 = vmul.f32 %v64, %v456
  %v489 = vmul.f32 %v65, %v457
  %v490 = vmul.f32 %v66, %v458
  %v491 = vmul.f32 %v67, %v459
  %v492 = vmul.f32 %v68, %v460
  %v493 = vmul.f32 %v69, %v461
  %v494 = vmul.f32 %v70, %v462
  %v495 = vmul.f32 %v71, %v463
  %v496 = vmul.f32 %v72, %v464
  %v497 = vmul.f32 %v73, %v465
  %v498 = vmul.f32 %v74, %v466
  %v499 = vmul.f32 %v75, %v467
  %v500 = vmul.f32 %v76, %v468
  %v501 = vmul.f32 %v77, %v469
  %v502 = vmul.f32 %v78, %v470
  %v503 = vmul.f32 %v79, %v471
  %v504 = vmul.f32 %v80, %v472
  %v505 = vmul.f32 %v81, %v473
  %v506 = vpack.c.bf16 %v283, %v282
  %v507 = vpack.c.bf16 %v285, %v284
  %v508 = vpack.c.bf16 %v287, %v286
  %v509 = vpack.c.bf16 %v289, %v288
  %v510 = vpack.c.bf16 %v291, %v290
  %v511 = vpack.c.bf16 %v293, %v292
  %v512 = vpack.c.bf16 %v295, %v294
  %v513 = vpack.c.bf16 %v297, %v296
  %v514 = vpack.c.bf16 %v299, %v298
  %v515 = vpack.c.bf16 %v301, %v300
  %v516 = vpack.c.bf16 %v303, %v302
  %v517 = vpack.c.bf16 %v305, %v304
  %v518 = vpack.c.bf16 %v307, %v306
  %v519 = vpack.c.bf16 %v309, %v308
  %v520 = vpack.c.bf16 %v311, %v310
  %v521 = vpack.c.bf16 %v313, %v312
  %v522 = vpack.c.bf16 %v475, %v474
  %v523 = vpack.c.bf16 %v477, %v476
  %v524 = vpack.c.bf16 %v479, %v478
  %v525 = vpack.c.bf16 %v481, %v480
  %v526 = vpack.c.bf16 %v483, %v482
  %v527 = vpack.c.bf16 %v485, %v484
  %v528 = vpack.c.bf16 %v487, %v486
  %v529 = vpack.c.bf16 %v489, %v488
  %v530 = vpack.c.bf16 %v491, %v490
  %v531 = vpack.c.bf16 %v493, %v492
  %v532 = vpack.c.bf16 %v495, %v494
  %v533 = vpack.c.bf16 %v497, %v496
  %v534 = vpack.c.bf16 %v499, %v498
  %v535 = vpack.c.bf16 %v501, %v500
  %v536 = vpack.c.bf16 %v503, %v502
  %v537 = vpack.c.bf16 %v505, %v504
  %538 = vmatprep.subr.bf16.mxu0 0
  %539 = vmatpush1.bf16.xpose.msra.mxu0 0
  %540 = vmatprep.subr.bf16.mxu0 0
  %541 = vmatpush1.bf16.xpose.msra.mxu0 0
  %542 = vmatprep.subr.bf16.mxu0 0
  %543 = vmatpush1.bf16.xpose.msra.mxu0 0
  %544 = vmatprep.subr.bf16.mxu0 0
  %545 = vmatpush1.bf16.xpose.msra.mxu0 0
  %546 = vmatprep.subr.bf16.mxu0 0
  %547 = vmatpush1.bf16.xpose.msra.mxu0 0
  %548 = vmatprep.subr.bf16.mxu0 0
  %549 = vmatpush1.bf16.xpose.msra.mxu0 0
  %550 = vmatprep.subr.bf16.mxu0 0
  %551 = vmatpush1.bf16.xpose.msra.mxu0 %v523
  %552 = vmatprep.subr.bf16.mxu0 0
  %553 = vmatpush1.bf16.xpose.msra.mxu0 %v522
  %554 = vmatprep.subr.bf16.mxu0 0
  %555 = vmatpush2.bf16.xpose.msra.mxu0 0
  %556 = vmatprep.subr.bf16.mxu0 0
  %557 = vmatpush2.bf16.xpose.msra.mxu0 0
  %558 = vmatprep.subr.bf16.mxu0 0
  %559 = vmatpush2.bf16.xpose.msra.mxu0 0
  %560 = vmatprep.subr.bf16.mxu0 0
  %561 = vmatpush2.bf16.xpose.msra.mxu0 0
  %562 = vmatprep.subr.bf16.mxu0 0
  %563 = vmatpush2.bf16.xpose.msra.mxu0 0
  %564 = vmatprep.subr.bf16.mxu0 0
  %565 = vmatpush2.bf16.xpose.msra.mxu0 0
  %566 = vmatprep.subr.bf16.mxu0 0
  %567 = vmatpush2.bf16.xpose.msra.mxu0 0
  %568 = vmatprep.subr.bf16.mxu0 0
  %569 = vmatpush2.bf16.xpose.msra.mxu0 0
  %570 = vmatprep.mubr.bf16.mxu0 0
  %571 = vmatmul.mubr.bf16.gmra.mxu0 %v506
  %v572 = vpop.f32.mrf.mxu0
  %v573 = vadd.f32 0.0, %v572
  %v574 = vpop.f32.mrf.mxu0
  %v575 = vpop.f32.mrf.mxu0
  %v576 = vadd.f32 0.0, %v575
  %v577 = vpop.f32.mrf.mxu0
  %578 = vmatprep.mubr.bf16.mxu0 0
  %579 = vmatmul.mubr.bf16.gmra.mxu0 %v507
  %v580 = vpop.f32.mrf.mxu0
  %v581 = vadd.f32 0.0, %v580
  %v582 = vpop.f32.mrf.mxu0
  %v583 = vpop.f32.mrf.mxu0
  %v584 = vadd.f32 0.0, %v583
  %v585 = vpop.f32.mrf.mxu0
  %586 = vdwg.mxu0
  %587 = vmatprep.subr.bf16.mxu0 0
  %588 = vmatpush1.bf16.xpose.msra.mxu0 0
  %589 = vmatprep.subr.bf16.mxu0 0
  %590 = vmatpush1.bf16.xpose.msra.mxu0 0
  %591 = vmatprep.subr.bf16.mxu0 0
  %592 = vmatpush1.bf16.xpose.msra.mxu0 0
  %593 = vmatprep.subr.bf16.mxu0 0
  %594 = vmatpush1.bf16.xpose.msra.mxu0 0
  %595 = vmatprep.subr.bf16.mxu0 0
  %596 = vmatpush1.bf16.xpose.msra.mxu0 0
  %597 = vmatprep.subr.bf16.mxu0 0
  %598 = vmatpush1.bf16.xpose.msra.mxu0 0
  %599 = vmatprep.subr.bf16.mxu0 0
  %600 = vmatpush1.bf16.xpose.msra.mxu0 %v525
  %601 = vmatprep.subr.bf16.mxu0 0
  %602 = vmatpush1.bf16.xpose.msra.mxu0 %v524
  %603 = vmatprep.subr.bf16.mxu0 0
  %604 = vmatpush2.bf16.xpose.msra.mxu0 0
  %605 = vmatprep.subr.bf16.mxu0 0
  %606 = vmatpush2.bf16.xpose.msra.mxu0 0
  %607 = vmatprep.subr.bf16.mxu0 0
  %608 = vmatpush2.bf16.xpose.msra.mxu0 0
  %609 = vmatprep.subr.bf16.mxu0 0
  %610 = vmatpush2.bf16.xpose.msra.mxu0 0
  %611 = vmatprep.subr.bf16.mxu0 0
  %612 = vmatpush2.bf16.xpose.msra.mxu0 0
  %613 = vmatprep.subr.bf16.mxu0 0
  %614 = vmatpush2.bf16.xpose.msra.mxu0 0
  %615 = vmatprep.subr.bf16.mxu0 0
  %616 = vmatpush2.bf16.xpose.msra.mxu0 0
  %617 = vmatprep.subr.bf16.mxu0 0
  %618 = vmatpush2.bf16.xpose.msra.mxu0 0
  %619 = vmatprep.mubr.bf16.mxu0 0
  %620 = vmatmul.mubr.bf16.gmra.mxu0 %v508
  %v621 = vpop.f32.mrf.mxu0
  %v622 = vadd.f32 0.0, %v621
  %v623 = vpop.f32.mrf.mxu0
  %v624 = vpop.f32.mrf.mxu0
  %v625 = vadd.f32 0.0, %v624
  %v626 = vpop.f32.mrf.mxu0
  %627 = vmatprep.mubr.bf16.mxu0 0
  %628 = vmatmul.mubr.bf16.gmra.mxu0 %v509
  %v629 = vpop.f32.mrf.mxu0
  %v630 = vadd.f32 0.0, %v629
  %v631 = vpop.f32.mrf.mxu0
  %v632 = vpop.f32.mrf.mxu0
  %v633 = vadd.f32 0.0, %v632
  %v634 = vpop.f32.mrf.mxu0
  %635 = vdwg.mxu0
  %636 = vmatprep.subr.bf16.mxu0 0
  %637 = vmatpush1.bf16.xpose.msra.mxu0 0
  %638 = vmatprep.subr.bf16.mxu0 0
  %639 = vmatpush1.bf16.xpose.msra.mxu0 0
  %640 = vmatprep.subr.bf16.mxu0 0
  %641 = vmatpush1.bf16.xpose.msra.mxu0 0
  %642 = vmatprep.subr.bf16.mxu0 0
  %643 = vmatpush1.bf16.xpose.msra.mxu0 0
  %644 = vmatprep.subr.bf16.mxu0 0
  %645 = vmatpush1.bf16.xpose.msra.mxu0 0
  %646 = vmatprep.subr.bf16.mxu0 0
  %647 = vmatpush1.bf16.xpose.msra.mxu0 0
  %648 = vmatprep.subr.bf16.mxu0 0
  %649 = vmatpush1.bf16.xpose.msra.mxu0 %v527
  %650 = vmatprep.subr.bf16.mxu0 0
  %651 = vmatpush1.bf16.xpose.msra.mxu0 %v526
  %652 = vmatprep.subr.bf16.mxu0 0
  %653 = vmatpush2.bf16.xpose.msra.mxu0 0
  %654 = vmatprep.subr.bf16.mxu0 0
  %655 = vmatpush2.bf16.xpose.msra.mxu0 0
  %656 = vmatprep.subr.bf16.mxu0 0
  %657 = vmatpush2.bf16.xpose.msra.mxu0 0
  %658 = vmatprep.subr.bf16.mxu0 0
  %659 = vmatpush2.bf16.xpose.msra.mxu0 0
  %660 = vmatprep.subr.bf16.mxu0 0
  %661 = vmatpush2.bf16.xpose.msra.mxu0 0
  %662 = vmatprep.subr.bf16.mxu0 0
  %663 = vmatpush2.bf16.xpose.msra.mxu0 0
  %664 = vmatprep.subr.bf16.mxu0 0
  %665 = vmatpush2.bf16.xpose.msra.mxu0 0
  %666 = vmatprep.subr.bf16.mxu0 0
  %667 = vmatpush2.bf16.xpose.msra.mxu0 0
  %668 = vmatprep.mubr.bf16.mxu0 0
  %669 = vmatmul.mubr.bf16.gmra.mxu0 %v510
  %v670 = vpop.f32.mrf.mxu0
  %v671 = vadd.f32 0.0, %v670
  %v672 = vpop.f32.mrf.mxu0
  %v673 = vpop.f32.mrf.mxu0
  %v674 = vadd.f32 0.0, %v673
  %v675 = vpop.f32.mrf.mxu0
  %676 = vmatprep.mubr.bf16.mxu0 0
  %677 = vmatmul.mubr.bf16.gmra.mxu0 %v511
  %v678 = vpop.f32.mrf.mxu0
  %v679 = vadd.f32 0.0, %v678
  %v680 = vpop.f32.mrf.mxu0
  %v681 = vpop.f32.mrf.mxu0
  %v682 = vadd.f32 0.0, %v681
  %v683 = vpop.f32.mrf.mxu0
  %684 = vdwg.mxu0
  %685 = vmatprep.subr.bf16.mxu0 0
  %686 = vmatpush1.bf16.xpose.msra.mxu0 0
  %687 = vmatprep.subr.bf16.mxu0 0
  %688 = vmatpush1.bf16.xpose.msra.mxu0 0
  %689 = vmatprep.subr.bf16.mxu0 0
  %690 = vmatpush1.bf16.xpose.msra.mxu0 0
  %691 = vmatprep.subr.bf16.mxu0 0
  %692 = vmatpush1.bf16.xpose.msra.mxu0 0
  %693 = vmatprep.subr.bf16.mxu0 0
  %694 = vmatpush1.bf16.xpose.msra.mxu0 0
  %695 = vmatprep.subr.bf16.mxu0 0
  %696 = vmatpush1.bf16.xpose.msra.mxu0 0
  %697 = vmatprep.subr.bf16.mxu0 0
  %698 = vmatpush1.bf16.xpose.msra.mxu0 %v529
  %699 = vmatprep.subr.bf16.mxu0 0
  %700 = vmatpush1.bf16.xpose.msra.mxu0 %v528
  %701 = vmatprep.subr.bf16.mxu0 0
  %702 = vmatpush2.bf16.xpose.msra.mxu0 0
  %703 = vmatprep.subr.bf16.mxu0 0
  %704 = vmatpush2.bf16.xpose.msra.mxu0 0
  %705 = vmatprep.subr.bf16.mxu0 0
  %706 = vmatpush2.bf16.xpose.msra.mxu0 0
  %707 = vmatprep.subr.bf16.mxu0 0
  %708 = vmatpush2.bf16.xpose.msra.mxu0 0
  %709 = vmatprep.subr.bf16.mxu0 0
  %710 = vmatpush2.bf16.xpose.msra.mxu0 0
  %711 = vmatprep.subr.bf16.mxu0 0
  %712 = vmatpush2.bf16.xpose.msra.mxu0 0
  %713 = vmatprep.subr.bf16.mxu0 0
  %714 = vmatpush2.bf16.xpose.msra.mxu0 0
  %715 = vmatprep.subr.bf16.mxu0 0
  %716 = vmatpush2.bf16.xpose.msra.mxu0 0
  %717 = vmatprep.mubr.bf16.mxu0 0
  %718 = vmatmul.mubr.bf16.gmra.mxu0 %v512
  %v719 = vpop.f32.mrf.mxu0
  %v720 = vadd.f32 0.0, %v719
  %v721 = vpop.f32.mrf.mxu0
  %v722 = vpop.f32.mrf.mxu0
  %v723 = vadd.f32 0.0, %v722
  %v724 = vpop.f32.mrf.mxu0
  %725 = vmatprep.mubr.bf16.mxu0 0
  %726 = vmatmul.mubr.bf16.gmra.mxu0 %v513
  %v727 = vpop.f32.mrf.mxu0
  %v728 = vadd.f32 0.0, %v727
  %v729 = vpop.f32.mrf.mxu0
  %v730 = vpop.f32.mrf.mxu0
  %v731 = vadd.f32 0.0, %v730
  %v732 = vpop.f32.mrf.mxu0
  %733 = vdwg.mxu0
  %734 = vmatprep.subr.bf16.mxu0 0
  %735 = vmatpush1.bf16.xpose.msra.mxu0 0
  %736 = vmatprep.subr.bf16.mxu0 0
  %737 = vmatpush1.bf16.xpose.msra.mxu0 0
  %738 = vmatprep.subr.bf16.mxu0 0
  %739 = vmatpush1.bf16.xpose.msra.mxu0 0
  %740 = vmatprep.subr.bf16.mxu0 0
  %741 = vmatpush1.bf16.xpose.msra.mxu0 0
  %742 = vmatprep.subr.bf16.mxu0 0
  %743 = vmatpush1.bf16.xpose.msra.mxu0 0
  %744 = vmatprep.subr.bf16.mxu0 0
  %745 = vmatpush1.bf16.xpose.msra.mxu0 0
  %746 = vmatprep.subr.bf16.mxu0 0
  %747 = vmatpush1.bf16.xpose.msra.mxu0 %v531
  %748 = vmatprep.subr.bf16.mxu0 0
  %749 = vmatpush1.bf16.xpose.msra.mxu0 %v530
  %750 = vmatprep.subr.bf16.mxu0 0
  %751 = vmatpush2.bf16.xpose.msra.mxu0 0
  %752 = vmatprep.subr.bf16.mxu0 0
  %753 = vmatpush2.bf16.xpose.msra.mxu0 0
  %754 = vmatprep.subr.bf16.mxu0 0
  %755 = vmatpush2.bf16.xpose.msra.mxu0 0
  %756 = vmatprep.subr.bf16.mxu0 0
  %757 = vmatpush2.bf16.xpose.msra.mxu0 0
  %758 = vmatprep.subr.bf16.mxu0 0
  %759 = vmatpush2.bf16.xpose.msra.mxu0 0
  %760 = vmatprep.subr.bf16.mxu0 0
  %761 = vmatpush2.bf16.xpose.msra.mxu0 0
  %762 = vmatprep.subr.bf16.mxu0 0
  %763 = vmatpush2.bf16.xpose.msra.mxu0 0
  %764 = vmatprep.subr.bf16.mxu0 0
  %765 = vmatpush2.bf16.xpose.msra.mxu0 0
  %766 = vmatprep.mubr.bf16.mxu0 0
  %767 = vmatmul.mubr.bf16.gmra.mxu0 %v514
  %v768 = vpop.f32.mrf.mxu0
  %v769 = vadd.f32 0.0, %v768
  %v770 = vpop.f32.mrf.mxu0
  %v771 = vpop.f32.mrf.mxu0
  %v772 = vadd.f32 0.0, %v771
  %v773 = vpop.f32.mrf.mxu0
  %774 = vmatprep.mubr.bf16.mxu0 0
  %775 = vmatmul.mubr.bf16.gmra.mxu0 %v515
  %v776 = vpop.f32.mrf.mxu0
  %v777 = vadd.f32 0.0, %v776
  %v778 = vpop.f32.mrf.mxu0
  %v779 = vpop.f32.mrf.mxu0
  %v780 = vadd.f32 0.0, %v779
  %v781 = vpop.f32.mrf.mxu0
  %782 = vdwg.mxu0
  %783 = vmatprep.subr.bf16.mxu0 0
  %784 = vmatpush1.bf16.xpose.msra.mxu0 0
  %785 = vmatprep.subr.bf16.mxu0 0
  %786 = vmatpush1.bf16.xpose.msra.mxu0 0
  %787 = vmatprep.subr.bf16.mxu0 0
  %788 = vmatpush1.bf16.xpose.msra.mxu0 0
  %789 = vmatprep.subr.bf16.mxu0 0
  %790 = vmatpush1.bf16.xpose.msra.mxu0 0
  %791 = vmatprep.subr.bf16.mxu0 0
  %792 = vmatpush1.bf16.xpose.msra.mxu0 0
  %793 = vmatprep.subr.bf16.mxu0 0
  %794 = vmatpush1.bf16.xpose.msra.mxu0 0
  %795 = vmatprep.subr.bf16.mxu0 0
  %796 = vmatpush1.bf16.xpose.msra.mxu0 %v533
  %797 = vmatprep.subr.bf16.mxu0 0
  %798 = vmatpush1.bf16.xpose.msra.mxu0 %v532
  %799 = vmatprep.subr.bf16.mxu0 0
  %800 = vmatpush2.bf16.xpose.msra.mxu0 0
  %801 = vmatprep.subr.bf16.mxu0 0
  %802 = vmatpush2.bf16.xpose.msra.mxu0 0
  %803 = vmatprep.subr.bf16.mxu0 0
  %804 = vmatpush2.bf16.xpose.msra.mxu0 0
  %805 = vmatprep.subr.bf16.mxu0 0
  %806 = vmatpush2.bf16.xpose.msra.mxu0 0
  %807 = vmatprep.subr.bf16.mxu0 0
  %808 = vmatpush2.bf16.xpose.msra.mxu0 0
  %809 = vmatprep.subr.bf16.mxu0 0
  %810 = vmatpush2.bf16.xpose.msra.mxu0 0
  %811 = vmatprep.subr.bf16.mxu0 0
  %812 = vmatpush2.bf16.xpose.msra.mxu0 0
  %813 = vmatprep.subr.bf16.mxu0 0
  %814 = vmatpush2.bf16.xpose.msra.mxu0 0
  %815 = vmatprep.mubr.bf16.mxu0 0
  %816 = vmatmul.mubr.bf16.gmra.mxu0 %v516
  %v817 = vpop.f32.mrf.mxu0
  %v818 = vadd.f32 0.0, %v817
  %v819 = vpop.f32.mrf.mxu0
  %v820 = vpop.f32.mrf.mxu0
  %v821 = vadd.f32 0.0, %v820
  %v822 = vpop.f32.mrf.mxu0
  %823 = vmatprep.mubr.bf16.mxu0 0
  %824 = vmatmul.mubr.bf16.gmra.mxu0 %v517
  %v825 = vpop.f32.mrf.mxu0
  %v826 = vadd.f32 0.0, %v825
  %v827 = vpop.f32.mrf.mxu0
  %v828 = vpop.f32.mrf.mxu0
  %v829 = vadd.f32 0.0, %v828
  %v830 = vpop.f32.mrf.mxu0
  %831 = vdwg.mxu0
  %832 = vmatprep.subr.bf16.mxu0 0
  %833 = vmatpush1.bf16.xpose.msra.mxu0 0
  %834 = vmatprep.subr.bf16.mxu0 0
  %835 = vmatpush1.bf16.xpose.msra.mxu0 0
  %836 = vmatprep.subr.bf16.mxu0 0
  %837 = vmatpush1.bf16.xpose.msra.mxu0 0
  %838 = vmatprep.subr.bf16.mxu0 0
  %839 = vmatpush1.bf16.xpose.msra.mxu0 0
  %840 = vmatprep.subr.bf16.mxu0 0
  %841 = vmatpush1.bf16.xpose.msra.mxu0 0
  %842 = vmatprep.subr.bf16.mxu0 0
  %843 = vmatpush1.bf16.xpose.msra.mxu0 0
  %844 = vmatprep.subr.bf16.mxu0 0
  %845 = vmatpush1.bf16.xpose.msra.mxu0 %v535
  %846 = vmatprep.subr.bf16.mxu0 0
  %847 = vmatpush1.bf16.xpose.msra.mxu0 %v534
  %848 = vmatprep.subr.bf16.mxu0 0
  %849 = vmatpush2.bf16.xpose.msra.mxu0 0
  %850 = vmatprep.subr.bf16.mxu0 0
  %851 = vmatpush2.bf16.xpose.msra.mxu0 0
  %852 = vmatprep.subr.bf16.mxu0 0
  %853 = vmatpush2.bf16.xpose.msra.mxu0 0
  %854 = vmatprep.subr.bf16.mxu0 0
  %855 = vmatpush2.bf16.xpose.msra.mxu0 0
  %856 = vmatprep.subr.bf16.mxu0 0
  %857 = vmatpush2.bf16.xpose.msra.mxu0 0
  %858 = vmatprep.subr.bf16.mxu0 0
  %859 = vmatpush2.bf16.xpose.msra.mxu0 0
  %860 = vmatprep.subr.bf16.mxu0 0
  %861 = vmatpush2.bf16.xpose.msra.mxu0 0
  %862 = vmatprep.subr.bf16.mxu0 0
  %863 = vmatpush2.bf16.xpose.msra.mxu0 0
  %864 = vmatprep.mubr.bf16.mxu0 0
  %865 = vmatmul.mubr.bf16.gmra.mxu0 %v518
  %v866 = vpop.f32.mrf.mxu0
  %v867 = vadd.f32 0.0, %v866
  %v868 = vpop.f32.mrf.mxu0
  %v869 = vpop.f32.mrf.mxu0
  %v870 = vadd.f32 0.0, %v869
  %v871 = vpop.f32.mrf.mxu0
  %872 = vmatprep.mubr.bf16.mxu0 0
  %873 = vmatmul.mubr.bf16.gmra.mxu0 %v519
  %v874 = vpop.f32.mrf.mxu0
  %v875 = vadd.f32 0.0, %v874
  %v876 = vpop.f32.mrf.mxu0
  %v877 = vpop.f32.mrf.mxu0
  %v878 = vadd.f32 0.0, %v877
  %v879 = vpop.f32.mrf.mxu0
  %880 = vdwg.mxu0
  %881 = vmatprep.subr.bf16.mxu0 0
  %882 = vmatpush1.bf16.xpose.msra.mxu0 0
  %883 = vmatprep.subr.bf16.mxu0 0
  %884 = vmatpush1.bf16.xpose.msra.mxu0 0
  %885 = vmatprep.subr.bf16.mxu0 0
  %886 = vmatpush1.bf16.xpose.msra.mxu0 0
  %887 = vmatprep.subr.bf16.mxu0 0
  %888 = vmatpush1.bf16.xpose.msra.mxu0 0
  %889 = vmatprep.subr.bf16.mxu0 0
  %890 = vmatpush1.bf16.xpose.msra.mxu0 0
  %891 = vmatprep.subr.bf16.mxu0 0
  %892 = vmatpush1.bf16.xpose.msra.mxu0 0
  %893 = vmatprep.subr.bf16.mxu0 0
  %894 = vmatpush1.bf16.xpose.msra.mxu0 %v537
  %895 = vmatprep.subr.bf16.mxu0 0
  %896 = vmatpush1.bf16.xpose.msra.mxu0 %v536
  %897 = vmatprep.subr.bf16.mxu0 0
  %898 = vmatpush2.bf16.xpose.msra.mxu0 0
  %899 = vmatprep.subr.bf16.mxu0 0
  %900 = vmatpush2.bf16.xpose.msra.mxu0 0
  %901 = vmatprep.subr.bf16.mxu0 0
  %902 = vmatpush2.bf16.xpose.msra.mxu0 0
  %903 = vmatprep.subr.bf16.mxu0 0
  %904 = vmatpush2.bf16.xpose.msra.mxu0 0
  %905 = vmatprep.subr.bf16.mxu0 0
  %906 = vmatpush2.bf16.xpose.msra.mxu0 0
  %907 = vmatprep.subr.bf16.mxu0 0
  %908 = vmatpush2.bf16.xpose.msra.mxu0 0
  %909 = vmatprep.subr.bf16.mxu0 0
  %910 = vmatpush2.bf16.xpose.msra.mxu0 0
  %911 = vmatprep.subr.bf16.mxu0 0
  %912 = vmatpush2.bf16.xpose.msra.mxu0 0
  %913 = vmatprep.mubr.bf16.mxu0 0
  %914 = vmatmul.mubr.bf16.gmra.mxu0 %v520
  %v915 = vpop.f32.mrf.mxu0
  %v916 = vadd.f32 0.0, %v915
  %v917 = vpop.f32.mrf.mxu0
  %v918 = vpop.f32.mrf.mxu0
  %v919 = vadd.f32 0.0, %v918
  %v920 = vpop.f32.mrf.mxu0
  %921 = vmatprep.mubr.bf16.mxu0 0
  %922 = vmatmul.mubr.bf16.gmra.mxu0 %v521
  %v923 = vpop.f32.mrf.mxu0
  %v924 = vadd.f32 0.0, %v923
  %v925 = vpop.f32.mrf.mxu0
  %v926 = vpop.f32.mrf.mxu0
  %v927 = vadd.f32 0.0, %v926
  %v928 = vpop.f32.mrf.mxu0
  %929 = vdwg.mxu0
  %v938 = vlaneseq
  %v939 = vshrl.u32 %v938, 7
  %v940 = vsub.s32 0, %v939
  %v941 = vrot.slane %v114, %v940
  %v942 = vlaneseq
  %v943 = vshrl.u32 %v942, 7
  %v944 = vsub.s32 0, %v943
  %v945 = vrot.slane %v115, %v944
  %v946 = vlaneseq
  %v947 = vshrl.u32 %v946, 7
  %v948 = vsub.s32 0, %v947
  %v949 = vrot.slane %v116, %v948
  %v950 = vlaneseq
  %v951 = vshrl.u32 %v950, 7
  %v952 = vsub.s32 0, %v951
  %v953 = vrot.slane %v117, %v952
  %v954 = vlaneseq
  %v955 = vshrl.u32 %v954, 7
  %v956 = vsub.s32 0, %v955
  %v957 = vrot.slane %v118, %v956
  %v958 = vlaneseq
  %v959 = vshrl.u32 %v958, 7
  %v960 = vsub.s32 0, %v959
  %v961 = vrot.slane %v119, %v960
  %v962 = vlaneseq
  %v963 = vshrl.u32 %v962, 7
  %v964 = vsub.s32 0, %v963
  %v965 = vrot.slane %v120, %v964
  %v966 = vlaneseq
  %v967 = vshrl.u32 %v966, 7
  %v968 = vsub.s32 0, %v967
  %v969 = vrot.slane %v121, %v968
  %970 = vset.pattern.permute.xlu0 0
  %971 = vperm.xlu0 %970, %v941
  %v972 = vpop.permute.xlu0 %971
  %974 = vset.pattern.permute.xlu0 0
  %975 = vperm.xlu0 %974, %v945
  %v976 = vpop.permute.xlu0 %975
  %978 = vset.pattern.permute.xlu0 0
  %979 = vperm.xlu0 %978, %v949
  %v980 = vpop.permute.xlu0 %979
  %982 = vset.pattern.permute.xlu0 0
  %983 = vperm.xlu0 %982, %v953
  %v984 = vpop.permute.xlu0 %983
  %986 = vset.pattern.permute.xlu0 0
  %987 = vperm.xlu0 %986, %v957
  %v988 = vpop.permute.xlu0 %987
  %990 = vset.pattern.permute.xlu0 0
  %991 = vperm.xlu0 %990, %v961
  %v992 = vpop.permute.xlu0 %991
  %994 = vset.pattern.permute.xlu0 0
  %995 = vperm.xlu0 %994, %v965
  %v996 = vpop.permute.xlu0 %995
  %998 = vset.pattern.permute.xlu0 0
  %999 = vperm.xlu0 %998, %v969
  %v1000 = vpop.permute.xlu0 %999
  %v1002 = vmul.f32 %v573, %v972
  %v1003 = vmul.f32 %v576, %v972
  %v1004 = vmul.f32 %v581, %v972
  %v1005 = vmul.f32 %v584, %v972
  %v1006 = vmul.f32 %v622, %v976
  %v1007 = vmul.f32 %v625, %v976
  %v1008 = vmul.f32 %v630, %v976
  %v1009 = vmul.f32 %v633, %v976
  %v1010 = vmul.f32 %v671, %v980
  %v1011 = vmul.f32 %v674, %v980
  %v1012 = vmul.f32 %v679, %v980
  %v1013 = vmul.f32 %v682, %v980
  %v1014 = vmul.f32 %v720, %v984
  %v1015 = vmul.f32 %v723, %v984
  %v1016 = vmul.f32 %v728, %v984
  %v1017 = vmul.f32 %v731, %v984
  %v1018 = vmul.f32 %v769, %v988
  %v1019 = vmul.f32 %v772, %v988
  %v1020 = vmul.f32 %v777, %v988
  %v1021 = vmul.f32 %v780, %v988
  %v1022 = vmul.f32 %v818, %v992
  %v1023 = vmul.f32 %v821, %v992
  %v1024 = vmul.f32 %v826, %v992
  %v1025 = vmul.f32 %v829, %v992
  %v1026 = vmul.f32 %v867, %v996
  %v1027 = vmul.f32 %v870, %v996
  %v1028 = vmul.f32 %v875, %v996
  %v1029 = vmul.f32 %v878, %v996
  %v1030 = vmul.f32 %v916, %v1000
  %v1031 = vmul.f32 %v919, %v1000
  %v1032 = vmul.f32 %v924, %v1000
  %v1033 = vmul.f32 %v927, %v1000
  %vm1034 = vcmask 261120
  %v1035 = vsel %vm1034, %v1002, -inf
  %1036 = vmax.xlane.f32.xlu0 %v1035
  %v1037 = vpop.xlane.xlu0 %1036
  %v1038 = vsel %vm1034, %v1003, -inf
  %1039 = vmax.xlane.f32.xlu0 %v1038
  %v1040 = vpop.xlane.xlu0 %1039
  %v1041 = vsel %vm1034, %v1004, -inf
  %1042 = vmax.xlane.f32.xlu0 %v1041
  %v1043 = vpop.xlane.xlu0 %1042
  %v1044 = vsel %vm1034, %v1005, -inf
  %1045 = vmax.xlane.f32.xlu0 %v1044
  %v1046 = vpop.xlane.xlu0 %1045
  %v1047 = vsel %vm1034, %v1006, -inf
  %1048 = vmax.xlane.f32.xlu0 %v1047
  %v1049 = vpop.xlane.xlu0 %1048
  %v1050 = vsel %vm1034, %v1007, -inf
  %1051 = vmax.xlane.f32.xlu0 %v1050
  %v1052 = vpop.xlane.xlu0 %1051
  %v1053 = vsel %vm1034, %v1008, -inf
  %1054 = vmax.xlane.f32.xlu0 %v1053
  %v1055 = vpop.xlane.xlu0 %1054
  %v1056 = vsel %vm1034, %v1009, -inf
  %1057 = vmax.xlane.f32.xlu0 %v1056
  %v1058 = vpop.xlane.xlu0 %1057
  %v1059 = vsel %vm1034, %v1010, -inf
  %1060 = vmax.xlane.f32.xlu0 %v1059
  %v1061 = vpop.xlane.xlu0 %1060
  %v1062 = vsel %vm1034, %v1011, -inf
  %1063 = vmax.xlane.f32.xlu0 %v1062
  %v1064 = vpop.xlane.xlu0 %1063
  %v1065 = vsel %vm1034, %v1012, -inf
  %1066 = vmax.xlane.f32.xlu0 %v1065
  %v1067 = vpop.xlane.xlu0 %1066
  %v1068 = vsel %vm1034, %v1013, -inf
  %1069 = vmax.xlane.f32.xlu0 %v1068
  %v1070 = vpop.xlane.xlu0 %1069
  %v1071 = vsel %vm1034, %v1014, -inf
  %1072 = vmax.xlane.f32.xlu0 %v1071
  %v1073 = vpop.xlane.xlu0 %1072
  %v1074 = vsel %vm1034, %v1015, -inf
  %1075 = vmax.xlane.f32.xlu0 %v1074
  %v1076 = vpop.xlane.xlu0 %1075
  %v1077 = vsel %vm1034, %v1016, -inf
  %1078 = vmax.xlane.f32.xlu0 %v1077
  %v1079 = vpop.xlane.xlu0 %1078
  %v1080 = vsel %vm1034, %v1017, -inf
  %1081 = vmax.xlane.f32.xlu0 %v1080
  %v1082 = vpop.xlane.xlu0 %1081
  %v1083 = vsel %vm1034, %v1018, -inf
  %1084 = vmax.xlane.f32.xlu0 %v1083
  %v1085 = vpop.xlane.xlu0 %1084
  %v1086 = vsel %vm1034, %v1019, -inf
  %1087 = vmax.xlane.f32.xlu0 %v1086
  %v1088 = vpop.xlane.xlu0 %1087
  %v1089 = vsel %vm1034, %v1020, -inf
  %1090 = vmax.xlane.f32.xlu0 %v1089
  %v1091 = vpop.xlane.xlu0 %1090
  %v1092 = vsel %vm1034, %v1021, -inf
  %1093 = vmax.xlane.f32.xlu0 %v1092
  %v1094 = vpop.xlane.xlu0 %1093
  %v1095 = vsel %vm1034, %v1022, -inf
  %1096 = vmax.xlane.f32.xlu0 %v1095
  %v1097 = vpop.xlane.xlu0 %1096
  %v1098 = vsel %vm1034, %v1023, -inf
  %1099 = vmax.xlane.f32.xlu0 %v1098
  %v1100 = vpop.xlane.xlu0 %1099
  %v1101 = vsel %vm1034, %v1024, -inf
  %1102 = vmax.xlane.f32.xlu0 %v1101
  %v1103 = vpop.xlane.xlu0 %1102
  %v1104 = vsel %vm1034, %v1025, -inf
  %1105 = vmax.xlane.f32.xlu0 %v1104
  %v1106 = vpop.xlane.xlu0 %1105
  %v1107 = vsel %vm1034, %v1026, -inf
  %1108 = vmax.xlane.f32.xlu0 %v1107
  %v1109 = vpop.xlane.xlu0 %1108
  %v1110 = vsel %vm1034, %v1027, -inf
  %1111 = vmax.xlane.f32.xlu0 %v1110
  %v1112 = vpop.xlane.xlu0 %1111
  %v1113 = vsel %vm1034, %v1028, -inf
  %1114 = vmax.xlane.f32.xlu0 %v1113
  %v1115 = vpop.xlane.xlu0 %1114
  %v1116 = vsel %vm1034, %v1029, -inf
  %1117 = vmax.xlane.f32.xlu0 %v1116
  %v1118 = vpop.xlane.xlu0 %1117
  %v1119 = vsel %vm1034, %v1030, -inf
  %1120 = vmax.xlane.f32.xlu0 %v1119
  %v1121 = vpop.xlane.xlu0 %1120
  %v1122 = vsel %vm1034, %v1031, -inf
  %1123 = vmax.xlane.f32.xlu0 %v1122
  %v1124 = vpop.xlane.xlu0 %1123
  %v1125 = vsel %vm1034, %v1032, -inf
  %1126 = vmax.xlane.f32.xlu0 %v1125
  %v1127 = vpop.xlane.xlu0 %1126
  %v1128 = vsel %vm1034, %v1033, -inf
  %1129 = vmax.xlane.f32.xlu0 %v1128
  %v1130 = vpop.xlane.xlu0 %1129
  %v1131 = vsub.f32 %v1002, %v1037
  %v1132 = vsub.f32 %v1003, %v1040
  %v1133 = vsub.f32 %v1004, %v1043
  %v1134 = vsub.f32 %v1005, %v1046
  %v1135 = vsub.f32 %v1006, %v1049
  %v1136 = vsub.f32 %v1007, %v1052
  %v1137 = vsub.f32 %v1008, %v1055
  %v1138 = vsub.f32 %v1009, %v1058
  %v1139 = vsub.f32 %v1010, %v1061
  %v1140 = vsub.f32 %v1011, %v1064
  %v1141 = vsub.f32 %v1012, %v1067
  %v1142 = vsub.f32 %v1013, %v1070
  %v1143 = vsub.f32 %v1014, %v1073
  %v1144 = vsub.f32 %v1015, %v1076
  %v1145 = vsub.f32 %v1016, %v1079
  %v1146 = vsub.f32 %v1017, %v1082
  %v1147 = vsub.f32 %v1018, %v1085
  %v1148 = vsub.f32 %v1019, %v1088
  %v1149 = vsub.f32 %v1020, %v1091
  %v1150 = vsub.f32 %v1021, %v1094
  %v1151 = vsub.f32 %v1022, %v1097
  %v1152 = vsub.f32 %v1023, %v1100
  %v1153 = vsub.f32 %v1024, %v1103
  %v1154 = vsub.f32 %v1025, %v1106
  %v1155 = vsub.f32 %v1026, %v1109
  %v1156 = vsub.f32 %v1027, %v1112
  %v1157 = vsub.f32 %v1028, %v1115
  %v1158 = vsub.f32 %v1029, %v1118
  %v1159 = vsub.f32 %v1030, %v1121
  %v1160 = vsub.f32 %v1031, %v1124
  %v1161 = vsub.f32 %v1032, %v1127
  %v1162 = vsub.f32 %v1033, %v1130
  %v1163 = vmul.f32 %v1131, 1.442695
  %v1164 = vpow.pop %v1163
  %v1165 = vmul.f32 %v1132, 1.442695
  %v1166 = vpow.pop %v1165
  %v1167 = vmul.f32 %v1133, 1.442695
  %v1168 = vpow.pop %v1167
  %v1169 = vmul.f32 %v1134, 1.442695
  %v1170 = vpow.pop %v1169
  %v1171 = vmul.f32 %v1135, 1.442695
  %v1172 = vpow.pop %v1171
  %v1173 = vmul.f32 %v1136, 1.442695
  %v1174 = vpow.pop %v1173
  %v1175 = vmul.f32 %v1137, 1.442695
  %v1176 = vpow.pop %v1175
  %v1177 = vmul.f32 %v1138, 1.442695
  %v1178 = vpow.pop %v1177
  %v1179 = vmul.f32 %v1139, 1.442695
  %v1180 = vpow.pop %v1179
  %v1181 = vmul.f32 %v1140, 1.442695
  %v1182 = vpow.pop %v1181
  %v1183 = vmul.f32 %v1141, 1.442695
  %v1184 = vpow.pop %v1183
  %v1185 = vmul.f32 %v1142, 1.442695
  %v1186 = vpow.pop %v1185
  %v1187 = vmul.f32 %v1143, 1.442695
  %v1188 = vpow.pop %v1187
  %v1189 = vmul.f32 %v1144, 1.442695
  %v1190 = vpow.pop %v1189
  %v1191 = vmul.f32 %v1145, 1.442695
  %v1192 = vpow.pop %v1191
  %v1193 = vmul.f32 %v1146, 1.442695
  %v1194 = vpow.pop %v1193
  %v1195 = vmul.f32 %v1147, 1.442695
  %v1196 = vpow.pop %v1195
  %v1197 = vmul.f32 %v1148, 1.442695
  %v1198 = vpow.pop %v1197
  %v1199 = vmul.f32 %v1149, 1.442695
  %v1200 = vpow.pop %v1199
  %v1201 = vmul.f32 %v1150, 1.442695
  %v1202 = vpow.pop %v1201
  %v1203 = vmul.f32 %v1151, 1.442695
  %v1204 = vpow.pop %v1203
  %v1205 = vmul.f32 %v1152, 1.442695
  %v1206 = vpow.pop %v1205
  %v1207 = vmul.f32 %v1153, 1.442695
  %v1208 = vpow.pop %v1207
  %v1209 = vmul.f32 %v1154, 1.442695
  %v1210 = vpow.pop %v1209
  %v1211 = vmul.f32 %v1155, 1.442695
  %v1212 = vpow.pop %v1211
  %v1213 = vmul.f32 %v1156, 1.442695
  %v1214 = vpow.pop %v1213
  %v1215 = vmul.f32 %v1157, 1.442695
  %v1216 = vpow.pop %v1215
  %v1217 = vmul.f32 %v1158, 1.442695
  %v1218 = vpow.pop %v1217
  %v1219 = vmul.f32 %v1159, 1.442695
  %v1220 = vpow.pop %v1219
  %v1221 = vmul.f32 %v1160, 1.442695
  %v1222 = vpow.pop %v1221
  %v1223 = vmul.f32 %v1161, 1.442695
  %v1224 = vpow.pop %v1223
  %v1225 = vmul.f32 %v1162, 1.442695
  %v1226 = vpow.pop %v1225
  %v1227 = vsel %vm1034, %v1164, 0.0
  %1228 = vadd.xlane.f32.xlu0 %v1227
  %v1229 = vpop.xlane.xlu0 %1228
  %v1230 = vsel %vm1034, %v1166, 0.0
  %1231 = vadd.xlane.f32.xlu0 %v1230
  %v1232 = vpop.xlane.xlu0 %1231
  %v1233 = vsel %vm1034, %v1168, 0.0
  %1234 = vadd.xlane.f32.xlu0 %v1233
  %v1235 = vpop.xlane.xlu0 %1234
  %v1236 = vsel %vm1034, %v1170, 0.0
  %1237 = vadd.xlane.f32.xlu0 %v1236
  %v1238 = vpop.xlane.xlu0 %1237
  %v1239 = vsel %vm1034, %v1172, 0.0
  %1240 = vadd.xlane.f32.xlu0 %v1239
  %v1241 = vpop.xlane.xlu0 %1240
  %v1242 = vsel %vm1034, %v1174, 0.0
  %1243 = vadd.xlane.f32.xlu0 %v1242
  %v1244 = vpop.xlane.xlu0 %1243
  %v1245 = vsel %vm1034, %v1176, 0.0
  %1246 = vadd.xlane.f32.xlu0 %v1245
  %v1247 = vpop.xlane.xlu0 %1246
  %v1248 = vsel %vm1034, %v1178, 0.0
  %1249 = vadd.xlane.f32.xlu0 %v1248
  %v1250 = vpop.xlane.xlu0 %1249
  %v1251 = vsel %vm1034, %v1180, 0.0
  %1252 = vadd.xlane.f32.xlu0 %v1251
  %v1253 = vpop.xlane.xlu0 %1252
  %v1254 = vsel %vm1034, %v1182, 0.0
  %1255 = vadd.xlane.f32.xlu0 %v1254
  %v1256 = vpop.xlane.xlu0 %1255
  %v1257 = vsel %vm1034, %v1184, 0.0
  %1258 = vadd.xlane.f32.xlu0 %v1257
  %v1259 = vpop.xlane.xlu0 %1258
  %v1260 = vsel %vm1034, %v1186, 0.0
  %1261 = vadd.xlane.f32.xlu0 %v1260
  %v1262 = vpop.xlane.xlu0 %1261
  %v1263 = vsel %vm1034, %v1188, 0.0
  %1264 = vadd.xlane.f32.xlu0 %v1263
  %v1265 = vpop.xlane.xlu0 %1264
  %v1266 = vsel %vm1034, %v1190, 0.0
  %1267 = vadd.xlane.f32.xlu0 %v1266
  %v1268 = vpop.xlane.xlu0 %1267
  %v1269 = vsel %vm1034, %v1192, 0.0
  %1270 = vadd.xlane.f32.xlu0 %v1269
  %v1271 = vpop.xlane.xlu0 %1270
  %v1272 = vsel %vm1034, %v1194, 0.0
  %1273 = vadd.xlane.f32.xlu0 %v1272
  %v1274 = vpop.xlane.xlu0 %1273
  %v1275 = vsel %vm1034, %v1196, 0.0
  %1276 = vadd.xlane.f32.xlu0 %v1275
  %v1277 = vpop.xlane.xlu0 %1276
  %v1278 = vsel %vm1034, %v1198, 0.0
  %1279 = vadd.xlane.f32.xlu0 %v1278
  %v1280 = vpop.xlane.xlu0 %1279
  %v1281 = vsel %vm1034, %v1200, 0.0
  %1282 = vadd.xlane.f32.xlu0 %v1281
  %v1283 = vpop.xlane.xlu0 %1282
  %v1284 = vsel %vm1034, %v1202, 0.0
  %1285 = vadd.xlane.f32.xlu0 %v1284
  %v1286 = vpop.xlane.xlu0 %1285
  %v1287 = vsel %vm1034, %v1204, 0.0
  %1288 = vadd.xlane.f32.xlu0 %v1287
  %v1289 = vpop.xlane.xlu0 %1288
  %v1290 = vsel %vm1034, %v1206, 0.0
  %1291 = vadd.xlane.f32.xlu0 %v1290
  %v1292 = vpop.xlane.xlu0 %1291
  %v1293 = vsel %vm1034, %v1208, 0.0
  %1294 = vadd.xlane.f32.xlu0 %v1293
  %v1295 = vpop.xlane.xlu0 %1294
  %v1296 = vsel %vm1034, %v1210, 0.0
  %1297 = vadd.xlane.f32.xlu0 %v1296
  %v1298 = vpop.xlane.xlu0 %1297
  %v1299 = vsel %vm1034, %v1212, 0.0
  %1300 = vadd.xlane.f32.xlu0 %v1299
  %v1301 = vpop.xlane.xlu0 %1300
  %v1302 = vsel %vm1034, %v1214, 0.0
  %1303 = vadd.xlane.f32.xlu0 %v1302
  %v1304 = vpop.xlane.xlu0 %1303
  %v1305 = vsel %vm1034, %v1216, 0.0
  %1306 = vadd.xlane.f32.xlu0 %v1305
  %v1307 = vpop.xlane.xlu0 %1306
  %v1308 = vsel %vm1034, %v1218, 0.0
  %1309 = vadd.xlane.f32.xlu0 %v1308
  %v1310 = vpop.xlane.xlu0 %1309
  %v1311 = vsel %vm1034, %v1220, 0.0
  %1312 = vadd.xlane.f32.xlu0 %v1311
  %v1313 = vpop.xlane.xlu0 %1312
  %v1314 = vsel %vm1034, %v1222, 0.0
  %1315 = vadd.xlane.f32.xlu0 %v1314
  %v1316 = vpop.xlane.xlu0 %1315
  %v1317 = vsel %vm1034, %v1224, 0.0
  %1318 = vadd.xlane.f32.xlu0 %v1317
  %v1319 = vpop.xlane.xlu0 %1318
  %v1320 = vsel %vm1034, %v1226, 0.0
  %1321 = vadd.xlane.f32.xlu0 %v1320
  %v1322 = vpop.xlane.xlu0 %1321
  %v1323 = vrcp.pop %v1229
  %v1324 = vrcp.pop %v1232
  %v1325 = vrcp.pop %v1235
  %v1326 = vrcp.pop %v1238
  %v1327 = vrcp.pop %v1241
  %v1328 = vrcp.pop %v1244
  %v1329 = vrcp.pop %v1247
  %v1330 = vrcp.pop %v1250
  %v1331 = vrcp.pop %v1253
  %v1332 = vrcp.pop %v1256
  %v1333 = vrcp.pop %v1259
  %v1334 = vrcp.pop %v1262
  %v1335 = vrcp.pop %v1265
  %v1336 = vrcp.pop %v1268
  %v1337 = vrcp.pop %v1271
  %v1338 = vrcp.pop %v1274
  %v1339 = vrcp.pop %v1277
  %v1340 = vrcp.pop %v1280
  %v1341 = vrcp.pop %v1283
  %v1342 = vrcp.pop %v1286
  %v1343 = vrcp.pop %v1289
  %v1344 = vrcp.pop %v1292
  %v1345 = vrcp.pop %v1295
  %v1346 = vrcp.pop %v1298
  %v1347 = vrcp.pop %v1301
  %v1348 = vrcp.pop %v1304
  %v1349 = vrcp.pop %v1307
  %v1350 = vrcp.pop %v1310
  %v1351 = vrcp.pop %v1313
  %v1352 = vrcp.pop %v1316
  %v1353 = vrcp.pop %v1319
  %v1354 = vrcp.pop %v1322
  %v1355 = vmul.f32 %v1164, %v1323
  %v1356 = vmul.f32 %v1166, %v1324
  %v1357 = vmul.f32 %v1168, %v1325
  %v1358 = vmul.f32 %v1170, %v1326
  %v1359 = vmul.f32 %v1172, %v1327
  %v1360 = vmul.f32 %v1174, %v1328
  %v1361 = vmul.f32 %v1176, %v1329
  %v1362 = vmul.f32 %v1178, %v1330
  %v1363 = vmul.f32 %v1180, %v1331
  %v1364 = vmul.f32 %v1182, %v1332
  %v1365 = vmul.f32 %v1184, %v1333
  %v1366 = vmul.f32 %v1186, %v1334
  %v1367 = vmul.f32 %v1188, %v1335
  %v1368 = vmul.f32 %v1190, %v1336
  %v1369 = vmul.f32 %v1192, %v1337
  %v1370 = vmul.f32 %v1194, %v1338
  %v1371 = vmul.f32 %v1196, %v1339
  %v1372 = vmul.f32 %v1198, %v1340
  %v1373 = vmul.f32 %v1200, %v1341
  %v1374 = vmul.f32 %v1202, %v1342
  %v1375 = vmul.f32 %v1204, %v1343
  %v1376 = vmul.f32 %v1206, %v1344
  %v1377 = vmul.f32 %v1208, %v1345
  %v1378 = vmul.f32 %v1210, %v1346
  %v1379 = vmul.f32 %v1212, %v1347
  %v1380 = vmul.f32 %v1214, %v1348
  %v1381 = vmul.f32 %v1216, %v1349
  %v1382 = vmul.f32 %v1218, %v1350
  %v1383 = vmul.f32 %v1220, %v1351
  %v1384 = vmul.f32 %v1222, %v1352
  %v1385 = vmul.f32 %v1224, %v1353
  %v1386 = vmul.f32 %v1226, %v1354
  %v1387 = vpack.c.bf16 %v1356, %v1355
  %v1388 = vpack.c.bf16 %v1358, %v1357
  %v1389 = vpack.c.bf16 %v1360, %v1359
  %v1390 = vpack.c.bf16 %v1362, %v1361
  %v1391 = vpack.c.bf16 %v1364, %v1363
  %v1392 = vpack.c.bf16 %v1366, %v1365
  %v1393 = vpack.c.bf16 %v1368, %v1367
  %v1394 = vpack.c.bf16 %v1370, %v1369
  %v1395 = vpack.c.bf16 %v1372, %v1371
  %v1396 = vpack.c.bf16 %v1374, %v1373
  %v1397 = vpack.c.bf16 %v1376, %v1375
  %v1398 = vpack.c.bf16 %v1378, %v1377
  %v1399 = vpack.c.bf16 %v1380, %v1379
  %v1400 = vpack.c.bf16 %v1382, %v1381
  %v1401 = vpack.c.bf16 %v1384, %v1383
  %v1402 = vpack.c.bf16 %v1386, %v1385
  %v1403 = vpack.c.bf16 %v83, %v82
  %v1404 = vpack.c.bf16 %v85, %v84
  %v1405 = vpack.c.bf16 %v87, %v86
  %v1406 = vpack.c.bf16 %v89, %v88
  %v1407 = vpack.c.bf16 %v91, %v90
  %v1408 = vpack.c.bf16 %v93, %v92
  %v1409 = vpack.c.bf16 %v95, %v94
  %v1410 = vpack.c.bf16 %v97, %v96
  %v1411 = vpack.c.bf16 %v99, %v98
  %v1412 = vpack.c.bf16 %v101, %v100
  %v1413 = vpack.c.bf16 %v103, %v102
  %v1414 = vpack.c.bf16 %v105, %v104
  %v1415 = vpack.c.bf16 %v107, %v106
  %v1416 = vpack.c.bf16 %v109, %v108
  %v1417 = vpack.c.bf16 %v111, %v110
  %v1418 = vpack.c.bf16 %v113, %v112
  %v1420 = vsel %vm1034, %v1387, 0
  %v1423 = vsel %vm1034, %v1388, 0
  %1425 = vmatprep.subr.bf16.mxu0 0
  %1426 = vmatpush1.bf16.msra.mxu0 0
  %1427 = vmatprep.subr.bf16.mxu0 0
  %1428 = vmatpush1.bf16.msra.mxu0 0
  %1429 = vmatprep.subr.bf16.mxu0 0
  %1430 = vmatpush1.bf16.msra.mxu0 0
  %1431 = vmatprep.subr.bf16.mxu0 0
  %1432 = vmatpush1.bf16.msra.mxu0 0
  %1433 = vmatprep.subr.bf16.mxu0 0
  %1434 = vmatpush1.bf16.msra.mxu0 0
  %1435 = vmatprep.subr.bf16.mxu0 0
  %1436 = vmatpush1.bf16.msra.mxu0 0
  %1437 = vmatprep.subr.bf16.mxu0 0
  %1438 = vmatpush1.bf16.msra.mxu0 %v1404
  %1439 = vmatprep.subr.bf16.mxu0 0
  %1440 = vmatpush1.bf16.msra.mxu0 %v1403
  %1441 = vmatprep.subr.bf16.mxu0 0
  %1442 = vmatpush2.bf16.msra.mxu0 0
  %1443 = vmatprep.subr.bf16.mxu0 0
  %1444 = vmatpush2.bf16.msra.mxu0 0
  %1445 = vmatprep.subr.bf16.mxu0 0
  %1446 = vmatpush2.bf16.msra.mxu0 0
  %1447 = vmatprep.subr.bf16.mxu0 0
  %1448 = vmatpush2.bf16.msra.mxu0 0
  %1449 = vmatprep.subr.bf16.mxu0 0
  %1450 = vmatpush2.bf16.msra.mxu0 0
  %1451 = vmatprep.subr.bf16.mxu0 0
  %1452 = vmatpush2.bf16.msra.mxu0 0
  %1453 = vmatprep.subr.bf16.mxu0 0
  %1454 = vmatpush2.bf16.msra.mxu0 0
  %1455 = vmatprep.subr.bf16.mxu0 0
  %1456 = vmatpush2.bf16.msra.mxu0 0
  %1457 = vmatprep.mubr.bf16.mxu0 0
  %1458 = vmatmul.mubr.bf16.gmra.mxu0 %v1420
  %v1459 = vpop.f32.mrf.mxu0
  %v1460 = vadd.f32 0.0, %v1459
  %v1461 = vpop.f32.mrf.mxu0
  %v1462 = vpop.f32.mrf.mxu0
  %v1463 = vadd.f32 0.0, %v1462
  %v1464 = vpop.f32.mrf.mxu0
  %1465 = vmatprep.mubr.bf16.mxu0 0
  %1466 = vmatmul.mubr.bf16.gmra.mxu0 %v1423
  %v1467 = vpop.f32.mrf.mxu0
  %v1468 = vadd.f32 0.0, %v1467
  %v1469 = vpop.f32.mrf.mxu0
  %v1470 = vpop.f32.mrf.mxu0
  %v1471 = vadd.f32 0.0, %v1470
  %v1472 = vpop.f32.mrf.mxu0
  %1473 = vdwg.mxu0
  %v1475 = vsel %vm1034, %v1389, 0
  %v1478 = vsel %vm1034, %v1390, 0
  %1480 = vmatprep.subr.bf16.mxu0 0
  %1481 = vmatpush1.bf16.msra.mxu0 0
  %1482 = vmatprep.subr.bf16.mxu0 0
  %1483 = vmatpush1.bf16.msra.mxu0 0
  %1484 = vmatprep.subr.bf16.mxu0 0
  %1485 = vmatpush1.bf16.msra.mxu0 0
  %1486 = vmatprep.subr.bf16.mxu0 0
  %1487 = vmatpush1.bf16.msra.mxu0 0
  %1488 = vmatprep.subr.bf16.mxu0 0
  %1489 = vmatpush1.bf16.msra.mxu0 0
  %1490 = vmatprep.subr.bf16.mxu0 0
  %1491 = vmatpush1.bf16.msra.mxu0 0
  %1492 = vmatprep.subr.bf16.mxu0 0
  %1493 = vmatpush1.bf16.msra.mxu0 %v1406
  %1494 = vmatprep.subr.bf16.mxu0 0
  %1495 = vmatpush1.bf16.msra.mxu0 %v1405
  %1496 = vmatprep.subr.bf16.mxu0 0
  %1497 = vmatpush2.bf16.msra.mxu0 0
  %1498 = vmatprep.subr.bf16.mxu0 0
  %1499 = vmatpush2.bf16.msra.mxu0 0
  %1500 = vmatprep.subr.bf16.mxu0 0
  %1501 = vmatpush2.bf16.msra.mxu0 0
  %1502 = vmatprep.subr.bf16.mxu0 0
  %1503 = vmatpush2.bf16.msra.mxu0 0
  %1504 = vmatprep.subr.bf16.mxu0 0
  %1505 = vmatpush2.bf16.msra.mxu0 0
  %1506 = vmatprep.subr.bf16.mxu0 0
  %1507 = vmatpush2.bf16.msra.mxu0 0
  %1508 = vmatprep.subr.bf16.mxu0 0
  %1509 = vmatpush2.bf16.msra.mxu0 0
  %1510 = vmatprep.subr.bf16.mxu0 0
  %1511 = vmatpush2.bf16.msra.mxu0 0
  %1512 = vmatprep.mubr.bf16.mxu0 0
  %1513 = vmatmul.mubr.bf16.gmra.mxu0 %v1475
  %v1514 = vpop.f32.mrf.mxu0
  %v1515 = vadd.f32 0.0, %v1514
  %v1516 = vpop.f32.mrf.mxu0
  %v1517 = vpop.f32.mrf.mxu0
  %v1518 = vadd.f32 0.0, %v1517
  %v1519 = vpop.f32.mrf.mxu0
  %1520 = vmatprep.mubr.bf16.mxu0 0
  %1521 = vmatmul.mubr.bf16.gmra.mxu0 %v1478
  %v1522 = vpop.f32.mrf.mxu0
  %v1523 = vadd.f32 0.0, %v1522
  %v1524 = vpop.f32.mrf.mxu0
  %v1525 = vpop.f32.mrf.mxu0
  %v1526 = vadd.f32 0.0, %v1525
  %v1527 = vpop.f32.mrf.mxu0
  %1528 = vdwg.mxu0
  %v1530 = vsel %vm1034, %v1391, 0
  %v1533 = vsel %vm1034, %v1392, 0
  %1535 = vmatprep.subr.bf16.mxu0 0
  %1536 = vmatpush1.bf16.msra.mxu0 0
  %1537 = vmatprep.subr.bf16.mxu0 0
  %1538 = vmatpush1.bf16.msra.mxu0 0
  %1539 = vmatprep.subr.bf16.mxu0 0
  %1540 = vmatpush1.bf16.msra.mxu0 0
  %1541 = vmatprep.subr.bf16.mxu0 0
  %1542 = vmatpush1.bf16.msra.mxu0 0
  %1543 = vmatprep.subr.bf16.mxu0 0
  %1544 = vmatpush1.bf16.msra.mxu0 0
  %1545 = vmatprep.subr.bf16.mxu0 0
  %1546 = vmatpush1.bf16.msra.mxu0 0
  %1547 = vmatprep.subr.bf16.mxu0 0
  %1548 = vmatpush1.bf16.msra.mxu0 %v1408
  %1549 = vmatprep.subr.bf16.mxu0 0
  %1550 = vmatpush1.bf16.msra.mxu0 %v1407
  %1551 = vmatprep.subr.bf16.mxu0 0
  %1552 = vmatpush2.bf16.msra.mxu0 0
  %1553 = vmatprep.subr.bf16.mxu0 0
  %1554 = vmatpush2.bf16.msra.mxu0 0
  %1555 = vmatprep.subr.bf16.mxu0 0
  %1556 = vmatpush2.bf16.msra.mxu0 0
  %1557 = vmatprep.subr.bf16.mxu0 0
  %1558 = vmatpush2.bf16.msra.mxu0 0
  %1559 = vmatprep.subr.bf16.mxu0 0
  %1560 = vmatpush2.bf16.msra.mxu0 0
  %1561 = vmatprep.subr.bf16.mxu0 0
  %1562 = vmatpush2.bf16.msra.mxu0 0
  %1563 = vmatprep.subr.bf16.mxu0 0
  %1564 = vmatpush2.bf16.msra.mxu0 0
  %1565 = vmatprep.subr.bf16.mxu0 0
  %1566 = vmatpush2.bf16.msra.mxu0 0
  %1567 = vmatprep.mubr.bf16.mxu0 0
  %1568 = vmatmul.mubr.bf16.gmra.mxu0 %v1530
  %v1569 = vpop.f32.mrf.mxu0
  %v1570 = vadd.f32 0.0, %v1569
  %v1571 = vpop.f32.mrf.mxu0
  %v1572 = vpop.f32.mrf.mxu0
  %v1573 = vadd.f32 0.0, %v1572
  %v1574 = vpop.f32.mrf.mxu0
  %1575 = vmatprep.mubr.bf16.mxu0 0
  %1576 = vmatmul.mubr.bf16.gmra.mxu0 %v1533
  %v1577 = vpop.f32.mrf.mxu0
  %v1578 = vadd.f32 0.0, %v1577
  %v1579 = vpop.f32.mrf.mxu0
  %v1580 = vpop.f32.mrf.mxu0
  %v1581 = vadd.f32 0.0, %v1580
  %v1582 = vpop.f32.mrf.mxu0
  %1583 = vdwg.mxu0
  %v1585 = vsel %vm1034, %v1393, 0
  %v1588 = vsel %vm1034, %v1394, 0
  %1590 = vmatprep.subr.bf16.mxu0 0
  %1591 = vmatpush1.bf16.msra.mxu0 0
  %1592 = vmatprep.subr.bf16.mxu0 0
  %1593 = vmatpush1.bf16.msra.mxu0 0
  %1594 = vmatprep.subr.bf16.mxu0 0
  %1595 = vmatpush1.bf16.msra.mxu0 0
  %1596 = vmatprep.subr.bf16.mxu0 0
  %1597 = vmatpush1.bf16.msra.mxu0 0
  %1598 = vmatprep.subr.bf16.mxu0 0
  %1599 = vmatpush1.bf16.msra.mxu0 0
  %1600 = vmatprep.subr.bf16.mxu0 0
  %1601 = vmatpush1.bf16.msra.mxu0 0
  %1602 = vmatprep.subr.bf16.mxu0 0
  %1603 = vmatpush1.bf16.msra.mxu0 %v1410
  %1604 = vmatprep.subr.bf16.mxu0 0
  %1605 = vmatpush1.bf16.msra.mxu0 %v1409
  %1606 = vmatprep.subr.bf16.mxu0 0
  %1607 = vmatpush2.bf16.msra.mxu0 0
  %1608 = vmatprep.subr.bf16.mxu0 0
  %1609 = vmatpush2.bf16.msra.mxu0 0
  %1610 = vmatprep.subr.bf16.mxu0 0
  %1611 = vmatpush2.bf16.msra.mxu0 0
  %1612 = vmatprep.subr.bf16.mxu0 0
  %1613 = vmatpush2.bf16.msra.mxu0 0
  %1614 = vmatprep.subr.bf16.mxu0 0
  %1615 = vmatpush2.bf16.msra.mxu0 0
  %1616 = vmatprep.subr.bf16.mxu0 0
  %1617 = vmatpush2.bf16.msra.mxu0 0
  %1618 = vmatprep.subr.bf16.mxu0 0
  %1619 = vmatpush2.bf16.msra.mxu0 0
  %1620 = vmatprep.subr.bf16.mxu0 0
  %1621 = vmatpush2.bf16.msra.mxu0 0
  %1622 = vmatprep.mubr.bf16.mxu0 0
  %1623 = vmatmul.mubr.bf16.gmra.mxu0 %v1585
  %v1624 = vpop.f32.mrf.mxu0
  %v1625 = vadd.f32 0.0, %v1624
  %v1626 = vpop.f32.mrf.mxu0
  %v1627 = vpop.f32.mrf.mxu0
  %v1628 = vadd.f32 0.0, %v1627
  %v1629 = vpop.f32.mrf.mxu0
  %1630 = vmatprep.mubr.bf16.mxu0 0
  %1631 = vmatmul.mubr.bf16.gmra.mxu0 %v1588
  %v1632 = vpop.f32.mrf.mxu0
  %v1633 = vadd.f32 0.0, %v1632
  %v1634 = vpop.f32.mrf.mxu0
  %v1635 = vpop.f32.mrf.mxu0
  %v1636 = vadd.f32 0.0, %v1635
  %v1637 = vpop.f32.mrf.mxu0
  %1638 = vdwg.mxu0
  %v1640 = vsel %vm1034, %v1395, 0
  %v1643 = vsel %vm1034, %v1396, 0
  %1645 = vmatprep.subr.bf16.mxu0 0
  %1646 = vmatpush1.bf16.msra.mxu0 0
  %1647 = vmatprep.subr.bf16.mxu0 0
  %1648 = vmatpush1.bf16.msra.mxu0 0
  %1649 = vmatprep.subr.bf16.mxu0 0
  %1650 = vmatpush1.bf16.msra.mxu0 0
  %1651 = vmatprep.subr.bf16.mxu0 0
  %1652 = vmatpush1.bf16.msra.mxu0 0
  %1653 = vmatprep.subr.bf16.mxu0 0
  %1654 = vmatpush1.bf16.msra.mxu0 0
  %1655 = vmatprep.subr.bf16.mxu0 0
  %1656 = vmatpush1.bf16.msra.mxu0 0
  %1657 = vmatprep.subr.bf16.mxu0 0
  %1658 = vmatpush1.bf16.msra.mxu0 %v1412
  %1659 = vmatprep.subr.bf16.mxu0 0
  %1660 = vmatpush1.bf16.msra.mxu0 %v1411
  %1661 = vmatprep.subr.bf16.mxu0 0
  %1662 = vmatpush2.bf16.msra.mxu0 0
  %1663 = vmatprep.subr.bf16.mxu0 0
  %1664 = vmatpush2.bf16.msra.mxu0 0
  %1665 = vmatprep.subr.bf16.mxu0 0
  %1666 = vmatpush2.bf16.msra.mxu0 0
  %1667 = vmatprep.subr.bf16.mxu0 0
  %1668 = vmatpush2.bf16.msra.mxu0 0
  %1669 = vmatprep.subr.bf16.mxu0 0
  %1670 = vmatpush2.bf16.msra.mxu0 0
  %1671 = vmatprep.subr.bf16.mxu0 0
  %1672 = vmatpush2.bf16.msra.mxu0 0
  %1673 = vmatprep.subr.bf16.mxu0 0
  %1674 = vmatpush2.bf16.msra.mxu0 0
  %1675 = vmatprep.subr.bf16.mxu0 0
  %1676 = vmatpush2.bf16.msra.mxu0 0
  %1677 = vmatprep.mubr.bf16.mxu0 0
  %1678 = vmatmul.mubr.bf16.gmra.mxu0 %v1640
  %v1679 = vpop.f32.mrf.mxu0
  %v1680 = vadd.f32 0.0, %v1679
  %v1681 = vpop.f32.mrf.mxu0
  %v1682 = vpop.f32.mrf.mxu0
  %v1683 = vadd.f32 0.0, %v1682
  %v1684 = vpop.f32.mrf.mxu0
  %1685 = vmatprep.mubr.bf16.mxu0 0
  %1686 = vmatmul.mubr.bf16.gmra.mxu0 %v1643
  %v1687 = vpop.f32.mrf.mxu0
  %v1688 = vadd.f32 0.0, %v1687
  %v1689 = vpop.f32.mrf.mxu0
  %v1690 = vpop.f32.mrf.mxu0
  %v1691 = vadd.f32 0.0, %v1690
  %v1692 = vpop.f32.mrf.mxu0
  %1693 = vdwg.mxu0
  %v1695 = vsel %vm1034, %v1397, 0
  %v1698 = vsel %vm1034, %v1398, 0
  %1700 = vmatprep.subr.bf16.mxu0 0
  %1701 = vmatpush1.bf16.msra.mxu0 0
  %1702 = vmatprep.subr.bf16.mxu0 0
  %1703 = vmatpush1.bf16.msra.mxu0 0
  %1704 = vmatprep.subr.bf16.mxu0 0
  %1705 = vmatpush1.bf16.msra.mxu0 0
  %1706 = vmatprep.subr.bf16.mxu0 0
  %1707 = vmatpush1.bf16.msra.mxu0 0
  %1708 = vmatprep.subr.bf16.mxu0 0
  %1709 = vmatpush1.bf16.msra.mxu0 0
  %1710 = vmatprep.subr.bf16.mxu0 0
  %1711 = vmatpush1.bf16.msra.mxu0 0
  %1712 = vmatprep.subr.bf16.mxu0 0
  %1713 = vmatpush1.bf16.msra.mxu0 %v1414
  %1714 = vmatprep.subr.bf16.mxu0 0
  %1715 = vmatpush1.bf16.msra.mxu0 %v1413
  %1716 = vmatprep.subr.bf16.mxu0 0
  %1717 = vmatpush2.bf16.msra.mxu0 0
  %1718 = vmatprep.subr.bf16.mxu0 0
  %1719 = vmatpush2.bf16.msra.mxu0 0
  %1720 = vmatprep.subr.bf16.mxu0 0
  %1721 = vmatpush2.bf16.msra.mxu0 0
  %1722 = vmatprep.subr.bf16.mxu0 0
  %1723 = vmatpush2.bf16.msra.mxu0 0
  %1724 = vmatprep.subr.bf16.mxu0 0
  %1725 = vmatpush2.bf16.msra.mxu0 0
  %1726 = vmatprep.subr.bf16.mxu0 0
  %1727 = vmatpush2.bf16.msra.mxu0 0
  %1728 = vmatprep.subr.bf16.mxu0 0
  %1729 = vmatpush2.bf16.msra.mxu0 0
  %1730 = vmatprep.subr.bf16.mxu0 0
  %1731 = vmatpush2.bf16.msra.mxu0 0
  %1732 = vmatprep.mubr.bf16.mxu0 0
  %1733 = vmatmul.mubr.bf16.gmra.mxu0 %v1695
  %v1734 = vpop.f32.mrf.mxu0
  %v1735 = vadd.f32 0.0, %v1734
  %v1736 = vpop.f32.mrf.mxu0
  %v1737 = vpop.f32.mrf.mxu0
  %v1738 = vadd.f32 0.0, %v1737
  %v1739 = vpop.f32.mrf.mxu0
  %1740 = vmatprep.mubr.bf16.mxu0 0
  %1741 = vmatmul.mubr.bf16.gmra.mxu0 %v1698
  %v1742 = vpop.f32.mrf.mxu0
  %v1743 = vadd.f32 0.0, %v1742
  %v1744 = vpop.f32.mrf.mxu0
  %v1745 = vpop.f32.mrf.mxu0
  %v1746 = vadd.f32 0.0, %v1745
  %v1747 = vpop.f32.mrf.mxu0
  %1748 = vdwg.mxu0
  %v1750 = vsel %vm1034, %v1399, 0
  %v1753 = vsel %vm1034, %v1400, 0
  %1755 = vmatprep.subr.bf16.mxu0 0
  %1756 = vmatpush1.bf16.msra.mxu0 0
  %1757 = vmatprep.subr.bf16.mxu0 0
  %1758 = vmatpush1.bf16.msra.mxu0 0
  %1759 = vmatprep.subr.bf16.mxu0 0
  %1760 = vmatpush1.bf16.msra.mxu0 0
  %1761 = vmatprep.subr.bf16.mxu0 0
  %1762 = vmatpush1.bf16.msra.mxu0 0
  %1763 = vmatprep.subr.bf16.mxu0 0
  %1764 = vmatpush1.bf16.msra.mxu0 0
  %1765 = vmatprep.subr.bf16.mxu0 0
  %1766 = vmatpush1.bf16.msra.mxu0 0
  %1767 = vmatprep.subr.bf16.mxu0 0
  %1768 = vmatpush1.bf16.msra.mxu0 %v1416
  %1769 = vmatprep.subr.bf16.mxu0 0
  %1770 = vmatpush1.bf16.msra.mxu0 %v1415
  %1771 = vmatprep.subr.bf16.mxu0 0
  %1772 = vmatpush2.bf16.msra.mxu0 0
  %1773 = vmatprep.subr.bf16.mxu0 0
  %1774 = vmatpush2.bf16.msra.mxu0 0
  %1775 = vmatprep.subr.bf16.mxu0 0
  %1776 = vmatpush2.bf16.msra.mxu0 0
  %1777 = vmatprep.subr.bf16.mxu0 0
  %1778 = vmatpush2.bf16.msra.mxu0 0
  %1779 = vmatprep.subr.bf16.mxu0 0
  %1780 = vmatpush2.bf16.msra.mxu0 0
  %1781 = vmatprep.subr.bf16.mxu0 0
  %1782 = vmatpush2.bf16.msra.mxu0 0
  %1783 = vmatprep.subr.bf16.mxu0 0
  %1784 = vmatpush2.bf16.msra.mxu0 0
  %1785 = vmatprep.subr.bf16.mxu0 0
  %1786 = vmatpush2.bf16.msra.mxu0 0
  %1787 = vmatprep.mubr.bf16.mxu0 0
  %1788 = vmatmul.mubr.bf16.gmra.mxu0 %v1750
  %v1789 = vpop.f32.mrf.mxu0
  %v1790 = vadd.f32 0.0, %v1789
  %v1791 = vpop.f32.mrf.mxu0
  %v1792 = vpop.f32.mrf.mxu0
  %v1793 = vadd.f32 0.0, %v1792
  %v1794 = vpop.f32.mrf.mxu0
  %1795 = vmatprep.mubr.bf16.mxu0 0
  %1796 = vmatmul.mubr.bf16.gmra.mxu0 %v1753
  %v1797 = vpop.f32.mrf.mxu0
  %v1798 = vadd.f32 0.0, %v1797
  %v1799 = vpop.f32.mrf.mxu0
  %v1800 = vpop.f32.mrf.mxu0
  %v1801 = vadd.f32 0.0, %v1800
  %v1802 = vpop.f32.mrf.mxu0
  %1803 = vdwg.mxu0
  %v1805 = vsel %vm1034, %v1401, 0
  %v1808 = vsel %vm1034, %v1402, 0
  %1810 = vmatprep.subr.bf16.mxu0 0
  %1811 = vmatpush1.bf16.msra.mxu0 0
  %1812 = vmatprep.subr.bf16.mxu0 0
  %1813 = vmatpush1.bf16.msra.mxu0 0
  %1814 = vmatprep.subr.bf16.mxu0 0
  %1815 = vmatpush1.bf16.msra.mxu0 0
  %1816 = vmatprep.subr.bf16.mxu0 0
  %1817 = vmatpush1.bf16.msra.mxu0 0
  %1818 = vmatprep.subr.bf16.mxu0 0
  %1819 = vmatpush1.bf16.msra.mxu0 0
  %1820 = vmatprep.subr.bf16.mxu0 0
  %1821 = vmatpush1.bf16.msra.mxu0 0
  %1822 = vmatprep.subr.bf16.mxu0 0
  %1823 = vmatpush1.bf16.msra.mxu0 %v1418
  %1824 = vmatprep.subr.bf16.mxu0 0
  %1825 = vmatpush1.bf16.msra.mxu0 %v1417
  %1826 = vmatprep.subr.bf16.mxu0 0
  %1827 = vmatpush2.bf16.msra.mxu0 0
  %1828 = vmatprep.subr.bf16.mxu0 0
  %1829 = vmatpush2.bf16.msra.mxu0 0
  %1830 = vmatprep.subr.bf16.mxu0 0
  %1831 = vmatpush2.bf16.msra.mxu0 0
  %1832 = vmatprep.subr.bf16.mxu0 0
  %1833 = vmatpush2.bf16.msra.mxu0 0
  %1834 = vmatprep.subr.bf16.mxu0 0
  %1835 = vmatpush2.bf16.msra.mxu0 0
  %1836 = vmatprep.subr.bf16.mxu0 0
  %1837 = vmatpush2.bf16.msra.mxu0 0
  %1838 = vmatprep.subr.bf16.mxu0 0
  %1839 = vmatpush2.bf16.msra.mxu0 0
  %1840 = vmatprep.subr.bf16.mxu0 0
  %1841 = vmatpush2.bf16.msra.mxu0 0
  %1842 = vmatprep.mubr.bf16.mxu0 0
  %1843 = vmatmul.mubr.bf16.gmra.mxu0 %v1805
  %v1844 = vpop.f32.mrf.mxu0
  %v1845 = vadd.f32 0.0, %v1844
  %v1846 = vpop.f32.mrf.mxu0
  %v1847 = vpop.f32.mrf.mxu0
  %v1848 = vadd.f32 0.0, %v1847
  %v1849 = vpop.f32.mrf.mxu0
  %1850 = vmatprep.mubr.bf16.mxu0 0
  %1851 = vmatmul.mubr.bf16.gmra.mxu0 %v1808
  %v1852 = vpop.f32.mrf.mxu0
  %v1853 = vadd.f32 0.0, %v1852
  %v1854 = vpop.f32.mrf.mxu0
  %v1855 = vpop.f32.mrf.mxu0
  %v1856 = vadd.f32 0.0, %v1855
  %v1857 = vpop.f32.mrf.mxu0
  %1858 = vdwg.mxu0
  %1859 = vst [vmem:[%s4] sm:$0xff] %v1460
  %1860 = vst [vmem:[%s4 + $0x8] sm:$0xff] %v1463
  %1861 = vst [vmem:[%s4 + $0x10] sm:$0xff] %v1468
  %1862 = vst [vmem:[%s4 + $0x18] sm:$0xff] %v1471
  %1863 = vst [vmem:[%s4 + $0x20] sm:$0xff] %v1515
  %1864 = vst [vmem:[%s4 + $0x28] sm:$0xff] %v1518
  %1865 = vst [vmem:[%s4 + $0x30] sm:$0xff] %v1523
  %1866 = vst [vmem:[%s4 + $0x38] sm:$0xff] %v1526
  %1867 = vst [vmem:[%s4 + $0x40] sm:$0xff] %v1570
  %1868 = vst [vmem:[%s4 + $0x48] sm:$0xff] %v1573
  %1869 = vst [vmem:[%s4 + $0x50] sm:$0xff] %v1578
  %1870 = vst [vmem:[%s4 + $0x58] sm:$0xff] %v1581
  %1871 = vst [vmem:[%s4 + $0x60] sm:$0xff] %v1625
  %1872 = vst [vmem:[%s4 + $0x68] sm:$0xff] %v1628
  %1873 = vst [vmem:[%s4 + $0x70] sm:$0xff] %v1633
  %1874 = vst [vmem:[%s4 + $0x78] sm:$0xff] %v1636
  %1875 = vst [vmem:[%s4 + $0x80] sm:$0xff] %v1680
  %1876 = vst [vmem:[%s4 + $0x88] sm:$0xff] %v1683
  %1877 = vst [vmem:[%s4 + $0x90] sm:$0xff] %v1688
  %1878 = vst [vmem:[%s4 + $0x98] sm:$0xff] %v1691
  %1879 = vst [vmem:[%s4 + $0xa0] sm:$0xff] %v1735
  %1880 = vst [vmem:[%s4 + $0xa8] sm:$0xff] %v1738
  %1881 = vst [vmem:[%s4 + $0xb0] sm:$0xff] %v1743
  %1882 = vst [vmem:[%s4 + $0xb8] sm:$0xff] %v1746
  %1883 = vst [vmem:[%s4 + $0xc0] sm:$0xff] %v1790
  %1884 = vst [vmem:[%s4 + $0xc8] sm:$0xff] %v1793
  %1885 = vst [vmem:[%s4 + $0xd0] sm:$0xff] %v1798
  %1886 = vst [vmem:[%s4 + $0xd8] sm:$0xff] %v1801
  %1887 = vst [vmem:[%s4 + $0xe0] sm:$0xff] %v1845
  %1888 = vst [vmem:[%s4 + $0xe8] sm:$0xff] %v1848
  %1889 = vst [vmem:[%s4 + $0xf0] sm:$0xff] %v1853
  %1890 = vst [vmem:[%s4 + $0xf8] sm:$0xff] %v1856
  // Predicated region
  $region18: #{main_forward.74} parent=0 // pred_check
    _
  $region19: #{main_forward.74} parent=0 // pred_check_branch
    %1892 = sbr.rel (0) target = $region21
  $region20: #{main_forward.74} parent=0 // pred_region
    _
  $region21: #{main_forward.74} parent=0 // pred_fallthru
    _
  // Predicated region
  $region22: #{main_forward.74} parent=0 // pred_check
    _
  $region23: #{main_forward.74} parent=0 // pred_check_branch
    %1894 = sbr.rel (0) target = $region25
  $region24: #{main_forward.74} parent=0 // pred_region
    _
  $region25: #{main_forward.74} parent=0 // pred_fallthru
    _

// kernel: main_forward.76
$region0: #{main_forward.76}
  #allocation0 [shape = 'u32[]', space=smem, size = 0x4, offset = 0x4, fixed_abs, tag = 'smem constant byte address 0x4 - core index']
  #allocation1 [shape = 'u32[144,128]{1,0:T(1,128)}', space=vmem, size = 0x12000, scoped, tag = 'internal scratch']
  %s0 = inlined_call_operand.vmem [shape: f32[32,128], index: 0, kind: input, shape index: {}]
  %s1 = inlined_call_operand.vmem [shape: f32[1,128], index: 1, kind: input, shape index: {}]
  %s2 = inlined_call_operand.vmem [shape: f32[32,128], index: 2, kind: output, shape index: {}]
  %s3 = sld [smem:[#allocation0]]
  $region18: #{main_forward.76} parent=0
    _
  %s5 = ssub.s32 1, %s3
  %s6 = scalar_select 0, %s5, %s3
  // Predicated region
  $region2: #{main_forward.76} parent=0 // pred_check
    _
  $region3: #{main_forward.76} parent=0 // pred_check_branch
    %8 = sbr.rel (0) target = $region5
  $region4: #{main_forward.76} parent=0 // pred_region
    _
  $region5: #{main_forward.76} parent=0 // pred_fallthru
    _
  // Predicated region
  $region6: #{main_forward.76} parent=0 // pred_check
    _
  $region7: #{main_forward.76} parent=0 // pred_check_branch
    %10 = sbr.rel (0) target = $region9
  $region8: #{main_forward.76} parent=0 // pred_region
    _
  $region9: #{main_forward.76} parent=0 // pred_fallthru
    _
  %v11 = vld [vmem:[%s0] sm:$0xff]
  %v12 = vld [vmem:[%s0 + $0x8] sm:$0xff]
  %v13 = vld [vmem:[%s0 + $0x10] sm:$0xff]
  %v14 = vld [vmem:[%s0 + $0x18] sm:$0xff]
  %15 = vadd.xlane.f32.xlu0 %v11
  %v16 = vpop.xlane.xlu0 %15
  %17 = vadd.xlane.f32.xlu0 %v12
  %v18 = vpop.xlane.xlu0 %17
  %19 = vadd.xlane.f32.xlu0 %v13
  %v20 = vpop.xlane.xlu0 %19
  %21 = vadd.xlane.f32.xlu0 %v14
  %v22 = vpop.xlane.xlu0 %21
  %v23 = vrcp.pop 128.0
  %v24 = vmul.f32 %v16, %v23
  %v25 = vmul.f32 %v18, %v23
  %v26 = vmul.f32 %v20, %v23
  %v27 = vmul.f32 %v22, %v23
  %v28 = vmul.f32 %v11, %v11
  %v29 = vmul.f32 %v12, %v12
  %v30 = vmul.f32 %v13, %v13
  %v31 = vmul.f32 %v14, %v14
  %32 = vadd.xlane.f32.xlu0 %v28
  %v33 = vpop.xlane.xlu0 %32
  %34 = vadd.xlane.f32.xlu0 %v29
  %v35 = vpop.xlane.xlu0 %34
  %36 = vadd.xlane.f32.xlu0 %v30
  %v37 = vpop.xlane.xlu0 %36
  %38 = vadd.xlane.f32.xlu0 %v31
  %v39 = vpop.xlane.xlu0 %38
  %v40 = vmul.f32 %v33, %v23
  %v41 = vmul.f32 %v35, %v23
  %v42 = vmul.f32 %v37, %v23
  %v43 = vmul.f32 %v39, %v23
  %v44 = vmul.f32 %v24, %v24
  %v45 = vmul.f32 %v25, %v25
  %v46 = vmul.f32 %v26, %v26
  %v47 = vmul.f32 %v27, %v27
  %v48 = vsub.f32 %v40, %v44
  %v49 = vsub.f32 %v41, %v45
  %v50 = vsub.f32 %v42, %v46
  %v51 = vsub.f32 %v43, %v47
  %v52 = vmax.f32 %v48, 0.0
  %v53 = vmax.f32 %v49, 0.0
  %v54 = vmax.f32 %v50, 0.0
  %v55 = vmax.f32 %v51, 0.0
  %v56 = vadd.f32 %v52, 1e-05
  %v57 = vadd.f32 %v53, 1e-05
  %v58 = vadd.f32 %v54, 1e-05
  %v59 = vadd.f32 %v55, 1e-05
  %v60 = vrsqrt.pop %v56
  %v61 = vrsqrt.pop %v57
  %v62 = vrsqrt.pop %v58
  %v63 = vrsqrt.pop %v59
  %v64 = vmul.f32 %v11, %v60
  %v65 = vmul.f32 %v12, %v61
  %v66 = vmul.f32 %v13, %v62
  %v67 = vmul.f32 %v14, %v63
  %v68 = vld [vmem:[%s1] sm:$0x1]
  %v70 = vlaneseq
  %v71 = vshrl.u32 %v70, 7
  %v72 = vsub.s32 0, %v71
  %v73 = vrot.slane %v68, %v72
  %v75 = vmul.f32 %v64, %v73
  %v76 = vmul.f32 %v65, %v73
  %v77 = vmul.f32 %v66, %v73
  %v78 = vmul.f32 %v67, %v73
  %79 = vst [vmem:[%s2] sm:$0xff] %v75
  %80 = vst [vmem:[%s2 + $0x8] sm:$0xff] %v76
  %81 = vst [vmem:[%s2 + $0x10] sm:$0xff] %v77
  %82 = vst [vmem:[%s2 + $0x18] sm:$0xff] %v78
  // Predicated region
  $region10: #{main_forward.76} parent=0 // pred_check
    _
  $region11: #{main_forward.76} parent=0 // pred_check_branch
    %84 = sbr.rel (0) target = $region13
  $region12: #{main_forward.76} parent=0 // pred_region
    _
  $region13: #{main_forward.76} parent=0 // pred_fallthru
    _
  // Predicated region
  $region14: #{main_forward.76} parent=0 // pred_check
    _
  $region15: #{main_forward.76} parent=0 // pred_check_branch
    %86 = sbr.rel (0) target = $region17
  $region16: #{main_forward.76} parent=0 // pred_region
    _
  $region17: #{main_forward.76} parent=0 // pred_fallthru
    _

// kernel: main_forward.77
$region0: #{main_forward.77}
  #allocation0 [shape = 'u32[]', space=smem, size = 0x4, offset = 0x4, fixed_abs, tag = 'smem constant byte address 0x4 - core index']
  #allocation1 [shape = 'u32[144,128]{1,0:T(1,128)}', space=vmem, size = 0x12000, scoped, tag = 'internal scratch']
  %s0 = inlined_call_operand.vmem [shape: bf16[32,128], index: 0, kind: input, shape index: {}]
  %s1 = inlined_call_operand.vmem [shape: bf16[128,256], index: 1, kind: input, shape index: {}]
  %s2 = inlined_call_operand.vmem [shape: f32[1,256], index: 2, kind: input, shape index: {}]
  %s3 = inlined_call_operand.vmem [shape: f32[32,256], index: 3, kind: output, shape index: {}]
  %s4 = sld [smem:[#allocation0]]
  $region22: #{main_forward.77} parent=0
    _
  %s6 = ssub.s32 1, %s4
  %s7 = scalar_select 0, %s6, %s4
  // Predicated region
  $region2: #{main_forward.77} parent=0 // pred_check
    _
  $region3: #{main_forward.77} parent=0 // pred_check_branch
    %9 = sbr.rel (0) target = $region5
  $region4: #{main_forward.77} parent=0 // pred_region
    _
  $region5: #{main_forward.77} parent=0 // pred_fallthru
    _
  // Predicated region
  $region6: #{main_forward.77} parent=0 // pred_check
    _
  $region7: #{main_forward.77} parent=0 // pred_check_branch
    %11 = sbr.rel (0) target = $region9
  $region8: #{main_forward.77} parent=0 // pred_region
    _
  $region9: #{main_forward.77} parent=0 // pred_fallthru
    _
  // Predicated region
  $region10: #{main_forward.77} parent=0 // pred_check
    _
  $region11: #{main_forward.77} parent=0 // pred_check_branch
    %13 = sbr.rel (0) target = $region13
  $region12: #{main_forward.77} parent=0 // pred_region
    _
  $region13: #{main_forward.77} parent=0 // pred_fallthru
    _
  %v15 = vld [vmem:[%s0] sm:$0xf]
  %v16 = vld [vmem:[%s0 + $0x4] sm:$0xf]
  %v17 = vld [vmem:[%s0 + $0x8] sm:$0xf]
  %v18 = vld [vmem:[%s0 + $0xc] sm:$0xf]
  %v19 = vld [vmem:[%s1] sm:$0xff]
  %v20 = vld [vmem:[%s1 + $0x8] sm:$0xff]
  %v21 = vld [vmem:[%s1 + $0x10] sm:$0xff]
  %v22 = vld [vmem:[%s1 + $0x18] sm:$0xff]
  %v23 = vld [vmem:[%s1 + $0x20] sm:$0xff]
  %v24 = vld [vmem:[%s1 + $0x28] sm:$0xff]
  %v25 = vld [vmem:[%s1 + $0x30] sm:$0xff]
  %v26 = vld [vmem:[%s1 + $0x38] sm:$0xff]
  %v27 = vld [vmem:[%s1 + $0x40] sm:$0xff]
  %v28 = vld [vmem:[%s1 + $0x48] sm:$0xff]
  %v29 = vld [vmem:[%s1 + $0x50] sm:$0xff]
  %v30 = vld [vmem:[%s1 + $0x58] sm:$0xff]
  %v31 = vld [vmem:[%s1 + $0x60] sm:$0xff]
  %v32 = vld [vmem:[%s1 + $0x68] sm:$0xff]
  %v33 = vld [vmem:[%s1 + $0x70] sm:$0xff]
  %v34 = vld [vmem:[%s1 + $0x78] sm:$0xff]
  %v35 = vld [vmem:[%s2] sm:$0x3]
  %v37 = vlaneseq
  %v38 = vshrl.u32 %v37, 7
  %v39 = vsub.s32 0, %v38
  %v40 = vrot.slane %v35, %v39
  %v41 = vlaneseq
  %v42 = vshrl.u32 %v41, 7
  %v43 = vsub.s32 1, %v42
  %v44 = vrot.slane %v35, %v43
  %v51 = vunpack.c.l.b16 %v15
  %v52 = vunpack.c.l.b16 %v16
  %v53 = vunpack.c.l.b16 %v17
  %v54 = vunpack.c.l.b16 %v18
  %v55 = vpack.c.b16 %v52, %v51
  %v56 = vpack.c.b16 %v54, %v53
  %v75 = vunpack.c.l.b16 %v19
  %v76 = vunpack.c.h.b16 %v19
  %v77 = vunpack.c.l.b16 %v20
  %v78 = vunpack.c.h.b16 %v20
  %v79 = vunpack.c.l.b16 %v21
  %v80 = vunpack.c.h.b16 %v21
  %v81 = vunpack.c.l.b16 %v22
  %v82 = vunpack.c.h.b16 %v22
  %v83 = vunpack.c.l.b16 %v23
  %v84 = vunpack.c.h.b16 %v23
  %v85 = vunpack.c.l.b16 %v24
  %v86 = vunpack.c.h.b16 %v24
  %v87 = vunpack.c.l.b16 %v25
  %v88 = vunpack.c.h.b16 %v25
  %v89 = vunpack.c.l.b16 %v26
  %v90 = vunpack.c.h.b16 %v26
  %v91 = vunpack.c.l.b16 %v27
  %v92 = vunpack.c.h.b16 %v27
  %v93 = vunpack.c.l.b16 %v28
  %v94 = vunpack.c.h.b16 %v28
  %v95 = vunpack.c.l.b16 %v29
  %v96 = vunpack.c.h.b16 %v29
  %v97 = vunpack.c.l.b16 %v30
  %v98 = vunpack.c.h.b16 %v30
  %v99 = vunpack.c.l.b16 %v31
  %v100 = vunpack.c.h.b16 %v31
  %v101 = vunpack.c.l.b16 %v32
  %v102 = vunpack.c.h.b16 %v32
  %v103 = vunpack.c.l.b16 %v33
  %v104 = vunpack.c.h.b16 %v33
  %v105 = vunpack.c.l.b16 %v34
  %v106 = vunpack.c.h.b16 %v34
  %v107 = vpack.c.b16 %v77, %v75
  %v108 = vpack.c.b16 %v78, %v76
  %v109 = vpack.c.b16 %v81, %v79
  %v110 = vpack.c.b16 %v82, %v80
  %v111 = vpack.c.b16 %v85, %v83
  %v112 = vpack.c.b16 %v86, %v84
  %v113 = vpack.c.b16 %v89, %v87
  %v114 = vpack.c.b16 %v90, %v88
  %v115 = vpack.c.b16 %v93, %v91
  %v116 = vpack.c.b16 %v94, %v92
  %v117 = vpack.c.b16 %v97, %v95
  %v118 = vpack.c.b16 %v98, %v96
  %v119 = vpack.c.b16 %v101, %v99
  %v120 = vpack.c.b16 %v102, %v100
  %v121 = vpack.c.b16 %v105, %v103
  %v122 = vpack.c.b16 %v106, %v104
  %139 = vmatprep.subr.bf16.mxu0 %v122
  %140 = vmatpush1.bf16.msra.mxu0 %v121
  %141 = vmatprep.subr.bf16.mxu0 %v120
  %142 = vmatpush1.bf16.msra.mxu0 %v119
  %143 = vmatprep.subr.bf16.mxu0 %v118
  %144 = vmatpush1.bf16.msra.mxu0 %v117
  %145 = vmatprep.subr.bf16.mxu0 %v116
  %146 = vmatpush1.bf16.msra.mxu0 %v115
  %147 = vmatprep.subr.bf16.mxu0 %v114
  %148 = vmatpush1.bf16.msra.mxu0 %v113
  %149 = vmatprep.subr.bf16.mxu0 %v112
  %150 = vmatpush1.bf16.msra.mxu0 %v111
  %151 = vmatprep.subr.bf16.mxu0 %v110
  %152 = vmatpush1.bf16.msra.mxu0 %v109
  %153 = vmatprep.subr.bf16.mxu0 %v108
  %154 = vmatpush1.bf16.msra.mxu0 %v107
  %155 = vmatprep.subr.bf16.mxu0 0
  %156 = vmatpush2.bf16.msra.mxu0 0
  %157 = vmatprep.subr.bf16.mxu0 0
  %158 = vmatpush2.bf16.msra.mxu0 0
  %159 = vmatprep.subr.bf16.mxu0 0
  %160 = vmatpush2.bf16.msra.mxu0 0
  %161 = vmatprep.subr.bf16.mxu0 0
  %162 = vmatpush2.bf16.msra.mxu0 0
  %163 = vmatprep.subr.bf16.mxu0 0
  %164 = vmatpush2.bf16.msra.mxu0 0
  %165 = vmatprep.subr.bf16.mxu0 0
  %166 = vmatpush2.bf16.msra.mxu0 0
  %167 = vmatprep.subr.bf16.mxu0 0
  %168 = vmatpush2.bf16.msra.mxu0 0
  %169 = vmatprep.subr.bf16.mxu0 0
  %170 = vmatpush2.bf16.msra.mxu0 0
  %171 = vmatprep.mubr.bf16.mxu0 0
  %172 = vmatmul.mubr.bf16.gmra.mxu0 %v55
  %v173 = vpop.f32.mrf.mxu0
  %v174 = vadd.f32 %v40, %v173
  %v175 = vpop.f32.mrf.mxu0
  %v176 = vadd.f32 %v44, %v175
  %v177 = vpop.f32.mrf.mxu0
  %v178 = vadd.f32 %v40, %v177
  %v179 = vpop.f32.mrf.mxu0
  %v180 = vadd.f32 %v44, %v179
  %181 = vmatprep.mubr.bf16.mxu0 0
  %182 = vmatmul.mubr.bf16.gmra.mxu0 %v56
  %v183 = vpop.f32.mrf.mxu0
  %v184 = vadd.f32 %v40, %v183
  %v185 = vpop.f32.mrf.mxu0
  %v186 = vadd.f32 %v44, %v185
  %v187 = vpop.f32.mrf.mxu0
  %v188 = vadd.f32 %v40, %v187
  %v189 = vpop.f32.mrf.mxu0
  %v190 = vadd.f32 %v44, %v189
  %191 = vdwg.mxu0
  %192 = vst [vmem:[%s3] sm:$0xff] %v174
  %193 = vst [vmem:[%s3 + $0x8] sm:$0xff] %v176
  %194 = vst [vmem:[%s3 + $0x10] sm:$0xff] %v178
  %195 = vst [vmem:[%s3 + $0x18] sm:$0xff] %v180
  %196 = vst [vmem:[%s3 + $0x20] sm:$0xff] %v184
  %197 = vst [vmem:[%s3 + $0x28] sm:$0xff] %v186
  %198 = vst [vmem:[%s3 + $0x30] sm:$0xff] %v188
  %199 = vst [vmem:[%s3 + $0x38] sm:$0xff] %v190
  // Predicated region
  $region14: #{main_forward.77} parent=0 // pred_check
    _
  $region15: #{main_forward.77} parent=0 // pred_check_branch
    %201 = sbr.rel (0) target = $region17
  $region16: #{main_forward.77} parent=0 // pred_region
    _
  $region17: #{main_forward.77} parent=0 // pred_fallthru
    _
  // Predicated region
  $region18: #{main_forward.77} parent=0 // pred_check
    _
  $region19: #{main_forward.77} parent=0 // pred_check_branch
    %203 = sbr.rel (0) target = $region21
  $region20: #{main_forward.77} parent=0 // pred_region
    _
  $region21: #{main_forward.77} parent=0 // pred_fallthru
    _

// kernel: main_forward.59
$region0: #{main_forward.59}
  #allocation0 [shape = 'u32[]', space=smem, size = 0x4, offset = 0x4, fixed_abs, tag = 'smem constant byte address 0x4 - core index']
  #allocation1 [shape = 'u32[144,128]{1,0:T(1,128)}', space=vmem, size = 0x12000, scoped, tag = 'internal scratch']
  %s0 = inlined_call_operand.vmem [shape: bf16[176,128], index: 0, kind: input, shape index: {}]
  %s1 = inlined_call_operand.vmem [shape: bf16[128,384], index: 1, kind: input, shape index: {}]
  %s2 = inlined_call_operand.vmem [shape: f32[1,384], index: 2, kind: input, shape index: {}]
  %s3 = inlined_call_operand.vmem [shape: f32[176,384], index: 3, kind: output, shape index: {}]
  %s4 = sld [smem:[#allocation0]]
  $region22: #{main_forward.59} parent=0
    _
  %s6 = ssub.s32 1, %s4
  %s7 = scalar_select 0, %s6, %s4
  // Predicated region
  $region2: #{main_forward.59} parent=0 // pred_check
    _
  $region3: #{main_forward.59} parent=0 // pred_check_branch
    %9 = sbr.rel (0) target = $region5
  $region4: #{main_forward.59} parent=0 // pred_region
    _
  $region5: #{main_forward.59} parent=0 // pred_fallthru
    _
  // Predicated region
  $region6: #{main_forward.59} parent=0 // pred_check
    _
  $region7: #{main_forward.59} parent=0 // pred_check_branch
    %11 = sbr.rel (0) target = $region9
  $region8: #{main_forward.59} parent=0 // pred_region
    _
  $region9: #{main_forward.59} parent=0 // pred_fallthru
    _
  // Predicated region
  $region10: #{main_forward.59} parent=0 // pred_check
    _
  $region11: #{main_forward.59} parent=0 // pred_check_branch
    %13 = sbr.rel (0) target = $region13
  $region12: #{main_forward.59} parent=0 // pred_region
    _
  $region13: #{main_forward.59} parent=0 // pred_fallthru
    _
  %v15 = vld [vmem:[%s0] sm:$0xf]
  %v16 = vld [vmem:[%s0 + $0x4] sm:$0xf]
  %v17 = vld [vmem:[%s0 + $0x8] sm:$0xf]
  %v18 = vld [vmem:[%s0 + $0xc] sm:$0xf]
  %v19 = vld [vmem:[%s0 + $0x10] sm:$0xf]
  %v20 = vld [vmem:[%s0 + $0x14] sm:$0xf]
  %v21 = vld [vmem:[%s0 + $0x18] sm:$0xf]
  %v22 = vld [vmem:[%s0 + $0x1c] sm:$0xf]
  %v23 = vld [vmem:[%s0 + $0x20] sm:$0xf]
  %v24 = vld [vmem:[%s0 + $0x24] sm:$0xf]
  %v25 = vld [vmem:[%s0 + $0x28] sm:$0xf]
  %v26 = vld [vmem:[%s0 + $0x2c] sm:$0xf]
  %v27 = vld [vmem:[%s0 + $0x30] sm:$0xf]
  %v28 = vld [vmem:[%s0 + $0x34] sm:$0xf]
  %v29 = vld [vmem:[%s0 + $0x38] sm:$0xf]
  %v30 = vld [vmem:[%s0 + $0x3c] sm:$0xf]
  %v31 = vld [vmem:[%s0 + $0x40] sm:$0xf]
  %v32 = vld [vmem:[%s0 + $0x44] sm:$0xf]
  %v33 = vld [vmem:[%s0 + $0x48] sm:$0xf]
  %v34 = vld [vmem:[%s0 + $0x4c] sm:$0xf]
  %v35 = vld [vmem:[%s0 + $0x50] sm:$0xf]
  %v36 = vld [vmem:[%s0 + $0x54] sm:$0xf]
  %v37 = vld [vmem:[%s1] sm:$0xff]
  %v38 = vld [vmem:[%s1 + $0x8] sm:$0xf]
  %v39 = vld [vmem:[%s1 + $0xc] sm:$0xff]
  %v40 = vld [vmem:[%s1 + $0x14] sm:$0xf]
  %v41 = vld [vmem:[%s1 + $0x18] sm:$0xff]
  %v42 = vld [vmem:[%s1 + $0x20] sm:$0xf]
  %v43 = vld [vmem:[%s1 + $0x24] sm:$0xff]
  %v44 = vld [vmem:[%s1 + $0x2c] sm:$0xf]
  %v45 = vld [vmem:[%s1 + $0x30] sm:$0xff]
  %v46 = vld [vmem:[%s1 + $0x38] sm:$0xf]
  %v47 = vld [vmem:[%s1 + $0x3c] sm:$0xff]
  %v48 = vld [vmem:[%s1 + $0x44] sm:$0xf]
  %v49 = vld [vmem:[%s1 + $0x48] sm:$0xff]
  %v50 = vld [vmem:[%s1 + $0x50] sm:$0xf]
  %v51 = vld [vmem:[%s1 + $0x54] sm:$0xff]
  %v52 = vld [vmem:[%s1 + $0x5c] sm:$0xf]
  %v53 = vld [vmem:[%s1 + $0x60] sm:$0xff]
  %v54 = vld [vmem:[%s1 + $0x68] sm:$0xf]
  %v55 = vld [vmem:[%s1 + $0x6c] sm:$0xff]
  %v56 = vld [vmem:[%s1 + $0x74] sm:$0xf]
  %v57 = vld [vmem:[%s1 + $0x78] sm:$0xff]
  %v58 = vld [vmem:[%s1 + $0x80] sm:$0xf]
  %v59 = vld [vmem:[%s1 + $0x84] sm:$0xff]
  %v60 = vld [vmem:[%s1 + $0x8c] sm:$0xf]
  %v61 = vld [vmem:[%s1 + $0x90] sm:$0xff]
  %v62 = vld [vmem:[%s1 + $0x98] sm:$0xf]
  %v63 = vld [vmem:[%s1 + $0x9c] sm:$0xff]
  %v64 = vld [vmem:[%s1 + $0xa4] sm:$0xf]
  %v65 = vld [vmem:[%s1 + $0xa8] sm:$0xff]
  %v66 = vld [vmem:[%s1 + $0xb0] sm:$0xf]
  %v67 = vld [vmem:[%s1 + $0xb4] sm:$0xff]
  %v68 = vld [vmem:[%s1 + $0xbc] sm:$0xf]
  %v69 = vld [vmem:[%s2] sm:$0x7]
  %v71 = vlaneseq
  %v72 = vshrl.u32 %v71, 7
  %v73 = vsub.s32 0, %v72
  %v74 = vrot.slane %v69, %v73
  %v75 = vlaneseq
  %v76 = vshrl.u32 %v75, 7
  %v77 = vsub.s32 1, %v76
  %v78 = vrot.slane %v69, %v77
  %v79 = vlaneseq
  %v80 = vshrl.u32 %v79, 7
  %v81 = vsub.s32 2, %v80
  %v82 = vrot.slane %v69, %v81
  %v108 = vunpack.c.l.b16 %v15
  %v109 = vunpack.c.l.b16 %v16
  %v110 = vunpack.c.l.b16 %v17
  %v111 = vunpack.c.l.b16 %v18
  %v112 = vunpack.c.l.b16 %v19
  %v113 = vunpack.c.l.b16 %v20
  %v114 = vunpack.c.l.b16 %v21
  %v115 = vunpack.c.l.b16 %v22
  %v116 = vunpack.c.l.b16 %v23
  %v117 = vunpack.c.l.b16 %v24
  %v118 = vunpack.c.l.b16 %v25
  %v119 = vunpack.c.l.b16 %v26
  %v120 = vunpack.c.l.b16 %v27
  %v121 = vunpack.c.l.b16 %v28
  %v122 = vunpack.c.l.b16 %v29
  %v123 = vunpack.c.l.b16 %v30
  %v124 = vunpack.c.l.b16 %v31
  %v125 = vunpack.c.l.b16 %v32
  %v126 = vunpack.c.l.b16 %v33
  %v127 = vunpack.c.l.b16 %v34
  %v128 = vunpack.c.l.b16 %v35
  %v129 = vunpack.c.l.b16 %v36
  %v130 = vpack.c.b16 %v109, %v108
  %v131 = vpack.c.b16 %v111, %v110
  %v132 = vpack.c.b16 %v113, %v112
  %v133 = vpack.c.b16 %v115, %v114
  %v134 = vpack.c.b16 %v117, %v116
  %v135 = vpack.c.b16 %v119, %v118
  %v136 = vpack.c.b16 %v121, %v120
  %v137 = vpack.c.b16 %v123, %v122
  %v138 = vpack.c.b16 %v125, %v124
  %v139 = vpack.c.b16 %v127, %v126
  %v140 = vpack.c.b16 %v129, %v128
  %v184 = vunpack.c.l.b16 %v37
  %v185 = vunpack.c.h.b16 %v37
  %v186 = vunpack.c.l.b16 %v38
  %v187 = vunpack.c.l.b16 %v39
  %v188 = vunpack.c.h.b16 %v39
  %v189 = vunpack.c.l.b16 %v40
  %v190 = vunpack.c.l.b16 %v41
  %v191 = vunpack.c.h.b16 %v41
  %v192 = vunpack.c.l.b16 %v42
  %v193 = vunpack.c.l.b16 %v43
  %v194 = vunpack.c.h.b16 %v43
  %v195 = vunpack.c.l.b16 %v44
  %v196 = vunpack.c.l.b16 %v45
  %v197 = vunpack.c.h.b16 %v45
  %v198 = vunpack.c.l.b16 %v46
  %v199 = vunpack.c.l.b16 %v47
  %v200 = vunpack.c.h.b16 %v47
  %v201 = vunpack.c.l.b16 %v48
  %v202 = vunpack.c.l.b16 %v49
  %v203 = vunpack.c.h.b16 %v49
  %v204 = vunpack.c.l.b16 %v50
  %v205 = vunpack.c.l.b16 %v51
  %v206 = vunpack.c.h.b16 %v51
  %v207 = vunpack.c.l.b16 %v52
  %v208 = vunpack.c.l.b16 %v53
  %v209 = vunpack.c.h.b16 %v53
  %v210 = vunpack.c.l.b16 %v54
  %v211 = vunpack.c.l.b16 %v55
  %v212 = vunpack.c.h.b16 %v55
  %v213 = vunpack.c.l.b16 %v56
  %v214 = vunpack.c.l.b16 %v57
  %v215 = vunpack.c.h.b16 %v57
  %v216 = vunpack.c.l.b16 %v58
  %v217 = vunpack.c.l.b16 %v59
  %v218 = vunpack.c.h.b16 %v59
  %v219 = vunpack.c.l.b16 %v60
  %v220 = vunpack.c.l.b16 %v61
  %v221 = vunpack.c.h.b16 %v61
  %v222 = vunpack.c.l.b16 %v62
  %v223 = vunpack.c.l.b16 %v63
  %v224 = vunpack.c.h.b16 %v63
  %v225 = vunpack.c.l.b16 %v64
  %v226 = vunpack.c.l.b16 %v65
  %v227 = vunpack.c.h.b16 %v65
  %v228 = vunpack.c.l.b16 %v66
  %v229 = vunpack.c.l.b16 %v67
  %v230 = vunpack.c.h.b16 %v67
  %v231 = vunpack.c.l.b16 %v68
  %v232 = vpack.c.b16 %v187, %v184
  %v233 = vpack.c.b16 %v188, %v185
  %v234 = vpack.c.b16 %v189, %v186
  %v235 = vpack.c.b16 %v193, %v190
  %v236 = vpack.c.b16 %v194, %v191
  %v237 = vpack.c.b16 %v195, %v192
  %v238 = vpack.c.b16 %v199, %v196
  %v239 = vpack.c.b16 %v200, %v197
  %v240 = vpack.c.b16 %v201, %v198
  %v241 = vpack.c.b16 %v205, %v202
  %v242 = vpack.c.b16 %v206, %v203
  %v243 = vpack.c.b16 %v207, %v204
  %v244 = vpack.c.b16 %v211, %v208
  %v245 = vpack.c.b16 %v212, %v209
  %v246 = vpack.c.b16 %v213, %v210
  %v247 = vpack.c.b16 %v217, %v214
  %v248 = vpack.c.b16 %v218, %v215
  %v249 = vpack.c.b16 %v219, %v216
  %v250 = vpack.c.b16 %v223, %v220
  %v251 = vpack.c.b16 %v224, %v221
  %v252 = vpack.c.b16 %v225, %v222
  %v253 = vpack.c.b16 %v229, %v226
  %v254 = vpack.c.b16 %v230, %v227
  %v255 = vpack.c.b16 %v231, %v228
  %280 = vmatprep.subr.bf16.mxu0 %v254
  %281 = vmatpush1.bf16.msra.mxu0 %v253
  %282 = vmatprep.subr.bf16.mxu0 %v251
  %283 = vmatpush1.bf16.msra.mxu0 %v250
  %284 = vmatprep.subr.bf16.mxu0 %v248
  %285 = vmatpush1.bf16.msra.mxu0 %v247
  %286 = vmatprep.subr.bf16.mxu0 %v245
  %287 = vmatpush1.bf16.msra.mxu0 %v244
  %288 = vmatprep.subr.bf16.mxu0 %v242
  %289 = vmatpush1.bf16.msra.mxu0 %v241
  %290 = vmatprep.subr.bf16.mxu0 %v239
  %291 = vmatpush1.bf16.msra.mxu0 %v238
  %292 = vmatprep.subr.bf16.mxu0 %v236
  %293 = vmatpush1.bf16.msra.mxu0 %v235
  %294 = vmatprep.subr.bf16.mxu0 %v233
  %295 = vmatpush1.bf16.msra.mxu0 %v232
  %296 = vmatprep.subr.bf16.mxu0 0
  %297 = vmatpush2.bf16.msra.mxu0 0
  %298 = vmatprep.subr.bf16.mxu0 0
  %299 = vmatpush2.bf16.msra.mxu0 0
  %300 = vmatprep.subr.bf16.mxu0 0
  %301 = vmatpush2.bf16.msra.mxu0 0
  %302 = vmatprep.subr.bf16.mxu0 0
  %303 = vmatpush2.bf16.msra.mxu0 0
  %304 = vmatprep.subr.bf16.mxu0 0
  %305 = vmatpush2.bf16.msra.mxu0 0
  %306 = vmatprep.subr.bf16.mxu0 0
  %307 = vmatpush2.bf16.msra.mxu0 0
  %308 = vmatprep.subr.bf16.mxu0 0
  %309 = vmatpush2.bf16.msra.mxu0 0
  %310 = vmatprep.subr.bf16.mxu0 0
  %311 = vmatpush2.bf16.msra.mxu0 0
  %312 = vmatprep.mubr.bf16.mxu0 0
  %313 = vmatmul.mubr.bf16.gmra.mxu0 %v130
  %v314 = vpop.f32.mrf.mxu0
  %v315 = vadd.f32 %v74, %v314
  %v316 = vpop.f32.mrf.mxu0
  %v317 = vadd.f32 %v78, %v316
  %v318 = vpop.f32.mrf.mxu0
  %v319 = vadd.f32 %v74, %v318
  %v320 = vpop.f32.mrf.mxu0
  %v321 = vadd.f32 %v78, %v320
  %322 = vmatprep.mubr.bf16.mxu0 0
  %323 = vmatmul.mubr.bf16.gmra.mxu0 %v131
  %v324 = vpop.f32.mrf.mxu0
  %v325 = vadd.f32 %v74, %v324
  %v326 = vpop.f32.mrf.mxu0
  %v327 = vadd.f32 %v78, %v326
  %v328 = vpop.f32.mrf.mxu0
  %v329 = vadd.f32 %v74, %v328
  %v330 = vpop.f32.mrf.mxu0
  %v331 = vadd.f32 %v78, %v330
  %332 = vmatprep.mubr.bf16.mxu0 0
  %333 = vmatmul.mubr.bf16.gmra.mxu0 %v132
  %v334 = vpop.f32.mrf.mxu0
  %v335 = vadd.f32 %v74, %v334
  %v336 = vpop.f32.mrf.mxu0
  %v337 = vadd.f32 %v78, %v336
  %v338 = vpop.f32.mrf.mxu0
  %v339 = vadd.f32 %v74, %v338
  %v340 = vpop.f32.mrf.mxu0
  %v341 = vadd.f32 %v78, %v340
  %342 = vmatprep.mubr.bf16.mxu0 0
  %343 = vmatmul.mubr.bf16.gmra.mxu0 %v133
  %v344 = vpop.f32.mrf.mxu0
  %v345 = vadd.f32 %v74, %v344
  %v346 = vpop.f32.mrf.mxu0
  %v347 = vadd.f32 %v78, %v346
  %v348 = vpop.f32.mrf.mxu0
  %v349 = vadd.f32 %v74, %v348
  %v350 = vpop.f32.mrf.mxu0
  %v351 = vadd.f32 %v78, %v350
  %352 = vmatprep.mubr.bf16.mxu0 0
  %353 = vmatmul.mubr.bf16.gmra.mxu0 %v134
  %v354 = vpop.f32.mrf.mxu0
  %v355 = vadd.f32 %v74, %v354
  %v356 = vpop.f32.mrf.mxu0
  %v357 = vadd.f32 %v78, %v356
  %v358 = vpop.f32.mrf.mxu0
  %v359 = vadd.f32 %v74, %v358
  %v360 = vpop.f32.mrf.mxu0
  %v361 = vadd.f32 %v78, %v360
  %362 = vmatprep.mubr.bf16.mxu0 0
  %363 = vmatmul.mubr.bf16.gmra.mxu0 %v135
  %v364 = vpop.f32.mrf.mxu0
  %v365 = vadd.f32 %v74, %v364
  %v366 = vpop.f32.mrf.mxu0
  %v367 = vadd.f32 %v78, %v366
  %v368 = vpop.f32.mrf.mxu0
  %v369 = vadd.f32 %v74, %v368
  %v370 = vpop.f32.mrf.mxu0
  %v371 = vadd.f32 %v78, %v370
  %372 = vmatprep.mubr.bf16.mxu0 0
  %373 = vmatmul.mubr.bf16.gmra.mxu0 %v136
  %v374 = vpop.f32.mrf.mxu0
  %v375 = vadd.f32 %v74, %v374
  %v376 = vpop.f32.mrf.mxu0
  %v377 = vadd.f32 %v78, %v376
  %v378 = vpop.f32.mrf.mxu0
  %v379 = vadd.f32 %v74, %v378
  %v380 = vpop.f32.mrf.mxu0
  %v381 = vadd.f32 %v78, %v380
  %382 = vmatprep.mubr.bf16.mxu0 0
  %383 = vmatmul.mubr.bf16.gmra.mxu0 %v137
  %v384 = vpop.f32.mrf.mxu0
  %v385 = vadd.f32 %v74, %v384
  %v386 = vpop.f32.mrf.mxu0
  %v387 = vadd.f32 %v78, %v386
  %v388 = vpop.f32.mrf.mxu0
  %v389 = vadd.f32 %v74, %v388
  %v390 = vpop.f32.mrf.mxu0
  %v391 = vadd.f32 %v78, %v390
  %392 = vmatprep.mubr.bf16.mxu0 0
  %393 = vmatmul.mubr.bf16.gmra.mxu0 %v138
  %v394 = vpop.f32.mrf.mxu0
  %v395 = vadd.f32 %v74, %v394
  %v396 = vpop.f32.mrf.mxu0
  %v397 = vadd.f32 %v78, %v396
  %v398 = vpop.f32.mrf.mxu0
  %v399 = vadd.f32 %v74, %v398
  %v400 = vpop.f32.mrf.mxu0
  %v401 = vadd.f32 %v78, %v400
  %402 = vmatprep.mubr.bf16.mxu0 0
  %403 = vmatmul.mubr.bf16.gmra.mxu0 %v139
  %v404 = vpop.f32.mrf.mxu0
  %v405 = vadd.f32 %v74, %v404
  %v406 = vpop.f32.mrf.mxu0
  %v407 = vadd.f32 %v78, %v406
  %v408 = vpop.f32.mrf.mxu0
  %v409 = vadd.f32 %v74, %v408
  %v410 = vpop.f32.mrf.mxu0
  %v411 = vadd.f32 %v78, %v410
  %412 = vmatprep.mubr.bf16.mxu0 0
  %413 = vmatmul.mubr.bf16.gmra.mxu0 %v140
  %v414 = vpop.f32.mrf.mxu0
  %v415 = vadd.f32 %v74, %v414
  %v416 = vpop.f32.mrf.mxu0
  %v417 = vadd.f32 %v78, %v416
  %v418 = vpop.f32.mrf.mxu0
  %v419 = vadd.f32 %v74, %v418
  %v420 = vpop.f32.mrf.mxu0
  %v421 = vadd.f32 %v78, %v420
  %422 = vdwg.mxu0
  %423 = vmatprep.subr.bf16.mxu0 0
  %424 = vmatpush1.bf16.msra.mxu0 %v255
  %425 = vmatprep.subr.bf16.mxu0 0
  %426 = vmatpush1.bf16.msra.mxu0 %v252
  %427 = vmatprep.subr.bf16.mxu0 0
  %428 = vmatpush1.bf16.msra.mxu0 %v249
  %429 = vmatprep.subr.bf16.mxu0 0
  %430 = vmatpush1.bf16.msra.mxu0 %v246
  %431 = vmatprep.subr.bf16.mxu0 0
  %432 = vmatpush1.bf16.msra.mxu0 %v243
  %433 = vmatprep.subr.bf16.mxu0 0
  %434 = vmatpush1.bf16.msra.mxu0 %v240
  %435 = vmatprep.subr.bf16.mxu0 0
  %436 = vmatpush1.bf16.msra.mxu0 %v237
  %437 = vmatprep.subr.bf16.mxu0 0
  %438 = vmatpush1.bf16.msra.mxu0 %v234
  %439 = vmatprep.subr.bf16.mxu0 0
  %440 = vmatpush2.bf16.msra.mxu0 0
  %441 = vmatprep.subr.bf16.mxu0 0
  %442 = vmatpush2.bf16.msra.mxu0 0
  %443 = vmatprep.subr.bf16.mxu0 0
  %444 = vmatpush2.bf16.msra.mxu0 0
  %445 = vmatprep.subr.bf16.mxu0 0
  %446 = vmatpush2.bf16.msra.mxu0 0
  %447 = vmatprep.subr.bf16.mxu0 0
  %448 = vmatpush2.bf16.msra.mxu0 0
  %449 = vmatprep.subr.bf16.mxu0 0
  %450 = vmatpush2.bf16.msra.mxu0 0
  %451 = vmatprep.subr.bf16.mxu0 0
  %452 = vmatpush2.bf16.msra.mxu0 0
  %453 = vmatprep.subr.bf16.mxu0 0
  %454 = vmatpush2.bf16.msra.mxu0 0
  %455 = vmatprep.mubr.bf16.mxu0 0
  %456 = vmatmul.mubr.bf16.gmra.mxu0 %v130
  %v457 = vpop.f32.mrf.mxu0
  %v458 = vadd.f32 %v82, %v457
  %v459 = vpop.f32.mrf.mxu0
  %v460 = vpop.f32.mrf.mxu0
  %v461 = vadd.f32 %v82, %v460
  %v462 = vpop.f32.mrf.mxu0
  %463 = vmatprep.mubr.bf16.mxu0 0
  %464 = vmatmul.mubr.bf16.gmra.mxu0 %v131
  %v465 = vpop.f32.mrf.mxu0
  %v466 = vadd.f32 %v82, %v465
  %v467 = vpop.f32.mrf.mxu0
  %v468 = vpop.f32.mrf.mxu0
  %v469 = vadd.f32 %v82, %v468
  %v470 = vpop.f32.mrf.mxu0
  %471 = vmatprep.mubr.bf16.mxu0 0
  %472 = vmatmul.mubr.bf16.gmra.mxu0 %v132
  %v473 = vpop.f32.mrf.mxu0
  %v474 = vadd.f32 %v82, %v473
  %v475 = vpop.f32.mrf.mxu0
  %v476 = vpop.f32.mrf.mxu0
  %v477 = vadd.f32 %v82, %v476
  %v478 = vpop.f32.mrf.mxu0
  %479 = vmatprep.mubr.bf16.mxu0 0
  %480 = vmatmul.mubr.bf16.gmra.mxu0 %v133
  %v481 = vpop.f32.mrf.mxu0
  %v482 = vadd.f32 %v82, %v481
  %v483 = vpop.f32.mrf.mxu0
  %v484 = vpop.f32.mrf.mxu0
  %v485 = vadd.f32 %v82, %v484
  %v486 = vpop.f32.mrf.mxu0
  %487 = vmatprep.mubr.bf16.mxu0 0
  %488 = vmatmul.mubr.bf16.gmra.mxu0 %v134
  %v489 = vpop.f32.mrf.mxu0
  %v490 = vadd.f32 %v82, %v489
  %v491 = vpop.f32.mrf.mxu0
  %v492 = vpop.f32.mrf.mxu0
  %v493 = vadd.f32 %v82, %v492
  %v494 = vpop.f32.mrf.mxu0
  %495 = vmatprep.mubr.bf16.mxu0 0
  %496 = vmatmul.mubr.bf16.gmra.mxu0 %v135
  %v497 = vpop.f32.mrf.mxu0
  %v498 = vadd.f32 %v82, %v497
  %v499 = vpop.f32.mrf.mxu0
  %v500 = vpop.f32.mrf.mxu0
  %v501 = vadd.f32 %v82, %v500
  %v502 = vpop.f32.mrf.mxu0
  %503 = vmatprep.mubr.bf16.mxu0 0
  %504 = vmatmul.mubr.bf16.gmra.mxu0 %v136
  %v505 = vpop.f32.mrf.mxu0
  %v506 = vadd.f32 %v82, %v505
  %v507 = vpop.f32.mrf.mxu0
  %v508 = vpop.f32.mrf.mxu0
  %v509 = vadd.f32 %v82, %v508
  %v510 = vpop.f32.mrf.mxu0
  %511 = vmatprep.mubr.bf16.mxu0 0
  %512 = vmatmul.mubr.bf16.gmra.mxu0 %v137
  %v513 = vpop.f32.mrf.mxu0
  %v514 = vadd.f32 %v82, %v513
  %v515 = vpop.f32.mrf.mxu0
  %v516 = vpop.f32.mrf.mxu0
  %v517 = vadd.f32 %v82, %v516
  %v518 = vpop.f32.mrf.mxu0
  %519 = vmatprep.mubr.bf16.mxu0 0
  %520 = vmatmul.mubr.bf16.gmra.mxu0 %v138
  %v521 = vpop.f32.mrf.mxu0
  %v522 = vadd.f32 %v82, %v521
  %v523 = vpop.f32.mrf.mxu0
  %v524 = vpop.f32.mrf.mxu0
  %v525 = vadd.f32 %v82, %v524
  %v526 = vpop.f32.mrf.mxu0
  %527 = vmatprep.mubr.bf16.mxu0 0
  %528 = vmatmul.mubr.bf16.gmra.mxu0 %v139
  %v529 = vpop.f32.mrf.mxu0
  %v530 = vadd.f32 %v82, %v529
  %v531 = vpop.f32.mrf.mxu0
  %v532 = vpop.f32.mrf.mxu0
  %v533 = vadd.f32 %v82, %v532
  %v534 = vpop.f32.mrf.mxu0
  %535 = vmatprep.mubr.bf16.mxu0 0
  %536 = vmatmul.mubr.bf16.gmra.mxu0 %v140
  %v537 = vpop.f32.mrf.mxu0
  %v538 = vadd.f32 %v82, %v537
  %v539 = vpop.f32.mrf.mxu0
  %v540 = vpop.f32.mrf.mxu0
  %v541 = vadd.f32 %v82, %v540
  %v542 = vpop.f32.mrf.mxu0
  %543 = vdwg.mxu0
  %544 = vst [vmem:[%s3] sm:$0xff] %v315
  %545 = vst [vmem:[%s3 + $0x8] sm:$0xff] %v317
  %546 = vst [vmem:[%s3 + $0x10] sm:$0xff] %v458
  %547 = vst [vmem:[%s3 + $0x18] sm:$0xff] %v319
  %548 = vst [vmem:[%s3 + $0x20] sm:$0xff] %v321
  %549 = vst [vmem:[%s3 + $0x28] sm:$0xff] %v461
  %550 = vst [vmem:[%s3 + $0x30] sm:$0xff] %v325
  %551 = vst [vmem:[%s3 + $0x38] sm:$0xff] %v327
  %552 = vst [vmem:[%s3 + $0x40] sm:$0xff] %v466
  %553 = vst [vmem:[%s3 + $0x48] sm:$0xff] %v329
  %554 = vst [vmem:[%s3 + $0x50] sm:$0xff] %v331
  %555 = vst [vmem:[%s3 + $0x58] sm:$0xff] %v469
  %556 = vst [vmem:[%s3 + $0x60] sm:$0xff] %v335
  %557 = vst [vmem:[%s3 + $0x68] sm:$0xff] %v337
  %558 = vst [vmem:[%s3 + $0x70] sm:$0xff] %v474
  %559 = vst [vmem:[%s3 + $0x78] sm:$0xff] %v339
  %560 = vst [vmem:[%s3 + $0x80] sm:$0xff] %v341
  %561 = vst [vmem:[%s3 + $0x88] sm:$0xff] %v477
  %562 = vst [vmem:[%s3 + $0x90] sm:$0xff] %v345
  %563 = vst [vmem:[%s3 + $0x98] sm:$0xff] %v347
  %564 = vst [vmem:[%s3 + $0xa0] sm:$0xff] %v482
  %565 = vst [vmem:[%s3 + $0xa8] sm:$0xff] %v349
  %566 = vst [vmem:[%s3 + $0xb0] sm:$0xff] %v351
  %567 = vst [vmem:[%s3 + $0xb8] sm:$0xff] %v485
  %568 = vst [vmem:[%s3 + $0xc0] sm:$0xff] %v355
  %569 = vst [vmem:[%s3 + $0xc8] sm:$0xff] %v357
  %570 = vst [vmem:[%s3 + $0xd0] sm:$0xff] %v490
  %571 = vst [vmem:[%s3 + $0xd8] sm:$0xff] %v359
  %572 = vst [vmem:[%s3 + $0xe0] sm:$0xff] %v361
  %573 = vst [vmem:[%s3 + $0xe8] sm:$0xff] %v493
  %574 = vst [vmem:[%s3 + $0xf0] sm:$0xff] %v365
  %575 = vst [vmem:[%s3 + $0xf8] sm:$0xff] %v367
  %576 = vst [vmem:[%s3 + $0x100] sm:$0xff] %v498
  %577 = vst [vmem:[%s3 + $0x108] sm:$0xff] %v369
  %578 = vst [vmem:[%s3 + $0x110] sm:$0xff] %v371
  %579 = vst [vmem:[%s3 + $0x118] sm:$0xff] %v501
  %580 = vst [vmem:[%s3 + $0x120] sm:$0xff] %v375
  %581 = vst [vmem:[%s3 + $0x128] sm:$0xff] %v377
  %582 = vst [vmem:[%s3 + $0x130] sm:$0xff] %v506
  %583 = vst [vmem:[%s3 + $0x138] sm:$0xff] %v379
  %584 = vst [vmem:[%s3 + $0x140] sm:$0xff] %v381
  %585 = vst [vmem:[%s3 + $0x148] sm:$0xff] %v509
  %586 = vst [vmem:[%s3 + $0x150] sm:$0xff] %v385
  %587 = vst [vmem:[%s3 + $0x158] sm:$0xff] %v387
  %588 = vst [vmem:[%s3 + $0x160] sm:$0xff] %v514
  %589 = vst [vmem:[%s3 + $0x168] sm:$0xff] %v389
  %590 = vst [vmem:[%s3 + $0x170] sm:$0xff] %v391
  %591 = vst [vmem:[%s3 + $0x178] sm:$0xff] %v517
  %592 = vst [vmem:[%s3 + $0x180] sm:$0xff] %v395
  %593 = vst [vmem:[%s3 + $0x188] sm:$0xff] %v397
  %594 = vst [vmem:[%s3 + $0x190] sm:$0xff] %v522
  %595 = vst [vmem:[%s3 + $0x198] sm:$0xff] %v399
  %596 = vst [vmem:[%s3 + $0x1a0] sm:$0xff] %v401
  %597 = vst [vmem:[%s3 + $0x1a8] sm:$0xff] %v525
  %598 = vst [vmem:[%s3 + $0x1b0] sm:$0xff] %v405
  %599 = vst [vmem:[%s3 + $0x1b8] sm:$0xff] %v407
  %600 = vst [vmem:[%s3 + $0x1c0] sm:$0xff] %v530
  %601 = vst [vmem:[%s3 + $0x1c8] sm:$0xff] %v409
  %602 = vst [vmem:[%s3 + $0x1d0] sm:$0xff] %v411
  %603 = vst [vmem:[%s3 + $0x1d8] sm:$0xff] %v533
  %604 = vst [vmem:[%s3 + $0x1e0] sm:$0xff] %v415
  %605 = vst [vmem:[%s3 + $0x1e8] sm:$0xff] %v417
  %606 = vst [vmem:[%s3 + $0x1f0] sm:$0xff] %v538
  %607 = vst [vmem:[%s3 + $0x1f8] sm:$0xff] %v419
  %608 = vst [vmem:[%s3 + $0x200] sm:$0xff] %v421
  %609 = vst [vmem:[%s3 + $0x208] sm:$0xff] %v541
  // Predicated region
  $region14: #{main_forward.59} parent=0 // pred_check
    _
  $region15: #{main_forward.59} parent=0 // pred_check_branch
    %611 = sbr.rel (0) target = $region17
  $region16: #{main_forward.59} parent=0 // pred_region
    _
  $region17: #{main_forward.59} parent=0 // pred_fallthru
    _
  // Predicated region
  $region18: #{main_forward.59} parent=0 // pred_check
    _
  $region19: #{main_forward.59} parent=0 // pred_check_branch
    %613 = sbr.rel (0) target = $region21
  $region20: #{main_forward.59} parent=0 // pred_region
    _
  $region21: #{main_forward.59} parent=0 // pred_fallthru
    _

// kernel: main_forward.62
$region0: #{main_forward.62}
  #allocation0 [shape = 'u32[]', space=smem, size = 0x4, offset = 0x4, fixed_abs, tag = 'smem constant byte address 0x4 - core index']
  #allocation1 [shape = 'u32[144,128]{1,0:T(1,128)}', space=vmem, size = 0x12000, scoped, tag = 'internal scratch']
  %s0 = inlined_call_operand.vmem [shape: f32[168,128], index: 0, kind: input, shape index: {}]
  %s1 = inlined_call_operand.vmem [shape: f32[1,128], index: 1, kind: input, shape index: {}]
  %s2 = inlined_call_operand.vmem [shape: f32[168,128], index: 2, kind: output, shape index: {}]
  %s3 = sld [smem:[#allocation0]]
  $region18: #{main_forward.62} parent=0
    _
  %s5 = ssub.s32 1, %s3
  %s6 = scalar_select 0, %s5, %s3
  // Predicated region
  $region2: #{main_forward.62} parent=0 // pred_check
    _
  $region3: #{main_forward.62} parent=0 // pred_check_branch
    %8 = sbr.rel (0) target = $region5
  $region4: #{main_forward.62} parent=0 // pred_region
    _
  $region5: #{main_forward.62} parent=0 // pred_fallthru
    _
  // Predicated region
  $region6: #{main_forward.62} parent=0 // pred_check
    _
  $region7: #{main_forward.62} parent=0 // pred_check_branch
    %10 = sbr.rel (0) target = $region9
  $region8: #{main_forward.62} parent=0 // pred_region
    _
  $region9: #{main_forward.62} parent=0 // pred_fallthru
    _
  %v11 = vld [vmem:[%s0] sm:$0xff]
  %v12 = vld [vmem:[%s0 + $0x8] sm:$0xff]
  %v13 = vld [vmem:[%s0 + $0x10] sm:$0xff]
  %v14 = vld [vmem:[%s0 + $0x18] sm:$0xff]
  %v15 = vld [vmem:[%s0 + $0x20] sm:$0xff]
  %v16 = vld [vmem:[%s0 + $0x28] sm:$0xff]
  %v17 = vld [vmem:[%s0 + $0x30] sm:$0xff]
  %v18 = vld [vmem:[%s0 + $0x38] sm:$0xff]
  %v19 = vld [vmem:[%s0 + $0x40] sm:$0xff]
  %v20 = vld [vmem:[%s0 + $0x48] sm:$0xff]
  %v21 = vld [vmem:[%s0 + $0x50] sm:$0xff]
  %v22 = vld [vmem:[%s0 + $0x58] sm:$0xff]
  %v23 = vld [vmem:[%s0 + $0x60] sm:$0xff]
  %v24 = vld [vmem:[%s0 + $0x68] sm:$0xff]
  %v25 = vld [vmem:[%s0 + $0x70] sm:$0xff]
  %v26 = vld [vmem:[%s0 + $0x78] sm:$0xff]
  %v27 = vld [vmem:[%s0 + $0x80] sm:$0xff]
  %v28 = vld [vmem:[%s0 + $0x88] sm:$0xff]
  %v29 = vld [vmem:[%s0 + $0x90] sm:$0xff]
  %v30 = vld [vmem:[%s0 + $0x98] sm:$0xff]
  %v31 = vld [vmem:[%s0 + $0xa0] sm:$0xff]
  %32 = vadd.xlane.f32.xlu0 %v11
  %v33 = vpop.xlane.xlu0 %32
  %34 = vadd.xlane.f32.xlu0 %v12
  %v35 = vpop.xlane.xlu0 %34
  %36 = vadd.xlane.f32.xlu0 %v13
  %v37 = vpop.xlane.xlu0 %36
  %38 = vadd.xlane.f32.xlu0 %v14
  %v39 = vpop.xlane.xlu0 %38
  %40 = vadd.xlane.f32.xlu0 %v15
  %v41 = vpop.xlane.xlu0 %40
  %42 = vadd.xlane.f32.xlu0 %v16
  %v43 = vpop.xlane.xlu0 %42
  %44 = vadd.xlane.f32.xlu0 %v17
  %v45 = vpop.xlane.xlu0 %44
  %46 = vadd.xlane.f32.xlu0 %v18
  %v47 = vpop.xlane.xlu0 %46
  %48 = vadd.xlane.f32.xlu0 %v19
  %v49 = vpop.xlane.xlu0 %48
  %50 = vadd.xlane.f32.xlu0 %v20
  %v51 = vpop.xlane.xlu0 %50
  %52 = vadd.xlane.f32.xlu0 %v21
  %v53 = vpop.xlane.xlu0 %52
  %54 = vadd.xlane.f32.xlu0 %v22
  %v55 = vpop.xlane.xlu0 %54
  %56 = vadd.xlane.f32.xlu0 %v23
  %v57 = vpop.xlane.xlu0 %56
  %58 = vadd.xlane.f32.xlu0 %v24
  %v59 = vpop.xlane.xlu0 %58
  %60 = vadd.xlane.f32.xlu0 %v25
  %v61 = vpop.xlane.xlu0 %60
  %62 = vadd.xlane.f32.xlu0 %v26
  %v63 = vpop.xlane.xlu0 %62
  %64 = vadd.xlane.f32.xlu0 %v27
  %v65 = vpop.xlane.xlu0 %64
  %66 = vadd.xlane.f32.xlu0 %v28
  %v67 = vpop.xlane.xlu0 %66
  %68 = vadd.xlane.f32.xlu0 %v29
  %v69 = vpop.xlane.xlu0 %68
  %70 = vadd.xlane.f32.xlu0 %v30
  %v71 = vpop.xlane.xlu0 %70
  %72 = vadd.xlane.f32.xlu0 %v31
  %v73 = vpop.xlane.xlu0 %72
  %v74 = vrcp.pop 128.0
  %v75 = vmul.f32 %v33, %v74
  %v76 = vmul.f32 %v35, %v74
  %v77 = vmul.f32 %v37, %v74
  %v78 = vmul.f32 %v39, %v74
  %v79 = vmul.f32 %v41, %v74
  %v80 = vmul.f32 %v43, %v74
  %v81 = vmul.f32 %v45, %v74
  %v82 = vmul.f32 %v47, %v74
  %v83 = vmul.f32 %v49, %v74
  %v84 = vmul.f32 %v51, %v74
  %v85 = vmul.f32 %v53, %v74
  %v86 = vmul.f32 %v55, %v74
  %v87 = vmul.f32 %v57, %v74
  %v88 = vmul.f32 %v59, %v74
  %v89 = vmul.f32 %v61, %v74
  %v90 = vmul.f32 %v63, %v74
  %v91 = vmul.f32 %v65, %v74
  %v92 = vmul.f32 %v67, %v74
  %v93 = vmul.f32 %v69, %v74
  %v94 = vmul.f32 %v71, %v74
  %v95 = vmul.f32 %v73, %v74
  %v96 = vmul.f32 %v11, %v11
  %v97 = vmul.f32 %v12, %v12
  %v98 = vmul.f32 %v13, %v13
  %v99 = vmul.f32 %v14, %v14
  %v100 = vmul.f32 %v15, %v15
  %v101 = vmul.f32 %v16, %v16
  %v102 = vmul.f32 %v17, %v17
  %v103 = vmul.f32 %v18, %v18
  %v104 = vmul.f32 %v19, %v19
  %v105 = vmul.f32 %v20, %v20
  %v106 = vmul.f32 %v21, %v21
  %v107 = vmul.f32 %v22, %v22
  %v108 = vmul.f32 %v23, %v23
  %v109 = vmul.f32 %v24, %v24
  %v110 = vmul.f32 %v25, %v25
  %v111 = vmul.f32 %v26, %v26
  %v112 = vmul.f32 %v27, %v27
  %v113 = vmul.f32 %v28, %v28
  %v114 = vmul.f32 %v29, %v29
  %v115 = vmul.f32 %v30, %v30
  %v116 = vmul.f32 %v31, %v31
  %117 = vadd.xlane.f32.xlu0 %v96
  %v118 = vpop.xlane.xlu0 %117
  %119 = vadd.xlane.f32.xlu0 %v97
  %v120 = vpop.xlane.xlu0 %119
  %121 = vadd.xlane.f32.xlu0 %v98
  %v122 = vpop.xlane.xlu0 %121
  %123 = vadd.xlane.f32.xlu0 %v99
  %v124 = vpop.xlane.xlu0 %123
  %125 = vadd.xlane.f32.xlu0 %v100
  %v126 = vpop.xlane.xlu0 %125
  %127 = vadd.xlane.f32.xlu0 %v101
  %v128 = vpop.xlane.xlu0 %127
  %129 = vadd.xlane.f32.xlu0 %v102
  %v130 = vpop.xlane.xlu0 %129
  %131 = vadd.xlane.f32.xlu0 %v103
  %v132 = vpop.xlane.xlu0 %131
  %133 = vadd.xlane.f32.xlu0 %v104
  %v134 = vpop.xlane.xlu0 %133
  %135 = vadd.xlane.f32.xlu0 %v105
  %v136 = vpop.xlane.xlu0 %135
  %137 = vadd.xlane.f32.xlu0 %v106
  %v138 = vpop.xlane.xlu0 %137
  %139 = vadd.xlane.f32.xlu0 %v107
  %v140 = vpop.xlane.xlu0 %139
  %141 = vadd.xlane.f32.xlu0 %v108
  %v142 = vpop.xlane.xlu0 %141
  %143 = vadd.xlane.f32.xlu0 %v109
  %v144 = vpop.xlane.xlu0 %143
  %145 = vadd.xlane.f32.xlu0 %v110
  %v146 = vpop.xlane.xlu0 %145
  %147 = vadd.xlane.f32.xlu0 %v111
  %v148 = vpop.xlane.xlu0 %147
  %149 = vadd.xlane.f32.xlu0 %v112
  %v150 = vpop.xlane.xlu0 %149
  %151 = vadd.xlane.f32.xlu0 %v113
  %v152 = vpop.xlane.xlu0 %151
  %153 = vadd.xlane.f32.xlu0 %v114
  %v154 = vpop.xlane.xlu0 %153
  %155 = vadd.xlane.f32.xlu0 %v115
  %v156 = vpop.xlane.xlu0 %155
  %157 = vadd.xlane.f32.xlu0 %v116
  %v158 = vpop.xlane.xlu0 %157
  %v159 = vmul.f32 %v118, %v74
  %v160 = vmul.f32 %v120, %v74
  %v161 = vmul.f32 %v122, %v74
  %v162 = vmul.f32 %v124, %v74
  %v163 = vmul.f32 %v126, %v74
  %v164 = vmul.f32 %v128, %v74
  %v165 = vmul.f32 %v130, %v74
  %v166 = vmul.f32 %v132, %v74
  %v167 = vmul.f32 %v134, %v74
  %v168 = vmul.f32 %v136, %v74
  %v169 = vmul.f32 %v138, %v74
  %v170 = vmul.f32 %v140, %v74
  %v171 = vmul.f32 %v142, %v74
  %v172 = vmul.f32 %v144, %v74
  %v173 = vmul.f32 %v146, %v74
  %v174 = vmul.f32 %v148, %v74
  %v175 = vmul.f32 %v150, %v74
  %v176 = vmul.f32 %v152, %v74
  %v177 = vmul.f32 %v154, %v74
  %v178 = vmul.f32 %v156, %v74
  %v179 = vmul.f32 %v158, %v74
  %v180 = vmul.f32 %v75, %v75
  %v181 = vmul.f32 %v76, %v76
  %v182 = vmul.f32 %v77, %v77
  %v183 = vmul.f32 %v78, %v78
  %v184 = vmul.f32 %v79, %v79
  %v185 = vmul.f32 %v80, %v80
  %v186 = vmul.f32 %v81, %v81
  %v187 = vmul.f32 %v82, %v82
  %v188 = vmul.f32 %v83, %v83
  %v189 = vmul.f32 %v84, %v84
  %v190 = vmul.f32 %v85, %v85
  %v191 = vmul.f32 %v86, %v86
  %v192 = vmul.f32 %v87, %v87
  %v193 = vmul.f32 %v88, %v88
  %v194 = vmul.f32 %v89, %v89
  %v195 = vmul.f32 %v90, %v90
  %v196 = vmul.f32 %v91, %v91
  %v197 = vmul.f32 %v92, %v92
  %v198 = vmul.f32 %v93, %v93
  %v199 = vmul.f32 %v94, %v94
  %v200 = vmul.f32 %v95, %v95
  %v201 = vsub.f32 %v159, %v180
  %v202 = vsub.f32 %v160, %v181
  %v203 = vsub.f32 %v161, %v182
  %v204 = vsub.f32 %v162, %v183
  %v205 = vsub.f32 %v163, %v184
  %v206 = vsub.f32 %v164, %v185
  %v207 = vsub.f32 %v165, %v186
  %v208 = vsub.f32 %v166, %v187
  %v209 = vsub.f32 %v167, %v188
  %v210 = vsub.f32 %v168, %v189
  %v211 = vsub.f32 %v169, %v190
  %v212 = vsub.f32 %v170, %v191
  %v213 = vsub.f32 %v171, %v192
  %v214 = vsub.f32 %v172, %v193
  %v215 = vsub.f32 %v173, %v194
  %v216 = vsub.f32 %v174, %v195
  %v217 = vsub.f32 %v175, %v196
  %v218 = vsub.f32 %v176, %v197
  %v219 = vsub.f32 %v177, %v198
  %v220 = vsub.f32 %v178, %v199
  %v221 = vsub.f32 %v179, %v200
  %v222 = vmax.f32 %v201, 0.0
  %v223 = vmax.f32 %v202, 0.0
  %v224 = vmax.f32 %v203, 0.0
  %v225 = vmax.f32 %v204, 0.0
  %v226 = vmax.f32 %v205, 0.0
  %v227 = vmax.f32 %v206, 0.0
  %v228 = vmax.f32 %v207, 0.0
  %v229 = vmax.f32 %v208, 0.0
  %v230 = vmax.f32 %v209, 0.0
  %v231 = vmax.f32 %v210, 0.0
  %v232 = vmax.f32 %v211, 0.0
  %v233 = vmax.f32 %v212, 0.0
  %v234 = vmax.f32 %v213, 0.0
  %v235 = vmax.f32 %v214, 0.0
  %v236 = vmax.f32 %v215, 0.0
  %v237 = vmax.f32 %v216, 0.0
  %v238 = vmax.f32 %v217, 0.0
  %v239 = vmax.f32 %v218, 0.0
  %v240 = vmax.f32 %v219, 0.0
  %v241 = vmax.f32 %v220, 0.0
  %v242 = vmax.f32 %v221, 0.0
  %v243 = vadd.f32 %v222, 1e-05
  %v244 = vadd.f32 %v223, 1e-05
  %v245 = vadd.f32 %v224, 1e-05
  %v246 = vadd.f32 %v225, 1e-05
  %v247 = vadd.f32 %v226, 1e-05
  %v248 = vadd.f32 %v227, 1e-05
  %v249 = vadd.f32 %v228, 1e-05
  %v250 = vadd.f32 %v229, 1e-05
  %v251 = vadd.f32 %v230, 1e-05
  %v252 = vadd.f32 %v231, 1e-05
  %v253 = vadd.f32 %v232, 1e-05
  %v254 = vadd.f32 %v233, 1e-05
  %v255 = vadd.f32 %v234, 1e-05
  %v256 = vadd.f32 %v235, 1e-05
  %v257 = vadd.f32 %v236, 1e-05
  %v258 = vadd.f32 %v237, 1e-05
  %v259 = vadd.f32 %v238, 1e-05
  %v260 = vadd.f32 %v239, 1e-05
  %v261 = vadd.f32 %v240, 1e-05
  %v262 = vadd.f32 %v241, 1e-05
  %v263 = vadd.f32 %v242, 1e-05
  %v264 = vrsqrt.pop %v243
  %v265 = vrsqrt.pop %v244
  %v266 = vrsqrt.pop %v245
  %v267 = vrsqrt.pop %v246
  %v268 = vrsqrt.pop %v247
  %v269 = vrsqrt.pop %v248
  %v270 = vrsqrt.pop %v249
  %v271 = vrsqrt.pop %v250
  %v272 = vrsqrt.pop %v251
  %v273 = vrsqrt.pop %v252
  %v274 = vrsqrt.pop %v253
  %v275 = vrsqrt.pop %v254
  %v276 = vrsqrt.pop %v255
  %v277 = vrsqrt.pop %v256
  %v278 = vrsqrt.pop %v257
  %v279 = vrsqrt.pop %v258
  %v280 = vrsqrt.pop %v259
  %v281 = vrsqrt.pop %v260
  %v282 = vrsqrt.pop %v261
  %v283 = vrsqrt.pop %v262
  %v284 = vrsqrt.pop %v263
  %v285 = vmul.f32 %v11, %v264
  %v286 = vmul.f32 %v12, %v265
  %v287 = vmul.f32 %v13, %v266
  %v288 = vmul.f32 %v14, %v267
  %v289 = vmul.f32 %v15, %v268
  %v290 = vmul.f32 %v16, %v269
  %v291 = vmul.f32 %v17, %v270
  %v292 = vmul.f32 %v18, %v271
  %v293 = vmul.f32 %v19, %v272
  %v294 = vmul.f32 %v20, %v273
  %v295 = vmul.f32 %v21, %v274
  %v296 = vmul.f32 %v22, %v275
  %v297 = vmul.f32 %v23, %v276
  %v298 = vmul.f32 %v24, %v277
  %v299 = vmul.f32 %v25, %v278
  %v300 = vmul.f32 %v26, %v279
  %v301 = vmul.f32 %v27, %v280
  %v302 = vmul.f32 %v28, %v281
  %v303 = vmul.f32 %v29, %v282
  %v304 = vmul.f32 %v30, %v283
  %v305 = vmul.f32 %v31, %v284
  %v306 = vld [vmem:[%s1] sm:$0x1]
  %v308 = vlaneseq
  %v309 = vshrl.u32 %v308, 7
  %v310 = vsub.s32 0, %v309
  %v311 = vrot.slane %v306, %v310
  %v313 = vmul.f32 %v285, %v311
  %v314 = vmul.f32 %v286, %v311
  %v315 = vmul.f32 %v287, %v311
  %v316 = vmul.f32 %v288, %v311
  %v317 = vmul.f32 %v289, %v311
  %v318 = vmul.f32 %v290, %v311
  %v319 = vmul.f32 %v291, %v311
  %v320 = vmul.f32 %v292, %v311
  %v321 = vmul.f32 %v293, %v311
  %v322 = vmul.f32 %v294, %v311
  %v323 = vmul.f32 %v295, %v311
  %v324 = vmul.f32 %v296, %v311
  %v325 = vmul.f32 %v297, %v311
  %v326 = vmul.f32 %v298, %v311
  %v327 = vmul.f32 %v299, %v311
  %v328 = vmul.f32 %v300, %v311
  %v329 = vmul.f32 %v301, %v311
  %v330 = vmul.f32 %v302, %v311
  %v331 = vmul.f32 %v303, %v311
  %v332 = vmul.f32 %v304, %v311
  %v333 = vmul.f32 %v305, %v311
  %334 = vst [vmem:[%s2] sm:$0xff] %v313
  %335 = vst [vmem:[%s2 + $0x8] sm:$0xff] %v314
  %336 = vst [vmem:[%s2 + $0x10] sm:$0xff] %v315
  %337 = vst [vmem:[%s2 + $0x18] sm:$0xff] %v316
  %338 = vst [vmem:[%s2 + $0x20] sm:$0xff] %v317
  %339 = vst [vmem:[%s2 + $0x28] sm:$0xff] %v318
  %340 = vst [vmem:[%s2 + $0x30] sm:$0xff] %v319
  %341 = vst [vmem:[%s2 + $0x38] sm:$0xff] %v320
  %342 = vst [vmem:[%s2 + $0x40] sm:$0xff] %v321
  %343 = vst [vmem:[%s2 + $0x48] sm:$0xff] %v322
  %344 = vst [vmem:[%s2 + $0x50] sm:$0xff] %v323
  %345 = vst [vmem:[%s2 + $0x58] sm:$0xff] %v324
  %346 = vst [vmem:[%s2 + $0x60] sm:$0xff] %v325
  %347 = vst [vmem:[%s2 + $0x68] sm:$0xff] %v326
  %348 = vst [vmem:[%s2 + $0x70] sm:$0xff] %v327
  %349 = vst [vmem:[%s2 + $0x78] sm:$0xff] %v328
  %350 = vst [vmem:[%s2 + $0x80] sm:$0xff] %v329
  %351 = vst [vmem:[%s2 + $0x88] sm:$0xff] %v330
  %352 = vst [vmem:[%s2 + $0x90] sm:$0xff] %v331
  %353 = vst [vmem:[%s2 + $0x98] sm:$0xff] %v332
  %354 = vst [vmem:[%s2 + $0xa0] sm:$0xff] %v333
  // Predicated region
  $region10: #{main_forward.62} parent=0 // pred_check
    _
  $region11: #{main_forward.62} parent=0 // pred_check_branch
    %356 = sbr.rel (0) target = $region13
  $region12: #{main_forward.62} parent=0 // pred_region
    _
  $region13: #{main_forward.62} parent=0 // pred_fallthru
    _
  // Predicated region
  $region14: #{main_forward.62} parent=0 // pred_check
    _
  $region15: #{main_forward.62} parent=0 // pred_check_branch
    %358 = sbr.rel (0) target = $region17
  $region16: #{main_forward.62} parent=0 // pred_region
    _
  $region17: #{main_forward.62} parent=0 // pred_fallthru
    _

// kernel: main_forward.63
$region0: #{main_forward.63}
  #allocation0 [shape = 'u32[]', space=smem, size = 0x4, offset = 0x4, fixed_abs, tag = 'smem constant byte address 0x4 - core index']
  #allocation1 [shape = 'u32[144,128]{1,0:T(1,128)}', space=vmem, size = 0x12000, scoped, tag = 'internal scratch']
  %s0 = inlined_call_operand.vmem [shape: bf16[176,128], index: 0, kind: input, shape index: {}]
  %s1 = inlined_call_operand.vmem [shape: bf16[128,256], index: 1, kind: input, shape index: {}]
  %s2 = inlined_call_operand.vmem [shape: f32[1,256], index: 2, kind: input, shape index: {}]
  %s3 = inlined_call_operand.vmem [shape: f32[176,256], index: 3, kind: output, shape index: {}]
  %s4 = sld [smem:[#allocation0]]
  $region22: #{main_forward.63} parent=0
    _
  %s6 = ssub.s32 1, %s4
  %s7 = scalar_select 0, %s6, %s4
  // Predicated region
  $region2: #{main_forward.63} parent=0 // pred_check
    _
  $region3: #{main_forward.63} parent=0 // pred_check_branch
    %9 = sbr.rel (0) target = $region5
  $region4: #{main_forward.63} parent=0 // pred_region
    _
  $region5: #{main_forward.63} parent=0 // pred_fallthru
    _
  // Predicated region
  $region6: #{main_forward.63} parent=0 // pred_check
    _
  $region7: #{main_forward.63} parent=0 // pred_check_branch
    %11 = sbr.rel (0) target = $region9
  $region8: #{main_forward.63} parent=0 // pred_region
    _
  $region9: #{main_forward.63} parent=0 // pred_fallthru
    _
  // Predicated region
  $region10: #{main_forward.63} parent=0 // pred_check
    _
  $region11: #{main_forward.63} parent=0 // pred_check_branch
    %13 = sbr.rel (0) target = $region13
  $region12: #{main_forward.63} parent=0 // pred_region
    _
  $region13: #{main_forward.63} parent=0 // pred_fallthru
    _
  %v15 = vld [vmem:[%s0] sm:$0xf]
  %v16 = vld [vmem:[%s0 + $0x4] sm:$0xf]
  %v17 = vld [vmem:[%s0 + $0x8] sm:$0xf]
  %v18 = vld [vmem:[%s0 + $0xc] sm:$0xf]
  %v19 = vld [vmem:[%s0 + $0x10] sm:$0xf]
  %v20 = vld [vmem:[%s0 + $0x14] sm:$0xf]
  %v21 = vld [vmem:[%s0 + $0x18] sm:$0xf]
  %v22 = vld [vmem:[%s0 + $0x1c] sm:$0xf]
  %v23 = vld [vmem:[%s0 + $0x20] sm:$0xf]
  %v24 = vld [vmem:[%s0 + $0x24] sm:$0xf]
  %v25 = vld [vmem:[%s0 + $0x28] sm:$0xf]
  %v26 = vld [vmem:[%s0 + $0x2c] sm:$0xf]
  %v27 = vld [vmem:[%s0 + $0x30] sm:$0xf]
  %v28 = vld [vmem:[%s0 + $0x34] sm:$0xf]
  %v29 = vld [vmem:[%s0 + $0x38] sm:$0xf]
  %v30 = vld [vmem:[%s0 + $0x3c] sm:$0xf]
  %v31 = vld [vmem:[%s0 + $0x40] sm:$0xf]
  %v32 = vld [vmem:[%s0 + $0x44] sm:$0xf]
  %v33 = vld [vmem:[%s0 + $0x48] sm:$0xf]
  %v34 = vld [vmem:[%s0 + $0x4c] sm:$0xf]
  %v35 = vld [vmem:[%s0 + $0x50] sm:$0xf]
  %v36 = vld [vmem:[%s0 + $0x54] sm:$0xf]
  %v37 = vld [vmem:[%s1] sm:$0xff]
  %v38 = vld [vmem:[%s1 + $0x8] sm:$0xff]
  %v39 = vld [vmem:[%s1 + $0x10] sm:$0xff]
  %v40 = vld [vmem:[%s1 + $0x18] sm:$0xff]
  %v41 = vld [vmem:[%s1 + $0x20] sm:$0xff]
  %v42 = vld [vmem:[%s1 + $0x28] sm:$0xff]
  %v43 = vld [vmem:[%s1 + $0x30] sm:$0xff]
  %v44 = vld [vmem:[%s1 + $0x38] sm:$0xff]
  %v45 = vld [vmem:[%s1 + $0x40] sm:$0xff]
  %v46 = vld [vmem:[%s1 + $0x48] sm:$0xff]
  %v47 = vld [vmem:[%s1 + $0x50] sm:$0xff]
  %v48 = vld [vmem:[%s1 + $0x58] sm:$0xff]
  %v49 = vld [vmem:[%s1 + $0x60] sm:$0xff]
  %v50 = vld [vmem:[%s1 + $0x68] sm:$0xff]
  %v51 = vld [vmem:[%s1 + $0x70] sm:$0xff]
  %v52 = vld [vmem:[%s1 + $0x78] sm:$0xff]
  %v53 = vld [vmem:[%s2] sm:$0x3]
  %v55 = vlaneseq
  %v56 = vshrl.u32 %v55, 7
  %v57 = vsub.s32 0, %v56
  %v58 = vrot.slane %v53, %v57
  %v59 = vlaneseq
  %v60 = vshrl.u32 %v59, 7
  %v61 = vsub.s32 1, %v60
  %v62 = vrot.slane %v53, %v61
  %v87 = vunpack.c.l.b16 %v15
  %v88 = vunpack.c.l.b16 %v16
  %v89 = vunpack.c.l.b16 %v17
  %v90 = vunpack.c.l.b16 %v18
  %v91 = vunpack.c.l.b16 %v19
  %v92 = vunpack.c.l.b16 %v20
  %v93 = vunpack.c.l.b16 %v21
  %v94 = vunpack.c.l.b16 %v22
  %v95 = vunpack.c.l.b16 %v23
  %v96 = vunpack.c.l.b16 %v24
  %v97 = vunpack.c.l.b16 %v25
  %v98 = vunpack.c.l.b16 %v26
  %v99 = vunpack.c.l.b16 %v27
  %v100 = vunpack.c.l.b16 %v28
  %v101 = vunpack.c.l.b16 %v29
  %v102 = vunpack.c.l.b16 %v30
  %v103 = vunpack.c.l.b16 %v31
  %v104 = vunpack.c.l.b16 %v32
  %v105 = vunpack.c.l.b16 %v33
  %v106 = vunpack.c.l.b16 %v34
  %v107 = vunpack.c.l.b16 %v35
  %v108 = vunpack.c.l.b16 %v36
  %v109 = vpack.c.b16 %v88, %v87
  %v110 = vpack.c.b16 %v90, %v89
  %v111 = vpack.c.b16 %v92, %v91
  %v112 = vpack.c.b16 %v94, %v93
  %v113 = vpack.c.b16 %v96, %v95
  %v114 = vpack.c.b16 %v98, %v97
  %v115 = vpack.c.b16 %v100, %v99
  %v116 = vpack.c.b16 %v102, %v101
  %v117 = vpack.c.b16 %v104, %v103
  %v118 = vpack.c.b16 %v106, %v105
  %v119 = vpack.c.b16 %v108, %v107
  %v147 = vunpack.c.l.b16 %v37
  %v148 = vunpack.c.h.b16 %v37
  %v149 = vunpack.c.l.b16 %v38
  %v150 = vunpack.c.h.b16 %v38
  %v151 = vunpack.c.l.b16 %v39
  %v152 = vunpack.c.h.b16 %v39
  %v153 = vunpack.c.l.b16 %v40
  %v154 = vunpack.c.h.b16 %v40
  %v155 = vunpack.c.l.b16 %v41
  %v156 = vunpack.c.h.b16 %v41
  %v157 = vunpack.c.l.b16 %v42
  %v158 = vunpack.c.h.b16 %v42
  %v159 = vunpack.c.l.b16 %v43
  %v160 = vunpack.c.h.b16 %v43
  %v161 = vunpack.c.l.b16 %v44
  %v162 = vunpack.c.h.b16 %v44
  %v163 = vunpack.c.l.b16 %v45
  %v164 = vunpack.c.h.b16 %v45
  %v165 = vunpack.c.l.b16 %v46
  %v166 = vunpack.c.h.b16 %v46
  %v167 = vunpack.c.l.b16 %v47
  %v168 = vunpack.c.h.b16 %v47
  %v169 = vunpack.c.l.b16 %v48
  %v170 = vunpack.c.h.b16 %v48
  %v171 = vunpack.c.l.b16 %v49
  %v172 = vunpack.c.h.b16 %v49
  %v173 = vunpack.c.l.b16 %v50
  %v174 = vunpack.c.h.b16 %v50
  %v175 = vunpack.c.l.b16 %v51
  %v176 = vunpack.c.h.b16 %v51
  %v177 = vunpack.c.l.b16 %v52
  %v178 = vunpack.c.h.b16 %v52
  %v179 = vpack.c.b16 %v149, %v147
  %v180 = vpack.c.b16 %v150, %v148
  %v181 = vpack.c.b16 %v153, %v151
  %v182 = vpack.c.b16 %v154, %v152
  %v183 = vpack.c.b16 %v157, %v155
  %v184 = vpack.c.b16 %v158, %v156
  %v185 = vpack.c.b16 %v161, %v159
  %v186 = vpack.c.b16 %v162, %v160
  %v187 = vpack.c.b16 %v165, %v163
  %v188 = vpack.c.b16 %v166, %v164
  %v189 = vpack.c.b16 %v169, %v167
  %v190 = vpack.c.b16 %v170, %v168
  %v191 = vpack.c.b16 %v173, %v171
  %v192 = vpack.c.b16 %v174, %v172
  %v193 = vpack.c.b16 %v177, %v175
  %v194 = vpack.c.b16 %v178, %v176
  %211 = vmatprep.subr.bf16.mxu0 %v194
  %212 = vmatpush1.bf16.msra.mxu0 %v193
  %213 = vmatprep.subr.bf16.mxu0 %v192
  %214 = vmatpush1.bf16.msra.mxu0 %v191
  %215 = vmatprep.subr.bf16.mxu0 %v190
  %216 = vmatpush1.bf16.msra.mxu0 %v189
  %217 = vmatprep.subr.bf16.mxu0 %v188
  %218 = vmatpush1.bf16.msra.mxu0 %v187
  %219 = vmatprep.subr.bf16.mxu0 %v186
  %220 = vmatpush1.bf16.msra.mxu0 %v185
  %221 = vmatprep.subr.bf16.mxu0 %v184
  %222 = vmatpush1.bf16.msra.mxu0 %v183
  %223 = vmatprep.subr.bf16.mxu0 %v182
  %224 = vmatpush1.bf16.msra.mxu0 %v181
  %225 = vmatprep.subr.bf16.mxu0 %v180
  %226 = vmatpush1.bf16.msra.mxu0 %v179
  %227 = vmatprep.subr.bf16.mxu0 0
  %228 = vmatpush2.bf16.msra.mxu0 0
  %229 = vmatprep.subr.bf16.mxu0 0
  %230 = vmatpush2.bf16.msra.mxu0 0
  %231 = vmatprep.subr.bf16.mxu0 0
  %232 = vmatpush2.bf16.msra.mxu0 0
  %233 = vmatprep.subr.bf16.mxu0 0
  %234 = vmatpush2.bf16.msra.mxu0 0
  %235 = vmatprep.subr.bf16.mxu0 0
  %236 = vmatpush2.bf16.msra.mxu0 0
  %237 = vmatprep.subr.bf16.mxu0 0
  %238 = vmatpush2.bf16.msra.mxu0 0
  %239 = vmatprep.subr.bf16.mxu0 0
  %240 = vmatpush2.bf16.msra.mxu0 0
  %241 = vmatprep.subr.bf16.mxu0 0
  %242 = vmatpush2.bf16.msra.mxu0 0
  %243 = vmatprep.mubr.bf16.mxu0 0
  %244 = vmatmul.mubr.bf16.gmra.mxu0 %v109
  %v245 = vpop.f32.mrf.mxu0
  %v246 = vadd.f32 %v58, %v245
  %v247 = vpop.f32.mrf.mxu0
  %v248 = vadd.f32 %v62, %v247
  %v249 = vpop.f32.mrf.mxu0
  %v250 = vadd.f32 %v58, %v249
  %v251 = vpop.f32.mrf.mxu0
  %v252 = vadd.f32 %v62, %v251
  %253 = vmatprep.mubr.bf16.mxu0 0
  %254 = vmatmul.mubr.bf16.gmra.mxu0 %v110
  %v255 = vpop.f32.mrf.mxu0
  %v256 = vadd.f32 %v58, %v255
  %v257 = vpop.f32.mrf.mxu0
  %v258 = vadd.f32 %v62, %v257
  %v259 = vpop.f32.mrf.mxu0
  %v260 = vadd.f32 %v58, %v259
  %v261 = vpop.f32.mrf.mxu0
  %v262 = vadd.f32 %v62, %v261
  %263 = vmatprep.mubr.bf16.mxu0 0
  %264 = vmatmul.mubr.bf16.gmra.mxu0 %v111
  %v265 = vpop.f32.mrf.mxu0
  %v266 = vadd.f32 %v58, %v265
  %v267 = vpop.f32.mrf.mxu0
  %v268 = vadd.f32 %v62, %v267
  %v269 = vpop.f32.mrf.mxu0
  %v270 = vadd.f32 %v58, %v269
  %v271 = vpop.f32.mrf.mxu0
  %v272 = vadd.f32 %v62, %v271
  %273 = vmatprep.mubr.bf16.mxu0 0
  %274 = vmatmul.mubr.bf16.gmra.mxu0 %v112
  %v275 = vpop.f32.mrf.mxu0
  %v276 = vadd.f32 %v58, %v275
  %v277 = vpop.f32.mrf.mxu0
  %v278 = vadd.f32 %v62, %v277
  %v279 = vpop.f32.mrf.mxu0
  %v280 = vadd.f32 %v58, %v279
  %v281 = vpop.f32.mrf.mxu0
  %v282 = vadd.f32 %v62, %v281
  %283 = vmatprep.mubr.bf16.mxu0 0
  %284 = vmatmul.mubr.bf16.gmra.mxu0 %v113
  %v285 = vpop.f32.mrf.mxu0
  %v286 = vadd.f32 %v58, %v285
  %v287 = vpop.f32.mrf.mxu0
  %v288 = vadd.f32 %v62, %v287
  %v289 = vpop.f32.mrf.mxu0
  %v290 = vadd.f32 %v58, %v289
  %v291 = vpop.f32.mrf.mxu0
  %v292 = vadd.f32 %v62, %v291
  %293 = vmatprep.mubr.bf16.mxu0 0
  %294 = vmatmul.mubr.bf16.gmra.mxu0 %v114
  %v295 = vpop.f32.mrf.mxu0
  %v296 = vadd.f32 %v58, %v295
  %v297 = vpop.f32.mrf.mxu0
  %v298 = vadd.f32 %v62, %v297
  %v299 = vpop.f32.mrf.mxu0
  %v300 = vadd.f32 %v58, %v299
  %v301 = vpop.f32.mrf.mxu0
  %v302 = vadd.f32 %v62, %v301
  %303 = vmatprep.mubr.bf16.mxu0 0
  %304 = vmatmul.mubr.bf16.gmra.mxu0 %v115
  %v305 = vpop.f32.mrf.mxu0
  %v306 = vadd.f32 %v58, %v305
  %v307 = vpop.f32.mrf.mxu0
  %v308 = vadd.f32 %v62, %v307
  %v309 = vpop.f32.mrf.mxu0
  %v310 = vadd.f32 %v58, %v309
  %v311 = vpop.f32.mrf.mxu0
  %v312 = vadd.f32 %v62, %v311
  %313 = vmatprep.mubr.bf16.mxu0 0
  %314 = vmatmul.mubr.bf16.gmra.mxu0 %v116
  %v315 = vpop.f32.mrf.mxu0
  %v316 = vadd.f32 %v58, %v315
  %v317 = vpop.f32.mrf.mxu0
  %v318 = vadd.f32 %v62, %v317
  %v319 = vpop.f32.mrf.mxu0
  %v320 = vadd.f32 %v58, %v319
  %v321 = vpop.f32.mrf.mxu0
  %v322 = vadd.f32 %v62, %v321
  %323 = vmatprep.mubr.bf16.mxu0 0
  %324 = vmatmul.mubr.bf16.gmra.mxu0 %v117
  %v325 = vpop.f32.mrf.mxu0
  %v326 = vadd.f32 %v58, %v325
  %v327 = vpop.f32.mrf.mxu0
  %v328 = vadd.f32 %v62, %v327
  %v329 = vpop.f32.mrf.mxu0
  %v330 = vadd.f32 %v58, %v329
  %v331 = vpop.f32.mrf.mxu0
  %v332 = vadd.f32 %v62, %v331
  %333 = vmatprep.mubr.bf16.mxu0 0
  %334 = vmatmul.mubr.bf16.gmra.mxu0 %v118
  %v335 = vpop.f32.mrf.mxu0
  %v336 = vadd.f32 %v58, %v335
  %v337 = vpop.f32.mrf.mxu0
  %v338 = vadd.f32 %v62, %v337
  %v339 = vpop.f32.mrf.mxu0
  %v340 = vadd.f32 %v58, %v339
  %v341 = vpop.f32.mrf.mxu0
  %v342 = vadd.f32 %v62, %v341
  %343 = vmatprep.mubr.bf16.mxu0 0
  %344 = vmatmul.mubr.bf16.gmra.mxu0 %v119
  %v345 = vpop.f32.mrf.mxu0
  %v346 = vadd.f32 %v58, %v345
  %v347 = vpop.f32.mrf.mxu0
  %v348 = vadd.f32 %v62, %v347
  %v349 = vpop.f32.mrf.mxu0
  %v350 = vadd.f32 %v58, %v349
  %v351 = vpop.f32.mrf.mxu0
  %v352 = vadd.f32 %v62, %v351
  %353 = vdwg.mxu0
  %354 = vst [vmem:[%s3] sm:$0xff] %v246
  %355 = vst [vmem:[%s3 + $0x8] sm:$0xff] %v248
  %356 = vst [vmem:[%s3 + $0x10] sm:$0xff] %v250
  %357 = vst [vmem:[%s3 + $0x18] sm:$0xff] %v252
  %358 = vst [vmem:[%s3 + $0x20] sm:$0xff] %v256
  %359 = vst [vmem:[%s3 + $0x28] sm:$0xff] %v258
  %360 = vst [vmem:[%s3 + $0x30] sm:$0xff] %v260
  %361 = vst [vmem:[%s3 + $0x38] sm:$0xff] %v262
  %362 = vst [vmem:[%s3 + $0x40] sm:$0xff] %v266
  %363 = vst [vmem:[%s3 + $0x48] sm:$0xff] %v268
  %364 = vst [vmem:[%s3 + $0x50] sm:$0xff] %v270
  %365 = vst [vmem:[%s3 + $0x58] sm:$0xff] %v272
  %366 = vst [vmem:[%s3 + $0x60] sm:$0xff] %v276
  %367 = vst [vmem:[%s3 + $0x68] sm:$0xff] %v278
  %368 = vst [vmem:[%s3 + $0x70] sm:$0xff] %v280
  %369 = vst [vmem:[%s3 + $0x78] sm:$0xff] %v282
  %370 = vst [vmem:[%s3 + $0x80] sm:$0xff] %v286
  %371 = vst [vmem:[%s3 + $0x88] sm:$0xff] %v288
  %372 = vst [vmem:[%s3 + $0x90] sm:$0xff] %v290
  %373 = vst [vmem:[%s3 + $0x98] sm:$0xff] %v292
  %374 = vst [vmem:[%s3 + $0xa0] sm:$0xff] %v296
  %375 = vst [vmem:[%s3 + $0xa8] sm:$0xff] %v298
  %376 = vst [vmem:[%s3 + $0xb0] sm:$0xff] %v300
  %377 = vst [vmem:[%s3 + $0xb8] sm:$0xff] %v302
  %378 = vst [vmem:[%s3 + $0xc0] sm:$0xff] %v306
  %379 = vst [vmem:[%s3 + $0xc8] sm:$0xff] %v308
  %380 = vst [vmem:[%s3 + $0xd0] sm:$0xff] %v310
  %381 = vst [vmem:[%s3 + $0xd8] sm:$0xff] %v312
  %382 = vst [vmem:[%s3 + $0xe0] sm:$0xff] %v316
  %383 = vst [vmem:[%s3 + $0xe8] sm:$0xff] %v318
  %384 = vst [vmem:[%s3 + $0xf0] sm:$0xff] %v320
  %385 = vst [vmem:[%s3 + $0xf8] sm:$0xff] %v322
  %386 = vst [vmem:[%s3 + $0x100] sm:$0xff] %v326
  %387 = vst [vmem:[%s3 + $0x108] sm:$0xff] %v328
  %388 = vst [vmem:[%s3 + $0x110] sm:$0xff] %v330
  %389 = vst [vmem:[%s3 + $0x118] sm:$0xff] %v332
  %390 = vst [vmem:[%s3 + $0x120] sm:$0xff] %v336
  %391 = vst [vmem:[%s3 + $0x128] sm:$0xff] %v338
  %392 = vst [vmem:[%s3 + $0x130] sm:$0xff] %v340
  %393 = vst [vmem:[%s3 + $0x138] sm:$0xff] %v342
  %394 = vst [vmem:[%s3 + $0x140] sm:$0xff] %v346
  %395 = vst [vmem:[%s3 + $0x148] sm:$0xff] %v348
  %396 = vst [vmem:[%s3 + $0x150] sm:$0xff] %v350
  %397 = vst [vmem:[%s3 + $0x158] sm:$0xff] %v352
  // Predicated region
  $region14: #{main_forward.63} parent=0 // pred_check
    _
  $region15: #{main_forward.63} parent=0 // pred_check_branch
    %399 = sbr.rel (0) target = $region17
  $region16: #{main_forward.63} parent=0 // pred_region
    _
  $region17: #{main_forward.63} parent=0 // pred_fallthru
    _
  // Predicated region
  $region18: #{main_forward.63} parent=0 // pred_check
    _
  $region19: #{main_forward.63} parent=0 // pred_check_branch
    %401 = sbr.rel (0) target = $region21
  $region20: #{main_forward.63} parent=0 // pred_region
    _
  $region21: #{main_forward.63} parent=0 // pred_fallthru
    _

// kernel: main_forward.115
$region0: #{main_forward.115}
  #allocation0 [shape = 'u32[]', space=smem, size = 0x4, offset = 0x4, fixed_abs, tag = 'smem constant byte address 0x4 - core index']
  #allocation1 [shape = 'u32[144,128]{1,0:T(1,128)}', space=vmem, size = 0x12000, scoped, tag = 'internal scratch']
  %s0 = inlined_call_operand.vmem [shape: bf16[176,1152], index: 0, kind: input, shape index: {}]
  %s1 = inlined_call_operand.vmem [shape: bf16[1152,128], index: 1, kind: input, shape index: {}]
  %s2 = inlined_call_operand.vmem [shape: f32[1,128], index: 2, kind: input, shape index: {}]
  %s3 = inlined_call_operand.vmem [shape: f32[176,128], index: 3, kind: output, shape index: {}]
  %s4 = sld [smem:[#allocation0]]
  $region22: #{main_forward.115} parent=0
    _
  %s6 = ssub.s32 1, %s4
  %s7 = scalar_select 0, %s6, %s4
  // Predicated region
  $region2: #{main_forward.115} parent=0 // pred_check
    _
  $region3: #{main_forward.115} parent=0 // pred_check_branch
    %9 = sbr.rel (0) target = $region5
  $region4: #{main_forward.115} parent=0 // pred_region
    _
  $region5: #{main_forward.115} parent=0 // pred_fallthru
    _
  // Predicated region
  $region6: #{main_forward.115} parent=0 // pred_check
    _
  $region7: #{main_forward.115} parent=0 // pred_check_branch
    %11 = sbr.rel (0) target = $region9
  $region8: #{main_forward.115} parent=0 // pred_region
    _
  $region9: #{main_forward.115} parent=0 // pred_fallthru
    _
  // Predicated region
  $region10: #{main_forward.115} parent=0 // pred_check
    _
  $region11: #{main_forward.115} parent=0 // pred_check_branch
    %13 = sbr.rel (0) target = $region13
  $region12: #{main_forward.115} parent=0 // pred_region
    _
  $region13: #{main_forward.115} parent=0 // pred_fallthru
    _
  %v15 = vld [vmem:[%s0] sm:$0xff]
  %v16 = vld [vmem:[%s0 + $0x8] sm:$0xff]
  %v17 = vld [vmem:[%s0 + $0x10] sm:$0xff]
  %v18 = vld [vmem:[%s0 + $0x18] sm:$0xff]
  %v19 = vld [vmem:[%s0 + $0x20] sm:$0xf]
  %v20 = vld [vmem:[%s0 + $0x24] sm:$0xff]
  %v21 = vld [vmem:[%s0 + $0x2c] sm:$0xff]
  %v22 = vld [vmem:[%s0 + $0x34] sm:$0xff]
  %v23 = vld [vmem:[%s0 + $0x3c] sm:$0xff]
  %v24 = vld [vmem:[%s0 + $0x44] sm:$0xf]
  %v25 = vld [vmem:[%s0 + $0x48] sm:$0xff]
  %v26 = vld [vmem:[%s0 + $0x50] sm:$0xff]
  %v27 = vld [vmem:[%s0 + $0x58] sm:$0xff]
  %v28 = vld [vmem:[%s0 + $0x60] sm:$0xff]
  %v29 = vld [vmem:[%s0 + $0x68] sm:$0xf]
  %v30 = vld [vmem:[%s0 + $0x6c] sm:$0xff]
  %v31 = vld [vmem:[%s0 + $0x74] sm:$0xff]
  %v32 = vld [vmem:[%s0 + $0x7c] sm:$0xff]
  %v33 = vld [vmem:[%s0 + $0x84] sm:$0xff]
  %v34 = vld [vmem:[%s0 + $0x8c] sm:$0xf]
  %v35 = vld [vmem:[%s0 + $0x90] sm:$0xff]
  %v36 = vld [vmem:[%s0 + $0x98] sm:$0xff]
  %v37 = vld [vmem:[%s0 + $0xa0] sm:$0xff]
  %v38 = vld [vmem:[%s0 + $0xa8] sm:$0xff]
  %v39 = vld [vmem:[%s0 + $0xb0] sm:$0xf]
  %v40 = vld [vmem:[%s0 + $0xb4] sm:$0xff]
  %v41 = vld [vmem:[%s0 + $0xbc] sm:$0xff]
  %v42 = vld [vmem:[%s0 + $0xc4] sm:$0xff]
  %v43 = vld [vmem:[%s0 + $0xcc] sm:$0xff]
  %v44 = vld [vmem:[%s0 + $0xd4] sm:$0xf]
  %v45 = vld [vmem:[%s0 + $0xd8] sm:$0xff]
  %v46 = vld [vmem:[%s0 + $0xe0] sm:$0xff]
  %v47 = vld [vmem:[%s0 + $0xe8] sm:$0xff]
  %v48 = vld [vmem:[%s0 + $0xf0] sm:$0xff]
  %v49 = vld [vmem:[%s0 + $0xf8] sm:$0xf]
  %v50 = vld [vmem:[%s0 + $0xfc] sm:$0xff]
  %v51 = vld [vmem:[%s0 + $0x104] sm:$0xff]
  %v52 = vld [vmem:[%s0 + $0x10c] sm:$0xff]
  %v53 = vld [vmem:[%s0 + $0x114] sm:$0xff]
  %v54 = vld [vmem:[%s0 + $0x11c] sm:$0xf]
  %v55 = vld [vmem:[%s0 + $0x120] sm:$0xff]
  %v56 = vld [vmem:[%s0 + $0x128] sm:$0xff]
  %v57 = vld [vmem:[%s0 + $0x130] sm:$0xff]
  %v58 = vld [vmem:[%s0 + $0x138] sm:$0xff]
  %v59 = vld [vmem:[%s0 + $0x140] sm:$0xf]
  %v60 = vld [vmem:[%s0 + $0x144] sm:$0xff]
  %v61 = vld [vmem:[%s0 + $0x14c] sm:$0xff]
  %v62 = vld [vmem:[%s0 + $0x154] sm:$0xff]
  %v63 = vld [vmem:[%s0 + $0x15c] sm:$0xff]
  %v64 = vld [vmem:[%s0 + $0x164] sm:$0xf]
  %v65 = vld [vmem:[%s0 + $0x168] sm:$0xff]
  %v66 = vld [vmem:[%s0 + $0x170] sm:$0xff]
  %v67 = vld [vmem:[%s0 + $0x178] sm:$0xff]
  %v68 = vld [vmem:[%s0 + $0x180] sm:$0xff]
  %v69 = vld [vmem:[%s0 + $0x188] sm:$0xf]
  %v70 = vld [vmem:[%s0 + $0x18c] sm:$0xff]
  %v71 = vld [vmem:[%s0 + $0x194] sm:$0xff]
  %v72 = vld [vmem:[%s0 + $0x19c] sm:$0xff]
  %v73 = vld [vmem:[%s0 + $0x1a4] sm:$0xff]
  %v74 = vld [vmem:[%s0 + $0x1ac] sm:$0xf]
  %v75 = vld [vmem:[%s0 + $0x1b0] sm:$0xff]
  %v76 = vld [vmem:[%s0 + $0x1b8] sm:$0xff]
  %v77 = vld [vmem:[%s0 + $0x1c0] sm:$0xff]
  %v78 = vld [vmem:[%s0 + $0x1c8] sm:$0xff]
  %v79 = vld [vmem:[%s0 + $0x1d0] sm:$0xf]
  %v80 = vld [vmem:[%s0 + $0x1d4] sm:$0xff]
  %v81 = vld [vmem:[%s0 + $0x1dc] sm:$0xff]
  %v82 = vld [vmem:[%s0 + $0x1e4] sm:$0xff]
  %v83 = vld [vmem:[%s0 + $0x1ec] sm:$0xff]
  %v84 = vld [vmem:[%s0 + $0x1f4] sm:$0xf]
  %v85 = vld [vmem:[%s0 + $0x1f8] sm:$0xff]
  %v86 = vld [vmem:[%s0 + $0x200] sm:$0xff]
  %v87 = vld [vmem:[%s0 + $0x208] sm:$0xff]
  %v88 = vld [vmem:[%s0 + $0x210] sm:$0xff]
  %v89 = vld [vmem:[%s0 + $0x218] sm:$0xf]
  %v90 = vld [vmem:[%s0 + $0x21c] sm:$0xff]
  %v91 = vld [vmem:[%s0 + $0x224] sm:$0xff]
  %v92 = vld [vmem:[%s0 + $0x22c] sm:$0xff]
  %v93 = vld [vmem:[%s0 + $0x234] sm:$0xff]
  %v94 = vld [vmem:[%s0 + $0x23c] sm:$0xf]
  %v95 = vld [vmem:[%s0 + $0x240] sm:$0xff]
  %v96 = vld [vmem:[%s0 + $0x248] sm:$0xff]
  %v97 = vld [vmem:[%s0 + $0x250] sm:$0xff]
  %v98 = vld [vmem:[%s0 + $0x258] sm:$0xff]
  %v99 = vld [vmem:[%s0 + $0x260] sm:$0xf]
  %v100 = vld [vmem:[%s0 + $0x264] sm:$0xff]
  %v101 = vld [vmem:[%s0 + $0x26c] sm:$0xff]
  %v102 = vld [vmem:[%s0 + $0x274] sm:$0xff]
  %v103 = vld [vmem:[%s0 + $0x27c] sm:$0xff]
  %v104 = vld [vmem:[%s0 + $0x284] sm:$0xf]
  %v105 = vld [vmem:[%s0 + $0x288] sm:$0xff]
  %v106 = vld [vmem:[%s0 + $0x290] sm:$0xff]
  %v107 = vld [vmem:[%s0 + $0x298] sm:$0xff]
  %v108 = vld [vmem:[%s0 + $0x2a0] sm:$0xff]
  %v109 = vld [vmem:[%s0 + $0x2a8] sm:$0xf]
  %v110 = vld [vmem:[%s0 + $0x2ac] sm:$0xff]
  %v111 = vld [vmem:[%s0 + $0x2b4] sm:$0xff]
  %v112 = vld [vmem:[%s0 + $0x2bc] sm:$0xff]
  %v113 = vld [vmem:[%s0 + $0x2c4] sm:$0xff]
  %v114 = vld [vmem:[%s0 + $0x2cc] sm:$0xf]
  %v115 = vld [vmem:[%s0 + $0x2d0] sm:$0xff]
  %v116 = vld [vmem:[%s0 + $0x2d8] sm:$0xff]
  %v117 = vld [vmem:[%s0 + $0x2e0] sm:$0xff]
  %v118 = vld [vmem:[%s0 + $0x2e8] sm:$0xff]
  %v119 = vld [vmem:[%s0 + $0x2f0] sm:$0xf]
  %v120 = vld [vmem:[%s0 + $0x2f4] sm:$0xff]
  %v121 = vld [vmem:[%s0 + $0x2fc] sm:$0xff]
  %v122 = vld [vmem:[%s0 + $0x304] sm:$0xff]
  %v123 = vld [vmem:[%s0 + $0x30c] sm:$0xff]
  %v124 = vld [vmem:[%s0 + $0x314] sm:$0xf]
  %v125 = vld [vmem:[%s1] sm:$0xf]
  %v126 = vld [vmem:[%s1 + $0x4] sm:$0xf]
  %v127 = vld [vmem:[%s1 + $0x8] sm:$0xf]
  %v128 = vld [vmem:[%s1 + $0xc] sm:$0xf]
  %v129 = vld [vmem:[%s1 + $0x10] sm:$0xf]
  %v130 = vld [vmem:[%s1 + $0x14] sm:$0xf]
  %v131 = vld [vmem:[%s1 + $0x18] sm:$0xf]
  %v132 = vld [vmem:[%s1 + $0x1c] sm:$0xf]
  %v133 = vld [vmem:[%s1 + $0x20] sm:$0xf]
  %v134 = vld [vmem:[%s1 + $0x24] sm:$0xf]
  %v135 = vld [vmem:[%s1 + $0x28] sm:$0xf]
  %v136 = vld [vmem:[%s1 + $0x2c] sm:$0xf]
  %v137 = vld [vmem:[%s1 + $0x30] sm:$0xf]
  %v138 = vld [vmem:[%s1 + $0x34] sm:$0xf]
  %v139 = vld [vmem:[%s1 + $0x38] sm:$0xf]
  %v140 = vld [vmem:[%s1 + $0x3c] sm:$0xf]
  %v141 = vld [vmem:[%s1 + $0x40] sm:$0xf]
  %v142 = vld [vmem:[%s1 + $0x44] sm:$0xf]
  %v143 = vld [vmem:[%s1 + $0x48] sm:$0xf]
  %v144 = vld [vmem:[%s1 + $0x4c] sm:$0xf]
  %v145 = vld [vmem:[%s1 + $0x50] sm:$0xf]
  %v146 = vld [vmem:[%s1 + $0x54] sm:$0xf]
  %v147 = vld [vmem:[%s1 + $0x58] sm:$0xf]
  %v148 = vld [vmem:[%s1 + $0x5c] sm:$0xf]
  %v149 = vld [vmem:[%s1 + $0x60] sm:$0xf]
  %v150 = vld [vmem:[%s1 + $0x64] sm:$0xf]
  %v151 = vld [vmem:[%s1 + $0x68] sm:$0xf]
  %v152 = vld [vmem:[%s1 + $0x6c] sm:$0xf]
  %v153 = vld [vmem:[%s1 + $0x70] sm:$0xf]
  %v154 = vld [vmem:[%s1 + $0x74] sm:$0xf]
  %v155 = vld [vmem:[%s1 + $0x78] sm:$0xf]
  %v156 = vld [vmem:[%s1 + $0x7c] sm:$0xf]
  %v157 = vld [vmem:[%s1 + $0x80] sm:$0xf]
  %v158 = vld [vmem:[%s1 + $0x84] sm:$0xf]
  %v159 = vld [vmem:[%s1 + $0x88] sm:$0xf]
  %v160 = vld [vmem:[%s1 + $0x8c] sm:$0xf]
  %v161 = vld [vmem:[%s1 + $0x90] sm:$0xf]
  %v162 = vld [vmem:[%s1 + $0x94] sm:$0xf]
  %v163 = vld [vmem:[%s1 + $0x98] sm:$0xf]
  %v164 = vld [vmem:[%s1 + $0x9c] sm:$0xf]
  %v165 = vld [vmem:[%s1 + $0xa0] sm:$0xf]
  %v166 = vld [vmem:[%s1 + $0xa4] sm:$0xf]
  %v167 = vld [vmem:[%s1 + $0xa8] sm:$0xf]
  %v168 = vld [vmem:[%s1 + $0xac] sm:$0xf]
  %v169 = vld [vmem:[%s1 + $0xb0] sm:$0xf]
  %v170 = vld [vmem:[%s1 + $0xb4] sm:$0xf]
  %v171 = vld [vmem:[%s1 + $0xb8] sm:$0xf]
  %v172 = vld [vmem:[%s1 + $0xbc] sm:$0xf]
  %v173 = vld [vmem:[%s1 + $0xc0] sm:$0xf]
  %v174 = vld [vmem:[%s1 + $0xc4] sm:$0xf]
  %v175 = vld [vmem:[%s1 + $0xc8] sm:$0xf]
  %v176 = vld [vmem:[%s1 + $0xcc] sm:$0xf]
  %v177 = vld [vmem:[%s1 + $0xd0] sm:$0xf]
  %v178 = vld [vmem:[%s1 + $0xd4] sm:$0xf]
  %v179 = vld [vmem:[%s1 + $0xd8] sm:$0xf]
  %v180 = vld [vmem:[%s1 + $0xdc] sm:$0xf]
  %v181 = vld [vmem:[%s1 + $0xe0] sm:$0xf]
  %v182 = vld [vmem:[%s1 + $0xe4] sm:$0xf]
  %v183 = vld [vmem:[%s1 + $0xe8] sm:$0xf]
  %v184 = vld [vmem:[%s1 + $0xec] sm:$0xf]
  %v185 = vld [vmem:[%s1 + $0xf0] sm:$0xf]
  %v186 = vld [vmem:[%s1 + $0xf4] sm:$0xf]
  %v187 = vld [vmem:[%s1 + $0xf8] sm:$0xf]
  %v188 = vld [vmem:[%s1 + $0xfc] sm:$0xf]
  %v189 = vld [vmem:[%s1 + $0x100] sm:$0xf]
  %v190 = vld [vmem:[%s1 + $0x104] sm:$0xf]
  %v191 = vld [vmem:[%s1 + $0x108] sm:$0xf]
  %v192 = vld [vmem:[%s1 + $0x10c] sm:$0xf]
  %v193 = vld [vmem:[%s1 + $0x110] sm:$0xf]
  %v194 = vld [vmem:[%s1 + $0x114] sm:$0xf]
  %v195 = vld [vmem:[%s1 + $0x118] sm:$0xf]
  %v196 = vld [vmem:[%s1 + $0x11c] sm:$0xf]
  %v197 = vld [vmem:[%s1 + $0x120] sm:$0xf]
  %v198 = vld [vmem:[%s1 + $0x124] sm:$0xf]
  %v199 = vld [vmem:[%s1 + $0x128] sm:$0xf]
  %v200 = vld [vmem:[%s1 + $0x12c] sm:$0xf]
  %v201 = vld [vmem:[%s1 + $0x130] sm:$0xf]
  %v202 = vld [vmem:[%s1 + $0x134] sm:$0xf]
  %v203 = vld [vmem:[%s1 + $0x138] sm:$0xf]
  %v204 = vld [vmem:[%s1 + $0x13c] sm:$0xf]
  %v205 = vld [vmem:[%s1 + $0x140] sm:$0xf]
  %v206 = vld [vmem:[%s1 + $0x144] sm:$0xf]
  %v207 = vld [vmem:[%s1 + $0x148] sm:$0xf]
  %v208 = vld [vmem:[%s1 + $0x14c] sm:$0xf]
  %v209 = vld [vmem:[%s1 + $0x150] sm:$0xf]
  %v210 = vld [vmem:[%s1 + $0x154] sm:$0xf]
  %v211 = vld [vmem:[%s1 + $0x158] sm:$0xf]
  %v212 = vld [vmem:[%s1 + $0x15c] sm:$0xf]
  %v213 = vld [vmem:[%s1 + $0x160] sm:$0xf]
  %v214 = vld [vmem:[%s1 + $0x164] sm:$0xf]
  %v215 = vld [vmem:[%s1 + $0x168] sm:$0xf]
  %v216 = vld [vmem:[%s1 + $0x16c] sm:$0xf]
  %v217 = vld [vmem:[%s1 + $0x170] sm:$0xf]
  %v218 = vld [vmem:[%s1 + $0x174] sm:$0xf]
  %v219 = vld [vmem:[%s1 + $0x178] sm:$0xf]
  %v220 = vld [vmem:[%s1 + $0x17c] sm:$0xf]
  %v221 = vld [vmem:[%s1 + $0x180] sm:$0xf]
  %v222 = vld [vmem:[%s1 + $0x184] sm:$0xf]
  %v223 = vld [vmem:[%s1 + $0x188] sm:$0xf]
  %v224 = vld [vmem:[%s1 + $0x18c] sm:$0xf]
  %v225 = vld [vmem:[%s1 + $0x190] sm:$0xf]
  %v226 = vld [vmem:[%s1 + $0x194] sm:$0xf]
  %v227 = vld [vmem:[%s1 + $0x198] sm:$0xf]
  %v228 = vld [vmem:[%s1 + $0x19c] sm:$0xf]
  %v229 = vld [vmem:[%s1 + $0x1a0] sm:$0xf]
  %v230 = vld [vmem:[%s1 + $0x1a4] sm:$0xf]
  %v231 = vld [vmem:[%s1 + $0x1a8] sm:$0xf]
  %v232 = vld [vmem:[%s1 + $0x1ac] sm:$0xf]
  %v233 = vld [vmem:[%s1 + $0x1b0] sm:$0xf]
  %v234 = vld [vmem:[%s1 + $0x1b4] sm:$0xf]
  %v235 = vld [vmem:[%s1 + $0x1b8] sm:$0xf]
  %v236 = vld [vmem:[%s1 + $0x1bc] sm:$0xf]
  %v237 = vld [vmem:[%s1 + $0x1c0] sm:$0xf]
  %v238 = vld [vmem:[%s1 + $0x1c4] sm:$0xf]
  %v239 = vld [vmem:[%s1 + $0x1c8] sm:$0xf]
  %v240 = vld [vmem:[%s1 + $0x1cc] sm:$0xf]
  %v241 = vld [vmem:[%s1 + $0x1d0] sm:$0xf]
  %v242 = vld [vmem:[%s1 + $0x1d4] sm:$0xf]
  %v243 = vld [vmem:[%s1 + $0x1d8] sm:$0xf]
  %v244 = vld [vmem:[%s1 + $0x1dc] sm:$0xf]
  %v245 = vld [vmem:[%s1 + $0x1e0] sm:$0xf]
  %v246 = vld [vmem:[%s1 + $0x1e4] sm:$0xf]
  %v247 = vld [vmem:[%s1 + $0x1e8] sm:$0xf]
  %v248 = vld [vmem:[%s1 + $0x1ec] sm:$0xf]
  %v249 = vld [vmem:[%s1 + $0x1f0] sm:$0xf]
  %v250 = vld [vmem:[%s1 + $0x1f4] sm:$0xf]
  %v251 = vld [vmem:[%s1 + $0x1f8] sm:$0xf]
  %v252 = vld [vmem:[%s1 + $0x1fc] sm:$0xf]
  %v253 = vld [vmem:[%s1 + $0x200] sm:$0xf]
  %v254 = vld [vmem:[%s1 + $0x204] sm:$0xf]
  %v255 = vld [vmem:[%s1 + $0x208] sm:$0xf]
  %v256 = vld [vmem:[%s1 + $0x20c] sm:$0xf]
  %v257 = vld [vmem:[%s1 + $0x210] sm:$0xf]
  %v258 = vld [vmem:[%s1 + $0x214] sm:$0xf]
  %v259 = vld [vmem:[%s1 + $0x218] sm:$0xf]
  %v260 = vld [vmem:[%s1 + $0x21c] sm:$0xf]
  %v261 = vld [vmem:[%s1 + $0x220] sm:$0xf]
  %v262 = vld [vmem:[%s1 + $0x224] sm:$0xf]
  %v263 = vld [vmem:[%s1 + $0x228] sm:$0xf]
  %v264 = vld [vmem:[%s1 + $0x22c] sm:$0xf]
  %v265 = vld [vmem:[%s1 + $0x230] sm:$0xf]
  %v266 = vld [vmem:[%s1 + $0x234] sm:$0xf]
  %v267 = vld [vmem:[%s1 + $0x238] sm:$0xf]
  %v268 = vld [vmem:[%s1 + $0x23c] sm:$0xf]
  %v269 = vld [vmem:[%s2] sm:$0x1]
  %v271 = vlaneseq
  %v272 = vshrl.u32 %v271, 7
  %v273 = vsub.s32 0, %v272
  %v274 = vrot.slane %v269, %v273
  %v386 = vunpack.c.l.b16 %v15
  %v387 = vunpack.c.h.b16 %v15
  %v388 = vunpack.c.l.b16 %v16
  %v389 = vunpack.c.h.b16 %v16
  %v390 = vunpack.c.l.b16 %v17
  %v391 = vunpack.c.h.b16 %v17
  %v392 = vunpack.c.l.b16 %v18
  %v393 = vunpack.c.h.b16 %v18
  %v394 = vunpack.c.l.b16 %v19
  %v395 = vunpack.c.l.b16 %v20
  %v396 = vunpack.c.h.b16 %v20
  %v397 = vunpack.c.l.b16 %v21
  %v398 = vunpack.c.h.b16 %v21
  %v399 = vunpack.c.l.b16 %v22
  %v400 = vunpack.c.h.b16 %v22
  %v401 = vunpack.c.l.b16 %v23
  %v402 = vunpack.c.h.b16 %v23
  %v403 = vunpack.c.l.b16 %v24
  %v404 = vunpack.c.l.b16 %v25
  %v405 = vunpack.c.h.b16 %v25
  %v406 = vunpack.c.l.b16 %v26
  %v407 = vunpack.c.h.b16 %v26
  %v408 = vunpack.c.l.b16 %v27
  %v409 = vunpack.c.h.b16 %v27
  %v410 = vunpack.c.l.b16 %v28
  %v411 = vunpack.c.h.b16 %v28
  %v412 = vunpack.c.l.b16 %v29
  %v413 = vunpack.c.l.b16 %v30
  %v414 = vunpack.c.h.b16 %v30
  %v415 = vunpack.c.l.b16 %v31
  %v416 = vunpack.c.h.b16 %v31
  %v417 = vunpack.c.l.b16 %v32
  %v418 = vunpack.c.h.b16 %v32
  %v419 = vunpack.c.l.b16 %v33
  %v420 = vunpack.c.h.b16 %v33
  %v421 = vunpack.c.l.b16 %v34
  %v422 = vunpack.c.l.b16 %v35
  %v423 = vunpack.c.h.b16 %v35
  %v424 = vunpack.c.l.b16 %v36
  %v425 = vunpack.c.h.b16 %v36
  %v426 = vunpack.c.l.b16 %v37
  %v427 = vunpack.c.h.b16 %v37
  %v428 = vunpack.c.l.b16 %v38
  %v429 = vunpack.c.h.b16 %v38
  %v430 = vunpack.c.l.b16 %v39
  %v431 = vunpack.c.l.b16 %v40
  %v432 = vunpack.c.h.b16 %v40
  %v433 = vunpack.c.l.b16 %v41
  %v434 = vunpack.c.h.b16 %v41
  %v435 = vunpack.c.l.b16 %v42
  %v436 = vunpack.c.h.b16 %v42
  %v437 = vunpack.c.l.b16 %v43
  %v438 = vunpack.c.h.b16 %v43
  %v439 = vunpack.c.l.b16 %v44
  %v440 = vunpack.c.l.b16 %v45
  %v441 = vunpack.c.h.b16 %v45
  %v442 = vunpack.c.l.b16 %v46
  %v443 = vunpack.c.h.b16 %v46
  %v444 = vunpack.c.l.b16 %v47
  %v445 = vunpack.c.h.b16 %v47
  %v446 = vunpack.c.l.b16 %v48
  %v447 = vunpack.c.h.b16 %v48
  %v448 = vunpack.c.l.b16 %v49
  %v449 = vunpack.c.l.b16 %v50
  %v450 = vunpack.c.h.b16 %v50
  %v451 = vunpack.c.l.b16 %v51
  %v452 = vunpack.c.h.b16 %v51
  %v453 = vunpack.c.l.b16 %v52
  %v454 = vunpack.c.h.b16 %v52
  %v455 = vunpack.c.l.b16 %v53
  %v456 = vunpack.c.h.b16 %v53
  %v457 = vunpack.c.l.b16 %v54
  %v458 = vunpack.c.l.b16 %v55
  %v459 = vunpack.c.h.b16 %v55
  %v460 = vunpack.c.l.b16 %v56
  %v461 = vunpack.c.h.b16 %v56
  %v462 = vunpack.c.l.b16 %v57
  %v463 = vunpack.c.h.b16 %v57
  %v464 = vunpack.c.l.b16 %v58
  %v465 = vunpack.c.h.b16 %v58
  %v466 = vunpack.c.l.b16 %v59
  %v467 = vunpack.c.l.b16 %v60
  %v468 = vunpack.c.h.b16 %v60
  %v469 = vunpack.c.l.b16 %v61
  %v470 = vunpack.c.h.b16 %v61
  %v471 = vunpack.c.l.b16 %v62
  %v472 = vunpack.c.h.b16 %v62
  %v473 = vunpack.c.l.b16 %v63
  %v474 = vunpack.c.h.b16 %v63
  %v475 = vunpack.c.l.b16 %v64
  %v476 = vunpack.c.l.b16 %v65
  %v477 = vunpack.c.h.b16 %v65
  %v478 = vunpack.c.l.b16 %v66
  %v479 = vunpack.c.h.b16 %v66
  %v480 = vunpack.c.l.b16 %v67
  %v481 = vunpack.c.h.b16 %v67
  %v482 = vunpack.c.l.b16 %v68
  %v483 = vunpack.c.h.b16 %v68
  %v484 = vunpack.c.l.b16 %v69
  %v485 = vunpack.c.l.b16 %v70
  %v486 = vunpack.c.h.b16 %v70
  %v487 = vunpack.c.l.b16 %v71
  %v488 = vunpack.c.h.b16 %v71
  %v489 = vunpack.c.l.b16 %v72
  %v490 = vunpack.c.h.b16 %v72
  %v491 = vunpack.c.l.b16 %v73
  %v492 = vunpack.c.h.b16 %v73
  %v493 = vunpack.c.l.b16 %v74
  %v494 = vunpack.c.l.b16 %v75
  %v495 = vunpack.c.h.b16 %v75
  %v496 = vunpack.c.l.b16 %v76
  %v497 = vunpack.c.h.b16 %v76
  %v498 = vunpack.c.l.b16 %v77
  %v499 = vunpack.c.h.b16 %v77
  %v500 = vunpack.c.l.b16 %v78
  %v501 = vunpack.c.h.b16 %v78
  %v502 = vunpack.c.l.b16 %v79
  %v503 = vunpack.c.l.b16 %v80
  %v504 = vunpack.c.h.b16 %v80
  %v505 = vunpack.c.l.b16 %v81
  %v506 = vunpack.c.h.b16 %v81
  %v507 = vunpack.c.l.b16 %v82
  %v508 = vunpack.c.h.b16 %v82
  %v509 = vunpack.c.l.b16 %v83
  %v510 = vunpack.c.h.b16 %v83
  %v511 = vunpack.c.l.b16 %v84
  %v512 = vunpack.c.l.b16 %v85
  %v513 = vunpack.c.h.b16 %v85
  %v514 = vunpack.c.l.b16 %v86
  %v515 = vunpack.c.h.b16 %v86
  %v516 = vunpack.c.l.b16 %v87
  %v517 = vunpack.c.h.b16 %v87
  %v518 = vunpack.c.l.b16 %v88
  %v519 = vunpack.c.h.b16 %v88
  %v520 = vunpack.c.l.b16 %v89
  %v521 = vunpack.c.l.b16 %v90
  %v522 = vunpack.c.h.b16 %v90
  %v523 = vunpack.c.l.b16 %v91
  %v524 = vunpack.c.h.b16 %v91
  %v525 = vunpack.c.l.b16 %v92
  %v526 = vunpack.c.h.b16 %v92
  %v527 = vunpack.c.l.b16 %v93
  %v528 = vunpack.c.h.b16 %v93
  %v529 = vunpack.c.l.b16 %v94
  %v530 = vunpack.c.l.b16 %v95
  %v531 = vunpack.c.h.b16 %v95
  %v532 = vunpack.c.l.b16 %v96
  %v533 = vunpack.c.h.b16 %v96
  %v534 = vunpack.c.l.b16 %v97
  %v535 = vunpack.c.h.b16 %v97
  %v536 = vunpack.c.l.b16 %v98
  %v537 = vunpack.c.h.b16 %v98
  %v538 = vunpack.c.l.b16 %v99
  %v539 = vunpack.c.l.b16 %v100
  %v540 = vunpack.c.h.b16 %v100
  %v541 = vunpack.c.l.b16 %v101
  %v542 = vunpack.c.h.b16 %v101
  %v543 = vunpack.c.l.b16 %v102
  %v544 = vunpack.c.h.b16 %v102
  %v545 = vunpack.c.l.b16 %v103
  %v546 = vunpack.c.h.b16 %v103
  %v547 = vunpack.c.l.b16 %v104
  %v548 = vunpack.c.l.b16 %v105
  %v549 = vunpack.c.h.b16 %v105
  %v550 = vunpack.c.l.b16 %v106
  %v551 = vunpack.c.h.b16 %v106
  %v552 = vunpack.c.l.b16 %v107
  %v553 = vunpack.c.h.b16 %v107
  %v554 = vunpack.c.l.b16 %v108
  %v555 = vunpack.c.h.b16 %v108
  %v556 = vunpack.c.l.b16 %v109
  %v557 = vunpack.c.l.b16 %v110
  %v558 = vunpack.c.h.b16 %v110
  %v559 = vunpack.c.l.b16 %v111
  %v560 = vunpack.c.h.b16 %v111
  %v561 = vunpack.c.l.b16 %v112
  %v562 = vunpack.c.h.b16 %v112
  %v563 = vunpack.c.l.b16 %v113
  %v564 = vunpack.c.h.b16 %v113
  %v565 = vunpack.c.l.b16 %v114
  %v566 = vunpack.c.l.b16 %v115
  %v567 = vunpack.c.h.b16 %v115
  %v568 = vunpack.c.l.b16 %v116
  %v569 = vunpack.c.h.b16 %v116
  %v570 = vunpack.c.l.b16 %v117
  %v571 = vunpack.c.h.b16 %v117
  %v572 = vunpack.c.l.b16 %v118
  %v573 = vunpack.c.h.b16 %v118
  %v574 = vunpack.c.l.b16 %v119
  %v575 = vunpack.c.l.b16 %v120
  %v576 = vunpack.c.h.b16 %v120
  %v577 = vunpack.c.l.b16 %v121
  %v578 = vunpack.c.h.b16 %v121
  %v579 = vunpack.c.l.b16 %v122
  %v580 = vunpack.c.h.b16 %v122
  %v581 = vunpack.c.l.b16 %v123
  %v582 = vunpack.c.h.b16 %v123
  %v583 = vunpack.c.l.b16 %v124
  %v584 = vpack.c.b16 %v395, %v386
  %v585 = vpack.c.b16 %v396, %v387
  %v586 = vpack.c.b16 %v397, %v388
  %v587 = vpack.c.b16 %v398, %v389
  %v588 = vpack.c.b16 %v399, %v390
  %v589 = vpack.c.b16 %v400, %v391
  %v590 = vpack.c.b16 %v401, %v392
  %v591 = vpack.c.b16 %v402, %v393
  %v592 = vpack.c.b16 %v403, %v394
  %v593 = vpack.c.b16 %v413, %v404
  %v594 = vpack.c.b16 %v414, %v405
  %v595 = vpack.c.b16 %v415, %v406
  %v596 = vpack.c.b16 %v416, %v407
  %v597 = vpack.c.b16 %v417, %v408
  %v598 = vpack.c.b16 %v418, %v409
  %v599 = vpack.c.b16 %v419, %v410
  %v600 = vpack.c.b16 %v420, %v411
  %v601 = vpack.c.b16 %v421, %v412
  %v602 = vpack.c.b16 %v431, %v422
  %v603 = vpack.c.b16 %v432, %v423
  %v604 = vpack.c.b16 %v433, %v424
  %v605 = vpack.c.b16 %v434, %v425
  %v606 = vpack.c.b16 %v435, %v426
  %v607 = vpack.c.b16 %v436, %v427
  %v608 = vpack.c.b16 %v437, %v428
  %v609 = vpack.c.b16 %v438, %v429
  %v610 = vpack.c.b16 %v439, %v430
  %v611 = vpack.c.b16 %v449, %v440
  %v612 = vpack.c.b16 %v450, %v441
  %v613 = vpack.c.b16 %v451, %v442
  %v614 = vpack.c.b16 %v452, %v443
  %v615 = vpack.c.b16 %v453, %v444
  %v616 = vpack.c.b16 %v454, %v445
  %v617 = vpack.c.b16 %v455, %v446
  %v618 = vpack.c.b16 %v456, %v447
  %v619 = vpack.c.b16 %v457, %v448
  %v620 = vpack.c.b16 %v467, %v458
  %v621 = vpack.c.b16 %v468, %v459
  %v622 = vpack.c.b16 %v469, %v460
  %v623 = vpack.c.b16 %v470, %v461
  %v624 = vpack.c.b16 %v471, %v462
  %v625 = vpack.c.b16 %v472, %v463
  %v626 = vpack.c.b16 %v473, %v464
  %v627 = vpack.c.b16 %v474, %v465
  %v628 = vpack.c.b16 %v475, %v466
  %v629 = vpack.c.b16 %v485, %v476
  %v630 = vpack.c.b16 %v486, %v477
  %v631 = vpack.c.b16 %v487, %v478
  %v632 = vpack.c.b16 %v488, %v479
  %v633 = vpack.c.b16 %v489, %v480
  %v634 = vpack.c.b16 %v490, %v481
  %v635 = vpack.c.b16 %v491, %v482
  %v636 = vpack.c.b16 %v492, %v483
  %v637 = vpack.c.b16 %v493, %v484
  %v638 = vpack.c.b16 %v503, %v494
  %v639 = vpack.c.b16 %v504, %v495
  %v640 = vpack.c.b16 %v505, %v496
  %v641 = vpack.c.b16 %v506, %v497
  %v642 = vpack.c.b16 %v507, %v498
  %v643 = vpack.c.b16 %v508, %v499
  %v644 = vpack.c.b16 %v509, %v500
  %v645 = vpack.c.b16 %v510, %v501
  %v646 = vpack.c.b16 %v511, %v502
  %v647 = vpack.c.b16 %v521, %v512
  %v648 = vpack.c.b16 %v522, %v513
  %v649 = vpack.c.b16 %v523, %v514
  %v650 = vpack.c.b16 %v524, %v515
  %v651 = vpack.c.b16 %v525, %v516
  %v652 = vpack.c.b16 %v526, %v517
  %v653 = vpack.c.b16 %v527, %v518
  %v654 = vpack.c.b16 %v528, %v519
  %v655 = vpack.c.b16 %v529, %v520
  %v656 = vpack.c.b16 %v539, %v530
  %v657 = vpack.c.b16 %v540, %v531
  %v658 = vpack.c.b16 %v541, %v532
  %v659 = vpack.c.b16 %v542, %v533
  %v660 = vpack.c.b16 %v543, %v534
  %v661 = vpack.c.b16 %v544, %v535
  %v662 = vpack.c.b16 %v545, %v536
  %v663 = vpack.c.b16 %v546, %v537
  %v664 = vpack.c.b16 %v547, %v538
  %v665 = vpack.c.b16 %v557, %v548
  %v666 = vpack.c.b16 %v558, %v549
  %v667 = vpack.c.b16 %v559, %v550
  %v668 = vpack.c.b16 %v560, %v551
  %v669 = vpack.c.b16 %v561, %v552
  %v670 = vpack.c.b16 %v562, %v553
  %v671 = vpack.c.b16 %v563, %v554
  %v672 = vpack.c.b16 %v564, %v555
  %v673 = vpack.c.b16 %v565, %v556
  %v674 = vpack.c.b16 %v575, %v566
  %v675 = vpack.c.b16 %v576, %v567
  %v676 = vpack.c.b16 %v577, %v568
  %v677 = vpack.c.b16 %v578, %v569
  %v678 = vpack.c.b16 %v579, %v570
  %v679 = vpack.c.b16 %v580, %v571
  %v680 = vpack.c.b16 %v581, %v572
  %v681 = vpack.c.b16 %v582, %v573
  %v682 = vpack.c.b16 %v583, %v574
  %v926 = vunpack.c.l.b16 %v125
  %v927 = vunpack.c.l.b16 %v126
  %v928 = vunpack.c.l.b16 %v127
  %v929 = vunpack.c.l.b16 %v128
  %v930 = vunpack.c.l.b16 %v129
  %v931 = vunpack.c.l.b16 %v130
  %v932 = vunpack.c.l.b16 %v131
  %v933 = vunpack.c.l.b16 %v132
  %v934 = vunpack.c.l.b16 %v133
  %v935 = vunpack.c.l.b16 %v134
  %v936 = vunpack.c.l.b16 %v135
  %v937 = vunpack.c.l.b16 %v136
  %v938 = vunpack.c.l.b16 %v137
  %v939 = vunpack.c.l.b16 %v138
  %v940 = vunpack.c.l.b16 %v139
  %v941 = vunpack.c.l.b16 %v140
  %v942 = vunpack.c.l.b16 %v141
  %v943 = vunpack.c.l.b16 %v142
  %v944 = vunpack.c.l.b16 %v143
  %v945 = vunpack.c.l.b16 %v144
  %v946 = vunpack.c.l.b16 %v145
  %v947 = vunpack.c.l.b16 %v146
  %v948 = vunpack.c.l.b16 %v147
  %v949 = vunpack.c.l.b16 %v148
  %v950 = vunpack.c.l.b16 %v149
  %v951 = vunpack.c.l.b16 %v150
  %v952 = vunpack.c.l.b16 %v151
  %v953 = vunpack.c.l.b16 %v152
  %v954 = vunpack.c.l.b16 %v153
  %v955 = vunpack.c.l.b16 %v154
  %v956 = vunpack.c.l.b16 %v155
  %v957 = vunpack.c.l.b16 %v156
  %v958 = vunpack.c.l.b16 %v157
  %v959 = vunpack.c.l.b16 %v158
  %v960 = vunpack.c.l.b16 %v159
  %v961 = vunpack.c.l.b16 %v160
  %v962 = vunpack.c.l.b16 %v161
  %v963 = vunpack.c.l.b16 %v162
  %v964 = vunpack.c.l.b16 %v163
  %v965 = vunpack.c.l.b16 %v164
  %v966 = vunpack.c.l.b16 %v165
  %v967 = vunpack.c.l.b16 %v166
  %v968 = vunpack.c.l.b16 %v167
  %v969 = vunpack.c.l.b16 %v168
  %v970 = vunpack.c.l.b16 %v169
  %v971 = vunpack.c.l.b16 %v170
  %v972 = vunpack.c.l.b16 %v171
  %v973 = vunpack.c.l.b16 %v172
  %v974 = vunpack.c.l.b16 %v173
  %v975 = vunpack.c.l.b16 %v174
  %v976 = vunpack.c.l.b16 %v175
  %v977 = vunpack.c.l.b16 %v176
  %v978 = vunpack.c.l.b16 %v177
  %v979 = vunpack.c.l.b16 %v178
  %v980 = vunpack.c.l.b16 %v179
  %v981 = vunpack.c.l.b16 %v180
  %v982 = vunpack.c.l.b16 %v181
  %v983 = vunpack.c.l.b16 %v182
  %v984 = vunpack.c.l.b16 %v183
  %v985 = vunpack.c.l.b16 %v184
  %v986 = vunpack.c.l.b16 %v185
  %v987 = vunpack.c.l.b16 %v186
  %v988 = vunpack.c.l.b16 %v187
  %v989 = vunpack.c.l.b16 %v188
  %v990 = vunpack.c.l.b16 %v189
  %v991 = vunpack.c.l.b16 %v190
  %v992 = vunpack.c.l.b16 %v191
  %v993 = vunpack.c.l.b16 %v192
  %v994 = vunpack.c.l.b16 %v193
  %v995 = vunpack.c.l.b16 %v194
  %v996 = vunpack.c.l.b16 %v195
  %v997 = vunpack.c.l.b16 %v196
  %v998 = vunpack.c.l.b16 %v197
  %v999 = vunpack.c.l.b16 %v198
  %v1000 = vunpack.c.l.b16 %v199
  %v1001 = vunpack.c.l.b16 %v200
  %v1002 = vunpack.c.l.b16 %v201
  %v1003 = vunpack.c.l.b16 %v202
  %v1004 = vunpack.c.l.b16 %v203
  %v1005 = vunpack.c.l.b16 %v204
  %v1006 = vunpack.c.l.b16 %v205
  %v1007 = vunpack.c.l.b16 %v206
  %v1008 = vunpack.c.l.b16 %v207
  %v1009 = vunpack.c.l.b16 %v208
  %v1010 = vunpack.c.l.b16 %v209
  %v1011 = vunpack.c.l.b16 %v210
  %v1012 = vunpack.c.l.b16 %v211
  %v1013 = vunpack.c.l.b16 %v212
  %v1014 = vunpack.c.l.b16 %v213
  %v1015 = vunpack.c.l.b16 %v214
  %v1016 = vunpack.c.l.b16 %v215
  %v1017 = vunpack.c.l.b16 %v216
  %v1018 = vunpack.c.l.b16 %v217
  %v1019 = vunpack.c.l.b16 %v218
  %v1020 = vunpack.c.l.b16 %v219
  %v1021 = vunpack.c.l.b16 %v220
  %v1022 = vunpack.c.l.b16 %v221
  %v1023 = vunpack.c.l.b16 %v222
  %v1024 = vunpack.c.l.b16 %v223
  %v1025 = vunpack.c.l.b16 %v224
  %v1026 = vunpack.c.l.b16 %v225
  %v1027 = vunpack.c.l.b16 %v226
  %v1028 = vunpack.c.l.b16 %v227
  %v1029 = vunpack.c.l.b16 %v228
  %v1030 = vunpack.c.l.b16 %v229
  %v1031 = vunpack.c.l.b16 %v230
  %v1032 = vunpack.c.l.b16 %v231
  %v1033 = vunpack.c.l.b16 %v232
  %v1034 = vunpack.c.l.b16 %v233
  %v1035 = vunpack.c.l.b16 %v234
  %v1036 = vunpack.c.l.b16 %v235
  %v1037 = vunpack.c.l.b16 %v236
  %v1038 = vunpack.c.l.b16 %v237
  %v1039 = vunpack.c.l.b16 %v238
  %v1040 = vunpack.c.l.b16 %v239
  %v1041 = vunpack.c.l.b16 %v240
  %v1042 = vunpack.c.l.b16 %v241
  %v1043 = vunpack.c.l.b16 %v242
  %v1044 = vunpack.c.l.b16 %v243
  %v1045 = vunpack.c.l.b16 %v244
  %v1046 = vunpack.c.l.b16 %v245
  %v1047 = vunpack.c.l.b16 %v246
  %v1048 = vunpack.c.l.b16 %v247
  %v1049 = vunpack.c.l.b16 %v248
  %v1050 = vunpack.c.l.b16 %v249
  %v1051 = vunpack.c.l.b16 %v250
  %v1052 = vunpack.c.l.b16 %v251
  %v1053 = vunpack.c.l.b16 %v252
  %v1054 = vunpack.c.l.b16 %v253
  %v1055 = vunpack.c.l.b16 %v254
  %v1056 = vunpack.c.l.b16 %v255
  %v1057 = vunpack.c.l.b16 %v256
  %v1058 = vunpack.c.l.b16 %v257
  %v1059 = vunpack.c.l.b16 %v258
  %v1060 = vunpack.c.l.b16 %v259
  %v1061 = vunpack.c.l.b16 %v260
  %v1062 = vunpack.c.l.b16 %v261
  %v1063 = vunpack.c.l.b16 %v262
  %v1064 = vunpack.c.l.b16 %v263
  %v1065 = vunpack.c.l.b16 %v264
  %v1066 = vunpack.c.l.b16 %v265
  %v1067 = vunpack.c.l.b16 %v266
  %v1068 = vunpack.c.l.b16 %v267
  %v1069 = vunpack.c.l.b16 %v268
  %v1070 = vpack.c.b16 %v927, %v926
  %v1071 = vpack.c.b16 %v929, %v928
  %v1072 = vpack.c.b16 %v931, %v930
  %v1073 = vpack.c.b16 %v933, %v932
  %v1074 = vpack.c.b16 %v935, %v934
  %v1075 = vpack.c.b16 %v937, %v936
  %v1076 = vpack.c.b16 %v939, %v938
  %v1077 = vpack.c.b16 %v941, %v940
  %v1078 = vpack.c.b16 %v943, %v942
  %v1079 = vpack.c.b16 %v945, %v944
  %v1080 = vpack.c.b16 %v947, %v946
  %v1081 = vpack.c.b16 %v949, %v948
  %v1082 = vpack.c.b16 %v951, %v950
  %v1083 = vpack.c.b16 %v953, %v952
  %v1084 = vpack.c.b16 %v955, %v954
  %v1085 = vpack.c.b16 %v957, %v956
  %v1086 = vpack.c.b16 %v959, %v958
  %v1087 = vpack.c.b16 %v961, %v960
  %v1088 = vpack.c.b16 %v963, %v962
  %v1089 = vpack.c.b16 %v965, %v964
  %v1090 = vpack.c.b16 %v967, %v966
  %v1091 = vpack.c.b16 %v969, %v968
  %v1092 = vpack.c.b16 %v971, %v970
  %v1093 = vpack.c.b16 %v973, %v972
  %v1094 = vpack.c.b16 %v975, %v974
  %v1095 = vpack.c.b16 %v977, %v976
  %v1096 = vpack.c.b16 %v979, %v978
  %v1097 = vpack.c.b16 %v981, %v980
  %v1098 = vpack.c.b16 %v983, %v982
  %v1099 = vpack.c.b16 %v985, %v984
  %v1100 = vpack.c.b16 %v987, %v986
  %v1101 = vpack.c.b16 %v989, %v988
  %v1102 = vpack.c.b16 %v991, %v990
  %v1103 = vpack.c.b16 %v993, %v992
  %v1104 = vpack.c.b16 %v995, %v994
  %v1105 = vpack.c.b16 %v997, %v996
  %v1106 = vpack.c.b16 %v999, %v998
  %v1107 = vpack.c.b16 %v1001, %v1000
  %v1108 = vpack.c.b16 %v1003, %v1002
  %v1109 = vpack.c.b16 %v1005, %v1004
  %v1110 = vpack.c.b16 %v1007, %v1006
  %v1111 = vpack.c.b16 %v1009, %v1008
  %v1112 = vpack.c.b16 %v1011, %v1010
  %v1113 = vpack.c.b16 %v1013, %v1012
  %v1114 = vpack.c.b16 %v1015, %v1014
  %v1115 = vpack.c.b16 %v1017, %v1016
  %v1116 = vpack.c.b16 %v1019, %v1018
  %v1117 = vpack.c.b16 %v1021, %v1020
  %v1118 = vpack.c.b16 %v1023, %v1022
  %v1119 = vpack.c.b16 %v1025, %v1024
  %v1120 = vpack.c.b16 %v1027, %v1026
  %v1121 = vpack.c.b16 %v1029, %v1028
  %v1122 = vpack.c.b16 %v1031, %v1030
  %v1123 = vpack.c.b16 %v1033, %v1032
  %v1124 = vpack.c.b16 %v1035, %v1034
  %v1125 = vpack.c.b16 %v1037, %v1036
  %v1126 = vpack.c.b16 %v1039, %v1038
  %v1127 = vpack.c.b16 %v1041, %v1040
  %v1128 = vpack.c.b16 %v1043, %v1042
  %v1129 = vpack.c.b16 %v1045, %v1044
  %v1130 = vpack.c.b16 %v1047, %v1046
  %v1131 = vpack.c.b16 %v1049, %v1048
  %v1132 = vpack.c.b16 %v1051, %v1050
  %v1133 = vpack.c.b16 %v1053, %v1052
  %v1134 = vpack.c.b16 %v1055, %v1054
  %v1135 = vpack.c.b16 %v1057, %v1056
  %v1136 = vpack.c.b16 %v1059, %v1058
  %v1137 = vpack.c.b16 %v1061, %v1060
  %v1138 = vpack.c.b16 %v1063, %v1062
  %v1139 = vpack.c.b16 %v1065, %v1064
  %v1140 = vpack.c.b16 %v1067, %v1066
  %v1141 = vpack.c.b16 %v1069, %v1068
  %1214 = vmatprep.subr.bf16.mxu0 0
  %1215 = vmatpush1.bf16.msra.mxu0 %v1077
  %1216 = vmatprep.subr.bf16.mxu0 0
  %1217 = vmatpush1.bf16.msra.mxu0 %v1076
  %1218 = vmatprep.subr.bf16.mxu0 0
  %1219 = vmatpush1.bf16.msra.mxu0 %v1075
  %1220 = vmatprep.subr.bf16.mxu0 0
  %1221 = vmatpush1.bf16.msra.mxu0 %v1074
  %1222 = vmatprep.subr.bf16.mxu0 0
  %1223 = vmatpush1.bf16.msra.mxu0 %v1073
  %1224 = vmatprep.subr.bf16.mxu0 0
  %1225 = vmatpush1.bf16.msra.mxu0 %v1072
  %1226 = vmatprep.subr.bf16.mxu0 0
  %1227 = vmatpush1.bf16.msra.mxu0 %v1071
  %1228 = vmatprep.subr.bf16.mxu0 0
  %1229 = vmatpush1.bf16.msra.mxu0 %v1070
  %1230 = vmatprep.subr.bf16.mxu0 0
  %1231 = vmatpush2.bf16.msra.mxu0 %v1085
  %1232 = vmatprep.subr.bf16.mxu0 0
  %1233 = vmatpush2.bf16.msra.mxu0 %v1084
  %1234 = vmatprep.subr.bf16.mxu0 0
  %1235 = vmatpush2.bf16.msra.mxu0 %v1083
  %1236 = vmatprep.subr.bf16.mxu0 0
  %1237 = vmatpush2.bf16.msra.mxu0 %v1082
  %1238 = vmatprep.subr.bf16.mxu0 0
  %1239 = vmatpush2.bf16.msra.mxu0 %v1081
  %1240 = vmatprep.subr.bf16.mxu0 0
  %1241 = vmatpush2.bf16.msra.mxu0 %v1080
  %1242 = vmatprep.subr.bf16.mxu0 0
  %1243 = vmatpush2.bf16.msra.mxu0 %v1079
  %1244 = vmatprep.subr.bf16.mxu0 0
  %1245 = vmatpush2.bf16.msra.mxu0 %v1078
  %1246 = vmatprep.mubr.bf16.mxu0 %v585
  %1247 = vmatmul.mubr.bf16.gmra.mxu0 %v584
  %v1248 = vpop.f32.mrf.mxu0
  %v1249 = vadd.f32 %v274, %v1248
  %v1250 = vpop.f32.mrf.mxu0
  %v1251 = vpop.f32.mrf.mxu0
  %v1252 = vadd.f32 %v274, %v1251
  %v1253 = vpop.f32.mrf.mxu0
  %1254 = vmatprep.mubr.bf16.mxu0 %v594
  %1255 = vmatmul.mubr.bf16.gmra.mxu0 %v593
  %v1256 = vpop.f32.mrf.mxu0
  %v1257 = vadd.f32 %v274, %v1256
  %v1258 = vpop.f32.mrf.mxu0
  %v1259 = vpop.f32.mrf.mxu0
  %v1260 = vadd.f32 %v274, %v1259
  %v1261 = vpop.f32.mrf.mxu0
  %1262 = vmatprep.mubr.bf16.mxu0 %v603
  %1263 = vmatmul.mubr.bf16.gmra.mxu0 %v602
  %v1264 = vpop.f32.mrf.mxu0
  %v1265 = vadd.f32 %v274, %v1264
  %v1266 = vpop.f32.mrf.mxu0
  %v1267 = vpop.f32.mrf.mxu0
  %v1268 = vadd.f32 %v274, %v1267
  %v1269 = vpop.f32.mrf.mxu0
  %1270 = vmatprep.mubr.bf16.mxu0 %v612
  %1271 = vmatmul.mubr.bf16.gmra.mxu0 %v611
  %v1272 = vpop.f32.mrf.mxu0
  %v1273 = vadd.f32 %v274, %v1272
  %v1274 = vpop.f32.mrf.mxu0
  %v1275 = vpop.f32.mrf.mxu0
  %v1276 = vadd.f32 %v274, %v1275
  %v1277 = vpop.f32.mrf.mxu0
  %1278 = vmatprep.mubr.bf16.mxu0 %v621
  %1279 = vmatmul.mubr.bf16.gmra.mxu0 %v620
  %v1280 = vpop.f32.mrf.mxu0
  %v1281 = vadd.f32 %v274, %v1280
  %v1282 = vpop.f32.mrf.mxu0
  %v1283 = vpop.f32.mrf.mxu0
  %v1284 = vadd.f32 %v274, %v1283
  %v1285 = vpop.f32.mrf.mxu0
  %1286 = vmatprep.mubr.bf16.mxu0 %v630
  %1287 = vmatmul.mubr.bf16.gmra.mxu0 %v629
  %v1288 = vpop.f32.mrf.mxu0
  %v1289 = vadd.f32 %v274, %v1288
  %v1290 = vpop.f32.mrf.mxu0
  %v1291 = vpop.f32.mrf.mxu0
  %v1292 = vadd.f32 %v274, %v1291
  %v1293 = vpop.f32.mrf.mxu0
  %1294 = vmatprep.mubr.bf16.mxu0 %v639
  %1295 = vmatmul.mubr.bf16.gmra.mxu0 %v638
  %v1296 = vpop.f32.mrf.mxu0
  %v1297 = vadd.f32 %v274, %v1296
  %v1298 = vpop.f32.mrf.mxu0
  %v1299 = vpop.f32.mrf.mxu0
  %v1300 = vadd.f32 %v274, %v1299
  %v1301 = vpop.f32.mrf.mxu0
  %1302 = vmatprep.mubr.bf16.mxu0 %v648
  %1303 = vmatmul.mubr.bf16.gmra.mxu0 %v647
  %v1304 = vpop.f32.mrf.mxu0
  %v1305 = vadd.f32 %v274, %v1304
  %v1306 = vpop.f32.mrf.mxu0
  %v1307 = vpop.f32.mrf.mxu0
  %v1308 = vadd.f32 %v274, %v1307
  %v1309 = vpop.f32.mrf.mxu0
  %1310 = vmatprep.mubr.bf16.mxu0 %v657
  %1311 = vmatmul.mubr.bf16.gmra.mxu0 %v656
  %v1312 = vpop.f32.mrf.mxu0
  %v1313 = vadd.f32 %v274, %v1312
  %v1314 = vpop.f32.mrf.mxu0
  %v1315 = vpop.f32.mrf.mxu0
  %v1316 = vadd.f32 %v274, %v1315
  %v1317 = vpop.f32.mrf.mxu0
  %1318 = vmatprep.mubr.bf16.mxu0 %v666
  %1319 = vmatmul.mubr.bf16.gmra.mxu0 %v665
  %v1320 = vpop.f32.mrf.mxu0
  %v1321 = vadd.f32 %v274, %v1320
  %v1322 = vpop.f32.mrf.mxu0
  %v1323 = vpop.f32.mrf.mxu0
  %v1324 = vadd.f32 %v274, %v1323
  %v1325 = vpop.f32.mrf.mxu0
  %1326 = vmatprep.mubr.bf16.mxu0 %v675
  %1327 = vmatmul.mubr.bf16.gmra.mxu0 %v674
  %v1328 = vpop.f32.mrf.mxu0
  %v1329 = vadd.f32 %v274, %v1328
  %v1330 = vpop.f32.mrf.mxu0
  %v1331 = vpop.f32.mrf.mxu0
  %v1332 = vadd.f32 %v274, %v1331
  %v1333 = vpop.f32.mrf.mxu0
  %1334 = vdwg.mxu0
  %1335 = vmatprep.subr.bf16.mxu0 0
  %1336 = vmatpush1.bf16.msra.mxu0 %v1093
  %1337 = vmatprep.subr.bf16.mxu0 0
  %1338 = vmatpush1.bf16.msra.mxu0 %v1092
  %1339 = vmatprep.subr.bf16.mxu0 0
  %1340 = vmatpush1.bf16.msra.mxu0 %v1091
  %1341 = vmatprep.subr.bf16.mxu0 0
  %1342 = vmatpush1.bf16.msra.mxu0 %v1090
  %1343 = vmatprep.subr.bf16.mxu0 0
  %1344 = vmatpush1.bf16.msra.mxu0 %v1089
  %1345 = vmatprep.subr.bf16.mxu0 0
  %1346 = vmatpush1.bf16.msra.mxu0 %v1088
  %1347 = vmatprep.subr.bf16.mxu0 0
  %1348 = vmatpush1.bf16.msra.mxu0 %v1087
  %1349 = vmatprep.subr.bf16.mxu0 0
  %1350 = vmatpush1.bf16.msra.mxu0 %v1086
  %1351 = vmatprep.subr.bf16.mxu0 0
  %1352 = vmatpush2.bf16.msra.mxu0 %v1101
  %1353 = vmatprep.subr.bf16.mxu0 0
  %1354 = vmatpush2.bf16.msra.mxu0 %v1100
  %1355 = vmatprep.subr.bf16.mxu0 0
  %1356 = vmatpush2.bf16.msra.mxu0 %v1099
  %1357 = vmatprep.subr.bf16.mxu0 0
  %1358 = vmatpush2.bf16.msra.mxu0 %v1098
  %1359 = vmatprep.subr.bf16.mxu0 0
  %1360 = vmatpush2.bf16.msra.mxu0 %v1097
  %1361 = vmatprep.subr.bf16.mxu0 0
  %1362 = vmatpush2.bf16.msra.mxu0 %v1096
  %1363 = vmatprep.subr.bf16.mxu0 0
  %1364 = vmatpush2.bf16.msra.mxu0 %v1095
  %1365 = vmatprep.subr.bf16.mxu0 0
  %1366 = vmatpush2.bf16.msra.mxu0 %v1094
  %1367 = vmatprep.mubr.bf16.mxu0 %v587
  %1368 = vmatmul.mubr.bf16.gmra.mxu0 %v586
  %v1369 = vpop.f32.mrf.mxu0
  %v1370 = vadd.f32 %v1249, %v1369
  %v1371 = vpop.f32.mrf.mxu0
  %v1372 = vpop.f32.mrf.mxu0
  %v1373 = vadd.f32 %v1252, %v1372
  %v1374 = vpop.f32.mrf.mxu0
  %1375 = vmatprep.mubr.bf16.mxu0 %v596
  %1376 = vmatmul.mubr.bf16.gmra.mxu0 %v595
  %v1377 = vpop.f32.mrf.mxu0
  %v1378 = vadd.f32 %v1257, %v1377
  %v1379 = vpop.f32.mrf.mxu0
  %v1380 = vpop.f32.mrf.mxu0
  %v1381 = vadd.f32 %v1260, %v1380
  %v1382 = vpop.f32.mrf.mxu0
  %1383 = vmatprep.mubr.bf16.mxu0 %v605
  %1384 = vmatmul.mubr.bf16.gmra.mxu0 %v604
  %v1385 = vpop.f32.mrf.mxu0
  %v1386 = vadd.f32 %v1265, %v1385
  %v1387 = vpop.f32.mrf.mxu0
  %v1388 = vpop.f32.mrf.mxu0
  %v1389 = vadd.f32 %v1268, %v1388
  %v1390 = vpop.f32.mrf.mxu0
  %1391 = vmatprep.mubr.bf16.mxu0 %v614
  %1392 = vmatmul.mubr.bf16.gmra.mxu0 %v613
  %v1393 = vpop.f32.mrf.mxu0
  %v1394 = vadd.f32 %v1273, %v1393
  %v1395 = vpop.f32.mrf.mxu0
  %v1396 = vpop.f32.mrf.mxu0
  %v1397 = vadd.f32 %v1276, %v1396
  %v1398 = vpop.f32.mrf.mxu0
  %1399 = vmatprep.mubr.bf16.mxu0 %v623
  %1400 = vmatmul.mubr.bf16.gmra.mxu0 %v622
  %v1401 = vpop.f32.mrf.mxu0
  %v1402 = vadd.f32 %v1281, %v1401
  %v1403 = vpop.f32.mrf.mxu0
  %v1404 = vpop.f32.mrf.mxu0
  %v1405 = vadd.f32 %v1284, %v1404
  %v1406 = vpop.f32.mrf.mxu0
  %1407 = vmatprep.mubr.bf16.mxu0 %v632
  %1408 = vmatmul.mubr.bf16.gmra.mxu0 %v631
  %v1409 = vpop.f32.mrf.mxu0
  %v1410 = vadd.f32 %v1289, %v1409
  %v1411 = vpop.f32.mrf.mxu0
  %v1412 = vpop.f32.mrf.mxu0
  %v1413 = vadd.f32 %v1292, %v1412
  %v1414 = vpop.f32.mrf.mxu0
  %1415 = vmatprep.mubr.bf16.mxu0 %v641
  %1416 = vmatmul.mubr.bf16.gmra.mxu0 %v640
  %v1417 = vpop.f32.mrf.mxu0
  %v1418 = vadd.f32 %v1297, %v1417
  %v1419 = vpop.f32.mrf.mxu0
  %v1420 = vpop.f32.mrf.mxu0
  %v1421 = vadd.f32 %v1300, %v1420
  %v1422 = vpop.f32.mrf.mxu0
  %1423 = vmatprep.mubr.bf16.mxu0 %v650
  %1424 = vmatmul.mubr.bf16.gmra.mxu0 %v649
  %v1425 = vpop.f32.mrf.mxu0
  %v1426 = vadd.f32 %v1305, %v1425
  %v1427 = vpop.f32.mrf.mxu0
  %v1428 = vpop.f32.mrf.mxu0
  %v1429 = vadd.f32 %v1308, %v1428
  %v1430 = vpop.f32.mrf.mxu0
  %1431 = vmatprep.mubr.bf16.mxu0 %v659
  %1432 = vmatmul.mubr.bf16.gmra.mxu0 %v658
  %v1433 = vpop.f32.mrf.mxu0
  %v1434 = vadd.f32 %v1313, %v1433
  %v1435 = vpop.f32.mrf.mxu0
  %v1436 = vpop.f32.mrf.mxu0
  %v1437 = vadd.f32 %v1316, %v1436
  %v1438 = vpop.f32.mrf.mxu0
  %1439 = vmatprep.mubr.bf16.mxu0 %v668
  %1440 = vmatmul.mubr.bf16.gmra.mxu0 %v667
  %v1441 = vpop.f32.mrf.mxu0
  %v1442 = vadd.f32 %v1321, %v1441
  %v1443 = vpop.f32.mrf.mxu0
  %v1444 = vpop.f32.mrf.mxu0
  %v1445 = vadd.f32 %v1324, %v1444
  %v1446 = vpop.f32.mrf.mxu0
  %1447 = vmatprep.mubr.bf16.mxu0 %v677
  %1448 = vmatmul.mubr.bf16.gmra.mxu0 %v676
  %v1449 = vpop.f32.mrf.mxu0
  %v1450 = vadd.f32 %v1329, %v1449
  %v1451 = vpop.f32.mrf.mxu0
  %v1452 = vpop.f32.mrf.mxu0
  %v1453 = vadd.f32 %v1332, %v1452
  %v1454 = vpop.f32.mrf.mxu0
  %1455 = vdwg.mxu0
  %1456 = vmatprep.subr.bf16.mxu0 0
  %1457 = vmatpush1.bf16.msra.mxu0 %v1109
  %1458 = vmatprep.subr.bf16.mxu0 0
  %1459 = vmatpush1.bf16.msra.mxu0 %v1108
  %1460 = vmatprep.subr.bf16.mxu0 0
  %1461 = vmatpush1.bf16.msra.mxu0 %v1107
  %1462 = vmatprep.subr.bf16.mxu0 0
  %1463 = vmatpush1.bf16.msra.mxu0 %v1106
  %1464 = vmatprep.subr.bf16.mxu0 0
  %1465 = vmatpush1.bf16.msra.mxu0 %v1105
  %1466 = vmatprep.subr.bf16.mxu0 0
  %1467 = vmatpush1.bf16.msra.mxu0 %v1104
  %1468 = vmatprep.subr.bf16.mxu0 0
  %1469 = vmatpush1.bf16.msra.mxu0 %v1103
  %1470 = vmatprep.subr.bf16.mxu0 0
  %1471 = vmatpush1.bf16.msra.mxu0 %v1102
  %1472 = vmatprep.subr.bf16.mxu0 0
  %1473 = vmatpush2.bf16.msra.mxu0 %v1117
  %1474 = vmatprep.subr.bf16.mxu0 0
  %1475 = vmatpush2.bf16.msra.mxu0 %v1116
  %1476 = vmatprep.subr.bf16.mxu0 0
  %1477 = vmatpush2.bf16.msra.mxu0 %v1115
  %1478 = vmatprep.subr.bf16.mxu0 0
  %1479 = vmatpush2.bf16.msra.mxu0 %v1114
  %1480 = vmatprep.subr.bf16.mxu0 0
  %1481 = vmatpush2.bf16.msra.mxu0 %v1113
  %1482 = vmatprep.subr.bf16.mxu0 0
  %1483 = vmatpush2.bf16.msra.mxu0 %v1112
  %1484 = vmatprep.subr.bf16.mxu0 0
  %1485 = vmatpush2.bf16.msra.mxu0 %v1111
  %1486 = vmatprep.subr.bf16.mxu0 0
  %1487 = vmatpush2.bf16.msra.mxu0 %v1110
  %1488 = vmatprep.mubr.bf16.mxu0 %v589
  %1489 = vmatmul.mubr.bf16.gmra.mxu0 %v588
  %v1490 = vpop.f32.mrf.mxu0
  %v1491 = vadd.f32 %v1370, %v1490
  %v1492 = vpop.f32.mrf.mxu0
  %v1493 = vpop.f32.mrf.mxu0
  %v1494 = vadd.f32 %v1373, %v1493
  %v1495 = vpop.f32.mrf.mxu0
  %1496 = vmatprep.mubr.bf16.mxu0 %v598
  %1497 = vmatmul.mubr.bf16.gmra.mxu0 %v597
  %v1498 = vpop.f32.mrf.mxu0
  %v1499 = vadd.f32 %v1378, %v1498
  %v1500 = vpop.f32.mrf.mxu0
  %v1501 = vpop.f32.mrf.mxu0
  %v1502 = vadd.f32 %v1381, %v1501
  %v1503 = vpop.f32.mrf.mxu0
  %1504 = vmatprep.mubr.bf16.mxu0 %v607
  %1505 = vmatmul.mubr.bf16.gmra.mxu0 %v606
  %v1506 = vpop.f32.mrf.mxu0
  %v1507 = vadd.f32 %v1386, %v1506
  %v1508 = vpop.f32.mrf.mxu0
  %v1509 = vpop.f32.mrf.mxu0
  %v1510 = vadd.f32 %v1389, %v1509
  %v1511 = vpop.f32.mrf.mxu0
  %1512 = vmatprep.mubr.bf16.mxu0 %v616
  %1513 = vmatmul.mubr.bf16.gmra.mxu0 %v615
  %v1514 = vpop.f32.mrf.mxu0
  %v1515 = vadd.f32 %v1394, %v1514
  %v1516 = vpop.f32.mrf.mxu0
  %v1517 = vpop.f32.mrf.mxu0
  %v1518 = vadd.f32 %v1397, %v1517
  %v1519 = vpop.f32.mrf.mxu0
  %1520 = vmatprep.mubr.bf16.mxu0 %v625
  %1521 = vmatmul.mubr.bf16.gmra.mxu0 %v624
  %v1522 = vpop.f32.mrf.mxu0
  %v1523 = vadd.f32 %v1402, %v1522
  %v1524 = vpop.f32.mrf.mxu0
  %v1525 = vpop.f32.mrf.mxu0
  %v1526 = vadd.f32 %v1405, %v1525
  %v1527 = vpop.f32.mrf.mxu0
  %1528 = vmatprep.mubr.bf16.mxu0 %v634
  %1529 = vmatmul.mubr.bf16.gmra.mxu0 %v633
  %v1530 = vpop.f32.mrf.mxu0
  %v1531 = vadd.f32 %v1410, %v1530
  %v1532 = vpop.f32.mrf.mxu0
  %v1533 = vpop.f32.mrf.mxu0
  %v1534 = vadd.f32 %v1413, %v1533
  %v1535 = vpop.f32.mrf.mxu0
  %1536 = vmatprep.mubr.bf16.mxu0 %v643
  %1537 = vmatmul.mubr.bf16.gmra.mxu0 %v642
  %v1538 = vpop.f32.mrf.mxu0
  %v1539 = vadd.f32 %v1418, %v1538
  %v1540 = vpop.f32.mrf.mxu0
  %v1541 = vpop.f32.mrf.mxu0
  %v1542 = vadd.f32 %v1421, %v1541
  %v1543 = vpop.f32.mrf.mxu0
  %1544 = vmatprep.mubr.bf16.mxu0 %v652
  %1545 = vmatmul.mubr.bf16.gmra.mxu0 %v651
  %v1546 = vpop.f32.mrf.mxu0
  %v1547 = vadd.f32 %v1426, %v1546
  %v1548 = vpop.f32.mrf.mxu0
  %v1549 = vpop.f32.mrf.mxu0
  %v1550 = vadd.f32 %v1429, %v1549
  %v1551 = vpop.f32.mrf.mxu0
  %1552 = vmatprep.mubr.bf16.mxu0 %v661
  %1553 = vmatmul.mubr.bf16.gmra.mxu0 %v660
  %v1554 = vpop.f32.mrf.mxu0
  %v1555 = vadd.f32 %v1434, %v1554
  %v1556 = vpop.f32.mrf.mxu0
  %v1557 = vpop.f32.mrf.mxu0
  %v1558 = vadd.f32 %v1437, %v1557
  %v1559 = vpop.f32.mrf.mxu0
  %1560 = vmatprep.mubr.bf16.mxu0 %v670
  %1561 = vmatmul.mubr.bf16.gmra.mxu0 %v669
  %v1562 = vpop.f32.mrf.mxu0
  %v1563 = vadd.f32 %v1442, %v1562
  %v1564 = vpop.f32.mrf.mxu0
  %v1565 = vpop.f32.mrf.mxu0
  %v1566 = vadd.f32 %v1445, %v1565
  %v1567 = vpop.f32.mrf.mxu0
  %1568 = vmatprep.mubr.bf16.mxu0 %v679
  %1569 = vmatmul.mubr.bf16.gmra.mxu0 %v678
  %v1570 = vpop.f32.mrf.mxu0
  %v1571 = vadd.f32 %v1450, %v1570
  %v1572 = vpop.f32.mrf.mxu0
  %v1573 = vpop.f32.mrf.mxu0
  %v1574 = vadd.f32 %v1453, %v1573
  %v1575 = vpop.f32.mrf.mxu0
  %1576 = vdwg.mxu0
  %1577 = vmatprep.subr.bf16.mxu0 0
  %1578 = vmatpush1.bf16.msra.mxu0 %v1125
  %1579 = vmatprep.subr.bf16.mxu0 0
  %1580 = vmatpush1.bf16.msra.mxu0 %v1124
  %1581 = vmatprep.subr.bf16.mxu0 0
  %1582 = vmatpush1.bf16.msra.mxu0 %v1123
  %1583 = vmatprep.subr.bf16.mxu0 0
  %1584 = vmatpush1.bf16.msra.mxu0 %v1122
  %1585 = vmatprep.subr.bf16.mxu0 0
  %1586 = vmatpush1.bf16.msra.mxu0 %v1121
  %1587 = vmatprep.subr.bf16.mxu0 0
  %1588 = vmatpush1.bf16.msra.mxu0 %v1120
  %1589 = vmatprep.subr.bf16.mxu0 0
  %1590 = vmatpush1.bf16.msra.mxu0 %v1119
  %1591 = vmatprep.subr.bf16.mxu0 0
  %1592 = vmatpush1.bf16.msra.mxu0 %v1118
  %1593 = vmatprep.subr.bf16.mxu0 0
  %1594 = vmatpush2.bf16.msra.mxu0 %v1133
  %1595 = vmatprep.subr.bf16.mxu0 0
  %1596 = vmatpush2.bf16.msra.mxu0 %v1132
  %1597 = vmatprep.subr.bf16.mxu0 0
  %1598 = vmatpush2.bf16.msra.mxu0 %v1131
  %1599 = vmatprep.subr.bf16.mxu0 0
  %1600 = vmatpush2.bf16.msra.mxu0 %v1130
  %1601 = vmatprep.subr.bf16.mxu0 0
  %1602 = vmatpush2.bf16.msra.mxu0 %v1129
  %1603 = vmatprep.subr.bf16.mxu0 0
  %1604 = vmatpush2.bf16.msra.mxu0 %v1128
  %1605 = vmatprep.subr.bf16.mxu0 0
  %1606 = vmatpush2.bf16.msra.mxu0 %v1127
  %1607 = vmatprep.subr.bf16.mxu0 0
  %1608 = vmatpush2.bf16.msra.mxu0 %v1126
  %1609 = vmatprep.mubr.bf16.mxu0 %v591
  %1610 = vmatmul.mubr.bf16.gmra.mxu0 %v590
  %v1611 = vpop.f32.mrf.mxu0
  %v1612 = vadd.f32 %v1491, %v1611
  %v1613 = vpop.f32.mrf.mxu0
  %v1614 = vpop.f32.mrf.mxu0
  %v1615 = vadd.f32 %v1494, %v1614
  %v1616 = vpop.f32.mrf.mxu0
  %1617 = vmatprep.mubr.bf16.mxu0 %v600
  %1618 = vmatmul.mubr.bf16.gmra.mxu0 %v599
  %v1619 = vpop.f32.mrf.mxu0
  %v1620 = vadd.f32 %v1499, %v1619
  %v1621 = vpop.f32.mrf.mxu0
  %v1622 = vpop.f32.mrf.mxu0
  %v1623 = vadd.f32 %v1502, %v1622
  %v1624 = vpop.f32.mrf.mxu0
  %1625 = vmatprep.mubr.bf16.mxu0 %v609
  %1626 = vmatmul.mubr.bf16.gmra.mxu0 %v608
  %v1627 = vpop.f32.mrf.mxu0
  %v1628 = vadd.f32 %v1507, %v1627
  %v1629 = vpop.f32.mrf.mxu0
  %v1630 = vpop.f32.mrf.mxu0
  %v1631 = vadd.f32 %v1510, %v1630
  %v1632 = vpop.f32.mrf.mxu0
  %1633 = vmatprep.mubr.bf16.mxu0 %v618
  %1634 = vmatmul.mubr.bf16.gmra.mxu0 %v617
  %v1635 = vpop.f32.mrf.mxu0
  %v1636 = vadd.f32 %v1515, %v1635
  %v1637 = vpop.f32.mrf.mxu0
  %v1638 = vpop.f32.mrf.mxu0
  %v1639 = vadd.f32 %v1518, %v1638
  %v1640 = vpop.f32.mrf.mxu0
  %1641 = vmatprep.mubr.bf16.mxu0 %v627
  %1642 = vmatmul.mubr.bf16.gmra.mxu0 %v626
  %v1643 = vpop.f32.mrf.mxu0
  %v1644 = vadd.f32 %v1523, %v1643
  %v1645 = vpop.f32.mrf.mxu0
  %v1646 = vpop.f32.mrf.mxu0
  %v1647 = vadd.f32 %v1526, %v1646
  %v1648 = vpop.f32.mrf.mxu0
  %1649 = vmatprep.mubr.bf16.mxu0 %v636
  %1650 = vmatmul.mubr.bf16.gmra.mxu0 %v635
  %v1651 = vpop.f32.mrf.mxu0
  %v1652 = vadd.f32 %v1531, %v1651
  %v1653 = vpop.f32.mrf.mxu0
  %v1654 = vpop.f32.mrf.mxu0
  %v1655 = vadd.f32 %v1534, %v1654
  %v1656 = vpop.f32.mrf.mxu0
  %1657 = vmatprep.mubr.bf16.mxu0 %v645
  %1658 = vmatmul.mubr.bf16.gmra.mxu0 %v644
  %v1659 = vpop.f32.mrf.mxu0
  %v1660 = vadd.f32 %v1539, %v1659
  %v1661 = vpop.f32.mrf.mxu0
  %v1662 = vpop.f32.mrf.mxu0
  %v1663 = vadd.f32 %v1542, %v1662
  %v1664 = vpop.f32.mrf.mxu0
  %1665 = vmatprep.mubr.bf16.mxu0 %v654
  %1666 = vmatmul.mubr.bf16.gmra.mxu0 %v653
  %v1667 = vpop.f32.mrf.mxu0
  %v1668 = vadd.f32 %v1547, %v1667
  %v1669 = vpop.f32.mrf.mxu0
  %v1670 = vpop.f32.mrf.mxu0
  %v1671 = vadd.f32 %v1550, %v1670
  %v1672 = vpop.f32.mrf.mxu0
  %1673 = vmatprep.mubr.bf16.mxu0 %v663
  %1674 = vmatmul.mubr.bf16.gmra.mxu0 %v662
  %v1675 = vpop.f32.mrf.mxu0
  %v1676 = vadd.f32 %v1555, %v1675
  %v1677 = vpop.f32.mrf.mxu0
  %v1678 = vpop.f32.mrf.mxu0
  %v1679 = vadd.f32 %v1558, %v1678
  %v1680 = vpop.f32.mrf.mxu0
  %1681 = vmatprep.mubr.bf16.mxu0 %v672
  %1682 = vmatmul.mubr.bf16.gmra.mxu0 %v671
  %v1683 = vpop.f32.mrf.mxu0
  %v1684 = vadd.f32 %v1563, %v1683
  %v1685 = vpop.f32.mrf.mxu0
  %v1686 = vpop.f32.mrf.mxu0
  %v1687 = vadd.f32 %v1566, %v1686
  %v1688 = vpop.f32.mrf.mxu0
  %1689 = vmatprep.mubr.bf16.mxu0 %v681
  %1690 = vmatmul.mubr.bf16.gmra.mxu0 %v680
  %v1691 = vpop.f32.mrf.mxu0
  %v1692 = vadd.f32 %v1571, %v1691
  %v1693 = vpop.f32.mrf.mxu0
  %v1694 = vpop.f32.mrf.mxu0
  %v1695 = vadd.f32 %v1574, %v1694
  %v1696 = vpop.f32.mrf.mxu0
  %1697 = vdwg.mxu0
  %1698 = vmatprep.subr.bf16.mxu0 0
  %1699 = vmatpush1.bf16.msra.mxu0 %v1141
  %1700 = vmatprep.subr.bf16.mxu0 0
  %1701 = vmatpush1.bf16.msra.mxu0 %v1140
  %1702 = vmatprep.subr.bf16.mxu0 0
  %1703 = vmatpush1.bf16.msra.mxu0 %v1139
  %1704 = vmatprep.subr.bf16.mxu0 0
  %1705 = vmatpush1.bf16.msra.mxu0 %v1138
  %1706 = vmatprep.subr.bf16.mxu0 0
  %1707 = vmatpush1.bf16.msra.mxu0 %v1137
  %1708 = vmatprep.subr.bf16.mxu0 0
  %1709 = vmatpush1.bf16.msra.mxu0 %v1136
  %1710 = vmatprep.subr.bf16.mxu0 0
  %1711 = vmatpush1.bf16.msra.mxu0 %v1135
  %1712 = vmatprep.subr.bf16.mxu0 0
  %1713 = vmatpush1.bf16.msra.mxu0 %v1134
  %1714 = vmatprep.subr.bf16.mxu0 0
  %1715 = vmatpush2.bf16.msra.mxu0 0
  %1716 = vmatprep.subr.bf16.mxu0 0
  %1717 = vmatpush2.bf16.msra.mxu0 0
  %1718 = vmatprep.subr.bf16.mxu0 0
  %1719 = vmatpush2.bf16.msra.mxu0 0
  %1720 = vmatprep.subr.bf16.mxu0 0
  %1721 = vmatpush2.bf16.msra.mxu0 0
  %1722 = vmatprep.subr.bf16.mxu0 0
  %1723 = vmatpush2.bf16.msra.mxu0 0
  %1724 = vmatprep.subr.bf16.mxu0 0
  %1725 = vmatpush2.bf16.msra.mxu0 0
  %1726 = vmatprep.subr.bf16.mxu0 0
  %1727 = vmatpush2.bf16.msra.mxu0 0
  %1728 = vmatprep.subr.bf16.mxu0 0
  %1729 = vmatpush2.bf16.msra.mxu0 0
  %1730 = vmatprep.mubr.bf16.mxu0 0
  %1731 = vmatmul.mubr.bf16.gmra.mxu0 %v592
  %v1732 = vpop.f32.mrf.mxu0
  %v1733 = vadd.f32 %v1612, %v1732
  %v1734 = vpop.f32.mrf.mxu0
  %v1735 = vpop.f32.mrf.mxu0
  %v1736 = vadd.f32 %v1615, %v1735
  %v1737 = vpop.f32.mrf.mxu0
  %1738 = vmatprep.mubr.bf16.mxu0 0
  %1739 = vmatmul.mubr.bf16.gmra.mxu0 %v601
  %v1740 = vpop.f32.mrf.mxu0
  %v1741 = vadd.f32 %v1620, %v1740
  %v1742 = vpop.f32.mrf.mxu0
  %v1743 = vpop.f32.mrf.mxu0
  %v1744 = vadd.f32 %v1623, %v1743
  %v1745 = vpop.f32.mrf.mxu0
  %1746 = vmatprep.mubr.bf16.mxu0 0
  %1747 = vmatmul.mubr.bf16.gmra.mxu0 %v610
  %v1748 = vpop.f32.mrf.mxu0
  %v1749 = vadd.f32 %v1628, %v1748
  %v1750 = vpop.f32.mrf.mxu0
  %v1751 = vpop.f32.mrf.mxu0
  %v1752 = vadd.f32 %v1631, %v1751
  %v1753 = vpop.f32.mrf.mxu0
  %1754 = vmatprep.mubr.bf16.mxu0 0
  %1755 = vmatmul.mubr.bf16.gmra.mxu0 %v619
  %v1756 = vpop.f32.mrf.mxu0
  %v1757 = vadd.f32 %v1636, %v1756
  %v1758 = vpop.f32.mrf.mxu0
  %v1759 = vpop.f32.mrf.mxu0
  %v1760 = vadd.f32 %v1639, %v1759
  %v1761 = vpop.f32.mrf.mxu0
  %1762 = vmatprep.mubr.bf16.mxu0 0
  %1763 = vmatmul.mubr.bf16.gmra.mxu0 %v628
  %v1764 = vpop.f32.mrf.mxu0
  %v1765 = vadd.f32 %v1644, %v1764
  %v1766 = vpop.f32.mrf.mxu0
  %v1767 = vpop.f32.mrf.mxu0
  %v1768 = vadd.f32 %v1647, %v1767
  %v1769 = vpop.f32.mrf.mxu0
  %1770 = vmatprep.mubr.bf16.mxu0 0
  %1771 = vmatmul.mubr.bf16.gmra.mxu0 %v637
  %v1772 = vpop.f32.mrf.mxu0
  %v1773 = vadd.f32 %v1652, %v1772
  %v1774 = vpop.f32.mrf.mxu0
  %v1775 = vpop.f32.mrf.mxu0
  %v1776 = vadd.f32 %v1655, %v1775
  %v1777 = vpop.f32.mrf.mxu0
  %1778 = vmatprep.mubr.bf16.mxu0 0
  %1779 = vmatmul.mubr.bf16.gmra.mxu0 %v646
  %v1780 = vpop.f32.mrf.mxu0
  %v1781 = vadd.f32 %v1660, %v1780
  %v1782 = vpop.f32.mrf.mxu0
  %v1783 = vpop.f32.mrf.mxu0
  %v1784 = vadd.f32 %v1663, %v1783
  %v1785 = vpop.f32.mrf.mxu0
  %1786 = vmatprep.mubr.bf16.mxu0 0
  %1787 = vmatmul.mubr.bf16.gmra.mxu0 %v655
  %v1788 = vpop.f32.mrf.mxu0
  %v1789 = vadd.f32 %v1668, %v1788
  %v1790 = vpop.f32.mrf.mxu0
  %v1791 = vpop.f32.mrf.mxu0
  %v1792 = vadd.f32 %v1671, %v1791
  %v1793 = vpop.f32.mrf.mxu0
  %1794 = vmatprep.mubr.bf16.mxu0 0
  %1795 = vmatmul.mubr.bf16.gmra.mxu0 %v664
  %v1796 = vpop.f32.mrf.mxu0
  %v1797 = vadd.f32 %v1676, %v1796
  %v1798 = vpop.f32.mrf.mxu0
  %v1799 = vpop.f32.mrf.mxu0
  %v1800 = vadd.f32 %v1679, %v1799
  %v1801 = vpop.f32.mrf.mxu0
  %1802 = vmatprep.mubr.bf16.mxu0 0
  %1803 = vmatmul.mubr.bf16.gmra.mxu0 %v673
  %v1804 = vpop.f32.mrf.mxu0
  %v1805 = vadd.f32 %v1684, %v1804
  %v1806 = vpop.f32.mrf.mxu0
  %v1807 = vpop.f32.mrf.mxu0
  %v1808 = vadd.f32 %v1687, %v1807
  %v1809 = vpop.f32.mrf.mxu0
  %1810 = vmatprep.mubr.bf16.mxu0 0
  %1811 = vmatmul.mubr.bf16.gmra.mxu0 %v682
  %v1812 = vpop.f32.mrf.mxu0
  %v1813 = vadd.f32 %v1692, %v1812
  %v1814 = vpop.f32.mrf.mxu0
  %v1815 = vpop.f32.mrf.mxu0
  %v1816 = vadd.f32 %v1695, %v1815
  %v1817 = vpop.f32.mrf.mxu0
  %1818 = vdwg.mxu0
  %1819 = vst [vmem:[%s3] sm:$0xff] %v1733
  %1820 = vst [vmem:[%s3 + $0x8] sm:$0xff] %v1736
  %1821 = vst [vmem:[%s3 + $0x10] sm:$0xff] %v1741
  %1822 = vst [vmem:[%s3 + $0x18] sm:$0xff] %v1744
  %1823 = vst [vmem:[%s3 + $0x20] sm:$0xff] %v1749
  %1824 = vst [vmem:[%s3 + $0x28] sm:$0xff] %v1752
  %1825 = vst [vmem:[%s3 + $0x30] sm:$0xff] %v1757
  %1826 = vst [vmem:[%s3 + $0x38] sm:$0xff] %v1760
  %1827 = vst [vmem:[%s3 + $0x40] sm:$0xff] %v1765
  %1828 = vst [vmem:[%s3 + $0x48] sm:$0xff] %v1768
  %1829 = vst [vmem:[%s3 + $0x50] sm:$0xff] %v1773
  %1830 = vst [vmem:[%s3 + $0x58] sm:$0xff] %v1776
  %1831 = vst [vmem:[%s3 + $0x60] sm:$0xff] %v1781
  %1832 = vst [vmem:[%s3 + $0x68] sm:$0xff] %v1784
  %1833 = vst [vmem:[%s3 + $0x70] sm:$0xff] %v1789
  %1834 = vst [vmem:[%s3 + $0x78] sm:$0xff] %v1792
  %1835 = vst [vmem:[%s3 + $0x80] sm:$0xff] %v1797
  %1836 = vst [vmem:[%s3 + $0x88] sm:$0xff] %v1800
  %1837 = vst [vmem:[%s3 + $0x90] sm:$0xff] %v1805
  %1838 = vst [vmem:[%s3 + $0x98] sm:$0xff] %v1808
  %1839 = vst [vmem:[%s3 + $0xa0] sm:$0xff] %v1813
  %1840 = vst [vmem:[%s3 + $0xa8] sm:$0xff] %v1816
  // Predicated region
  $region14: #{main_forward.115} parent=0 // pred_check
    _
  $region15: #{main_forward.115} parent=0 // pred_check_branch
    %1842 = sbr.rel (0) target = $region17
  $region16: #{main_forward.115} parent=0 // pred_region
    _
  $region17: #{main_forward.115} parent=0 // pred_fallthru
    _
  // Predicated region
  $region18: #{main_forward.115} parent=0 // pred_check
    _
  $region19: #{main_forward.115} parent=0 // pred_check_branch
    %1844 = sbr.rel (0) target = $region21
  $region20: #{main_forward.115} parent=0 // pred_region
    _
  $region21: #{main_forward.115} parent=0 // pred_fallthru
    _

</llo_original>
